<compile_context>
chip_gen: v7x
topology: tpu7x:2x2x1
jax: 0.10.0
libtpu: 0.0.40
codegen_flags: <defaults>
</compile_context>

<pallas_src>
import functools

import jax
import jax.numpy as jnp
from jax.experimental import pallas as pl
from jax.experimental.pallas import tpu as pltpu

EPS = 1e-5


# ----------------------------- fused ResUnit kernel -----------------------------

def _resunit_kernel(x_ref, s1_ref, b1_ref, w1_ref, s2_ref, b2_ref, kdw_ref,
                    w3_ref, o_ref, ypad_ref, *, D, H, W):
    # x_ref:    (1, D, H, W, C)          f32
    # w1_ref:   (C, mid)                 bf16   (1x1x1 conv)
    # kdw_ref:  (27, mid)                f32    (depthwise taps, row = kd*9+kh*3+kw)
    # w3_ref:   (mid, C)                 bf16   (1x1x1 conv)
    # o_ref:    (1, D, H, W, 2C)         f32    ([x | y3] channel concat)
    # ypad_ref: (1, D+2, H+2, W, mid)    f32    VMEM halo scratch (D/H only)
    C = x_ref.shape[-1]
    mid = w1_ref.shape[-1]
    M = D * H * W

    x = x_ref[...]                                            # (1,D,H,W,C) f32

    # ---- stage 1: relu(bn1(x)) -> 1x1x1 conv (MXU) -> relu(bn2(.)) ----
    h = jnp.maximum(x.reshape(M, C) * s1_ref[...] + b1_ref[...], 0.0)
    y1 = jnp.dot(h.astype(jnp.bfloat16), w1_ref[...],
                 preferred_element_type=jnp.float32)          # (M, mid) f32 accum
    y1 = jnp.maximum(y1 * s2_ref[...] + b2_ref[...], 0.0)

    # ---- halo scratch: zero ONLY the 4 D/H faces (W is unpadded), then write ----
    # the interior.  Faces are O(surface); trailing (W, mid) dims stay aligned so
    # the interior store and every slab load below are plain vector accesses.
    zd = jnp.zeros((1, 1, H + 2, W, mid), jnp.float32)
    zh = jnp.zeros((1, D, 1, W, mid), jnp.float32)
    ypad_ref[:, 0:1, :, :, :] = zd
    ypad_ref[:, D + 1:D + 2, :, :, :] = zd
    ypad_ref[:, 1:D + 1, 0:1, :, :] = zh
    ypad_ref[:, 1:D + 1, H + 1:H + 2, :, :] = zh
    ypad_ref[:, 1:D + 1, 1:H + 1, :, :] = y1.reshape(1, D, H, W, mid)

    # ---- depthwise 3x3x3 conv (pad=1) ----
    # 9 aligned slab loads; per slab accumulate 3 partial sums (one per kw tap).
    # The W (sublane) shift is deferred to 2 shifts on the partial sums instead of
    # 27 masked, misaligned slices.
    kdw = kdw_ref[...]                                        # (27, mid), hoisted
    acc_m = acc_c = acc_p = None
    for kd in range(3):
        for kh in range(3):
            slab = ypad_ref[:, kd:kd + D, kh:kh + H, :, :]    # (1,D,H,W,mid) aligned
            t = (kd * 3 + kh) * 3
            if acc_m is None:                                 # seed with first tap
                acc_m = slab * kdw[t]
                acc_c = slab * kdw[t + 1]
                acc_p = slab * kdw[t + 2]
            else:
                acc_m = acc_m + slab * kdw[t]
                acc_c = acc_c + slab * kdw[t + 1]
                acc_p = acc_p + slab * kdw[t + 2]

    # y2[w] = acc_m[w-1] + acc_c[w] + acc_p[w+1], zero-padded outside [0, W).
    zcol = jnp.zeros((1, D, H, 1, mid), jnp.float32)
    left = jnp.concatenate([zcol, acc_m[:, :, :, :W - 1, :]], axis=3)
    right = jnp.concatenate([acc_p[:, :, :, 1:, :], zcol], axis=3)
    y2 = acc_c + left + right                                 # (1,D,H,W,mid)

    # ---- final 1x1x1 conv (MXU) + split channel-concat store ----
    y3 = jnp.dot(y2.reshape(M, mid).astype(jnp.bfloat16), w3_ref[...],
                 preferred_element_type=jnp.float32)          # (M, C) f32
    o_ref[:, :, :, :, 0:C] = x                                # passthrough half
    o_ref[:, :, :, :, C:2 * C] = y3.reshape(1, D, H, W, C)    # new channels


def res_unit_forward(x, p):
    N, D, H, W, C = x.shape
    mid = p["w1"].shape[1]
    s1, b1 = _fold_bn(p["bn1_gamma"], p["bn1_beta"], p["bn1_mean"], p["bn1_var"])
    s2, b2 = _fold_bn(p["bn2_gamma"], p["bn2_beta"], p["bn2_mean"], p["bn2_var"])
    # bf16 MXU operands with f32 accumulation.
    w1 = p["w1"].astype(jnp.bfloat16)
    w3 = p["w3"].astype(jnp.bfloat16)

    # VMEM budget: double-buffered in/out blocks + halo scratch + temporaries.
    blk_in = D * H * W * C * 4
    blk_out = D * H * W * 2 * C * 4
    scratch = (D + 2) * (H + 2) * W * mid * 4
    temps = D * H * W * (6 * mid + 2 * C) * 4
    weights = 2 * (2 * C * mid * 2 + 27 * mid * 4 + 2 * (C + mid) * 4)
    est = 2 * (blk_in + blk_out) + scratch + temps + weights
    vmem_limit = int(min(max(2 * est, 32 * 1024 * 1024), 64 * 1024 * 1024))

    kern = functools.partial(_resunit_kernel, D=D, H=H, W=W)
    return pl.pallas_call(
        kern,
        out_shape=jax.ShapeDtypeStruct((N, D, H, W, 2 * C), jnp.float32),
        grid=(N,),
        in_specs=[
            pl.BlockSpec((1, D, H, W, C), lambda n: (n, 0, 0, 0, 0)),
            pl.BlockSpec((1, C), lambda n: (0, 0)),
            pl.BlockSpec((1, C), lambda n: (0, 0)),
            pl.BlockSpec((C, mid), lambda n: (0, 0)),
            pl.BlockSpec((1, mid), lambda n: (0, 0)),
            pl.BlockSpec((1, mid), lambda n: (0, 0)),
            pl.BlockSpec((27, mid), lambda n: (0, 0)),
            pl.BlockSpec((mid, C), lambda n: (0, 0)),
        ],
        out_specs=pl.BlockSpec((1, D, H, W, 2 * C), lambda n: (n, 0, 0, 0, 0)),
        scratch_shapes=[pltpu.VMEM((1, D + 2, H + 2, W, mid), jnp.float32)],
        compiler_params=pltpu.CompilerParams(
            dimension_semantics=("parallel",),
            vmem_limit_bytes=vmem_limit),
    )(x, s1, b1, w1, s2, b2, p["w_dw"], w3)


def res_block_forward(x, params):
    for p in params:
        x = res_unit_forward(x, p)
    return x


# ----------------------------- parameters -----------------------------

def init_resunit_params(key, c_in, rate):
    mid = int(rate * c_in)
    ks = jax.random.split(key, 10)
    return {
        "bn1_gamma": 1.0 + 0.1 * jax.random.normal(ks[0], (c_in,), jnp.float32),
        "bn1_beta": 0.1 * jax.random.normal(ks[1], (c_in,), jnp.float32),
        "bn1_mean": 0.1 * jax.random.normal(ks[2], (c_in,), jnp.float32),
        "bn1_var": 0.5 + jax.nn.softplus(jax.random.normal(ks[3], (c_in,), jnp.float32)),
        # Conv3d(c_in -> mid, 1x1x1, bias=False), stored transposed to (c_in, mid)
        "w1": jax.random.normal(ks[4], (c_in, mid), jnp.float32) / jnp.sqrt(c_in),
        "bn2_gamma": 1.0 + 0.1 * jax.random.normal(ks[5], (mid,), jnp.float32),
        "bn2_beta": 0.1 * jax.random.normal(ks[6], (mid,), jnp.float32),
        "bn2_mean": 0.1 * jax.random.normal(ks[7], (mid,), jnp.float32),
        "bn2_var": 0.5 + jax.nn.softplus(jax.random.normal(ks[8], (mid,), jnp.float32)),
        # depthwise Conv3d(mid -> mid, 3x3x3, groups=mid, bias=False): (27, mid)
        "w_dw": 0.2 * jax.random.normal(ks[9], (27, mid), jnp.float32),
        # Conv3d(mid -> c_in, 1x1x1, bias=False), stored transposed to (mid, c_in)
        "w3": jax.random.normal(jax.random.fold_in(key, 99), (mid, c_in), jnp.float32)
        / jnp.sqrt(mid),
    }


def init_resblock_params(key, in_channels, rate, num_layer):
    params, c = [], in_channels
    for i in range(num_layer):
        params.append(init_resunit_params(jax.random.fold_in(key, i), c, rate))
        c *= 2
    return params


def _fold_bn(gamma, beta, mean, var):
    s = gamma / jnp.sqrt(var + EPS)
    b = beta - mean * s
    return s.reshape(1, -1), b.reshape(1, -1)


# ----------------------------- plain-JAX reference -----------------------------
# Mirrors the kernel math (bf16 matmul operands, f32 accumulation); the depthwise
# conv is computed the direct 27-tap way as an independent cross-check.

def ref_unit(x, p):
    N, D, H, W, C = x.shape
    s1, b1 = _fold_bn(p["bn1_gamma"], p["bn1_beta"], p["bn1_mean"], p["bn1_var"])
    s2, b2 = _fold_bn(p["bn2_gamma"], p["bn2_beta"], p["bn2_mean"], p["bn2_var"])
    h = jnp.maximum(x * s1[0] + b1[0], 0.0)
    y1 = jnp.einsum("ndhwc,cm->ndhwm", h.astype(jnp.bfloat16),
                    p["w1"].astype(jnp.bfloat16),
                    preferred_element_type=jnp.float32)
    y1 = jnp.maximum(y1 * s2[0] + b2[0], 0.0)
    yp = jnp.pad(y1, ((0, 0), (1, 1), (1, 1), (1, 1), (0, 0)))
    y2 = jnp.zeros_like(y1)
    for kd in range(3):
        for kh in range(3):
            for kw in range(3):
                y2 = y2 + yp[:, kd:kd + D, kh:kh + H, kw:kw + W, :] * p["w_dw"][kd * 9 + kh * 3 + kw]
    y3 = jnp.einsum("ndhwm,mc->ndhwc", y2.astype(jnp.bfloat16),
                    p["w3"].astype(jnp.bfloat16),
                    preferred_element_type=jnp.float32)
    return jnp.concatenate([x, y3], axis=-1)


def ref_block(x, params):
    for p in params:
        x = ref_unit(x, p)
    return x


# ----------------------------- main -----------------------------

if __name__ == "__main__":
    in_channels, rate, num_layer = 4, 2, 2
    N, C, D, H, W = 2, in_channels, 4, 8, 8          # PyTorch NCDHW shape (W=8 -> sublane-aligned)

    key = jax.random.PRNGKey(0)
    kx, kp = jax.random.split(key)
    x_ncdhw = jax.random.normal(kx, (N, C, D, H, W), jnp.float32)
    x = jnp.transpose(x_ncdhw, (0, 2, 3, 4, 1))      # -> NDHWC

    params = init_resblock_params(kp, in_channels, rate, num_layer)

    out = jax.jit(lambda a: res_block_forward(a, params))(x)
    out = jax.block_until_ready(out)

    expected_c = in_channels * (2 ** num_layer)
    assert out.shape == (N, D, H, W, expected_c), out.shape

    ref = jax.block_until_ready(ref_block(x, params))
    err = float(jnp.max(jnp.abs(out - ref)))
    assert jnp.allclose(out, ref, rtol=1e-2, atol=1e-2), err

    print("KERNEL_OK")
</pallas_src>

<mosaic_0001>
module attributes {stable_mosaic.version = 11 : i64} {
  func.func @_resunit_kernel(%arg0: i32, %arg1: memref<1x4x8x8x4xf32, #tpu.memory_space<vmem>>, %arg2: memref<1x4xf32, #tpu.memory_space<vmem>>, %arg3: memref<1x4xf32, #tpu.memory_space<vmem>>, %arg4: memref<4x8xbf16, #tpu.memory_space<vmem>>, %arg5: memref<1x8xf32, #tpu.memory_space<vmem>>, %arg6: memref<1x8xf32, #tpu.memory_space<vmem>>, %arg7: memref<27x8xf32, #tpu.memory_space<vmem>>, %arg8: memref<8x4xbf16, #tpu.memory_space<vmem>>, %arg9: memref<1x4x8x8x8xf32, #tpu.memory_space<vmem>>, %arg10: memref<1x6x10x8x8xf32, #tpu.memory_space<vmem>>) attributes {dimension_semantics = [#tpu.dimension_semantics<parallel>], iteration_bounds = array<i64: 2>, scalar_prefetch = 0 : i64, scratch_operands = 1 : i64, tpu.core_type = #tpu.core_type<tc>, window_params = [{transform_indices = @transform_0, window_bounds = array<i64: 1, 4, 8, 8, 4>}, {pipeline_mode = #tpu.pipeline_mode<synchronous>, transform_indices = @transform_1, window_bounds = array<i64: 1, 4>}, {pipeline_mode = #tpu.pipeline_mode<synchronous>, transform_indices = @transform_2, window_bounds = array<i64: 1, 4>}, {pipeline_mode = #tpu.pipeline_mode<synchronous>, transform_indices = @transform_3, window_bounds = array<i64: 4, 8>}, {pipeline_mode = #tpu.pipeline_mode<synchronous>, transform_indices = @transform_4, window_bounds = array<i64: 1, 8>}, {pipeline_mode = #tpu.pipeline_mode<synchronous>, transform_indices = @transform_5, window_bounds = array<i64: 1, 8>}, {pipeline_mode = #tpu.pipeline_mode<synchronous>, transform_indices = @transform_6, window_bounds = array<i64: 27, 8>}, {pipeline_mode = #tpu.pipeline_mode<synchronous>, transform_indices = @transform_7, window_bounds = array<i64: 8, 4>}, {transform_indices = @transform_8, window_bounds = array<i64: 1, 4, 8, 8, 8>}]} {
    %c0 = arith.constant 0 : index
    %c0_0 = arith.constant 0 : index
    %c0_1 = arith.constant 0 : index
    %c0_2 = arith.constant 0 : index
    %c0_3 = arith.constant 0 : index
    %0 = vector.load %arg1[%c0, %c0_0, %c0_1, %c0_2, %c0_3] : memref<1x4x8x8x4xf32, #tpu.memory_space<vmem>>, vector<1x4x8x8x4xf32>
    %1 = vector.shape_cast %0 : vector<1x4x8x8x4xf32> to vector<256x4xf32>
    %c0_4 = arith.constant 0 : index
    %c0_5 = arith.constant 0 : index
    %2 = vector.load %arg2[%c0_4, %c0_5] : memref<1x4xf32, #tpu.memory_space<vmem>>, vector<1x4xf32>
    %3 = vector.broadcast %2 : vector<1x4xf32> to vector<256x4xf32>
    %4 = arith.mulf %1, %3 : vector<256x4xf32>
    %c0_6 = arith.constant 0 : index
    %c0_7 = arith.constant 0 : index
    %5 = vector.load %arg3[%c0_6, %c0_7] : memref<1x4xf32, #tpu.memory_space<vmem>>, vector<1x4xf32>
    %6 = vector.broadcast %5 : vector<1x4xf32> to vector<256x4xf32>
    %7 = arith.addf %4, %6 : vector<256x4xf32>
    %cst = arith.constant 0.000000e+00 : f32
    %8 = vector.broadcast %cst : f32 to vector<256x4xf32>
    %9 = arith.maximumf %7, %8 : vector<256x4xf32>
    %10 = arith.truncf %9 : vector<256x4xf32> to vector<256x4xbf16>
    %c0_8 = arith.constant 0 : index
    %c0_9 = arith.constant 0 : index
    %11 = vector.load %arg4[%c0_8, %c0_9] : memref<4x8xbf16, #tpu.memory_space<vmem>>, vector<4x8xbf16>
    %cst_10 = arith.constant dense<0.000000e+00> : vector<256x8xf32>
    %12 = tpu.matmul %10, %11, %cst_10 {dimension_numbers = #tpu.dot_dimension_numbers<[1], [0], [0], [1], [0, 0, 1, 1], [], []>} : vector<256x4xbf16>, vector<4x8xbf16>, vector<256x8xf32> -> vector<256x8xf32>
    %c0_11 = arith.constant 0 : index
    %c0_12 = arith.constant 0 : index
    %13 = vector.load %arg5[%c0_11, %c0_12] : memref<1x8xf32, #tpu.memory_space<vmem>>, vector<1x8xf32>
    %14 = vector.broadcast %13 : vector<1x8xf32> to vector<256x8xf32>
    %15 = arith.mulf %12, %14 : vector<256x8xf32>
    %c0_13 = arith.constant 0 : index
    %c0_14 = arith.constant 0 : index
    %16 = vector.load %arg6[%c0_13, %c0_14] : memref<1x8xf32, #tpu.memory_space<vmem>>, vector<1x8xf32>
    %17 = vector.broadcast %16 : vector<1x8xf32> to vector<256x8xf32>
    %18 = arith.addf %15, %17 : vector<256x8xf32>
    %cst_15 = arith.constant 0.000000e+00 : f32
    %19 = vector.broadcast %cst_15 : f32 to vector<256x8xf32>
    %20 = arith.maximumf %18, %19 : vector<256x8xf32>
    %cst_16 = arith.constant 0.000000e+00 : f32
    %21 = vector.broadcast %cst_16 : f32 to vector<1x1x10x8x8xf32>
    %cst_17 = arith.constant 0.000000e+00 : f32
    %22 = vector.broadcast %cst_17 : f32 to vector<1x4x1x8x8xf32>
    %c0_18 = arith.constant 0 : index
    %c0_19 = arith.constant 0 : index
    %c0_20 = arith.constant 0 : index
    %c0_21 = arith.constant 0 : index
    %c0_22 = arith.constant 0 : index
    %23 = vector.load %arg10[%c0_18, %c0_19, %c0_20, %c0_21, %c0_22] : memref<1x6x10x8x8xf32, #tpu.memory_space<vmem>>, vector<1x1x10x8x8xf32>
    tpu.vector_store %arg10[%c0_18, %c0_19, %c0_20, %c0_21, %c0_22], %21 {strides = array<i32>} : memref<1x6x10x8x8xf32, #tpu.memory_space<vmem>>, vector<1x1x10x8x8xf32>,
    %c0_23 = arith.constant 0 : index
    %c5 = arith.constant 5 : index
    %c0_24 = arith.constant 0 : index
    %c0_25 = arith.constant 0 : index
    %c0_26 = arith.constant 0 : index
    %24 = vector.load %arg10[%c0_23, %c5, %c0_24, %c0_25, %c0_26] : memref<1x6x10x8x8xf32, #tpu.memory_space<vmem>>, vector<1x1x10x8x8xf32>
    tpu.vector_store %arg10[%c0_23, %c5, %c0_24, %c0_25, %c0_26], %21 {strides = array<i32>} : memref<1x6x10x8x8xf32, #tpu.memory_space<vmem>>, vector<1x1x10x8x8xf32>,
    %c0_27 = arith.constant 0 : index
    %c1 = arith.constant 1 : index
    %c0_28 = arith.constant 0 : index
    %c0_29 = arith.constant 0 : index
    %c0_30 = arith.constant 0 : index
    %25 = vector.load %arg10[%c0_27, %c1, %c0_28, %c0_29, %c0_30] : memref<1x6x10x8x8xf32, #tpu.memory_space<vmem>>, vector<1x4x1x8x8xf32>
    tpu.vector_store %arg10[%c0_27, %c1, %c0_28, %c0_29, %c0_30], %22 {strides = array<i32>} : memref<1x6x10x8x8xf32, #tpu.memory_space<vmem>>, vector<1x4x1x8x8xf32>,
    %c0_31 = arith.constant 0 : index
    %c1_32 = arith.constant 1 : index
    %c9 = arith.constant 9 : index
    %c0_33 = arith.constant 0 : index
    %c0_34 = arith.constant 0 : index
    %26 = vector.load %arg10[%c0_31, %c1_32, %c9, %c0_33, %c0_34] : memref<1x6x10x8x8xf32, #tpu.memory_space<vmem>>, vector<1x4x1x8x8xf32>
    tpu.vector_store %arg10[%c0_31, %c1_32, %c9, %c0_33, %c0_34], %22 {strides = array<i32>} : memref<1x6x10x8x8xf32, #tpu.memory_space<vmem>>, vector<1x4x1x8x8xf32>,
    %27 = vector.shape_cast %20 : vector<256x8xf32> to vector<1x4x8x8x8xf32>
    %c0_35 = arith.constant 0 : index
    %c1_36 = arith.constant 1 : index
    %c1_37 = arith.constant 1 : index
    %c0_38 = arith.constant 0 : index
    %c0_39 = arith.constant 0 : index
    %28 = vector.load %arg10[%c0_35, %c1_36, %c1_37, %c0_38, %c0_39] : memref<1x6x10x8x8xf32, #tpu.memory_space<vmem>>, vector<1x4x8x8x8xf32>
    tpu.vector_store %arg10[%c0_35, %c1_36, %c1_37, %c0_38, %c0_39], %27 {strides = array<i32>} : memref<1x6x10x8x8xf32, #tpu.memory_space<vmem>>, vector<1x4x8x8x8xf32>,
    %c0_40 = arith.constant 0 : index
    %c0_41 = arith.constant 0 : index
    %29 = vector.load %arg7[%c0_40, %c0_41] : memref<27x8xf32, #tpu.memory_space<vmem>>, vector<27x8xf32>
    %c0_42 = arith.constant 0 : index
    %c0_43 = arith.constant 0 : index
    %c0_44 = arith.constant 0 : index
    %c0_45 = arith.constant 0 : index
    %c0_46 = arith.constant 0 : index
    %30 = vector.load %arg10[%c0_42, %c0_43, %c0_44, %c0_45, %c0_46] : memref<1x6x10x8x8xf32, #tpu.memory_space<vmem>>, vector<1x4x8x8x8xf32>
    %31 = vector.extract_strided_slice %29 {offsets = [0, 0], sizes = [1, 8], strides = [1, 1]} : vector<27x8xf32> to vector<1x8xf32>
    %32 = vector.shape_cast %31 : vector<1x8xf32> to vector<8xf32>
    %33 = vector.shape_cast %32 : vector<8xf32> to vector<1x1x1x1x8xf32>
    %34 = vector.broadcast %33 : vector<1x1x1x1x8xf32> to vector<1x4x8x8x8xf32>
    %35 = arith.mulf %30, %34 : vector<1x4x8x8x8xf32>
    %36 = vector.extract_strided_slice %29 {offsets = [1, 0], sizes = [1, 8], strides = [1, 1]} : vector<27x8xf32> to vector<1x8xf32>
    %37 = vector.shape_cast %36 : vector<1x8xf32> to vector<8xf32>
    %38 = vector.shape_cast %37 : vector<8xf32> to vector<1x1x1x1x8xf32>
    %39 = vector.broadcast %38 : vector<1x1x1x1x8xf32> to vector<1x4x8x8x8xf32>
    %40 = arith.mulf %30, %39 : vector<1x4x8x8x8xf32>
    %41 = vector.extract_strided_slice %29 {offsets = [2, 0], sizes = [1, 8], strides = [1, 1]} : vector<27x8xf32> to vector<1x8xf32>
    %42 = vector.shape_cast %41 : vector<1x8xf32> to vector<8xf32>
    %43 = vector.shape_cast %42 : vector<8xf32> to vector<1x1x1x1x8xf32>
    %44 = vector.broadcast %43 : vector<1x1x1x1x8xf32> to vector<1x4x8x8x8xf32>
    %45 = arith.mulf %30, %44 : vector<1x4x8x8x8xf32>
    %c0_47 = arith.constant 0 : index
    %c0_48 = arith.constant 0 : index
    %c1_49 = arith.constant 1 : index
    %c0_50 = arith.constant 0 : index
    %c0_51 = arith.constant 0 : index
    %46 = vector.load %arg10[%c0_47, %c0_48, %c1_49, %c0_50, %c0_51] : memref<1x6x10x8x8xf32, #tpu.memory_space<vmem>>, vector<1x4x8x8x8xf32>
    %47 = vector.extract_strided_slice %29 {offsets = [3, 0], sizes = [1, 8], strides = [1, 1]} : vector<27x8xf32> to vector<1x8xf32>
    %48 = vector.shape_cast %47 : vector<1x8xf32> to vector<8xf32>
    %49 = vector.shape_cast %48 : vector<8xf32> to vector<1x1x1x1x8xf32>
    %50 = vector.broadcast %49 : vector<1x1x1x1x8xf32> to vector<1x4x8x8x8xf32>
    %51 = arith.mulf %46, %50 : vector<1x4x8x8x8xf32>
    %52 = arith.addf %35, %51 : vector<1x4x8x8x8xf32>
    %53 = vector.extract_strided_slice %29 {offsets = [4, 0], sizes = [1, 8], strides = [1, 1]} : vector<27x8xf32> to vector<1x8xf32>
    %54 = vector.shape_cast %53 : vector<1x8xf32> to vector<8xf32>
    %55 = vector.shape_cast %54 : vector<8xf32> to vector<1x1x1x1x8xf32>
    %56 = vector.broadcast %55 : vector<1x1x1x1x8xf32> to vector<1x4x8x8x8xf32>
    %57 = arith.mulf %46, %56 : vector<1x4x8x8x8xf32>
    %58 = arith.addf %40, %57 : vector<1x4x8x8x8xf32>
    %59 = vector.extract_strided_slice %29 {offsets = [5, 0], sizes = [1, 8], strides = [1, 1]} : vector<27x8xf32> to vector<1x8xf32>
    %60 = vector.shape_cast %59 : vector<1x8xf32> to vector<8xf32>
    %61 = vector.shape_cast %60 : vector<8xf32> to vector<1x1x1x1x8xf32>
    %62 = vector.broadcast %61 : vector<1x1x1x1x8xf32> to vector<1x4x8x8x8xf32>
    %63 = arith.mulf %46, %62 : vector<1x4x8x8x8xf32>
    %64 = arith.addf %45, %63 : vector<1x4x8x8x8xf32>
    %c0_52 = arith.constant 0 : index
    %c0_53 = arith.constant 0 : index
    %c2 = arith.constant 2 : index
    %c0_54 = arith.constant 0 : index
    %c0_55 = arith.constant 0 : index
    %65 = vector.load %arg10[%c0_52, %c0_53, %c2, %c0_54, %c0_55] : memref<1x6x10x8x8xf32, #tpu.memory_space<vmem>>, vector<1x4x8x8x8xf32>
    %66 = vector.extract_strided_slice %29 {offsets = [6, 0], sizes = [1, 8], strides = [1, 1]} : vector<27x8xf32> to vector<1x8xf32>
    %67 = vector.shape_cast %66 : vector<1x8xf32> to vector<8xf32>
    %68 = vector.shape_cast %67 : vector<8xf32> to vector<1x1x1x1x8xf32>
    %69 = vector.broadcast %68 : vector<1x1x1x1x8xf32> to vector<1x4x8x8x8xf32>
    %70 = arith.mulf %65, %69 : vector<1x4x8x8x8xf32>
    %71 = arith.addf %52, %70 : vector<1x4x8x8x8xf32>
    %72 = vector.extract_strided_slice %29 {offsets = [7, 0], sizes = [1, 8], strides = [1, 1]} : vector<27x8xf32> to vector<1x8xf32>
    %73 = vector.shape_cast %72 : vector<1x8xf32> to vector<8xf32>
    %74 = vector.shape_cast %73 : vector<8xf32> to vector<1x1x1x1x8xf32>
    %75 = vector.broadcast %74 : vector<1x1x1x1x8xf32> to vector<1x4x8x8x8xf32>
    %76 = arith.mulf %65, %75 : vector<1x4x8x8x8xf32>
    %77 = arith.addf %58, %76 : vector<1x4x8x8x8xf32>
    %78 = vector.extract_strided_slice %29 {offsets = [8, 0], sizes = [1, 8], strides = [1, 1]} : vector<27x8xf32> to vector<1x8xf32>
    %79 = vector.shape_cast %78 : vector<1x8xf32> to vector<8xf32>
    %80 = vector.shape_cast %79 : vector<8xf32> to vector<1x1x1x1x8xf32>
    %81 = vector.broadcast %80 : vector<1x1x1x1x8xf32> to vector<1x4x8x8x8xf32>
    %82 = arith.mulf %65, %81 : vector<1x4x8x8x8xf32>
    %83 = arith.addf %64, %82 : vector<1x4x8x8x8xf32>
    %c0_56 = arith.constant 0 : index
    %c1_57 = arith.constant 1 : index
    %c0_58 = arith.constant 0 : index
    %c0_59 = arith.constant 0 : index
    %c0_60 = arith.constant 0 : index
    %84 = vector.load %arg10[%c0_56, %c1_57, %c0_58, %c0_59, %c0_60] : memref<1x6x10x8x8xf32, #tpu.memory_space<vmem>>, vector<1x4x8x8x8xf32>
    %85 = vector.extract_strided_slice %29 {offsets = [9, 0], sizes = [1, 8], strides = [1, 1]} : vector<27x8xf32> to vector<1x8xf32>
    %86 = vector.shape_cast %85 : vector<1x8xf32> to vector<8xf32>
    %87 = vector.shape_cast %86 : vector<8xf32> to vector<1x1x1x1x8xf32>
    %88 = vector.broadcast %87 : vector<1x1x1x1x8xf32> to vector<1x4x8x8x8xf32>
    %89 = arith.mulf %84, %88 : vector<1x4x8x8x8xf32>
    %90 = arith.addf %71, %89 : vector<1x4x8x8x8xf32>
    %91 = vector.extract_strided_slice %29 {offsets = [10, 0], sizes = [1, 8], strides = [1, 1]} : vector<27x8xf32> to vector<1x8xf32>
    %92 = vector.shape_cast %91 : vector<1x8xf32> to vector<8xf32>
    %93 = vector.shape_cast %92 : vector<8xf32> to vector<1x1x1x1x8xf32>
    %94 = vector.broadcast %93 : vector<1x1x1x1x8xf32> to vector<1x4x8x8x8xf32>
    %95 = arith.mulf %84, %94 : vector<1x4x8x8x8xf32>
    %96 = arith.addf %77, %95 : vector<1x4x8x8x8xf32>
    %97 = vector.extract_strided_slice %29 {offsets = [11, 0], sizes = [1, 8], strides = [1, 1]} : vector<27x8xf32> to vector<1x8xf32>
    %98 = vector.shape_cast %97 : vector<1x8xf32> to vector<8xf32>
    %99 = vector.shape_cast %98 : vector<8xf32> to vector<1x1x1x1x8xf32>
    %100 = vector.broadcast %99 : vector<1x1x1x1x8xf32> to vector<1x4x8x8x8xf32>
    %101 = arith.mulf %84, %100 : vector<1x4x8x8x8xf32>
    %102 = arith.addf %83, %101 : vector<1x4x8x8x8xf32>
    %c0_61 = arith.constant 0 : index
    %c1_62 = arith.constant 1 : index
    %c1_63 = arith.constant 1 : index
    %c0_64 = arith.constant 0 : index
    %c0_65 = arith.constant 0 : index
    %103 = vector.load %arg10[%c0_61, %c1_62, %c1_63, %c0_64, %c0_65] : memref<1x6x10x8x8xf32, #tpu.memory_space<vmem>>, vector<1x4x8x8x8xf32>
    %104 = vector.extract_strided_slice %29 {offsets = [12, 0], sizes = [1, 8], strides = [1, 1]} : vector<27x8xf32> to vector<1x8xf32>
    %105 = vector.shape_cast %104 : vector<1x8xf32> to vector<8xf32>
    %106 = vector.shape_cast %105 : vector<8xf32> to vector<1x1x1x1x8xf32>
    %107 = vector.broadcast %106 : vector<1x1x1x1x8xf32> to vector<1x4x8x8x8xf32>
    %108 = arith.mulf %103, %107 : vector<1x4x8x8x8xf32>
    %109 = arith.addf %90, %108 : vector<1x4x8x8x8xf32>
    %110 = vector.extract_strided_slice %29 {offsets = [13, 0], sizes = [1, 8], strides = [1, 1]} : vector<27x8xf32> to vector<1x8xf32>
    %111 = vector.shape_cast %110 : vector<1x8xf32> to vector<8xf32>
    %112 = vector.shape_cast %111 : vector<8xf32> to vector<1x1x1x1x8xf32>
    %113 = vector.broadcast %112 : vector<1x1x1x1x8xf32> to vector<1x4x8x8x8xf32>
    %114 = arith.mulf %103, %113 : vector<1x4x8x8x8xf32>
    %115 = arith.addf %96, %114 : vector<1x4x8x8x8xf32>
    %116 = vector.extract_strided_slice %29 {offsets = [14, 0], sizes = [1, 8], strides = [1, 1]} : vector<27x8xf32> to vector<1x8xf32>
    %117 = vector.shape_cast %116 : vector<1x8xf32> to vector<8xf32>
    %118 = vector.shape_cast %117 : vector<8xf32> to vector<1x1x1x1x8xf32>
    %119 = vector.broadcast %118 : vector<1x1x1x1x8xf32> to vector<1x4x8x8x8xf32>
    %120 = arith.mulf %103, %119 : vector<1x4x8x8x8xf32>
    %121 = arith.addf %102, %120 : vector<1x4x8x8x8xf32>
    %c0_66 = arith.constant 0 : index
    %c1_67 = arith.constant 1 : index
    %c2_68 = arith.constant 2 : index
    %c0_69 = arith.constant 0 : index
    %c0_70 = arith.constant 0 : index
    %122 = vector.load %arg10[%c0_66, %c1_67, %c2_68, %c0_69, %c0_70] : memref<1x6x10x8x8xf32, #tpu.memory_space<vmem>>, vector<1x4x8x8x8xf32>
    %123 = vector.extract_strided_slice %29 {offsets = [15, 0], sizes = [1, 8], strides = [1, 1]} : vector<27x8xf32> to vector<1x8xf32>
    %124 = vector.shape_cast %123 : vector<1x8xf32> to vector<8xf32>
    %125 = vector.shape_cast %124 : vector<8xf32> to vector<1x1x1x1x8xf32>
    %126 = vector.broadcast %125 : vector<1x1x1x1x8xf32> to vector<1x4x8x8x8xf32>
    %127 = arith.mulf %122, %126 : vector<1x4x8x8x8xf32>
    %128 = arith.addf %109, %127 : vector<1x4x8x8x8xf32>
    %129 = vector.extract_strided_slice %29 {offsets = [16, 0], sizes = [1, 8], strides = [1, 1]} : vector<27x8xf32> to vector<1x8xf32>
    %130 = vector.shape_cast %129 : vector<1x8xf32> to vector<8xf32>
    %131 = vector.shape_cast %130 : vector<8xf32> to vector<1x1x1x1x8xf32>
    %132 = vector.broadcast %131 : vector<1x1x1x1x8xf32> to vector<1x4x8x8x8xf32>
    %133 = arith.mulf %122, %132 : vector<1x4x8x8x8xf32>
    %134 = arith.addf %115, %133 : vector<1x4x8x8x8xf32>
    %135 = vector.extract_strided_slice %29 {offsets = [17, 0], sizes = [1, 8], strides = [1, 1]} : vector<27x8xf32> to vector<1x8xf32>
    %136 = vector.shape_cast %135 : vector<1x8xf32> to vector<8xf32>
    %137 = vector.shape_cast %136 : vector<8xf32> to vector<1x1x1x1x8xf32>
    %138 = vector.broadcast %137 : vector<1x1x1x1x8xf32> to vector<1x4x8x8x8xf32>
    %139 = arith.mulf %122, %138 : vector<1x4x8x8x8xf32>
    %140 = arith.addf %121, %139 : vector<1x4x8x8x8xf32>
    %c0_71 = arith.constant 0 : index
    %c2_72 = arith.constant 2 : index
    %c0_73 = arith.constant 0 : index
    %c0_74 = arith.constant 0 : index
    %c0_75 = arith.constant 0 : index
    %141 = vector.load %arg10[%c0_71, %c2_72, %c0_73, %c0_74, %c0_75] : memref<1x6x10x8x8xf32, #tpu.memory_space<vmem>>, vector<1x4x8x8x8xf32>
    %142 = vector.extract_strided_slice %29 {offsets = [18, 0], sizes = [1, 8], strides = [1, 1]} : vector<27x8xf32> to vector<1x8xf32>
    %143 = vector.shape_cast %142 : vector<1x8xf32> to vector<8xf32>
    %144 = vector.shape_cast %143 : vector<8xf32> to vector<1x1x1x1x8xf32>
    %145 = vector.broadcast %144 : vector<1x1x1x1x8xf32> to vector<1x4x8x8x8xf32>
    %146 = arith.mulf %141, %145 : vector<1x4x8x8x8xf32>
    %147 = arith.addf %128, %146 : vector<1x4x8x8x8xf32>
    %148 = vector.extract_strided_slice %29 {offsets = [19, 0], sizes = [1, 8], strides = [1, 1]} : vector<27x8xf32> to vector<1x8xf32>
    %149 = vector.shape_cast %148 : vector<1x8xf32> to vector<8xf32>
    %150 = vector.shape_cast %149 : vector<8xf32> to vector<1x1x1x1x8xf32>
    %151 = vector.broadcast %150 : vector<1x1x1x1x8xf32> to vector<1x4x8x8x8xf32>
    %152 = arith.mulf %141, %151 : vector<1x4x8x8x8xf32>
    %153 = arith.addf %134, %152 : vector<1x4x8x8x8xf32>
    %154 = vector.extract_strided_slice %29 {offsets = [20, 0], sizes = [1, 8], strides = [1, 1]} : vector<27x8xf32> to vector<1x8xf32>
    %155 = vector.shape_cast %154 : vector<1x8xf32> to vector<8xf32>
    %156 = vector.shape_cast %155 : vector<8xf32> to vector<1x1x1x1x8xf32>
    %157 = vector.broadcast %156 : vector<1x1x1x1x8xf32> to vector<1x4x8x8x8xf32>
    %158 = arith.mulf %141, %157 : vector<1x4x8x8x8xf32>
    %159 = arith.addf %140, %158 : vector<1x4x8x8x8xf32>
    %c0_76 = arith.constant 0 : index
    %c2_77 = arith.constant 2 : index
    %c1_78 = arith.constant 1 : index
    %c0_79 = arith.constant 0 : index
    %c0_80 = arith.constant 0 : index
    %160 = vector.load %arg10[%c0_76, %c2_77, %c1_78, %c0_79, %c0_80] : memref<1x6x10x8x8xf32, #tpu.memory_space<vmem>>, vector<1x4x8x8x8xf32>
    %161 = vector.extract_strided_slice %29 {offsets = [21, 0], sizes = [1, 8], strides = [1, 1]} : vector<27x8xf32> to vector<1x8xf32>
    %162 = vector.shape_cast %161 : vector<1x8xf32> to vector<8xf32>
    %163 = vector.shape_cast %162 : vector<8xf32> to vector<1x1x1x1x8xf32>
    %164 = vector.broadcast %163 : vector<1x1x1x1x8xf32> to vector<1x4x8x8x8xf32>
    %165 = arith.mulf %160, %164 : vector<1x4x8x8x8xf32>
    %166 = arith.addf %147, %165 : vector<1x4x8x8x8xf32>
    %167 = vector.extract_strided_slice %29 {offsets = [22, 0], sizes = [1, 8], strides = [1, 1]} : vector<27x8xf32> to vector<1x8xf32>
    %168 = vector.shape_cast %167 : vector<1x8xf32> to vector<8xf32>
    %169 = vector.shape_cast %168 : vector<8xf32> to vector<1x1x1x1x8xf32>
    %170 = vector.broadcast %169 : vector<1x1x1x1x8xf32> to vector<1x4x8x8x8xf32>
    %171 = arith.mulf %160, %170 : vector<1x4x8x8x8xf32>
    %172 = arith.addf %153, %171 : vector<1x4x8x8x8xf32>
    %173 = vector.extract_strided_slice %29 {offsets = [23, 0], sizes = [1, 8], strides = [1, 1]} : vector<27x8xf32> to vector<1x8xf32>
    %174 = vector.shape_cast %173 : vector<1x8xf32> to vector<8xf32>
    %175 = vector.shape_cast %174 : vector<8xf32> to vector<1x1x1x1x8xf32>
    %176 = vector.broadcast %175 : vector<1x1x1x1x8xf32> to vector<1x4x8x8x8xf32>
    %177 = arith.mulf %160, %176 : vector<1x4x8x8x8xf32>
    %178 = arith.addf %159, %177 : vector<1x4x8x8x8xf32>
    %c0_81 = arith.constant 0 : index
    %c2_82 = arith.constant 2 : index
    %c2_83 = arith.constant 2 : index
    %c0_84 = arith.constant 0 : index
    %c0_85 = arith.constant 0 : index
    %179 = vector.load %arg10[%c0_81, %c2_82, %c2_83, %c0_84, %c0_85] : memref<1x6x10x8x8xf32, #tpu.memory_space<vmem>>, vector<1x4x8x8x8xf32>
    %180 = vector.extract_strided_slice %29 {offsets = [24, 0], sizes = [1, 8], strides = [1, 1]} : vector<27x8xf32> to vector<1x8xf32>
    %181 = vector.shape_cast %180 : vector<1x8xf32> to vector<8xf32>
    %182 = vector.shape_cast %181 : vector<8xf32> to vector<1x1x1x1x8xf32>
    %183 = vector.broadcast %182 : vector<1x1x1x1x8xf32> to vector<1x4x8x8x8xf32>
    %184 = arith.mulf %179, %183 : vector<1x4x8x8x8xf32>
    %185 = arith.addf %166, %184 : vector<1x4x8x8x8xf32>
    %186 = vector.extract_strided_slice %29 {offsets = [25, 0], sizes = [1, 8], strides = [1, 1]} : vector<27x8xf32> to vector<1x8xf32>
    %187 = vector.shape_cast %186 : vector<1x8xf32> to vector<8xf32>
    %188 = vector.shape_cast %187 : vector<8xf32> to vector<1x1x1x1x8xf32>
    %189 = vector.broadcast %188 : vector<1x1x1x1x8xf32> to vector<1x4x8x8x8xf32>
    %190 = arith.mulf %179, %189 : vector<1x4x8x8x8xf32>
    %191 = arith.addf %172, %190 : vector<1x4x8x8x8xf32>
    %192 = vector.extract_strided_slice %29 {offsets = [26, 0], sizes = [1, 8], strides = [1, 1]} : vector<27x8xf32> to vector<1x8xf32>
    %193 = vector.shape_cast %192 : vector<1x8xf32> to vector<8xf32>
    %194 = vector.shape_cast %193 : vector<8xf32> to vector<1x1x1x1x8xf32>
    %195 = vector.broadcast %194 : vector<1x1x1x1x8xf32> to vector<1x4x8x8x8xf32>
    %196 = arith.mulf %179, %195 : vector<1x4x8x8x8xf32>
    %197 = arith.addf %178, %196 : vector<1x4x8x8x8xf32>
    %cst_86 = arith.constant 0.000000e+00 : f32
    %198 = vector.broadcast %cst_86 : f32 to vector<1x4x8x1x8xf32>
    %199 = vector.extract_strided_slice %185 {offsets = [0, 0, 0, 0, 0], sizes = [1, 4, 8, 7, 8], strides = [1, 1, 1, 1, 1]} : vector<1x4x8x8x8xf32> to vector<1x4x8x7x8xf32>
    %200 = tpu.concatenate %198, %199 in 3 : vector<1x4x8x1x8xf32>, vector<1x4x8x7x8xf32> -> vector<1x4x8x8x8xf32>
    %201 = vector.extract_strided_slice %197 {offsets = [0, 0, 0, 1, 0], sizes = [1, 4, 8, 7, 8], strides = [1, 1, 1, 1, 1]} : vector<1x4x8x8x8xf32> to vector<1x4x8x7x8xf32>
    %202 = tpu.concatenate %201, %198 in 3 : vector<1x4x8x7x8xf32>, vector<1x4x8x1x8xf32> -> vector<1x4x8x8x8xf32>
    %203 = arith.addf %191, %200 : vector<1x4x8x8x8xf32>
    %204 = arith.addf %203, %202 : vector<1x4x8x8x8xf32>
    %205 = vector.shape_cast %204 : vector<1x4x8x8x8xf32> to vector<256x8xf32>
    %206 = arith.truncf %205 : vector<256x8xf32> to vector<256x8xbf16>
    %c0_87 = arith.constant 0 : index
    %c0_88 = arith.constant 0 : index
    %207 = vector.load %arg8[%c0_87, %c0_88] : memref<8x4xbf16, #tpu.memory_space<vmem>>, vector<8x4xbf16>
    %cst_89 = arith.constant dense<0.000000e+00> : vector<256x4xf32>
    %208 = tpu.matmul %206, %207, %cst_89 {dimension_numbers = #tpu.dot_dimension_numbers<[1], [0], [0], [1], [0, 0, 1, 1], [], []>} : vector<256x8xbf16>, vector<8x4xbf16>, vector<256x4xf32> -> vector<256x4xf32>
    %c0_90 = arith.constant 0 : index
    %c0_91 = arith.constant 0 : index
    %c0_92 = arith.constant 0 : index
    %c0_93 = arith.constant 0 : index
    %c0_94 = arith.constant 0 : index
    %209 = vector.load %arg9[%c0_90, %c0_91, %c0_92, %c0_93, %c0_94] : memref<1x4x8x8x8xf32, #tpu.memory_space<vmem>>, vector<1x4x8x8x4xf32>
    tpu.vector_store %arg9[%c0_90, %c0_91, %c0_92, %c0_93, %c0_94], %0 {strides = array<i32>} : memref<1x4x8x8x8xf32, #tpu.memory_space<vmem>>, vector<1x4x8x8x4xf32>,
    %210 = vector.shape_cast %208 : vector<256x4xf32> to vector<1x4x8x8x4xf32>
    %c0_95 = arith.constant 0 : index
    %c0_96 = arith.constant 0 : index
    %c0_97 = arith.constant 0 : index
    %c0_98 = arith.constant 0 : index
    %c4 = arith.constant 4 : index
    %211 = vector.load %arg9[%c0_95, %c0_96, %c0_97, %c0_98, %c4] : memref<1x4x8x8x8xf32, #tpu.memory_space<vmem>>, vector<1x4x8x8x4xf32>
    tpu.vector_store %arg9[%c0_95, %c0_96, %c0_97, %c0_98, %c4], %210 {strides = array<i32>} : memref<1x4x8x8x8xf32, #tpu.memory_space<vmem>>, vector<1x4x8x8x4xf32>,
    return
  }
  func.func @transform_0(%arg0: i32) -> (i32, i32, i32, i32, i32) {
    %c0_i32 = arith.constant 0 : i32
    %c0_i32_0 = arith.constant 0 : i32
    %c0_i32_1 = arith.constant 0 : i32
    %c0_i32_2 = arith.constant 0 : i32
    %c0_i32_3 = arith.constant 0 : i32
    return %arg0, %c0_i32, %c0_i32_0, %c0_i32_1, %c0_i32_2 : i32, i32, i32, i32, i32
  }
  func.func @transform_1(%arg0: i32) -> (i32, i32) {
    %c0_i32 = arith.constant 0 : i32
    %c0_i32_0 = arith.constant 0 : i32
    %c0_i32_1 = arith.constant 0 : i32
    return %c0_i32, %c0_i32_0 : i32, i32
  }
  func.func @transform_2(%arg0: i32) -> (i32, i32) {
    %c0_i32 = arith.constant 0 : i32
    %c0_i32_0 = arith.constant 0 : i32
    %c0_i32_1 = arith.constant 0 : i32
    return %c0_i32, %c0_i32_0 : i32, i32
  }
  func.func @transform_3(%arg0: i32) -> (i32, i32) {
    %c0_i32 = arith.constant 0 : i32
    %c0_i32_0 = arith.constant 0 : i32
    %c0_i32_1 = arith.constant 0 : i32
    return %c0_i32, %c0_i32_0 : i32, i32
  }
  func.func @transform_4(%arg0: i32) -> (i32, i32) {
    %c0_i32 = arith.constant 0 : i32
    %c0_i32_0 = arith.constant 0 : i32
    %c0_i32_1 = arith.constant 0 : i32
    return %c0_i32, %c0_i32_0 : i32, i32
  }
  func.func @transform_5(%arg0: i32) -> (i32, i32) {
    %c0_i32 = arith.constant 0 : i32
    %c0_i32_0 = arith.constant 0 : i32
    %c0_i32_1 = arith.constant 0 : i32
    return %c0_i32, %c0_i32_0 : i32, i32
  }
  func.func @transform_6(%arg0: i32) -> (i32, i32) {
    %c0_i32 = arith.constant 0 : i32
    %c0_i32_0 = arith.constant 0 : i32
    %c0_i32_1 = arith.constant 0 : i32
    return %c0_i32, %c0_i32_0 : i32, i32
  }
  func.func @transform_7(%arg0: i32) -> (i32, i32) {
    %c0_i32 = arith.constant 0 : i32
    %c0_i32_0 = arith.constant 0 : i32
    %c0_i32_1 = arith.constant 0 : i32
    return %c0_i32, %c0_i32_0 : i32, i32
  }
  func.func @transform_8(%arg0: i32) -> (i32, i32, i32, i32, i32) {
    %c0_i32 = arith.constant 0 : i32
    %c0_i32_0 = arith.constant 0 : i32
    %c0_i32_1 = arith.constant 0 : i32
    %c0_i32_2 = arith.constant 0 : i32
    %c0_i32_3 = arith.constant 0 : i32
    return %arg0, %c0_i32, %c0_i32_0, %c0_i32_1, %c0_i32_2 : i32, i32, i32, i32, i32
  }
}

module attributes {stable_mosaic.version = 11 : i64} {
  func.func @_resunit_kernel(%arg0: i32, %arg1: memref<1x4x8x8x8xf32, #tpu.memory_space<vmem>>, %arg2: memref<1x8xf32, #tpu.memory_space<vmem>>, %arg3: memref<1x8xf32, #tpu.memory_space<vmem>>, %arg4: memref<8x16xbf16, #tpu.memory_space<vmem>>, %arg5: memref<1x16xf32, #tpu.memory_space<vmem>>, %arg6: memref<1x16xf32, #tpu.memory_space<vmem>>, %arg7: memref<27x16xf32, #tpu.memory_space<vmem>>, %arg8: memref<16x8xbf16, #tpu.memory_space<vmem>>, %arg9: memref<1x4x8x8x16xf32, #tpu.memory_space<vmem>>, %arg10: memref<1x6x10x8x16xf32, #tpu.memory_space<vmem>>) attributes {dimension_semantics = [#tpu.dimension_semantics<parallel>], iteration_bounds = array<i64: 2>, scalar_prefetch = 0 : i64, scratch_operands = 1 : i64, tpu.core_type = #tpu.core_type<tc>, window_params = [{transform_indices = @transform_0, window_bounds = array<i64: 1, 4, 8, 8, 8>}, {pipeline_mode = #tpu.pipeline_mode<synchronous>, transform_indices = @transform_1, window_bounds = array<i64: 1, 8>}, {pipeline_mode = #tpu.pipeline_mode<synchronous>, transform_indices = @transform_2, window_bounds = array<i64: 1, 8>}, {pipeline_mode = #tpu.pipeline_mode<synchronous>, transform_indices = @transform_3, window_bounds = array<i64: 8, 16>}, {pipeline_mode = #tpu.pipeline_mode<synchronous>, transform_indices = @transform_4, window_bounds = array<i64: 1, 16>}, {pipeline_mode = #tpu.pipeline_mode<synchronous>, transform_indices = @transform_5, window_bounds = array<i64: 1, 16>}, {pipeline_mode = #tpu.pipeline_mode<synchronous>, transform_indices = @transform_6, window_bounds = array<i64: 27, 16>}, {pipeline_mode = #tpu.pipeline_mode<synchronous>, transform_indices = @transform_7, window_bounds = array<i64: 16, 8>}, {transform_indices = @transform_8, window_bounds = array<i64: 1, 4, 8, 8, 16>}]} {
    %c0 = arith.constant 0 : index
    %c0_0 = arith.constant 0 : index
    %c0_1 = arith.constant 0 : index
    %c0_2 = arith.constant 0 : index
    %c0_3 = arith.constant 0 : index
    %0 = vector.load %arg1[%c0, %c0_0, %c0_1, %c0_2, %c0_3] : memref<1x4x8x8x8xf32, #tpu.memory_space<vmem>>, vector<1x4x8x8x8xf32>
    %1 = vector.shape_cast %0 : vector<1x4x8x8x8xf32> to vector<256x8xf32>
    %c0_4 = arith.constant 0 : index
    %c0_5 = arith.constant 0 : index
    %2 = vector.load %arg2[%c0_4, %c0_5] : memref<1x8xf32, #tpu.memory_space<vmem>>, vector<1x8xf32>
    %3 = vector.broadcast %2 : vector<1x8xf32> to vector<256x8xf32>
    %4 = arith.mulf %1, %3 : vector<256x8xf32>
    %c0_6 = arith.constant 0 : index
    %c0_7 = arith.constant 0 : index
    %5 = vector.load %arg3[%c0_6, %c0_7] : memref<1x8xf32, #tpu.memory_space<vmem>>, vector<1x8xf32>
    %6 = vector.broadcast %5 : vector<1x8xf32> to vector<256x8xf32>
    %7 = arith.addf %4, %6 : vector<256x8xf32>
    %cst = arith.constant 0.000000e+00 : f32
    %8 = vector.broadcast %cst : f32 to vector<256x8xf32>
    %9 = arith.maximumf %7, %8 : vector<256x8xf32>
    %10 = arith.truncf %9 : vector<256x8xf32> to vector<256x8xbf16>
    %c0_8 = arith.constant 0 : index
    %c0_9 = arith.constant 0 : index
    %11 = vector.load %arg4[%c0_8, %c0_9] : memref<8x16xbf16, #tpu.memory_space<vmem>>, vector<8x16xbf16>
    %cst_10 = arith.constant dense<0.000000e+00> : vector<256x16xf32>
    %12 = tpu.matmul %10, %11, %cst_10 {dimension_numbers = #tpu.dot_dimension_numbers<[1], [0], [0], [1], [0, 0, 1, 1], [], []>} : vector<256x8xbf16>, vector<8x16xbf16>, vector<256x16xf32> -> vector<256x16xf32>
    %c0_11 = arith.constant 0 : index
    %c0_12 = arith.constant 0 : index
    %13 = vector.load %arg5[%c0_11, %c0_12] : memref<1x16xf32, #tpu.memory_space<vmem>>, vector<1x16xf32>
    %14 = vector.broadcast %13 : vector<1x16xf32> to vector<256x16xf32>
    %15 = arith.mulf %12, %14 : vector<256x16xf32>
    %c0_13 = arith.constant 0 : index
    %c0_14 = arith.constant 0 : index
    %16 = vector.load %arg6[%c0_13, %c0_14] : memref<1x16xf32, #tpu.memory_space<vmem>>, vector<1x16xf32>
    %17 = vector.broadcast %16 : vector<1x16xf32> to vector<256x16xf32>
    %18 = arith.addf %15, %17 : vector<256x16xf32>
    %cst_15 = arith.constant 0.000000e+00 : f32
    %19 = vector.broadcast %cst_15 : f32 to vector<256x16xf32>
    %20 = arith.maximumf %18, %19 : vector<256x16xf32>
    %cst_16 = arith.constant 0.000000e+00 : f32
    %21 = vector.broadcast %cst_16 : f32 to vector<1x1x10x8x16xf32>
    %cst_17 = arith.constant 0.000000e+00 : f32
    %22 = vector.broadcast %cst_17 : f32 to vector<1x4x1x8x16xf32>
    %c0_18 = arith.constant 0 : index
    %c0_19 = arith.constant 0 : index
    %c0_20 = arith.constant 0 : index
    %c0_21 = arith.constant 0 : index
    %c0_22 = arith.constant 0 : index
    %23 = vector.load %arg10[%c0_18, %c0_19, %c0_20, %c0_21, %c0_22] : memref<1x6x10x8x16xf32, #tpu.memory_space<vmem>>, vector<1x1x10x8x16xf32>
    tpu.vector_store %arg10[%c0_18, %c0_19, %c0_20, %c0_21, %c0_22], %21 {strides = array<i32>} : memref<1x6x10x8x16xf32, #tpu.memory_space<vmem>>, vector<1x1x10x8x16xf32>,
    %c0_23 = arith.constant 0 : index
    %c5 = arith.constant 5 : index
    %c0_24 = arith.constant 0 : index
    %c0_25 = arith.constant 0 : index
    %c0_26 = arith.constant 0 : index
    %24 = vector.load %arg10[%c0_23, %c5, %c0_24, %c0_25, %c0_26] : memref<1x6x10x8x16xf32, #tpu.memory_space<vmem>>, vector<1x1x10x8x16xf32>
    tpu.vector_store %arg10[%c0_23, %c5, %c0_24, %c0_25, %c0_26], %21 {strides = array<i32>} : memref<1x6x10x8x16xf32, #tpu.memory_space<vmem>>, vector<1x1x10x8x16xf32>,
    %c0_27 = arith.constant 0 : index
    %c1 = arith.constant 1 : index
    %c0_28 = arith.constant 0 : index
    %c0_29 = arith.constant 0 : index
    %c0_30 = arith.constant 0 : index
    %25 = vector.load %arg10[%c0_27, %c1, %c0_28, %c0_29, %c0_30] : memref<1x6x10x8x16xf32, #tpu.memory_space<vmem>>, vector<1x4x1x8x16xf32>
    tpu.vector_store %arg10[%c0_27, %c1, %c0_28, %c0_29, %c0_30], %22 {strides = array<i32>} : memref<1x6x10x8x16xf32, #tpu.memory_space<vmem>>, vector<1x4x1x8x16xf32>,
    %c0_31 = arith.constant 0 : index
    %c1_32 = arith.constant 1 : index
    %c9 = arith.constant 9 : index
    %c0_33 = arith.constant 0 : index
    %c0_34 = arith.constant 0 : index
    %26 = vector.load %arg10[%c0_31, %c1_32, %c9, %c0_33, %c0_34] : memref<1x6x10x8x16xf32, #tpu.memory_space<vmem>>, vector<1x4x1x8x16xf32>
    tpu.vector_store %arg10[%c0_31, %c1_32, %c9, %c0_33, %c0_34], %22 {strides = array<i32>} : memref<1x6x10x8x16xf32, #tpu.memory_space<vmem>>, vector<1x4x1x8x16xf32>,
    %27 = vector.shape_cast %20 : vector<256x16xf32> to vector<1x4x8x8x16xf32>
    %c0_35 = arith.constant 0 : index
    %c1_36 = arith.constant 1 : index
    %c1_37 = arith.constant 1 : index
    %c0_38 = arith.constant 0 : index
    %c0_39 = arith.constant 0 : index
    %28 = vector.load %arg10[%c0_35, %c1_36, %c1_37, %c0_38, %c0_39] : memref<1x6x10x8x16xf32, #tpu.memory_space<vmem>>, vector<1x4x8x8x16xf32>
    tpu.vector_store %arg10[%c0_35, %c1_36, %c1_37, %c0_38, %c0_39], %27 {strides = array<i32>} : memref<1x6x10x8x16xf32, #tpu.memory_space<vmem>>, vector<1x4x8x8x16xf32>,
    %c0_40 = arith.constant 0 : index
    %c0_41 = arith.constant 0 : index
    %29 = vector.load %arg7[%c0_40, %c0_41] : memref<27x16xf32, #tpu.memory_space<vmem>>, vector<27x16xf32>
    %c0_42 = arith.constant 0 : index
    %c0_43 = arith.constant 0 : index
    %c0_44 = arith.constant 0 : index
    %c0_45 = arith.constant 0 : index
    %c0_46 = arith.constant 0 : index
    %30 = vector.load %arg10[%c0_42, %c0_43, %c0_44, %c0_45, %c0_46] : memref<1x6x10x8x16xf32, #tpu.memory_space<vmem>>, vector<1x4x8x8x16xf32>
    %31 = vector.extract_strided_slice %29 {offsets = [0, 0], sizes = [1, 16], strides = [1, 1]} : vector<27x16xf32> to vector<1x16xf32>
    %32 = vector.shape_cast %31 : vector<1x16xf32> to vector<16xf32>
    %33 = vector.shape_cast %32 : vector<16xf32> to vector<1x1x1x1x16xf32>
    %34 = vector.broadcast %33 : vector<1x1x1x1x16xf32> to vector<1x4x8x8x16xf32>
    %35 = arith.mulf %30, %34 : vector<1x4x8x8x16xf32>
    %36 = vector.extract_strided_slice %29 {offsets = [1, 0], sizes = [1, 16], strides = [1, 1]} : vector<27x16xf32> to vector<1x16xf32>
    %37 = vector.shape_cast %36 : vector<1x16xf32> to vector<16xf32>
    %38 = vector.shape_cast %37 : vector<16xf32> to vector<1x1x1x1x16xf32>
    %39 = vector.broadcast %38 : vector<1x1x1x1x16xf32> to vector<1x4x8x8x16xf32>
    %40 = arith.mulf %30, %39 : vector<1x4x8x8x16xf32>
    %41 = vector.extract_strided_slice %29 {offsets = [2, 0], sizes = [1, 16], strides = [1, 1]} : vector<27x16xf32> to vector<1x16xf32>
    %42 = vector.shape_cast %41 : vector<1x16xf32> to vector<16xf32>
    %43 = vector.shape_cast %42 : vector<16xf32> to vector<1x1x1x1x16xf32>
    %44 = vector.broadcast %43 : vector<1x1x1x1x16xf32> to vector<1x4x8x8x16xf32>
    %45 = arith.mulf %30, %44 : vector<1x4x8x8x16xf32>
    %c0_47 = arith.constant 0 : index
    %c0_48 = arith.constant 0 : index
    %c1_49 = arith.constant 1 : index
    %c0_50 = arith.constant 0 : index
    %c0_51 = arith.constant 0 : index
    %46 = vector.load %arg10[%c0_47, %c0_48, %c1_49, %c0_50, %c0_51] : memref<1x6x10x8x16xf32, #tpu.memory_space<vmem>>, vector<1x4x8x8x16xf32>
    %47 = vector.extract_strided_slice %29 {offsets = [3, 0], sizes = [1, 16], strides = [1, 1]} : vector<27x16xf32> to vector<1x16xf32>
    %48 = vector.shape_cast %47 : vector<1x16xf32> to vector<16xf32>
    %49 = vector.shape_cast %48 : vector<16xf32> to vector<1x1x1x1x16xf32>
    %50 = vector.broadcast %49 : vector<1x1x1x1x16xf32> to vector<1x4x8x8x16xf32>
    %51 = arith.mulf %46, %50 : vector<1x4x8x8x16xf32>
    %52 = arith.addf %35, %51 : vector<1x4x8x8x16xf32>
    %53 = vector.extract_strided_slice %29 {offsets = [4, 0], sizes = [1, 16], strides = [1, 1]} : vector<27x16xf32> to vector<1x16xf32>
    %54 = vector.shape_cast %53 : vector<1x16xf32> to vector<16xf32>
    %55 = vector.shape_cast %54 : vector<16xf32> to vector<1x1x1x1x16xf32>
    %56 = vector.broadcast %55 : vector<1x1x1x1x16xf32> to vector<1x4x8x8x16xf32>
    %57 = arith.mulf %46, %56 : vector<1x4x8x8x16xf32>
    %58 = arith.addf %40, %57 : vector<1x4x8x8x16xf32>
    %59 = vector.extract_strided_slice %29 {offsets = [5, 0], sizes = [1, 16], strides = [1, 1]} : vector<27x16xf32> to vector<1x16xf32>
    %60 = vector.shape_cast %59 : vector<1x16xf32> to vector<16xf32>
    %61 = vector.shape_cast %60 : vector<16xf32> to vector<1x1x1x1x16xf32>
    %62 = vector.broadcast %61 : vector<1x1x1x1x16xf32> to vector<1x4x8x8x16xf32>
    %63 = arith.mulf %46, %62 : vector<1x4x8x8x16xf32>
    %64 = arith.addf %45, %63 : vector<1x4x8x8x16xf32>
    %c0_52 = arith.constant 0 : index
    %c0_53 = arith.constant 0 : index
    %c2 = arith.constant 2 : index
    %c0_54 = arith.constant 0 : index
    %c0_55 = arith.constant 0 : index
    %65 = vector.load %arg10[%c0_52, %c0_53, %c2, %c0_54, %c0_55] : memref<1x6x10x8x16xf32, #tpu.memory_space<vmem>>, vector<1x4x8x8x16xf32>
    %66 = vector.extract_strided_slice %29 {offsets = [6, 0], sizes = [1, 16], strides = [1, 1]} : vector<27x16xf32> to vector<1x16xf32>
    %67 = vector.shape_cast %66 : vector<1x16xf32> to vector<16xf32>
    %68 = vector.shape_cast %67 : vector<16xf32> to vector<1x1x1x1x16xf32>
    %69 = vector.broadcast %68 : vector<1x1x1x1x16xf32> to vector<1x4x8x8x16xf32>
    %70 = arith.mulf %65, %69 : vector<1x4x8x8x16xf32>
    %71 = arith.addf %52, %70 : vector<1x4x8x8x16xf32>
    %72 = vector.extract_strided_slice %29 {offsets = [7, 0], sizes = [1, 16], strides = [1, 1]} : vector<27x16xf32> to vector<1x16xf32>
    %73 = vector.shape_cast %72 : vector<1x16xf32> to vector<16xf32>
    %74 = vector.shape_cast %73 : vector<16xf32> to vector<1x1x1x1x16xf32>
    %75 = vector.broadcast %74 : vector<1x1x1x1x16xf32> to vector<1x4x8x8x16xf32>
    %76 = arith.mulf %65, %75 : vector<1x4x8x8x16xf32>
    %77 = arith.addf %58, %76 : vector<1x4x8x8x16xf32>
    %78 = vector.extract_strided_slice %29 {offsets = [8, 0], sizes = [1, 16], strides = [1, 1]} : vector<27x16xf32> to vector<1x16xf32>
    %79 = vector.shape_cast %78 : vector<1x16xf32> to vector<16xf32>
    %80 = vector.shape_cast %79 : vector<16xf32> to vector<1x1x1x1x16xf32>
    %81 = vector.broadcast %80 : vector<1x1x1x1x16xf32> to vector<1x4x8x8x16xf32>
    %82 = arith.mulf %65, %81 : vector<1x4x8x8x16xf32>
    %83 = arith.addf %64, %82 : vector<1x4x8x8x16xf32>
    %c0_56 = arith.constant 0 : index
    %c1_57 = arith.constant 1 : index
    %c0_58 = arith.constant 0 : index
    %c0_59 = arith.constant 0 : index
    %c0_60 = arith.constant 0 : index
    %84 = vector.load %arg10[%c0_56, %c1_57, %c0_58, %c0_59, %c0_60] : memref<1x6x10x8x16xf32, #tpu.memory_space<vmem>>, vector<1x4x8x8x16xf32>
    %85 = vector.extract_strided_slice %29 {offsets = [9, 0], sizes = [1, 16], strides = [1, 1]} : vector<27x16xf32> to vector<1x16xf32>
    %86 = vector.shape_cast %85 : vector<1x16xf32> to vector<16xf32>
    %87 = vector.shape_cast %86 : vector<16xf32> to vector<1x1x1x1x16xf32>
    %88 = vector.broadcast %87 : vector<1x1x1x1x16xf32> to vector<1x4x8x8x16xf32>
    %89 = arith.mulf %84, %88 : vector<1x4x8x8x16xf32>
    %90 = arith.addf %71, %89 : vector<1x4x8x8x16xf32>
    %91 = vector.extract_strided_slice %29 {offsets = [10, 0], sizes = [1, 16], strides = [1, 1]} : vector<27x16xf32> to vector<1x16xf32>
    %92 = vector.shape_cast %91 : vector<1x16xf32> to vector<16xf32>
    %93 = vector.shape_cast %92 : vector<16xf32> to vector<1x1x1x1x16xf32>
    %94 = vector.broadcast %93 : vector<1x1x1x1x16xf32> to vector<1x4x8x8x16xf32>
    %95 = arith.mulf %84, %94 : vector<1x4x8x8x16xf32>
    %96 = arith.addf %77, %95 : vector<1x4x8x8x16xf32>
    %97 = vector.extract_strided_slice %29 {offsets = [11, 0], sizes = [1, 16], strides = [1, 1]} : vector<27x16xf32> to vector<1x16xf32>
    %98 = vector.shape_cast %97 : vector<1x16xf32> to vector<16xf32>
    %99 = vector.shape_cast %98 : vector<16xf32> to vector<1x1x1x1x16xf32>
    %100 = vector.broadcast %99 : vector<1x1x1x1x16xf32> to vector<1x4x8x8x16xf32>
    %101 = arith.mulf %84, %100 : vector<1x4x8x8x16xf32>
    %102 = arith.addf %83, %101 : vector<1x4x8x8x16xf32>
    %c0_61 = arith.constant 0 : index
    %c1_62 = arith.constant 1 : index
    %c1_63 = arith.constant 1 : index
    %c0_64 = arith.constant 0 : index
    %c0_65 = arith.constant 0 : index
    %103 = vector.load %arg10[%c0_61, %c1_62, %c1_63, %c0_64, %c0_65] : memref<1x6x10x8x16xf32, #tpu.memory_space<vmem>>, vector<1x4x8x8x16xf32>
    %104 = vector.extract_strided_slice %29 {offsets = [12, 0], sizes = [1, 16], strides = [1, 1]} : vector<27x16xf32> to vector<1x16xf32>
    %105 = vector.shape_cast %104 : vector<1x16xf32> to vector<16xf32>
    %106 = vector.shape_cast %105 : vector<16xf32> to vector<1x1x1x1x16xf32>
    %107 = vector.broadcast %106 : vector<1x1x1x1x16xf32> to vector<1x4x8x8x16xf32>
    %108 = arith.mulf %103, %107 : vector<1x4x8x8x16xf32>
    %109 = arith.addf %90, %108 : vector<1x4x8x8x16xf32>
    %110 = vector.extract_strided_slice %29 {offsets = [13, 0], sizes = [1, 16], strides = [1, 1]} : vector<27x16xf32> to vector<1x16xf32>
    %111 = vector.shape_cast %110 : vector<1x16xf32> to vector<16xf32>
    %112 = vector.shape_cast %111 : vector<16xf32> to vector<1x1x1x1x16xf32>
    %113 = vector.broadcast %112 : vector<1x1x1x1x16xf32> to vector<1x4x8x8x16xf32>
    %114 = arith.mulf %103, %113 : vector<1x4x8x8x16xf32>
    %115 = arith.addf %96, %114 : vector<1x4x8x8x16xf32>
    %116 = vector.extract_strided_slice %29 {offsets = [14, 0], sizes = [1, 16], strides = [1, 1]} : vector<27x16xf32> to vector<1x16xf32>
    %117 = vector.shape_cast %116 : vector<1x16xf32> to vector<16xf32>
    %118 = vector.shape_cast %117 : vector<16xf32> to vector<1x1x1x1x16xf32>
    %119 = vector.broadcast %118 : vector<1x1x1x1x16xf32> to vector<1x4x8x8x16xf32>
    %120 = arith.mulf %103, %119 : vector<1x4x8x8x16xf32>
    %121 = arith.addf %102, %120 : vector<1x4x8x8x16xf32>
    %c0_66 = arith.constant 0 : index
    %c1_67 = arith.constant 1 : index
    %c2_68 = arith.constant 2 : index
    %c0_69 = arith.constant 0 : index
    %c0_70 = arith.constant 0 : index
    %122 = vector.load %arg10[%c0_66, %c1_67, %c2_68, %c0_69, %c0_70] : memref<1x6x10x8x16xf32, #tpu.memory_space<vmem>>, vector<1x4x8x8x16xf32>
    %123 = vector.extract_strided_slice %29 {offsets = [15, 0], sizes = [1, 16], strides = [1, 1]} : vector<27x16xf32> to vector<1x16xf32>
    %124 = vector.shape_cast %123 : vector<1x16xf32> to vector<16xf32>
    %125 = vector.shape_cast %124 : vector<16xf32> to vector<1x1x1x1x16xf32>
    %126 = vector.broadcast %125 : vector<1x1x1x1x16xf32> to vector<1x4x8x8x16xf32>
    %127 = arith.mulf %122, %126 : vector<1x4x8x8x16xf32>
    %128 = arith.addf %109, %127 : vector<1x4x8x8x16xf32>
    %129 = vector.extract_strided_slice %29 {offsets = [16, 0], sizes = [1, 16], strides = [1, 1]} : vector<27x16xf32> to vector<1x16xf32>
    %130 = vector.shape_cast %129 : vector<1x16xf32> to vector<16xf32>
    %131 = vector.shape_cast %130 : vector<16xf32> to vector<1x1x1x1x16xf32>
    %132 = vector.broadcast %131 : vector<1x1x1x1x16xf32> to vector<1x4x8x8x16xf32>
    %133 = arith.mulf %122, %132 : vector<1x4x8x8x16xf32>
    %134 = arith.addf %115, %133 : vector<1x4x8x8x16xf32>
    %135 = vector.extract_strided_slice %29 {offsets = [17, 0], sizes = [1, 16], strides = [1, 1]} : vector<27x16xf32> to vector<1x16xf32>
    %136 = vector.shape_cast %135 : vector<1x16xf32> to vector<16xf32>
    %137 = vector.shape_cast %136 : vector<16xf32> to vector<1x1x1x1x16xf32>
    %138 = vector.broadcast %137 : vector<1x1x1x1x16xf32> to vector<1x4x8x8x16xf32>
    %139 = arith.mulf %122, %138 : vector<1x4x8x8x16xf32>
    %140 = arith.addf %121, %139 : vector<1x4x8x8x16xf32>
    %c0_71 = arith.constant 0 : index
    %c2_72 = arith.constant 2 : index
    %c0_73 = arith.constant 0 : index
    %c0_74 = arith.constant 0 : index
    %c0_75 = arith.constant 0 : index
    %141 = vector.load %arg10[%c0_71, %c2_72, %c0_73, %c0_74, %c0_75] : memref<1x6x10x8x16xf32, #tpu.memory_space<vmem>>, vector<1x4x8x8x16xf32>
    %142 = vector.extract_strided_slice %29 {offsets = [18, 0], sizes = [1, 16], strides = [1, 1]} : vector<27x16xf32> to vector<1x16xf32>
    %143 = vector.shape_cast %142 : vector<1x16xf32> to vector<16xf32>
    %144 = vector.shape_cast %143 : vector<16xf32> to vector<1x1x1x1x16xf32>
    %145 = vector.broadcast %144 : vector<1x1x1x1x16xf32> to vector<1x4x8x8x16xf32>
    %146 = arith.mulf %141, %145 : vector<1x4x8x8x16xf32>
    %147 = arith.addf %128, %146 : vector<1x4x8x8x16xf32>
    %148 = vector.extract_strided_slice %29 {offsets = [19, 0], sizes = [1, 16], strides = [1, 1]} : vector<27x16xf32> to vector<1x16xf32>
    %149 = vector.shape_cast %148 : vector<1x16xf32> to vector<16xf32>
    %150 = vector.shape_cast %149 : vector<16xf32> to vector<1x1x1x1x16xf32>
    %151 = vector.broadcast %150 : vector<1x1x1x1x16xf32> to vector<1x4x8x8x16xf32>
    %152 = arith.mulf %141, %151 : vector<1x4x8x8x16xf32>
    %153 = arith.addf %134, %152 : vector<1x4x8x8x16xf32>
    %154 = vector.extract_strided_slice %29 {offsets = [20, 0], sizes = [1, 16], strides = [1, 1]} : vector<27x16xf32> to vector<1x16xf32>
    %155 = vector.shape_cast %154 : vector<1x16xf32> to vector<16xf32>
    %156 = vector.shape_cast %155 : vector<16xf32> to vector<1x1x1x1x16xf32>
    %157 = vector.broadcast %156 : vector<1x1x1x1x16xf32> to vector<1x4x8x8x16xf32>
    %158 = arith.mulf %141, %157 : vector<1x4x8x8x16xf32>
    %159 = arith.addf %140, %158 : vector<1x4x8x8x16xf32>
    %c0_76 = arith.constant 0 : index
    %c2_77 = arith.constant 2 : index
    %c1_78 = arith.constant 1 : index
    %c0_79 = arith.constant 0 : index
    %c0_80 = arith.constant 0 : index
    %160 = vector.load %arg10[%c0_76, %c2_77, %c1_78, %c0_79, %c0_80] : memref<1x6x10x8x16xf32, #tpu.memory_space<vmem>>, vector<1x4x8x8x16xf32>
    %161 = vector.extract_strided_slice %29 {offsets = [21, 0], sizes = [1, 16], strides = [1, 1]} : vector<27x16xf32> to vector<1x16xf32>
    %162 = vector.shape_cast %161 : vector<1x16xf32> to vector<16xf32>
    %163 = vector.shape_cast %162 : vector<16xf32> to vector<1x1x1x1x16xf32>
    %164 = vector.broadcast %163 : vector<1x1x1x1x16xf32> to vector<1x4x8x8x16xf32>
    %165 = arith.mulf %160, %164 : vector<1x4x8x8x16xf32>
    %166 = arith.addf %147, %165 : vector<1x4x8x8x16xf32>
    %167 = vector.extract_strided_slice %29 {offsets = [22, 0], sizes = [1, 16], strides = [1, 1]} : vector<27x16xf32> to vector<1x16xf32>
    %168 = vector.shape_cast %167 : vector<1x16xf32> to vector<16xf32>
    %169 = vector.shape_cast %168 : vector<16xf32> to vector<1x1x1x1x16xf32>
    %170 = vector.broadcast %169 : vector<1x1x1x1x16xf32> to vector<1x4x8x8x16xf32>
    %171 = arith.mulf %160, %170 : vector<1x4x8x8x16xf32>
    %172 = arith.addf %153, %171 : vector<1x4x8x8x16xf32>
    %173 = vector.extract_strided_slice %29 {offsets = [23, 0], sizes = [1, 16], strides = [1, 1]} : vector<27x16xf32> to vector<1x16xf32>
    %174 = vector.shape_cast %173 : vector<1x16xf32> to vector<16xf32>
    %175 = vector.shape_cast %174 : vector<16xf32> to vector<1x1x1x1x16xf32>
    %176 = vector.broadcast %175 : vector<1x1x1x1x16xf32> to vector<1x4x8x8x16xf32>
    %177 = arith.mulf %160, %176 : vector<1x4x8x8x16xf32>
    %178 = arith.addf %159, %177 : vector<1x4x8x8x16xf32>
    %c0_81 = arith.constant 0 : index
    %c2_82 = arith.constant 2 : index
    %c2_83 = arith.constant 2 : index
    %c0_84 = arith.constant 0 : index
    %c0_85 = arith.constant 0 : index
    %179 = vector.load %arg10[%c0_81, %c2_82, %c2_83, %c0_84, %c0_85] : memref<1x6x10x8x16xf32, #tpu.memory_space<vmem>>, vector<1x4x8x8x16xf32>
    %180 = vector.extract_strided_slice %29 {offsets = [24, 0], sizes = [1, 16], strides = [1, 1]} : vector<27x16xf32> to vector<1x16xf32>
    %181 = vector.shape_cast %180 : vector<1x16xf32> to vector<16xf32>
    %182 = vector.shape_cast %181 : vector<16xf32> to vector<1x1x1x1x16xf32>
    %183 = vector.broadcast %182 : vector<1x1x1x1x16xf32> to vector<1x4x8x8x16xf32>
    %184 = arith.mulf %179, %183 : vector<1x4x8x8x16xf32>
    %185 = arith.addf %166, %184 : vector<1x4x8x8x16xf32>
    %186 = vector.extract_strided_slice %29 {offsets = [25, 0], sizes = [1, 16], strides = [1, 1]} : vector<27x16xf32> to vector<1x16xf32>
    %187 = vector.shape_cast %186 : vector<1x16xf32> to vector<16xf32>
    %188 = vector.shape_cast %187 : vector<16xf32> to vector<1x1x1x1x16xf32>
    %189 = vector.broadcast %188 : vector<1x1x1x1x16xf32> to vector<1x4x8x8x16xf32>
    %190 = arith.mulf %179, %189 : vector<1x4x8x8x16xf32>
    %191 = arith.addf %172, %190 : vector<1x4x8x8x16xf32>
    %192 = vector.extract_strided_slice %29 {offsets = [26, 0], sizes = [1, 16], strides = [1, 1]} : vector<27x16xf32> to vector<1x16xf32>
    %193 = vector.shape_cast %192 : vector<1x16xf32> to vector<16xf32>
    %194 = vector.shape_cast %193 : vector<16xf32> to vector<1x1x1x1x16xf32>
    %195 = vector.broadcast %194 : vector<1x1x1x1x16xf32> to vector<1x4x8x8x16xf32>
    %196 = arith.mulf %179, %195 : vector<1x4x8x8x16xf32>
    %197 = arith.addf %178, %196 : vector<1x4x8x8x16xf32>
    %cst_86 = arith.constant 0.000000e+00 : f32
    %198 = vector.broadcast %cst_86 : f32 to vector<1x4x8x1x16xf32>
    %199 = vector.extract_strided_slice %185 {offsets = [0, 0, 0, 0, 0], sizes = [1, 4, 8, 7, 16], strides = [1, 1, 1, 1, 1]} : vector<1x4x8x8x16xf32> to vector<1x4x8x7x16xf32>
    %200 = tpu.concatenate %198, %199 in 3 : vector<1x4x8x1x16xf32>, vector<1x4x8x7x16xf32> -> vector<1x4x8x8x16xf32>
    %201 = vector.extract_strided_slice %197 {offsets = [0, 0, 0, 1, 0], sizes = [1, 4, 8, 7, 16], strides = [1, 1, 1, 1, 1]} : vector<1x4x8x8x16xf32> to vector<1x4x8x7x16xf32>
    %202 = tpu.concatenate %201, %198 in 3 : vector<1x4x8x7x16xf32>, vector<1x4x8x1x16xf32> -> vector<1x4x8x8x16xf32>
    %203 = arith.addf %191, %200 : vector<1x4x8x8x16xf32>
    %204 = arith.addf %203, %202 : vector<1x4x8x8x16xf32>
    %205 = vector.shape_cast %204 : vector<1x4x8x8x16xf32> to vector<256x16xf32>
    %206 = arith.truncf %205 : vector<256x16xf32> to vector<256x16xbf16>
    %c0_87 = arith.constant 0 : index
    %c0_88 = arith.constant 0 : index
    %207 = vector.load %arg8[%c0_87, %c0_88] : memref<16x8xbf16, #tpu.memory_space<vmem>>, vector<16x8xbf16>
    %cst_89 = arith.constant dense<0.000000e+00> : vector<256x8xf32>
    %208 = tpu.matmul %206, %207, %cst_89 {dimension_numbers = #tpu.dot_dimension_numbers<[1], [0], [0], [1], [0, 0, 1, 1], [], []>} : vector<256x16xbf16>, vector<16x8xbf16>, vector<256x8xf32> -> vector<256x8xf32>
    %c0_90 = arith.constant 0 : index
    %c0_91 = arith.constant 0 : index
    %c0_92 = arith.constant 0 : index
    %c0_93 = arith.constant 0 : index
    %c0_94 = arith.constant 0 : index
    %209 = vector.load %arg9[%c0_90, %c0_91, %c0_92, %c0_93, %c0_94] : memref<1x4x8x8x16xf32, #tpu.memory_space<vmem>>, vector<1x4x8x8x8xf32>
    tpu.vector_store %arg9[%c0_90, %c0_91, %c0_92, %c0_93, %c0_94], %0 {strides = array<i32>} : memref<1x4x8x8x16xf32, #tpu.memory_space<vmem>>, vector<1x4x8x8x8xf32>,
    %210 = vector.shape_cast %208 : vector<256x8xf32> to vector<1x4x8x8x8xf32>
    %c0_95 = arith.constant 0 : index
    %c0_96 = arith.constant 0 : index
    %c0_97 = arith.constant 0 : index
    %c0_98 = arith.constant 0 : index
    %c8 = arith.constant 8 : index
    %211 = vector.load %arg9[%c0_95, %c0_96, %c0_97, %c0_98, %c8] : memref<1x4x8x8x16xf32, #tpu.memory_space<vmem>>, vector<1x4x8x8x8xf32>
    tpu.vector_store %arg9[%c0_95, %c0_96, %c0_97, %c0_98, %c8], %210 {strides = array<i32>} : memref<1x4x8x8x16xf32, #tpu.memory_space<vmem>>, vector<1x4x8x8x8xf32>,
    return
  }
  func.func @transform_0(%arg0: i32) -> (i32, i32, i32, i32, i32) {
    %c0_i32 = arith.constant 0 : i32
    %c0_i32_0 = arith.constant 0 : i32
    %c0_i32_1 = arith.constant 0 : i32
    %c0_i32_2 = arith.constant 0 : i32
    %c0_i32_3 = arith.constant 0 : i32
    return %arg0, %c0_i32, %c0_i32_0, %c0_i32_1, %c0_i32_2 : i32, i32, i32, i32, i32
  }
  func.func @transform_1(%arg0: i32) -> (i32, i32) {
    %c0_i32 = arith.constant 0 : i32
    %c0_i32_0 = arith.constant 0 : i32
    %c0_i32_1 = arith.constant 0 : i32
    return %c0_i32, %c0_i32_0 : i32, i32
  }
  func.func @transform_2(%arg0: i32) -> (i32, i32) {
    %c0_i32 = arith.constant 0 : i32
    %c0_i32_0 = arith.constant 0 : i32
    %c0_i32_1 = arith.constant 0 : i32
    return %c0_i32, %c0_i32_0 : i32, i32
  }
  func.func @transform_3(%arg0: i32) -> (i32, i32) {
    %c0_i32 = arith.constant 0 : i32
    %c0_i32_0 = arith.constant 0 : i32
    %c0_i32_1 = arith.constant 0 : i32
    return %c0_i32, %c0_i32_0 : i32, i32
  }
  func.func @transform_4(%arg0: i32) -> (i32, i32) {
    %c0_i32 = arith.constant 0 : i32
    %c0_i32_0 = arith.constant 0 : i32
    %c0_i32_1 = arith.constant 0 : i32
    return %c0_i32, %c0_i32_0 : i32, i32
  }
  func.func @transform_5(%arg0: i32) -> (i32, i32) {
    %c0_i32 = arith.constant 0 : i32
    %c0_i32_0 = arith.constant 0 : i32
    %c0_i32_1 = arith.constant 0 : i32
    return %c0_i32, %c0_i32_0 : i32, i32
  }
  func.func @transform_6(%arg0: i32) -> (i32, i32) {
    %c0_i32 = arith.constant 0 : i32
    %c0_i32_0 = arith.constant 0 : i32
    %c0_i32_1 = arith.constant 0 : i32
    return %c0_i32, %c0_i32_0 : i32, i32
  }
  func.func @transform_7(%arg0: i32) -> (i32, i32) {
    %c0_i32 = arith.constant 0 : i32
    %c0_i32_0 = arith.constant 0 : i32
    %c0_i32_1 = arith.constant 0 : i32
    return %c0_i32, %c0_i32_0 : i32, i32
  }
  func.func @transform_8(%arg0: i32) -> (i32, i32, i32, i32, i32) {
    %c0_i32 = arith.constant 0 : i32
    %c0_i32_0 = arith.constant 0 : i32
    %c0_i32_1 = arith.constant 0 : i32
    %c0_i32_2 = arith.constant 0 : i32
    %c0_i32_3 = arith.constant 0 : i32
    return %arg0, %c0_i32, %c0_i32_0, %c0_i32_1, %c0_i32_2 : i32, i32, i32, i32, i32
  }
}

</mosaic_0001>

<llo_original>
// kernel: _lambda_.3
$region0: #{_lambda_.3}
  #allocation0 [shape = 'u32[]', space=smem, size = 0x4, offset = 0x4, fixed_abs, tag = 'smem constant byte address 0x4 - core index']
  #allocation1 [shape = 'u32[144,128]{1,0:T(1,128)}', space=vmem, size = 0x12000, scoped, tag = 'internal scratch']
  #allocation2 [shape = 'f32[1,6,10,8,16]{4,3,2,1,0:T(8,128)}', space=vmem, size = 0x3c000, scoped, tag = 'scratch operand']
  %s0 = inlined_call_operand.vmem [shape: f32[2,4,8,8,8], index: 0, kind: input, shape index: {}]
  %s1 = inlined_call_operand.vmem [shape: f32[1,8], index: 1, kind: input, shape index: {}]
  %s2 = inlined_call_operand.vmem [shape: f32[1,8], index: 2, kind: input, shape index: {}]
  %s3 = inlined_call_operand.vmem [shape: bf16[8,16], index: 3, kind: input, shape index: {}]
  %s4 = inlined_call_operand.vmem [shape: f32[1,16], index: 4, kind: input, shape index: {}]
  %s5 = inlined_call_operand.vmem [shape: f32[1,16], index: 5, kind: input, shape index: {}]
  %s6 = inlined_call_operand.vmem [shape: f32[27,16], index: 6, kind: input, shape index: {}]
  %s7 = inlined_call_operand.vmem [shape: bf16[16,8], index: 7, kind: input, shape index: {}]
  %s8 = inlined_call_operand.hbm [shape: f32[2,4,8,8,16], index: 8, kind: output, shape index: {}]
  %s9 = sld [smem:[#allocation0]]
  $region65: #{_lambda_.3} parent=0
    _
  %s11 = ssub.s32 1, %s9
  %s12 = scalar_select 0, %s11, %s9
  $region1: #{_lambda_.3} parent=0
    #allocation3 [shape = 'u8[262144]{0}', space=vmem, size = 0x40000, scoped, tag = 'output window, operand 0']
    #allocation4 [shape = 's32[2]{0}', space=sflag, size = 0x8, scoped, tag = 'scoped memory for _lambda_.3']
    %13 = vsyncpa [#allocation4], 0
    %s14 = scalar_lea.sflag [#allocation4], 1
    %15 = vsyncpa %s14, 0
    loop: start=0, step=1, limit=4
    $region2: #{_lambda_.3} parent=1 // loop_pre_header
      _
    $region3: #{_lambda_.3} parent=1 // loop_header
      %s17 = sphi 0, %s21
      %p18 = scmp.ge.s32.totalorder %s17, 4
      %s27 = sphi 0, %s29
      %s30 = sphi 0, %s27
      %s31 = sphi 0, %s30
      %s47 = sphi 0, %s31
      %s51 = sphi 0, %s51
      %s53 = sphi 0, %s51
      %s54 = sphi 0, %s53
      %s68 = sphi 0, %s54
      %s72 = sphi 0, %s72
      %s74 = sphi 0, %s72
      %s75 = sphi 0, %s74
      %s89 = sphi 0, %s75
      %s93 = sphi 0, %s93
      %s95 = sphi 0, %s93
      %s96 = sphi 0, %s95
      %s110 = sphi 0, %s96
      %s114 = sphi 0, %s114
      %s116 = sphi 0, %s114
      %s117 = sphi 0, %s116
      %s131 = sphi 0, %s117
      %s135 = sphi 0, %s135
      %s137 = sphi 0, %s135
      %s138 = sphi 0, %s137
      %s152 = sphi 0, %s138
      %s156 = sphi 0, %s156
      %s158 = sphi 0, %s156
      %s159 = sphi 0, %s158
      %s173 = sphi 0, %s159
      %s177 = sphi 0, %s177
      %s179 = sphi 0, %s177
      %s180 = sphi 0, %s179
      %s194 = sphi 0, %s180
      %s200 = sphi 0, %s202
      %s203 = sphi 0, %s200
      %s204 = sphi 0, %s203
      %s220 = sphi 0, %s204
    $region4: #{_lambda_.3} parent=1 // loop_header_branch
      %20 = sbr.rel (%p18) target = $region8
    $region5: #{_lambda_.3} parent=1 // loop_body
      %s22 = ssub.s32 %s17, 1
      %s23 = ssub.s32 %s17, 2
      %s24 = sadd.s32 %s17, 1
      %s25 = ssub.s32 %s17, %s24
      %p26 = scmp.eq.s32.totalorder %s25, 0
      %s28 = sadd.s32 %s27, 1
      %s29 = scalar_select %p26, %s27, %s28
      %p32 = pneg %p26
      %p33 = scmp.eq.s32.totalorder %s17, 1
      %p34 = por %p32, %p33
      %p35 = scmp.ne.s32.totalorder %s27, %s30
      %p36 = scmp.eq.s32.totalorder %s17, 0
      %p37 = por %p35, %p36
      %p38 = scmp.ne.s32.totalorder %s27, %s30
      %p39 = scmp.eq.s32.totalorder %s22, 1
      %p40 = por %p38, %p39
      %p41 = scmp.ne.s32.totalorder %s30, %s31
      %p42 = scmp.eq.s32.totalorder %s22, 0
      %p43 = por %p41, %p42
      %p44 = scmp.ne.s32.totalorder %s30, %s31
      %p45 = scmp.eq.s32.totalorder %s23, 1
      %p46 = por %p44, %p45
      %p48 = scmp.ne.s32.totalorder %s31, %s47
      %p49 = scmp.eq.s32.totalorder %s23, 0
      %p50 = por %p48, %p49
      %s52 = sadd.s32 %s51, 1
      %p55 = scmp.eq.s32.totalorder %s17, 1
      %p56 = scmp.ne.s32.totalorder %s51, %s53
      %p57 = scmp.eq.s32.totalorder %s17, 0
      %p58 = por %p56, %p57
      %p59 = scmp.ne.s32.totalorder %s51, %s53
      %p60 = scmp.eq.s32.totalorder %s22, 1
      %p61 = por %p59, %p60
      %p62 = scmp.ne.s32.totalorder %s53, %s54
      %p63 = scmp.eq.s32.totalorder %s22, 0
      %p64 = por %p62, %p63
      %p65 = scmp.ne.s32.totalorder %s53, %s54
      %p66 = scmp.eq.s32.totalorder %s23, 1
      %p67 = por %p65, %p66
      %p69 = scmp.ne.s32.totalorder %s54, %s68
      %p70 = scmp.eq.s32.totalorder %s23, 0
      %p71 = por %p69, %p70
      %s73 = sadd.s32 %s72, 1
      %p76 = scmp.eq.s32.totalorder %s17, 1
      %p77 = scmp.ne.s32.totalorder %s72, %s74
      %p78 = scmp.eq.s32.totalorder %s17, 0
      %p79 = por %p77, %p78
      %p80 = scmp.ne.s32.totalorder %s72, %s74
      %p81 = scmp.eq.s32.totalorder %s22, 1
      %p82 = por %p80, %p81
      %p83 = scmp.ne.s32.totalorder %s74, %s75
      %p84 = scmp.eq.s32.totalorder %s22, 0
      %p85 = por %p83, %p84
      %p86 = scmp.ne.s32.totalorder %s74, %s75
      %p87 = scmp.eq.s32.totalorder %s23, 1
      %p88 = por %p86, %p87
      %p90 = scmp.ne.s32.totalorder %s75, %s89
      %p91 = scmp.eq.s32.totalorder %s23, 0
      %p92 = por %p90, %p91
      %s94 = sadd.s32 %s93, 1
      %p97 = scmp.eq.s32.totalorder %s17, 1
      %p98 = scmp.ne.s32.totalorder %s93, %s95
      %p99 = scmp.eq.s32.totalorder %s17, 0
      %p100 = por %p98, %p99
      %p101 = scmp.ne.s32.totalorder %s93, %s95
      %p102 = scmp.eq.s32.totalorder %s22, 1
      %p103 = por %p101, %p102
      %p104 = scmp.ne.s32.totalorder %s95, %s96
      %p105 = scmp.eq.s32.totalorder %s22, 0
      %p106 = por %p104, %p105
      %p107 = scmp.ne.s32.totalorder %s95, %s96
      %p108 = scmp.eq.s32.totalorder %s23, 1
      %p109 = por %p107, %p108
      %p111 = scmp.ne.s32.totalorder %s96, %s110
      %p112 = scmp.eq.s32.totalorder %s23, 0
      %p113 = por %p111, %p112
      %s115 = sadd.s32 %s114, 1
      %p118 = scmp.eq.s32.totalorder %s17, 1
      %p119 = scmp.ne.s32.totalorder %s114, %s116
      %p120 = scmp.eq.s32.totalorder %s17, 0
      %p121 = por %p119, %p120
      %p122 = scmp.ne.s32.totalorder %s114, %s116
      %p123 = scmp.eq.s32.totalorder %s22, 1
      %p124 = por %p122, %p123
      %p125 = scmp.ne.s32.totalorder %s116, %s117
      %p126 = scmp.eq.s32.totalorder %s22, 0
      %p127 = por %p125, %p126
      %p128 = scmp.ne.s32.totalorder %s116, %s117
      %p129 = scmp.eq.s32.totalorder %s23, 1
      %p130 = por %p128, %p129
      %p132 = scmp.ne.s32.totalorder %s117, %s131
      %p133 = scmp.eq.s32.totalorder %s23, 0
      %p134 = por %p132, %p133
      %s136 = sadd.s32 %s135, 1
      %p139 = scmp.eq.s32.totalorder %s17, 1
      %p140 = scmp.ne.s32.totalorder %s135, %s137
      %p141 = scmp.eq.s32.totalorder %s17, 0
      %p142 = por %p140, %p141
      %p143 = scmp.ne.s32.totalorder %s135, %s137
      %p144 = scmp.eq.s32.totalorder %s22, 1
      %p145 = por %p143, %p144
      %p146 = scmp.ne.s32.totalorder %s137, %s138
      %p147 = scmp.eq.s32.totalorder %s22, 0
      %p148 = por %p146, %p147
      %p149 = scmp.ne.s32.totalorder %s137, %s138
      %p150 = scmp.eq.s32.totalorder %s23, 1
      %p151 = por %p149, %p150
      %p153 = scmp.ne.s32.totalorder %s138, %s152
      %p154 = scmp.eq.s32.totalorder %s23, 0
      %p155 = por %p153, %p154
      %s157 = sadd.s32 %s156, 1
      %p160 = scmp.eq.s32.totalorder %s17, 1
      %p161 = scmp.ne.s32.totalorder %s156, %s158
      %p162 = scmp.eq.s32.totalorder %s17, 0
      %p163 = por %p161, %p162
      %p164 = scmp.ne.s32.totalorder %s156, %s158
      %p165 = scmp.eq.s32.totalorder %s22, 1
      %p166 = por %p164, %p165
      %p167 = scmp.ne.s32.totalorder %s158, %s159
      %p168 = scmp.eq.s32.totalorder %s22, 0
      %p169 = por %p167, %p168
      %p170 = scmp.ne.s32.totalorder %s158, %s159
      %p171 = scmp.eq.s32.totalorder %s23, 1
      %p172 = por %p170, %p171
      %p174 = scmp.ne.s32.totalorder %s159, %s173
      %p175 = scmp.eq.s32.totalorder %s23, 0
      %p176 = por %p174, %p175
      %s178 = sadd.s32 %s177, 1
      %p181 = scmp.eq.s32.totalorder %s17, 1
      %p182 = scmp.ne.s32.totalorder %s177, %s179
      %p183 = scmp.eq.s32.totalorder %s17, 0
      %p184 = por %p182, %p183
      %p185 = scmp.ne.s32.totalorder %s177, %s179
      %p186 = scmp.eq.s32.totalorder %s22, 1
      %p187 = por %p185, %p186
      %p188 = scmp.ne.s32.totalorder %s179, %s180
      %p189 = scmp.eq.s32.totalorder %s22, 0
      %p190 = por %p188, %p189
      %p191 = scmp.ne.s32.totalorder %s179, %s180
      %p192 = scmp.eq.s32.totalorder %s23, 1
      %p193 = por %p191, %p192
      %p195 = scmp.ne.s32.totalorder %s180, %s194
      %p196 = scmp.eq.s32.totalorder %s23, 0
      %p197 = por %p195, %p196
      %s198 = ssub.s32 %s17, %s24
      %p199 = scmp.eq.s32.totalorder %s198, 0
      %s201 = sadd.s32 %s200, 1
      %s202 = scalar_select %p199, %s200, %s201
      %p205 = pneg %p199
      %p206 = scmp.eq.s32.totalorder %s17, 1
      %p207 = por %p205, %p206
      %p208 = scmp.ne.s32.totalorder %s200, %s203
      %p209 = scmp.eq.s32.totalorder %s17, 0
      %p210 = por %p208, %p209
      %p211 = scmp.ne.s32.totalorder %s200, %s203
      %p212 = scmp.eq.s32.totalorder %s22, 1
      %p213 = por %p211, %p212
      %p214 = scmp.ne.s32.totalorder %s203, %s204
      %p215 = scmp.eq.s32.totalorder %s22, 0
      %p216 = por %p214, %p215
      %p217 = scmp.ne.s32.totalorder %s203, %s204
      %p218 = scmp.eq.s32.totalorder %s23, 1
      %p219 = por %p217, %p218
      %p221 = scmp.ne.s32.totalorder %s204, %s220
      %p222 = scmp.eq.s32.totalorder %s23, 0
      %p223 = por %p221, %p222
      %p224 = scmp.le.s32.totalorder 1, %s17
      %p225 = scmp.lt.s32.totalorder %s17, 3
      %p226 = pnand %p224, %p225
      %p227 = pneg %p226
      // Predicated region
      $region9: #{_lambda_.3} parent=5 // pred_check
        _
      $region10: #{_lambda_.3} parent=5 // pred_check_branch
        %229 = sbr.rel (%p226) target = $region12
      $region11: #{_lambda_.3} parent=5 // pred_region
        %s230 = ssub.s32 %s17, 1
        // Predicated region
        $region13: #{_lambda_.3} parent=11 // pred_check
          %p231 = pneg %p64
        $region14: #{_lambda_.3} parent=11 // pred_check_branch
          %233 = sbr.rel (%p231) target = $region16
        $region15: #{_lambda_.3} parent=11 // pred_region
          _
        $region16: #{_lambda_.3} parent=11 // pred_fallthru
          _
        // Predicated region
        $region17: #{_lambda_.3} parent=11 // pred_check
          %p234 = pneg %p85
        $region18: #{_lambda_.3} parent=11 // pred_check_branch
          %236 = sbr.rel (%p234) target = $region20
        $region19: #{_lambda_.3} parent=11 // pred_region
          _
        $region20: #{_lambda_.3} parent=11 // pred_fallthru
          _
        // Predicated region
        $region21: #{_lambda_.3} parent=11 // pred_check
          %p237 = pneg %p106
        $region22: #{_lambda_.3} parent=11 // pred_check_branch
          %239 = sbr.rel (%p237) target = $region24
        $region23: #{_lambda_.3} parent=11 // pred_region
          _
        $region24: #{_lambda_.3} parent=11 // pred_fallthru
          _
        // Predicated region
        $region25: #{_lambda_.3} parent=11 // pred_check
          %p240 = pneg %p127
        $region26: #{_lambda_.3} parent=11 // pred_check_branch
          %242 = sbr.rel (%p240) target = $region28
        $region27: #{_lambda_.3} parent=11 // pred_region
          _
        $region28: #{_lambda_.3} parent=11 // pred_fallthru
          _
        // Predicated region
        $region29: #{_lambda_.3} parent=11 // pred_check
          %p243 = pneg %p148
        $region30: #{_lambda_.3} parent=11 // pred_check_branch
          %245 = sbr.rel (%p243) target = $region32
        $region31: #{_lambda_.3} parent=11 // pred_region
          _
        $region32: #{_lambda_.3} parent=11 // pred_fallthru
          _
        // Predicated region
        $region33: #{_lambda_.3} parent=11 // pred_check
          %p246 = pneg %p169
        $region34: #{_lambda_.3} parent=11 // pred_check_branch
          %248 = sbr.rel (%p246) target = $region36
        $region35: #{_lambda_.3} parent=11 // pred_region
          _
        $region36: #{_lambda_.3} parent=11 // pred_fallthru
          _
        // Predicated region
        $region37: #{_lambda_.3} parent=11 // pred_check
          %p249 = pneg %p190
        $region38: #{_lambda_.3} parent=11 // pred_check_branch
          %251 = sbr.rel (%p249) target = $region40
        $region39: #{_lambda_.3} parent=11 // pred_region
          _
        $region40: #{_lambda_.3} parent=11 // pred_fallthru
          _
      $region12: #{_lambda_.3} parent=5 // pred_fallthru
        _
      %p252 = scmp.lt.s32.totalorder %s17, 2
      // Predicated region
      $region41: #{_lambda_.3} parent=5 // pred_check
        %p253 = pneg %p252
      $region42: #{_lambda_.3} parent=5 // pred_check_branch
        %255 = sbr.rel (%p253) target = $region44
      $region43: #{_lambda_.3} parent=5 // pred_region
        // Predicated region
        $region45: #{_lambda_.3} parent=43 // pred_check
          %p256 = pneg %p37
        $region46: #{_lambda_.3} parent=43 // pred_check_branch
          %258 = sbr.rel (%p256) target = $region48
        $region47: #{_lambda_.3} parent=43 // pred_region
          %p259 = scmp.lt.s32.totalorder %s17, 1
          %s260 = scalar_select %p259, %s17, 1
          %s261 = smul.addr %s260, 32
          %s262 = smul.addr %s261, 8
          %s263 = scalar_lea.vmem %s0, %s262
        $region48: #{_lambda_.3} parent=43 // pred_fallthru
          _
      $region44: #{_lambda_.3} parent=5 // pred_fallthru
        _
      %p264 = scmp.le.s32.totalorder 1, %s17
      %p265 = scmp.lt.s32.totalorder %s17, 3
      %p266 = pnand %p264, %p265
      %p267 = pneg %p266
      // Predicated region
      $region49: #{_lambda_.3} parent=5 // pred_check
        _
      $region50: #{_lambda_.3} parent=5 // pred_check_branch
        %269 = sbr.rel (%p266) target = $region52
      $region51: #{_lambda_.3} parent=5 // pred_region
        %s270 = ssub.s32 %s17, 1
        %p271 = scmp.lt.s32.totalorder %s22, 1
        %s272 = scalar_select %p271, %s22, 1
        %s273 = smul.addr %s272, 32
        %s274 = smul.addr %s273, 8
        %s275 = scalar_lea.vmem %s0, %s274
        %p276 = pneg %p43
        %p277 = pneg %p40
        %p278 = pneg %p64
        %p279 = pneg %p61
        %p280 = pneg %p85
        %p281 = pneg %p82
        %p282 = pneg %p106
        %p283 = pneg %p103
        %p284 = pneg %p127
        %p285 = pneg %p124
        %p286 = pneg %p148
        %p287 = pneg %p145
        %p288 = pneg %p169
        %p289 = pneg %p166
        %p290 = pneg %p190
        %p291 = pneg %p187
        %p292 = pneg %p216
        %p293 = pneg %p213
        %s294 = sand.u32 %s203, 1
        %s295 = scalar_lea.sflag [#allocation4], %s294
        %s296 = sand.u32 %s203, 1
        %s297 = smul.addr %s296, 256
        %s298 = scalar_lea.vmem [#allocation3], %s297
        %p299 = scmp.lt.s32.totalorder %s22, 1
        %s300 = scalar_select %p299, %s22, 1
        %s301 = smul.addr %s300, 32
        %s302 = smul.addr %s301, 8
        %s303 = scalar_lea.vmem %s0, %s302
        %v305 = vld [vmem:[%s303] sm:$0xff]
        %v306 = vld [vmem:[%s303 + $0x8] sm:$0xff]
        %v307 = vld [vmem:[%s303 + $0x10] sm:$0xff]
        %v308 = vld [vmem:[%s303 + $0x18] sm:$0xff]
        %v309 = vld [vmem:[%s303 + $0x20] sm:$0xff]
        %v310 = vld [vmem:[%s303 + $0x28] sm:$0xff]
        %v311 = vld [vmem:[%s303 + $0x30] sm:$0xff]
        %v312 = vld [vmem:[%s303 + $0x38] sm:$0xff]
        %v313 = vld [vmem:[%s303 + $0x40] sm:$0xff]
        %v314 = vld [vmem:[%s303 + $0x48] sm:$0xff]
        %v315 = vld [vmem:[%s303 + $0x50] sm:$0xff]
        %v316 = vld [vmem:[%s303 + $0x58] sm:$0xff]
        %v317 = vld [vmem:[%s303 + $0x60] sm:$0xff]
        %v318 = vld [vmem:[%s303 + $0x68] sm:$0xff]
        %v319 = vld [vmem:[%s303 + $0x70] sm:$0xff]
        %v320 = vld [vmem:[%s303 + $0x78] sm:$0xff]
        %v321 = vld [vmem:[%s303 + $0x80] sm:$0xff]
        %v322 = vld [vmem:[%s303 + $0x88] sm:$0xff]
        %v323 = vld [vmem:[%s303 + $0x90] sm:$0xff]
        %v324 = vld [vmem:[%s303 + $0x98] sm:$0xff]
        %v325 = vld [vmem:[%s303 + $0xa0] sm:$0xff]
        %v326 = vld [vmem:[%s303 + $0xa8] sm:$0xff]
        %v327 = vld [vmem:[%s303 + $0xb0] sm:$0xff]
        %v328 = vld [vmem:[%s303 + $0xb8] sm:$0xff]
        %v329 = vld [vmem:[%s303 + $0xc0] sm:$0xff]
        %v330 = vld [vmem:[%s303 + $0xc8] sm:$0xff]
        %v331 = vld [vmem:[%s303 + $0xd0] sm:$0xff]
        %v332 = vld [vmem:[%s303 + $0xd8] sm:$0xff]
        %v333 = vld [vmem:[%s303 + $0xe0] sm:$0xff]
        %v334 = vld [vmem:[%s303 + $0xe8] sm:$0xff]
        %v335 = vld [vmem:[%s303 + $0xf0] sm:$0xff]
        %v336 = vld [vmem:[%s303 + $0xf8] sm:$0xff]
        %v337 = vld [vmem:[%s1] sm:$0x1]
        %v339 = vlaneseq
        %v340 = vshrl.u32 %v339, 7
        %v341 = vsub.s32 0, %v340
        %v342 = vrot.slane %v337, %v341
        %v344 = vmul.f32 %v305, %v342
        %v345 = vmul.f32 %v306, %v342
        %v346 = vmul.f32 %v307, %v342
        %v347 = vmul.f32 %v308, %v342
        %v348 = vmul.f32 %v309, %v342
        %v349 = vmul.f32 %v310, %v342
        %v350 = vmul.f32 %v311, %v342
        %v351 = vmul.f32 %v312, %v342
        %v352 = vmul.f32 %v313, %v342
        %v353 = vmul.f32 %v314, %v342
        %v354 = vmul.f32 %v315, %v342
        %v355 = vmul.f32 %v316, %v342
        %v356 = vmul.f32 %v317, %v342
        %v357 = vmul.f32 %v318, %v342
        %v358 = vmul.f32 %v319, %v342
        %v359 = vmul.f32 %v320, %v342
        %v360 = vmul.f32 %v321, %v342
        %v361 = vmul.f32 %v322, %v342
        %v362 = vmul.f32 %v323, %v342
        %v363 = vmul.f32 %v324, %v342
        %v364 = vmul.f32 %v325, %v342
        %v365 = vmul.f32 %v326, %v342
        %v366 = vmul.f32 %v327, %v342
        %v367 = vmul.f32 %v328, %v342
        %v368 = vmul.f32 %v329, %v342
        %v369 = vmul.f32 %v330, %v342
        %v370 = vmul.f32 %v331, %v342
        %v371 = vmul.f32 %v332, %v342
        %v372 = vmul.f32 %v333, %v342
        %v373 = vmul.f32 %v334, %v342
        %v374 = vmul.f32 %v335, %v342
        %v375 = vmul.f32 %v336, %v342
        %v376 = vld [vmem:[%s2] sm:$0x1]
        %v378 = vlaneseq
        %v379 = vshrl.u32 %v378, 7
        %v380 = vsub.s32 0, %v379
        %v381 = vrot.slane %v376, %v380
        %v383 = vadd.f32 %v344, %v381
        %v384 = vadd.f32 %v345, %v381
        %v385 = vadd.f32 %v346, %v381
        %v386 = vadd.f32 %v347, %v381
        %v387 = vadd.f32 %v348, %v381
        %v388 = vadd.f32 %v349, %v381
        %v389 = vadd.f32 %v350, %v381
        %v390 = vadd.f32 %v351, %v381
        %v391 = vadd.f32 %v352, %v381
        %v392 = vadd.f32 %v353, %v381
        %v393 = vadd.f32 %v354, %v381
        %v394 = vadd.f32 %v355, %v381
        %v395 = vadd.f32 %v356, %v381
        %v396 = vadd.f32 %v357, %v381
        %v397 = vadd.f32 %v358, %v381
        %v398 = vadd.f32 %v359, %v381
        %v399 = vadd.f32 %v360, %v381
        %v400 = vadd.f32 %v361, %v381
        %v401 = vadd.f32 %v362, %v381
        %v402 = vadd.f32 %v363, %v381
        %v403 = vadd.f32 %v364, %v381
        %v404 = vadd.f32 %v365, %v381
        %v405 = vadd.f32 %v366, %v381
        %v406 = vadd.f32 %v367, %v381
        %v407 = vadd.f32 %v368, %v381
        %v408 = vadd.f32 %v369, %v381
        %v409 = vadd.f32 %v370, %v381
        %v410 = vadd.f32 %v371, %v381
        %v411 = vadd.f32 %v372, %v381
        %v412 = vadd.f32 %v373, %v381
        %v413 = vadd.f32 %v374, %v381
        %v414 = vadd.f32 %v375, %v381
        %v415 = vmax.f32 %v383, 0.0
        %v416 = vmax.f32 %v384, 0.0
        %v417 = vmax.f32 %v385, 0.0
        %v418 = vmax.f32 %v386, 0.0
        %v419 = vmax.f32 %v387, 0.0
        %v420 = vmax.f32 %v388, 0.0
        %v421 = vmax.f32 %v389, 0.0
        %v422 = vmax.f32 %v390, 0.0
        %v423 = vmax.f32 %v391, 0.0
        %v424 = vmax.f32 %v392, 0.0
        %v425 = vmax.f32 %v393, 0.0
        %v426 = vmax.f32 %v394, 0.0
        %v427 = vmax.f32 %v395, 0.0
        %v428 = vmax.f32 %v396, 0.0
        %v429 = vmax.f32 %v397, 0.0
        %v430 = vmax.f32 %v398, 0.0
        %v431 = vmax.f32 %v399, 0.0
        %v432 = vmax.f32 %v400, 0.0
        %v433 = vmax.f32 %v401, 0.0
        %v434 = vmax.f32 %v402, 0.0
        %v435 = vmax.f32 %v403, 0.0
        %v436 = vmax.f32 %v404, 0.0
        %v437 = vmax.f32 %v405, 0.0
        %v438 = vmax.f32 %v406, 0.0
        %v439 = vmax.f32 %v407, 0.0
        %v440 = vmax.f32 %v408, 0.0
        %v441 = vmax.f32 %v409, 0.0
        %v442 = vmax.f32 %v410, 0.0
        %v443 = vmax.f32 %v411, 0.0
        %v444 = vmax.f32 %v412, 0.0
        %v445 = vmax.f32 %v413, 0.0
        %v446 = vmax.f32 %v414, 0.0
        %v447 = vpack.c.bf16 %v416, %v415
        %v448 = vpack.c.bf16 %v418, %v417
        %v449 = vpack.c.bf16 %v420, %v419
        %v450 = vpack.c.bf16 %v422, %v421
        %v451 = vpack.c.bf16 %v424, %v423
        %v452 = vpack.c.bf16 %v426, %v425
        %v453 = vpack.c.bf16 %v428, %v427
        %v454 = vpack.c.bf16 %v430, %v429
        %v455 = vpack.c.bf16 %v432, %v431
        %v456 = vpack.c.bf16 %v434, %v433
        %v457 = vpack.c.bf16 %v436, %v435
        %v458 = vpack.c.bf16 %v438, %v437
        %v459 = vpack.c.bf16 %v440, %v439
        %v460 = vpack.c.bf16 %v442, %v441
        %v461 = vpack.c.bf16 %v444, %v443
        %v462 = vpack.c.bf16 %v446, %v445
        %v463 = vld [vmem:[%s3] sm:$0xf]
        %vm464 = vcmask 64512
        %v466 = vsel %vm464, %v447, 0
        %v469 = vsel %vm464, %v448, 0
        %v472 = vsel %vm464, %v449, 0
        %v475 = vsel %vm464, %v450, 0
        %v478 = vsel %vm464, %v451, 0
        %v481 = vsel %vm464, %v452, 0
        %v484 = vsel %vm464, %v453, 0
        %v487 = vsel %vm464, %v454, 0
        %v490 = vsel %vm464, %v455, 0
        %v493 = vsel %vm464, %v456, 0
        %v496 = vsel %vm464, %v457, 0
        %v499 = vsel %vm464, %v458, 0
        %v502 = vsel %vm464, %v459, 0
        %v505 = vsel %vm464, %v460, 0
        %v508 = vsel %vm464, %v461, 0
        %v511 = vsel %vm464, %v462, 0
        %vm513 = vcmask 1043456
        %v515 = vsel %vm513, %v463, 0
        %517 = vmatprep.subr.bf16.mxu0 0
        %518 = vmatpush1.bf16.msra.mxu0 %v515
        %519 = vmatprep.subr.bf16.mxu0 0
        %520 = vmatpush1.bf16.msra.mxu0 0
        %521 = vmatprep.subr.bf16.mxu0 0
        %522 = vmatpush1.bf16.msra.mxu0 0
        %523 = vmatprep.subr.bf16.mxu0 0
        %524 = vmatpush1.bf16.msra.mxu0 0
        %525 = vmatprep.subr.bf16.mxu0 0
        %526 = vmatpush1.bf16.msra.mxu0 0
        %527 = vmatprep.subr.bf16.mxu0 0
        %528 = vmatpush1.bf16.msra.mxu0 0
        %529 = vmatprep.subr.bf16.mxu0 0
        %530 = vmatpush1.bf16.msra.mxu0 0
        %531 = vmatprep.subr.bf16.mxu0 0
        %532 = vmatpush1.bf16.msra.mxu0 0
        %533 = vmatprep.subr.bf16.mxu0 0
        %534 = vmatpush1.bf16.msra.mxu0 0
        %535 = vmatprep.subr.bf16.mxu0 0
        %536 = vmatpush1.bf16.msra.mxu0 0
        %537 = vmatprep.subr.bf16.mxu0 0
        %538 = vmatpush1.bf16.msra.mxu0 0
        %539 = vmatprep.subr.bf16.mxu0 0
        %540 = vmatpush1.bf16.msra.mxu0 0
        %541 = vmatprep.subr.bf16.mxu0 0
        %542 = vmatpush1.bf16.msra.mxu0 0
        %543 = vmatprep.subr.bf16.mxu0 0
        %544 = vmatpush1.bf16.msra.mxu0 0
        %545 = vmatprep.subr.bf16.mxu0 0
        %546 = vmatpush1.bf16.msra.mxu0 0
        %547 = vmatprep.subr.bf16.mxu0 0
        %548 = vmatpush1.bf16.msra.mxu0 0
        %549 = vmatprep.mubr.bf16.mxu0 0
        %550 = vmatmul.mubr.bf16.gmra.mrb[0].mxu0 %v466
        %v551 = vpop.f32.mrb[0].mxu0
        %v552 = vadd.f32 0.0, %v551
        %v553 = vpop.f32.mrb[0].mxu0
        %v554 = vpop.f32.mrb[0].mxu0
        %v555 = vadd.f32 0.0, %v554
        %v556 = vpop.f32.mrb[0].mxu0
        %557 = vmatprep.mubr.bf16.mxu0 0
        %558 = vmatmul.mubr.bf16.gmra.mrb[0].mxu0 %v469
        %v559 = vpop.f32.mrb[0].mxu0
        %v560 = vadd.f32 0.0, %v559
        %v561 = vpop.f32.mrb[0].mxu0
        %v562 = vpop.f32.mrb[0].mxu0
        %v563 = vadd.f32 0.0, %v562
        %v564 = vpop.f32.mrb[0].mxu0
        %565 = vmatprep.mubr.bf16.mxu0 0
        %566 = vmatmul.mubr.bf16.gmra.mrb[0].mxu0 %v472
        %v567 = vpop.f32.mrb[0].mxu0
        %v568 = vadd.f32 0.0, %v567
        %v569 = vpop.f32.mrb[0].mxu0
        %v570 = vpop.f32.mrb[0].mxu0
        %v571 = vadd.f32 0.0, %v570
        %v572 = vpop.f32.mrb[0].mxu0
        %573 = vmatprep.mubr.bf16.mxu0 0
        %574 = vmatmul.mubr.bf16.gmra.mrb[0].mxu0 %v475
        %v575 = vpop.f32.mrb[0].mxu0
        %v576 = vadd.f32 0.0, %v575
        %v577 = vpop.f32.mrb[0].mxu0
        %v578 = vpop.f32.mrb[0].mxu0
        %v579 = vadd.f32 0.0, %v578
        %v580 = vpop.f32.mrb[0].mxu0
        %581 = vmatprep.mubr.bf16.mxu0 0
        %582 = vmatmul.mubr.bf16.gmra.mrb[0].mxu0 %v478
        %v583 = vpop.f32.mrb[0].mxu0
        %v584 = vadd.f32 0.0, %v583
        %v585 = vpop.f32.mrb[0].mxu0
        %v586 = vpop.f32.mrb[0].mxu0
        %v587 = vadd.f32 0.0, %v586
        %v588 = vpop.f32.mrb[0].mxu0
        %589 = vmatprep.mubr.bf16.mxu0 0
        %590 = vmatmul.mubr.bf16.gmra.mrb[0].mxu0 %v481
        %v591 = vpop.f32.mrb[0].mxu0
        %v592 = vadd.f32 0.0, %v591
        %v593 = vpop.f32.mrb[0].mxu0
        %v594 = vpop.f32.mrb[0].mxu0
        %v595 = vadd.f32 0.0, %v594
        %v596 = vpop.f32.mrb[0].mxu0
        %597 = vmatprep.mubr.bf16.mxu0 0
        %598 = vmatmul.mubr.bf16.gmra.mrb[0].mxu0 %v484
        %v599 = vpop.f32.mrb[0].mxu0
        %v600 = vadd.f32 0.0, %v599
        %v601 = vpop.f32.mrb[0].mxu0
        %v602 = vpop.f32.mrb[0].mxu0
        %v603 = vadd.f32 0.0, %v602
        %v604 = vpop.f32.mrb[0].mxu0
        %605 = vmatprep.mubr.bf16.mxu0 0
        %606 = vmatmul.mubr.bf16.gmra.mrb[0].mxu0 %v487
        %v607 = vpop.f32.mrb[0].mxu0
        %v608 = vadd.f32 0.0, %v607
        %v609 = vpop.f32.mrb[0].mxu0
        %v610 = vpop.f32.mrb[0].mxu0
        %v611 = vadd.f32 0.0, %v610
        %v612 = vpop.f32.mrb[0].mxu0
        %613 = vmatprep.mubr.bf16.mxu0 0
        %614 = vmatmul.mubr.bf16.gmra.mrb[0].mxu0 %v490
        %v615 = vpop.f32.mrb[0].mxu0
        %v616 = vadd.f32 0.0, %v615
        %v617 = vpop.f32.mrb[0].mxu0
        %v618 = vpop.f32.mrb[0].mxu0
        %v619 = vadd.f32 0.0, %v618
        %v620 = vpop.f32.mrb[0].mxu0
        %621 = vmatprep.mubr.bf16.mxu0 0
        %622 = vmatmul.mubr.bf16.gmra.mrb[0].mxu0 %v493
        %v623 = vpop.f32.mrb[0].mxu0
        %v624 = vadd.f32 0.0, %v623
        %v625 = vpop.f32.mrb[0].mxu0
        %v626 = vpop.f32.mrb[0].mxu0
        %v627 = vadd.f32 0.0, %v626
        %v628 = vpop.f32.mrb[0].mxu0
        %629 = vmatprep.mubr.bf16.mxu0 0
        %630 = vmatmul.mubr.bf16.gmra.mrb[0].mxu0 %v496
        %v631 = vpop.f32.mrb[0].mxu0
        %v632 = vadd.f32 0.0, %v631
        %v633 = vpop.f32.mrb[0].mxu0
        %v634 = vpop.f32.mrb[0].mxu0
        %v635 = vadd.f32 0.0, %v634
        %v636 = vpop.f32.mrb[0].mxu0
        %637 = vmatprep.mubr.bf16.mxu0 0
        %638 = vmatmul.mubr.bf16.gmra.mrb[0].mxu0 %v499
        %v639 = vpop.f32.mrb[0].mxu0
        %v640 = vadd.f32 0.0, %v639
        %v641 = vpop.f32.mrb[0].mxu0
        %v642 = vpop.f32.mrb[0].mxu0
        %v643 = vadd.f32 0.0, %v642
        %v644 = vpop.f32.mrb[0].mxu0
        %645 = vmatprep.mubr.bf16.mxu0 0
        %646 = vmatmul.mubr.bf16.gmra.mrb[0].mxu0 %v502
        %v647 = vpop.f32.mrb[0].mxu0
        %v648 = vadd.f32 0.0, %v647
        %v649 = vpop.f32.mrb[0].mxu0
        %v650 = vpop.f32.mrb[0].mxu0
        %v651 = vadd.f32 0.0, %v650
        %v652 = vpop.f32.mrb[0].mxu0
        %653 = vmatprep.mubr.bf16.mxu0 0
        %654 = vmatmul.mubr.bf16.gmra.mrb[0].mxu0 %v505
        %v655 = vpop.f32.mrb[0].mxu0
        %v656 = vadd.f32 0.0, %v655
        %v657 = vpop.f32.mrb[0].mxu0
        %v658 = vpop.f32.mrb[0].mxu0
        %v659 = vadd.f32 0.0, %v658
        %v660 = vpop.f32.mrb[0].mxu0
        %661 = vmatprep.mubr.bf16.mxu0 0
        %662 = vmatmul.mubr.bf16.gmra.mrb[0].mxu0 %v508
        %v663 = vpop.f32.mrb[0].mxu0
        %v664 = vadd.f32 0.0, %v663
        %v665 = vpop.f32.mrb[0].mxu0
        %v666 = vpop.f32.mrb[0].mxu0
        %v667 = vadd.f32 0.0, %v666
        %v668 = vpop.f32.mrb[0].mxu0
        %669 = vmatprep.mubr.bf16.mxu0 0
        %670 = vmatmul.mubr.bf16.gmra.mrb[0].mxu0 %v511
        %v671 = vpop.f32.mrb[0].mxu0
        %v672 = vadd.f32 0.0, %v671
        %v673 = vpop.f32.mrb[0].mxu0
        %v674 = vpop.f32.mrb[0].mxu0
        %v675 = vadd.f32 0.0, %v674
        %v676 = vpop.f32.mrb[0].mxu0
        %677 = vdwg.mxu0
        %v678 = vld [vmem:[%s4] sm:$0x1]
        %v680 = vlaneseq
        %v681 = vshrl.u32 %v680, 7
        %v682 = vsub.s32 0, %v681
        %v683 = vrot.slane %v678, %v682
        %v685 = vmul.f32 %v552, %v683
        %v686 = vmul.f32 %v555, %v683
        %v687 = vmul.f32 %v560, %v683
        %v688 = vmul.f32 %v563, %v683
        %v689 = vmul.f32 %v568, %v683
        %v690 = vmul.f32 %v571, %v683
        %v691 = vmul.f32 %v576, %v683
        %v692 = vmul.f32 %v579, %v683
        %v693 = vmul.f32 %v584, %v683
        %v694 = vmul.f32 %v587, %v683
        %v695 = vmul.f32 %v592, %v683
        %v696 = vmul.f32 %v595, %v683
        %v697 = vmul.f32 %v600, %v683
        %v698 = vmul.f32 %v603, %v683
        %v699 = vmul.f32 %v608, %v683
        %v700 = vmul.f32 %v611, %v683
        %v701 = vmul.f32 %v616, %v683
        %v702 = vmul.f32 %v619, %v683
        %v703 = vmul.f32 %v624, %v683
        %v704 = vmul.f32 %v627, %v683
        %v705 = vmul.f32 %v632, %v683
        %v706 = vmul.f32 %v635, %v683
        %v707 = vmul.f32 %v640, %v683
        %v708 = vmul.f32 %v643, %v683
        %v709 = vmul.f32 %v648, %v683
        %v710 = vmul.f32 %v651, %v683
        %v711 = vmul.f32 %v656, %v683
        %v712 = vmul.f32 %v659, %v683
        %v713 = vmul.f32 %v664, %v683
        %v714 = vmul.f32 %v667, %v683
        %v715 = vmul.f32 %v672, %v683
        %v716 = vmul.f32 %v675, %v683
        %v717 = vld [vmem:[%s5] sm:$0x1]
        %v719 = vlaneseq
        %v720 = vshrl.u32 %v719, 7
        %v721 = vsub.s32 0, %v720
        %v722 = vrot.slane %v717, %v721
        %v724 = vadd.f32 %v685, %v722
        %v725 = vadd.f32 %v686, %v722
        %v726 = vadd.f32 %v687, %v722
        %v727 = vadd.f32 %v688, %v722
        %v728 = vadd.f32 %v689, %v722
        %v729 = vadd.f32 %v690, %v722
        %v730 = vadd.f32 %v691, %v722
        %v731 = vadd.f32 %v692, %v722
        %v732 = vadd.f32 %v693, %v722
        %v733 = vadd.f32 %v694, %v722
        %v734 = vadd.f32 %v695, %v722
        %v735 = vadd.f32 %v696, %v722
        %v736 = vadd.f32 %v697, %v722
        %v737 = vadd.f32 %v698, %v722
        %v738 = vadd.f32 %v699, %v722
        %v739 = vadd.f32 %v700, %v722
        %v740 = vadd.f32 %v701, %v722
        %v741 = vadd.f32 %v702, %v722
        %v742 = vadd.f32 %v703, %v722
        %v743 = vadd.f32 %v704, %v722
        %v744 = vadd.f32 %v705, %v722
        %v745 = vadd.f32 %v706, %v722
        %v746 = vadd.f32 %v707, %v722
        %v747 = vadd.f32 %v708, %v722
        %v748 = vadd.f32 %v709, %v722
        %v749 = vadd.f32 %v710, %v722
        %v750 = vadd.f32 %v711, %v722
        %v751 = vadd.f32 %v712, %v722
        %v752 = vadd.f32 %v713, %v722
        %v753 = vadd.f32 %v714, %v722
        %v754 = vadd.f32 %v715, %v722
        %v755 = vadd.f32 %v716, %v722
        %v756 = vmax.f32 %v724, 0.0
        %v757 = vmax.f32 %v725, 0.0
        %v758 = vmax.f32 %v726, 0.0
        %v759 = vmax.f32 %v727, 0.0
        %v760 = vmax.f32 %v728, 0.0
        %v761 = vmax.f32 %v729, 0.0
        %v762 = vmax.f32 %v730, 0.0
        %v763 = vmax.f32 %v731, 0.0
        %v764 = vmax.f32 %v732, 0.0
        %v765 = vmax.f32 %v733, 0.0
        %v766 = vmax.f32 %v734, 0.0
        %v767 = vmax.f32 %v735, 0.0
        %v768 = vmax.f32 %v736, 0.0
        %v769 = vmax.f32 %v737, 0.0
        %v770 = vmax.f32 %v738, 0.0
        %v771 = vmax.f32 %v739, 0.0
        %v772 = vmax.f32 %v740, 0.0
        %v773 = vmax.f32 %v741, 0.0
        %v774 = vmax.f32 %v742, 0.0
        %v775 = vmax.f32 %v743, 0.0
        %v776 = vmax.f32 %v744, 0.0
        %v777 = vmax.f32 %v745, 0.0
        %v778 = vmax.f32 %v746, 0.0
        %v779 = vmax.f32 %v747, 0.0
        %v780 = vmax.f32 %v748, 0.0
        %v781 = vmax.f32 %v749, 0.0
        %v782 = vmax.f32 %v750, 0.0
        %v783 = vmax.f32 %v751, 0.0
        %v784 = vmax.f32 %v752, 0.0
        %v785 = vmax.f32 %v753, 0.0
        %v786 = vmax.f32 %v754, 0.0
        %v787 = vmax.f32 %v755, 0.0
        %vm788 = vcmask 130048
        %789 = vst.msk [vmem:[#allocation2] sm:$0xff] %vm788, 0.0
        %790 = vst.msk [vmem:[#allocation2 + $0x8] sm:$0xff] %vm788, 0.0
        %791 = vst.msk [vmem:[#allocation2 + $0x10] sm:$0xff] %vm788, 0.0
        %792 = vst.msk [vmem:[#allocation2 + $0x18] sm:$0xff] %vm788, 0.0
        %793 = vst.msk [vmem:[#allocation2 + $0x20] sm:$0xff] %vm788, 0.0
        %794 = vst.msk [vmem:[#allocation2 + $0x28] sm:$0xff] %vm788, 0.0
        %795 = vst.msk [vmem:[#allocation2 + $0x30] sm:$0xff] %vm788, 0.0
        %796 = vst.msk [vmem:[#allocation2 + $0x38] sm:$0xff] %vm788, 0.0
        %797 = vst.msk [vmem:[#allocation2 + $0x40] sm:$0xff] %vm788, 0.0
        %798 = vst.msk [vmem:[#allocation2 + $0x48] sm:$0xff] %vm788, 0.0
        %s799 = scalar_lea.vmem [#allocation2], 400
        %800 = vst.msk [vmem:[%s799] sm:$0xff] %vm788, 0.0
        %801 = vst.msk [vmem:[%s799 + $0x8] sm:$0xff] %vm788, 0.0
        %802 = vst.msk [vmem:[%s799 + $0x10] sm:$0xff] %vm788, 0.0
        %803 = vst.msk [vmem:[%s799 + $0x18] sm:$0xff] %vm788, 0.0
        %804 = vst.msk [vmem:[%s799 + $0x20] sm:$0xff] %vm788, 0.0
        %805 = vst.msk [vmem:[%s799 + $0x28] sm:$0xff] %vm788, 0.0
        %806 = vst.msk [vmem:[%s799 + $0x30] sm:$0xff] %vm788, 0.0
        %807 = vst.msk [vmem:[%s799 + $0x38] sm:$0xff] %vm788, 0.0
        %808 = vst.msk [vmem:[%s799 + $0x40] sm:$0xff] %vm788, 0.0
        %809 = vst.msk [vmem:[%s799 + $0x48] sm:$0xff] %vm788, 0.0
        %s810 = scalar_lea.vmem [#allocation2], 80
        %811 = vst.msk [vmem:[%s810] sm:$0xff] %vm788, 0.0
        %812 = vst.msk [vmem:[%s810 + $0x50] sm:$0xff] %vm788, 0.0
        %813 = vst.msk [vmem:[%s810 + $0xa0] sm:$0xff] %vm788, 0.0
        %814 = vst.msk [vmem:[%s810 + $0xf0] sm:$0xff] %vm788, 0.0
        %s815 = scalar_lea.vmem [#allocation2], 152
        %816 = vst.msk [vmem:[%s815] sm:$0xff] %vm788, 0.0
        %817 = vst.msk [vmem:[%s815 + $0x50] sm:$0xff] %vm788, 0.0
        %818 = vst.msk [vmem:[%s815 + $0xa0] sm:$0xff] %vm788, 0.0
        %819 = vst.msk [vmem:[%s815 + $0xf0] sm:$0xff] %vm788, 0.0
        %s820 = scalar_lea.vmem [#allocation2], 88
        %821 = vst.msk [vmem:[%s820] sm:$0xff] %vm788, %v756
        %822 = vst.msk [vmem:[%s820 + $0x8] sm:$0xff] %vm788, %v757
        %823 = vst.msk [vmem:[%s820 + $0x10] sm:$0xff] %vm788, %v758
        %824 = vst.msk [vmem:[%s820 + $0x18] sm:$0xff] %vm788, %v759
        %825 = vst.msk [vmem:[%s820 + $0x20] sm:$0xff] %vm788, %v760
        %826 = vst.msk [vmem:[%s820 + $0x28] sm:$0xff] %vm788, %v761
        %827 = vst.msk [vmem:[%s820 + $0x30] sm:$0xff] %vm788, %v762
        %828 = vst.msk [vmem:[%s820 + $0x38] sm:$0xff] %vm788, %v763
        %829 = vst.msk [vmem:[%s820 + $0x50] sm:$0xff] %vm788, %v764
        %830 = vst.msk [vmem:[%s820 + $0x58] sm:$0xff] %vm788, %v765
        %831 = vst.msk [vmem:[%s820 + $0x60] sm:$0xff] %vm788, %v766
        %832 = vst.msk [vmem:[%s820 + $0x68] sm:$0xff] %vm788, %v767
        %833 = vst.msk [vmem:[%s820 + $0x70] sm:$0xff] %vm788, %v768
        %834 = vst.msk [vmem:[%s820 + $0x78] sm:$0xff] %vm788, %v769
        %835 = vst.msk [vmem:[%s820 + $0x80] sm:$0xff] %vm788, %v770
        %836 = vst.msk [vmem:[%s820 + $0x88] sm:$0xff] %vm788, %v771
        %837 = vst.msk [vmem:[%s820 + $0xa0] sm:$0xff] %vm788, %v772
        %838 = vst.msk [vmem:[%s820 + $0xa8] sm:$0xff] %vm788, %v773
        %839 = vst.msk [vmem:[%s820 + $0xb0] sm:$0xff] %vm788, %v774
        %840 = vst.msk [vmem:[%s820 + $0xb8] sm:$0xff] %vm788, %v775
        %841 = vst.msk [vmem:[%s820 + $0xc0] sm:$0xff] %vm788, %v776
        %842 = vst.msk [vmem:[%s820 + $0xc8] sm:$0xff] %vm788, %v777
        %843 = vst.msk [vmem:[%s820 + $0xd0] sm:$0xff] %vm788, %v778
        %844 = vst.msk [vmem:[%s820 + $0xd8] sm:$0xff] %vm788, %v779
        %845 = vst.msk [vmem:[%s820 + $0xf0] sm:$0xff] %vm788, %v780
        %846 = vst.msk [vmem:[%s820 + $0xf8] sm:$0xff] %vm788, %v781
        %847 = vst.msk [vmem:[%s820 + $0x100] sm:$0xff] %vm788, %v782
        %848 = vst.msk [vmem:[%s820 + $0x108] sm:$0xff] %vm788, %v783
        %849 = vst.msk [vmem:[%s820 + $0x110] sm:$0xff] %vm788, %v784
        %850 = vst.msk [vmem:[%s820 + $0x118] sm:$0xff] %vm788, %v785
        %851 = vst.msk [vmem:[%s820 + $0x120] sm:$0xff] %vm788, %v786
        %852 = vst.msk [vmem:[%s820 + $0x128] sm:$0xff] %vm788, %v787
        %v853 = vld [vmem:[%s6] sm:$0xff]
        %v854 = vld [vmem:[%s6 + $0x8] sm:$0xff]
        %v855 = vld [vmem:[%s6 + $0x10] sm:$0xff]
        %v856 = vld [vmem:[%s6 + $0x18] sm:$0x7]
        %v857 = vld [vmem:[#allocation2] sm:$0xff]
        %v858 = vld [vmem:[#allocation2 + $0x8] sm:$0xff]
        %v859 = vld [vmem:[#allocation2 + $0x10] sm:$0xff]
        %v860 = vld [vmem:[#allocation2 + $0x18] sm:$0xff]
        %v861 = vld [vmem:[#allocation2 + $0x20] sm:$0xff]
        %v862 = vld [vmem:[#allocation2 + $0x28] sm:$0xff]
        %v863 = vld [vmem:[#allocation2 + $0x30] sm:$0xff]
        %v864 = vld [vmem:[#allocation2 + $0x38] sm:$0xff]
        %v865 = vld [vmem:[#allocation2 + $0x50] sm:$0xff]
        %v866 = vld [vmem:[#allocation2 + $0x58] sm:$0xff]
        %v867 = vld [vmem:[#allocation2 + $0x60] sm:$0xff]
        %v868 = vld [vmem:[#allocation2 + $0x68] sm:$0xff]
        %v869 = vld [vmem:[#allocation2 + $0x70] sm:$0xff]
        %v870 = vld [vmem:[#allocation2 + $0x78] sm:$0xff]
        %v871 = vld [vmem:[#allocation2 + $0x80] sm:$0xff]
        %v872 = vld [vmem:[#allocation2 + $0x88] sm:$0xff]
        %v873 = vld [vmem:[#allocation2 + $0xa0] sm:$0xff]
        %v874 = vld [vmem:[#allocation2 + $0xa8] sm:$0xff]
        %v875 = vld [vmem:[#allocation2 + $0xb0] sm:$0xff]
        %v876 = vld [vmem:[#allocation2 + $0xb8] sm:$0xff]
        %v877 = vld [vmem:[#allocation2 + $0xc0] sm:$0xff]
        %v878 = vld [vmem:[#allocation2 + $0xc8] sm:$0xff]
        %v879 = vld [vmem:[#allocation2 + $0xd0] sm:$0xff]
        %v880 = vld [vmem:[#allocation2 + $0xd8] sm:$0xff]
        %v881 = vld [vmem:[#allocation2 + $0xf0] sm:$0xff]
        %v882 = vld [vmem:[#allocation2 + $0xf8] sm:$0xff]
        %v883 = vld [vmem:[#allocation2 + $0x100] sm:$0xff]
        %v884 = vld [vmem:[#allocation2 + $0x108] sm:$0xff]
        %v885 = vld [vmem:[#allocation2 + $0x110] sm:$0xff]
        %v886 = vld [vmem:[#allocation2 + $0x118] sm:$0xff]
        %v887 = vld [vmem:[#allocation2 + $0x120] sm:$0xff]
        %v888 = vld [vmem:[#allocation2 + $0x128] sm:$0xff]
        %v889 = vlaneseq
        %v890 = vshrl.u32 %v889, 7
        %v891 = vsub.s32 0, %v890
        %v892 = vrot.slane %v853, %v891
        %v893 = vmul.f32 %v857, %v892
        %v894 = vmul.f32 %v858, %v892
        %v895 = vmul.f32 %v859, %v892
        %v896 = vmul.f32 %v860, %v892
        %v897 = vmul.f32 %v861, %v892
        %v898 = vmul.f32 %v862, %v892
        %v899 = vmul.f32 %v863, %v892
        %v900 = vmul.f32 %v864, %v892
        %v901 = vmul.f32 %v865, %v892
        %v902 = vmul.f32 %v866, %v892
        %v903 = vmul.f32 %v867, %v892
        %v904 = vmul.f32 %v868, %v892
        %v905 = vmul.f32 %v869, %v892
        %v906 = vmul.f32 %v870, %v892
        %v907 = vmul.f32 %v871, %v892
        %v908 = vmul.f32 %v872, %v892
        %v909 = vmul.f32 %v873, %v892
        %v910 = vmul.f32 %v874, %v892
        %v911 = vmul.f32 %v875, %v892
        %v912 = vmul.f32 %v876, %v892
        %v913 = vmul.f32 %v877, %v892
        %v914 = vmul.f32 %v878, %v892
        %v915 = vmul.f32 %v879, %v892
        %v916 = vmul.f32 %v880, %v892
        %v917 = vmul.f32 %v881, %v892
        %v918 = vmul.f32 %v882, %v892
        %v919 = vmul.f32 %v883, %v892
        %v920 = vmul.f32 %v884, %v892
        %v921 = vmul.f32 %v885, %v892
        %v922 = vmul.f32 %v886, %v892
        %v923 = vmul.f32 %v887, %v892
        %v924 = vmul.f32 %v888, %v892
        %v925 = vlaneseq
        %v926 = vshrl.u32 %v925, 7
        %v927 = vsub.s32 1, %v926
        %v928 = vrot.slane %v853, %v927
        %v929 = vmul.f32 %v857, %v928
        %v930 = vmul.f32 %v858, %v928
        %v931 = vmul.f32 %v859, %v928
        %v932 = vmul.f32 %v860, %v928
        %v933 = vmul.f32 %v861, %v928
        %v934 = vmul.f32 %v862, %v928
        %v935 = vmul.f32 %v863, %v928
        %v936 = vmul.f32 %v864, %v928
        %v937 = vmul.f32 %v865, %v928
        %v938 = vmul.f32 %v866, %v928
        %v939 = vmul.f32 %v867, %v928
        %v940 = vmul.f32 %v868, %v928
        %v941 = vmul.f32 %v869, %v928
        %v942 = vmul.f32 %v870, %v928
        %v943 = vmul.f32 %v871, %v928
        %v944 = vmul.f32 %v872, %v928
        %v945 = vmul.f32 %v873, %v928
        %v946 = vmul.f32 %v874, %v928
        %v947 = vmul.f32 %v875, %v928
        %v948 = vmul.f32 %v876, %v928
        %v949 = vmul.f32 %v877, %v928
        %v950 = vmul.f32 %v878, %v928
        %v951 = vmul.f32 %v879, %v928
        %v952 = vmul.f32 %v880, %v928
        %v953 = vmul.f32 %v881, %v928
        %v954 = vmul.f32 %v882, %v928
        %v955 = vmul.f32 %v883, %v928
        %v956 = vmul.f32 %v884, %v928
        %v957 = vmul.f32 %v885, %v928
        %v958 = vmul.f32 %v886, %v928
        %v959 = vmul.f32 %v887, %v928
        %v960 = vmul.f32 %v888, %v928
        %v961 = vlaneseq
        %v962 = vshrl.u32 %v961, 7
        %v963 = vsub.s32 2, %v962
        %v964 = vrot.slane %v853, %v963
        %v965 = vmul.f32 %v857, %v964
        %v966 = vmul.f32 %v858, %v964
        %v967 = vmul.f32 %v859, %v964
        %v968 = vmul.f32 %v860, %v964
        %v969 = vmul.f32 %v861, %v964
        %v970 = vmul.f32 %v862, %v964
        %v971 = vmul.f32 %v863, %v964
        %v972 = vmul.f32 %v864, %v964
        %v973 = vmul.f32 %v865, %v964
        %v974 = vmul.f32 %v866, %v964
        %v975 = vmul.f32 %v867, %v964
        %v976 = vmul.f32 %v868, %v964
        %v977 = vmul.f32 %v869, %v964
        %v978 = vmul.f32 %v870, %v964
        %v979 = vmul.f32 %v871, %v964
        %v980 = vmul.f32 %v872, %v964
        %v981 = vmul.f32 %v873, %v964
        %v982 = vmul.f32 %v874, %v964
        %v983 = vmul.f32 %v875, %v964
        %v984 = vmul.f32 %v876, %v964
        %v985 = vmul.f32 %v877, %v964
        %v986 = vmul.f32 %v878, %v964
        %v987 = vmul.f32 %v879, %v964
        %v988 = vmul.f32 %v880, %v964
        %v989 = vmul.f32 %v881, %v964
        %v990 = vmul.f32 %v882, %v964
        %v991 = vmul.f32 %v883, %v964
        %v992 = vmul.f32 %v884, %v964
        %v993 = vmul.f32 %v885, %v964
        %v994 = vmul.f32 %v886, %v964
        %v995 = vmul.f32 %v887, %v964
        %v996 = vmul.f32 %v888, %v964
        %s997 = scalar_lea.vmem [#allocation2], 8
        %v998 = vld [vmem:[%s997] sm:$0xff]
        %v999 = vld [vmem:[%s997 + $0x8] sm:$0xff]
        %v1000 = vld [vmem:[%s997 + $0x10] sm:$0xff]
        %v1001 = vld [vmem:[%s997 + $0x18] sm:$0xff]
        %v1002 = vld [vmem:[%s997 + $0x20] sm:$0xff]
        %v1003 = vld [vmem:[%s997 + $0x28] sm:$0xff]
        %v1004 = vld [vmem:[%s997 + $0x30] sm:$0xff]
        %v1005 = vld [vmem:[%s997 + $0x38] sm:$0xff]
        %v1006 = vld [vmem:[%s997 + $0x50] sm:$0xff]
        %v1007 = vld [vmem:[%s997 + $0x58] sm:$0xff]
        %v1008 = vld [vmem:[%s997 + $0x60] sm:$0xff]
        %v1009 = vld [vmem:[%s997 + $0x68] sm:$0xff]
        %v1010 = vld [vmem:[%s997 + $0x70] sm:$0xff]
        %v1011 = vld [vmem:[%s997 + $0x78] sm:$0xff]
        %v1012 = vld [vmem:[%s997 + $0x80] sm:$0xff]
        %v1013 = vld [vmem:[%s997 + $0x88] sm:$0xff]
        %v1014 = vld [vmem:[%s997 + $0xa0] sm:$0xff]
        %v1015 = vld [vmem:[%s997 + $0xa8] sm:$0xff]
        %v1016 = vld [vmem:[%s997 + $0xb0] sm:$0xff]
        %v1017 = vld [vmem:[%s997 + $0xb8] sm:$0xff]
        %v1018 = vld [vmem:[%s997 + $0xc0] sm:$0xff]
        %v1019 = vld [vmem:[%s997 + $0xc8] sm:$0xff]
        %v1020 = vld [vmem:[%s997 + $0xd0] sm:$0xff]
        %v1021 = vld [vmem:[%s997 + $0xd8] sm:$0xff]
        %v1022 = vld [vmem:[%s997 + $0xf0] sm:$0xff]
        %v1023 = vld [vmem:[%s997 + $0xf8] sm:$0xff]
        %v1024 = vld [vmem:[%s997 + $0x100] sm:$0xff]
        %v1025 = vld [vmem:[%s997 + $0x108] sm:$0xff]
        %v1026 = vld [vmem:[%s997 + $0x110] sm:$0xff]
        %v1027 = vld [vmem:[%s997 + $0x118] sm:$0xff]
        %v1028 = vld [vmem:[%s997 + $0x120] sm:$0xff]
        %v1029 = vld [vmem:[%s997 + $0x128] sm:$0xff]
        %v1030 = vlaneseq
        %v1031 = vshrl.u32 %v1030, 7
        %v1032 = vsub.s32 3, %v1031
        %v1033 = vrot.slane %v853, %v1032
        %v1034 = vmul.f32 %v998, %v1033
        %v1035 = vmul.f32 %v999, %v1033
        %v1036 = vmul.f32 %v1000, %v1033
        %v1037 = vmul.f32 %v1001, %v1033
        %v1038 = vmul.f32 %v1002, %v1033
        %v1039 = vmul.f32 %v1003, %v1033
        %v1040 = vmul.f32 %v1004, %v1033
        %v1041 = vmul.f32 %v1005, %v1033
        %v1042 = vmul.f32 %v1006, %v1033
        %v1043 = vmul.f32 %v1007, %v1033
        %v1044 = vmul.f32 %v1008, %v1033
        %v1045 = vmul.f32 %v1009, %v1033
        %v1046 = vmul.f32 %v1010, %v1033
        %v1047 = vmul.f32 %v1011, %v1033
        %v1048 = vmul.f32 %v1012, %v1033
        %v1049 = vmul.f32 %v1013, %v1033
        %v1050 = vmul.f32 %v1014, %v1033
        %v1051 = vmul.f32 %v1015, %v1033
        %v1052 = vmul.f32 %v1016, %v1033
        %v1053 = vmul.f32 %v1017, %v1033
        %v1054 = vmul.f32 %v1018, %v1033
        %v1055 = vmul.f32 %v1019, %v1033
        %v1056 = vmul.f32 %v1020, %v1033
        %v1057 = vmul.f32 %v1021, %v1033
        %v1058 = vmul.f32 %v1022, %v1033
        %v1059 = vmul.f32 %v1023, %v1033
        %v1060 = vmul.f32 %v1024, %v1033
        %v1061 = vmul.f32 %v1025, %v1033
        %v1062 = vmul.f32 %v1026, %v1033
        %v1063 = vmul.f32 %v1027, %v1033
        %v1064 = vmul.f32 %v1028, %v1033
        %v1065 = vmul.f32 %v1029, %v1033
        %v1066 = vadd.f32 %v893, %v1034
        %v1067 = vadd.f32 %v894, %v1035
        %v1068 = vadd.f32 %v895, %v1036
        %v1069 = vadd.f32 %v896, %v1037
        %v1070 = vadd.f32 %v897, %v1038
        %v1071 = vadd.f32 %v898, %v1039
        %v1072 = vadd.f32 %v899, %v1040
        %v1073 = vadd.f32 %v900, %v1041
        %v1074 = vadd.f32 %v901, %v1042
        %v1075 = vadd.f32 %v902, %v1043
        %v1076 = vadd.f32 %v903, %v1044
        %v1077 = vadd.f32 %v904, %v1045
        %v1078 = vadd.f32 %v905, %v1046
        %v1079 = vadd.f32 %v906, %v1047
        %v1080 = vadd.f32 %v907, %v1048
        %v1081 = vadd.f32 %v908, %v1049
        %v1082 = vadd.f32 %v909, %v1050
        %v1083 = vadd.f32 %v910, %v1051
        %v1084 = vadd.f32 %v911, %v1052
        %v1085 = vadd.f32 %v912, %v1053
        %v1086 = vadd.f32 %v913, %v1054
        %v1087 = vadd.f32 %v914, %v1055
        %v1088 = vadd.f32 %v915, %v1056
        %v1089 = vadd.f32 %v916, %v1057
        %v1090 = vadd.f32 %v917, %v1058
        %v1091 = vadd.f32 %v918, %v1059
        %v1092 = vadd.f32 %v919, %v1060
        %v1093 = vadd.f32 %v920, %v1061
        %v1094 = vadd.f32 %v921, %v1062
        %v1095 = vadd.f32 %v922, %v1063
        %v1096 = vadd.f32 %v923, %v1064
        %v1097 = vadd.f32 %v924, %v1065
        %v1098 = vlaneseq
        %v1099 = vshrl.u32 %v1098, 7
        %v1100 = vsub.s32 4, %v1099
        %v1101 = vrot.slane %v853, %v1100
        %v1102 = vmul.f32 %v998, %v1101
        %v1103 = vmul.f32 %v999, %v1101
        %v1104 = vmul.f32 %v1000, %v1101
        %v1105 = vmul.f32 %v1001, %v1101
        %v1106 = vmul.f32 %v1002, %v1101
        %v1107 = vmul.f32 %v1003, %v1101
        %v1108 = vmul.f32 %v1004, %v1101
        %v1109 = vmul.f32 %v1005, %v1101
        %v1110 = vmul.f32 %v1006, %v1101
        %v1111 = vmul.f32 %v1007, %v1101
        %v1112 = vmul.f32 %v1008, %v1101
        %v1113 = vmul.f32 %v1009, %v1101
        %v1114 = vmul.f32 %v1010, %v1101
        %v1115 = vmul.f32 %v1011, %v1101
        %v1116 = vmul.f32 %v1012, %v1101
        %v1117 = vmul.f32 %v1013, %v1101
        %v1118 = vmul.f32 %v1014, %v1101
        %v1119 = vmul.f32 %v1015, %v1101
        %v1120 = vmul.f32 %v1016, %v1101
        %v1121 = vmul.f32 %v1017, %v1101
        %v1122 = vmul.f32 %v1018, %v1101
        %v1123 = vmul.f32 %v1019, %v1101
        %v1124 = vmul.f32 %v1020, %v1101
        %v1125 = vmul.f32 %v1021, %v1101
        %v1126 = vmul.f32 %v1022, %v1101
        %v1127 = vmul.f32 %v1023, %v1101
        %v1128 = vmul.f32 %v1024, %v1101
        %v1129 = vmul.f32 %v1025, %v1101
        %v1130 = vmul.f32 %v1026, %v1101
        %v1131 = vmul.f32 %v1027, %v1101
        %v1132 = vmul.f32 %v1028, %v1101
        %v1133 = vmul.f32 %v1029, %v1101
        %v1134 = vadd.f32 %v929, %v1102
        %v1135 = vadd.f32 %v930, %v1103
        %v1136 = vadd.f32 %v931, %v1104
        %v1137 = vadd.f32 %v932, %v1105
        %v1138 = vadd.f32 %v933, %v1106
        %v1139 = vadd.f32 %v934, %v1107
        %v1140 = vadd.f32 %v935, %v1108
        %v1141 = vadd.f32 %v936, %v1109
        %v1142 = vadd.f32 %v937, %v1110
        %v1143 = vadd.f32 %v938, %v1111
        %v1144 = vadd.f32 %v939, %v1112
        %v1145 = vadd.f32 %v940, %v1113
        %v1146 = vadd.f32 %v941, %v1114
        %v1147 = vadd.f32 %v942, %v1115
        %v1148 = vadd.f32 %v943, %v1116
        %v1149 = vadd.f32 %v944, %v1117
        %v1150 = vadd.f32 %v945, %v1118
        %v1151 = vadd.f32 %v946, %v1119
        %v1152 = vadd.f32 %v947, %v1120
        %v1153 = vadd.f32 %v948, %v1121
        %v1154 = vadd.f32 %v949, %v1122
        %v1155 = vadd.f32 %v950, %v1123
        %v1156 = vadd.f32 %v951, %v1124
        %v1157 = vadd.f32 %v952, %v1125
        %v1158 = vadd.f32 %v953, %v1126
        %v1159 = vadd.f32 %v954, %v1127
        %v1160 = vadd.f32 %v955, %v1128
        %v1161 = vadd.f32 %v956, %v1129
        %v1162 = vadd.f32 %v957, %v1130
        %v1163 = vadd.f32 %v958, %v1131
        %v1164 = vadd.f32 %v959, %v1132
        %v1165 = vadd.f32 %v960, %v1133
        %v1166 = vlaneseq
        %v1167 = vshrl.u32 %v1166, 7
        %v1168 = vsub.s32 5, %v1167
        %v1169 = vrot.slane %v853, %v1168
        %v1170 = vmul.f32 %v998, %v1169
        %v1171 = vmul.f32 %v999, %v1169
        %v1172 = vmul.f32 %v1000, %v1169
        %v1173 = vmul.f32 %v1001, %v1169
        %v1174 = vmul.f32 %v1002, %v1169
        %v1175 = vmul.f32 %v1003, %v1169
        %v1176 = vmul.f32 %v1004, %v1169
        %v1177 = vmul.f32 %v1005, %v1169
        %v1178 = vmul.f32 %v1006, %v1169
        %v1179 = vmul.f32 %v1007, %v1169
        %v1180 = vmul.f32 %v1008, %v1169
        %v1181 = vmul.f32 %v1009, %v1169
        %v1182 = vmul.f32 %v1010, %v1169
        %v1183 = vmul.f32 %v1011, %v1169
        %v1184 = vmul.f32 %v1012, %v1169
        %v1185 = vmul.f32 %v1013, %v1169
        %v1186 = vmul.f32 %v1014, %v1169
        %v1187 = vmul.f32 %v1015, %v1169
        %v1188 = vmul.f32 %v1016, %v1169
        %v1189 = vmul.f32 %v1017, %v1169
        %v1190 = vmul.f32 %v1018, %v1169
        %v1191 = vmul.f32 %v1019, %v1169
        %v1192 = vmul.f32 %v1020, %v1169
        %v1193 = vmul.f32 %v1021, %v1169
        %v1194 = vmul.f32 %v1022, %v1169
        %v1195 = vmul.f32 %v1023, %v1169
        %v1196 = vmul.f32 %v1024, %v1169
        %v1197 = vmul.f32 %v1025, %v1169
        %v1198 = vmul.f32 %v1026, %v1169
        %v1199 = vmul.f32 %v1027, %v1169
        %v1200 = vmul.f32 %v1028, %v1169
        %v1201 = vmul.f32 %v1029, %v1169
        %v1202 = vadd.f32 %v965, %v1170
        %v1203 = vadd.f32 %v966, %v1171
        %v1204 = vadd.f32 %v967, %v1172
        %v1205 = vadd.f32 %v968, %v1173
        %v1206 = vadd.f32 %v969, %v1174
        %v1207 = vadd.f32 %v970, %v1175
        %v1208 = vadd.f32 %v971, %v1176
        %v1209 = vadd.f32 %v972, %v1177
        %v1210 = vadd.f32 %v973, %v1178
        %v1211 = vadd.f32 %v974, %v1179
        %v1212 = vadd.f32 %v975, %v1180
        %v1213 = vadd.f32 %v976, %v1181
        %v1214 = vadd.f32 %v977, %v1182
        %v1215 = vadd.f32 %v978, %v1183
        %v1216 = vadd.f32 %v979, %v1184
        %v1217 = vadd.f32 %v980, %v1185
        %v1218 = vadd.f32 %v981, %v1186
        %v1219 = vadd.f32 %v982, %v1187
        %v1220 = vadd.f32 %v983, %v1188
        %v1221 = vadd.f32 %v984, %v1189
        %v1222 = vadd.f32 %v985, %v1190
        %v1223 = vadd.f32 %v986, %v1191
        %v1224 = vadd.f32 %v987, %v1192
        %v1225 = vadd.f32 %v988, %v1193
        %v1226 = vadd.f32 %v989, %v1194
        %v1227 = vadd.f32 %v990, %v1195
        %v1228 = vadd.f32 %v991, %v1196
        %v1229 = vadd.f32 %v992, %v1197
        %v1230 = vadd.f32 %v993, %v1198
        %v1231 = vadd.f32 %v994, %v1199
        %v1232 = vadd.f32 %v995, %v1200
        %v1233 = vadd.f32 %v996, %v1201
        %s1234 = scalar_lea.vmem [#allocation2], 16
        %v1235 = vld [vmem:[%s1234] sm:$0xff]
        %v1236 = vld [vmem:[%s1234 + $0x8] sm:$0xff]
        %v1237 = vld [vmem:[%s1234 + $0x10] sm:$0xff]
        %v1238 = vld [vmem:[%s1234 + $0x18] sm:$0xff]
        %v1239 = vld [vmem:[%s1234 + $0x20] sm:$0xff]
        %v1240 = vld [vmem:[%s1234 + $0x28] sm:$0xff]
        %v1241 = vld [vmem:[%s1234 + $0x30] sm:$0xff]
        %v1242 = vld [vmem:[%s1234 + $0x38] sm:$0xff]
        %v1243 = vld [vmem:[%s1234 + $0x50] sm:$0xff]
        %v1244 = vld [vmem:[%s1234 + $0x58] sm:$0xff]
        %v1245 = vld [vmem:[%s1234 + $0x60] sm:$0xff]
        %v1246 = vld [vmem:[%s1234 + $0x68] sm:$0xff]
        %v1247 = vld [vmem:[%s1234 + $0x70] sm:$0xff]
        %v1248 = vld [vmem:[%s1234 + $0x78] sm:$0xff]
        %v1249 = vld [vmem:[%s1234 + $0x80] sm:$0xff]
        %v1250 = vld [vmem:[%s1234 + $0x88] sm:$0xff]
        %v1251 = vld [vmem:[%s1234 + $0xa0] sm:$0xff]
        %v1252 = vld [vmem:[%s1234 + $0xa8] sm:$0xff]
        %v1253 = vld [vmem:[%s1234 + $0xb0] sm:$0xff]
        %v1254 = vld [vmem:[%s1234 + $0xb8] sm:$0xff]
        %v1255 = vld [vmem:[%s1234 + $0xc0] sm:$0xff]
        %v1256 = vld [vmem:[%s1234 + $0xc8] sm:$0xff]
        %v1257 = vld [vmem:[%s1234 + $0xd0] sm:$0xff]
        %v1258 = vld [vmem:[%s1234 + $0xd8] sm:$0xff]
        %v1259 = vld [vmem:[%s1234 + $0xf0] sm:$0xff]
        %v1260 = vld [vmem:[%s1234 + $0xf8] sm:$0xff]
        %v1261 = vld [vmem:[%s1234 + $0x100] sm:$0xff]
        %v1262 = vld [vmem:[%s1234 + $0x108] sm:$0xff]
        %v1263 = vld [vmem:[%s1234 + $0x110] sm:$0xff]
        %v1264 = vld [vmem:[%s1234 + $0x118] sm:$0xff]
        %v1265 = vld [vmem:[%s1234 + $0x120] sm:$0xff]
        %v1266 = vld [vmem:[%s1234 + $0x128] sm:$0xff]
        %v1267 = vlaneseq
        %v1268 = vshrl.u32 %v1267, 7
        %v1269 = vsub.s32 6, %v1268
        %v1270 = vrot.slane %v853, %v1269
        %v1271 = vmul.f32 %v1235, %v1270
        %v1272 = vmul.f32 %v1236, %v1270
        %v1273 = vmul.f32 %v1237, %v1270
        %v1274 = vmul.f32 %v1238, %v1270
        %v1275 = vmul.f32 %v1239, %v1270
        %v1276 = vmul.f32 %v1240, %v1270
        %v1277 = vmul.f32 %v1241, %v1270
        %v1278 = vmul.f32 %v1242, %v1270
        %v1279 = vmul.f32 %v1243, %v1270
        %v1280 = vmul.f32 %v1244, %v1270
        %v1281 = vmul.f32 %v1245, %v1270
        %v1282 = vmul.f32 %v1246, %v1270
        %v1283 = vmul.f32 %v1247, %v1270
        %v1284 = vmul.f32 %v1248, %v1270
        %v1285 = vmul.f32 %v1249, %v1270
        %v1286 = vmul.f32 %v1250, %v1270
        %v1287 = vmul.f32 %v1251, %v1270
        %v1288 = vmul.f32 %v1252, %v1270
        %v1289 = vmul.f32 %v1253, %v1270
        %v1290 = vmul.f32 %v1254, %v1270
        %v1291 = vmul.f32 %v1255, %v1270
        %v1292 = vmul.f32 %v1256, %v1270
        %v1293 = vmul.f32 %v1257, %v1270
        %v1294 = vmul.f32 %v1258, %v1270
        %v1295 = vmul.f32 %v1259, %v1270
        %v1296 = vmul.f32 %v1260, %v1270
        %v1297 = vmul.f32 %v1261, %v1270
        %v1298 = vmul.f32 %v1262, %v1270
        %v1299 = vmul.f32 %v1263, %v1270
        %v1300 = vmul.f32 %v1264, %v1270
        %v1301 = vmul.f32 %v1265, %v1270
        %v1302 = vmul.f32 %v1266, %v1270
        %v1303 = vadd.f32 %v1066, %v1271
        %v1304 = vadd.f32 %v1067, %v1272
        %v1305 = vadd.f32 %v1068, %v1273
        %v1306 = vadd.f32 %v1069, %v1274
        %v1307 = vadd.f32 %v1070, %v1275
        %v1308 = vadd.f32 %v1071, %v1276
        %v1309 = vadd.f32 %v1072, %v1277
        %v1310 = vadd.f32 %v1073, %v1278
        %v1311 = vadd.f32 %v1074, %v1279
        %v1312 = vadd.f32 %v1075, %v1280
        %v1313 = vadd.f32 %v1076, %v1281
        %v1314 = vadd.f32 %v1077, %v1282
        %v1315 = vadd.f32 %v1078, %v1283
        %v1316 = vadd.f32 %v1079, %v1284
        %v1317 = vadd.f32 %v1080, %v1285
        %v1318 = vadd.f32 %v1081, %v1286
        %v1319 = vadd.f32 %v1082, %v1287
        %v1320 = vadd.f32 %v1083, %v1288
        %v1321 = vadd.f32 %v1084, %v1289
        %v1322 = vadd.f32 %v1085, %v1290
        %v1323 = vadd.f32 %v1086, %v1291
        %v1324 = vadd.f32 %v1087, %v1292
        %v1325 = vadd.f32 %v1088, %v1293
        %v1326 = vadd.f32 %v1089, %v1294
        %v1327 = vadd.f32 %v1090, %v1295
        %v1328 = vadd.f32 %v1091, %v1296
        %v1329 = vadd.f32 %v1092, %v1297
        %v1330 = vadd.f32 %v1093, %v1298
        %v1331 = vadd.f32 %v1094, %v1299
        %v1332 = vadd.f32 %v1095, %v1300
        %v1333 = vadd.f32 %v1096, %v1301
        %v1334 = vadd.f32 %v1097, %v1302
        %v1335 = vlaneseq
        %v1336 = vshrl.u32 %v1335, 7
        %v1337 = vsub.s32 7, %v1336
        %v1338 = vrot.slane %v853, %v1337
        %v1339 = vmul.f32 %v1235, %v1338
        %v1340 = vmul.f32 %v1236, %v1338
        %v1341 = vmul.f32 %v1237, %v1338
        %v1342 = vmul.f32 %v1238, %v1338
        %v1343 = vmul.f32 %v1239, %v1338
        %v1344 = vmul.f32 %v1240, %v1338
        %v1345 = vmul.f32 %v1241, %v1338
        %v1346 = vmul.f32 %v1242, %v1338
        %v1347 = vmul.f32 %v1243, %v1338
        %v1348 = vmul.f32 %v1244, %v1338
        %v1349 = vmul.f32 %v1245, %v1338
        %v1350 = vmul.f32 %v1246, %v1338
        %v1351 = vmul.f32 %v1247, %v1338
        %v1352 = vmul.f32 %v1248, %v1338
        %v1353 = vmul.f32 %v1249, %v1338
        %v1354 = vmul.f32 %v1250, %v1338
        %v1355 = vmul.f32 %v1251, %v1338
        %v1356 = vmul.f32 %v1252, %v1338
        %v1357 = vmul.f32 %v1253, %v1338
        %v1358 = vmul.f32 %v1254, %v1338
        %v1359 = vmul.f32 %v1255, %v1338
        %v1360 = vmul.f32 %v1256, %v1338
        %v1361 = vmul.f32 %v1257, %v1338
        %v1362 = vmul.f32 %v1258, %v1338
        %v1363 = vmul.f32 %v1259, %v1338
        %v1364 = vmul.f32 %v1260, %v1338
        %v1365 = vmul.f32 %v1261, %v1338
        %v1366 = vmul.f32 %v1262, %v1338
        %v1367 = vmul.f32 %v1263, %v1338
        %v1368 = vmul.f32 %v1264, %v1338
        %v1369 = vmul.f32 %v1265, %v1338
        %v1370 = vmul.f32 %v1266, %v1338
        %v1371 = vadd.f32 %v1134, %v1339
        %v1372 = vadd.f32 %v1135, %v1340
        %v1373 = vadd.f32 %v1136, %v1341
        %v1374 = vadd.f32 %v1137, %v1342
        %v1375 = vadd.f32 %v1138, %v1343
        %v1376 = vadd.f32 %v1139, %v1344
        %v1377 = vadd.f32 %v1140, %v1345
        %v1378 = vadd.f32 %v1141, %v1346
        %v1379 = vadd.f32 %v1142, %v1347
        %v1380 = vadd.f32 %v1143, %v1348
        %v1381 = vadd.f32 %v1144, %v1349
        %v1382 = vadd.f32 %v1145, %v1350
        %v1383 = vadd.f32 %v1146, %v1351
        %v1384 = vadd.f32 %v1147, %v1352
        %v1385 = vadd.f32 %v1148, %v1353
        %v1386 = vadd.f32 %v1149, %v1354
        %v1387 = vadd.f32 %v1150, %v1355
        %v1388 = vadd.f32 %v1151, %v1356
        %v1389 = vadd.f32 %v1152, %v1357
        %v1390 = vadd.f32 %v1153, %v1358
        %v1391 = vadd.f32 %v1154, %v1359
        %v1392 = vadd.f32 %v1155, %v1360
        %v1393 = vadd.f32 %v1156, %v1361
        %v1394 = vadd.f32 %v1157, %v1362
        %v1395 = vadd.f32 %v1158, %v1363
        %v1396 = vadd.f32 %v1159, %v1364
        %v1397 = vadd.f32 %v1160, %v1365
        %v1398 = vadd.f32 %v1161, %v1366
        %v1399 = vadd.f32 %v1162, %v1367
        %v1400 = vadd.f32 %v1163, %v1368
        %v1401 = vadd.f32 %v1164, %v1369
        %v1402 = vadd.f32 %v1165, %v1370
        %v1403 = vlaneseq
        %v1404 = vshrl.u32 %v1403, 7
        %v1405 = vsub.s32 0, %v1404
        %v1406 = vrot.slane %v854, %v1405
        %v1407 = vmul.f32 %v1235, %v1406
        %v1408 = vmul.f32 %v1236, %v1406
        %v1409 = vmul.f32 %v1237, %v1406
        %v1410 = vmul.f32 %v1238, %v1406
        %v1411 = vmul.f32 %v1239, %v1406
        %v1412 = vmul.f32 %v1240, %v1406
        %v1413 = vmul.f32 %v1241, %v1406
        %v1414 = vmul.f32 %v1242, %v1406
        %v1415 = vmul.f32 %v1243, %v1406
        %v1416 = vmul.f32 %v1244, %v1406
        %v1417 = vmul.f32 %v1245, %v1406
        %v1418 = vmul.f32 %v1246, %v1406
        %v1419 = vmul.f32 %v1247, %v1406
        %v1420 = vmul.f32 %v1248, %v1406
        %v1421 = vmul.f32 %v1249, %v1406
        %v1422 = vmul.f32 %v1250, %v1406
        %v1423 = vmul.f32 %v1251, %v1406
        %v1424 = vmul.f32 %v1252, %v1406
        %v1425 = vmul.f32 %v1253, %v1406
        %v1426 = vmul.f32 %v1254, %v1406
        %v1427 = vmul.f32 %v1255, %v1406
        %v1428 = vmul.f32 %v1256, %v1406
        %v1429 = vmul.f32 %v1257, %v1406
        %v1430 = vmul.f32 %v1258, %v1406
        %v1431 = vmul.f32 %v1259, %v1406
        %v1432 = vmul.f32 %v1260, %v1406
        %v1433 = vmul.f32 %v1261, %v1406
        %v1434 = vmul.f32 %v1262, %v1406
        %v1435 = vmul.f32 %v1263, %v1406
        %v1436 = vmul.f32 %v1264, %v1406
        %v1437 = vmul.f32 %v1265, %v1406
        %v1438 = vmul.f32 %v1266, %v1406
        %v1439 = vadd.f32 %v1202, %v1407
        %v1440 = vadd.f32 %v1203, %v1408
        %v1441 = vadd.f32 %v1204, %v1409
        %v1442 = vadd.f32 %v1205, %v1410
        %v1443 = vadd.f32 %v1206, %v1411
        %v1444 = vadd.f32 %v1207, %v1412
        %v1445 = vadd.f32 %v1208, %v1413
        %v1446 = vadd.f32 %v1209, %v1414
        %v1447 = vadd.f32 %v1210, %v1415
        %v1448 = vadd.f32 %v1211, %v1416
        %v1449 = vadd.f32 %v1212, %v1417
        %v1450 = vadd.f32 %v1213, %v1418
        %v1451 = vadd.f32 %v1214, %v1419
        %v1452 = vadd.f32 %v1215, %v1420
        %v1453 = vadd.f32 %v1216, %v1421
        %v1454 = vadd.f32 %v1217, %v1422
        %v1455 = vadd.f32 %v1218, %v1423
        %v1456 = vadd.f32 %v1219, %v1424
        %v1457 = vadd.f32 %v1220, %v1425
        %v1458 = vadd.f32 %v1221, %v1426
        %v1459 = vadd.f32 %v1222, %v1427
        %v1460 = vadd.f32 %v1223, %v1428
        %v1461 = vadd.f32 %v1224, %v1429
        %v1462 = vadd.f32 %v1225, %v1430
        %v1463 = vadd.f32 %v1226, %v1431
        %v1464 = vadd.f32 %v1227, %v1432
        %v1465 = vadd.f32 %v1228, %v1433
        %v1466 = vadd.f32 %v1229, %v1434
        %v1467 = vadd.f32 %v1230, %v1435
        %v1468 = vadd.f32 %v1231, %v1436
        %v1469 = vadd.f32 %v1232, %v1437
        %v1470 = vadd.f32 %v1233, %v1438
        %v1471 = vld [vmem:[%s810] sm:$0xff]
        %v1472 = vld [vmem:[%s810 + $0x8] sm:$0xff]
        %v1473 = vld [vmem:[%s810 + $0x10] sm:$0xff]
        %v1474 = vld [vmem:[%s810 + $0x18] sm:$0xff]
        %v1475 = vld [vmem:[%s810 + $0x20] sm:$0xff]
        %v1476 = vld [vmem:[%s810 + $0x28] sm:$0xff]
        %v1477 = vld [vmem:[%s810 + $0x30] sm:$0xff]
        %v1478 = vld [vmem:[%s810 + $0x38] sm:$0xff]
        %v1479 = vld [vmem:[%s810 + $0x50] sm:$0xff]
        %v1480 = vld [vmem:[%s810 + $0x58] sm:$0xff]
        %v1481 = vld [vmem:[%s810 + $0x60] sm:$0xff]
        %v1482 = vld [vmem:[%s810 + $0x68] sm:$0xff]
        %v1483 = vld [vmem:[%s810 + $0x70] sm:$0xff]
        %v1484 = vld [vmem:[%s810 + $0x78] sm:$0xff]
        %v1485 = vld [vmem:[%s810 + $0x80] sm:$0xff]
        %v1486 = vld [vmem:[%s810 + $0x88] sm:$0xff]
        %v1487 = vld [vmem:[%s810 + $0xa0] sm:$0xff]
        %v1488 = vld [vmem:[%s810 + $0xa8] sm:$0xff]
        %v1489 = vld [vmem:[%s810 + $0xb0] sm:$0xff]
        %v1490 = vld [vmem:[%s810 + $0xb8] sm:$0xff]
        %v1491 = vld [vmem:[%s810 + $0xc0] sm:$0xff]
        %v1492 = vld [vmem:[%s810 + $0xc8] sm:$0xff]
        %v1493 = vld [vmem:[%s810 + $0xd0] sm:$0xff]
        %v1494 = vld [vmem:[%s810 + $0xd8] sm:$0xff]
        %v1495 = vld [vmem:[%s810 + $0xf0] sm:$0xff]
        %v1496 = vld [vmem:[%s810 + $0xf8] sm:$0xff]
        %v1497 = vld [vmem:[%s810 + $0x100] sm:$0xff]
        %v1498 = vld [vmem:[%s810 + $0x108] sm:$0xff]
        %v1499 = vld [vmem:[%s810 + $0x110] sm:$0xff]
        %v1500 = vld [vmem:[%s810 + $0x118] sm:$0xff]
        %v1501 = vld [vmem:[%s810 + $0x120] sm:$0xff]
        %v1502 = vld [vmem:[%s810 + $0x128] sm:$0xff]
        %v1503 = vlaneseq
        %v1504 = vshrl.u32 %v1503, 7
        %v1505 = vsub.s32 1, %v1504
        %v1506 = vrot.slane %v854, %v1505
        %v1507 = vmul.f32 %v1471, %v1506
        %v1508 = vmul.f32 %v1472, %v1506
        %v1509 = vmul.f32 %v1473, %v1506
        %v1510 = vmul.f32 %v1474, %v1506
        %v1511 = vmul.f32 %v1475, %v1506
        %v1512 = vmul.f32 %v1476, %v1506
        %v1513 = vmul.f32 %v1477, %v1506
        %v1514 = vmul.f32 %v1478, %v1506
        %v1515 = vmul.f32 %v1479, %v1506
        %v1516 = vmul.f32 %v1480, %v1506
        %v1517 = vmul.f32 %v1481, %v1506
        %v1518 = vmul.f32 %v1482, %v1506
        %v1519 = vmul.f32 %v1483, %v1506
        %v1520 = vmul.f32 %v1484, %v1506
        %v1521 = vmul.f32 %v1485, %v1506
        %v1522 = vmul.f32 %v1486, %v1506
        %v1523 = vmul.f32 %v1487, %v1506
        %v1524 = vmul.f32 %v1488, %v1506
        %v1525 = vmul.f32 %v1489, %v1506
        %v1526 = vmul.f32 %v1490, %v1506
        %v1527 = vmul.f32 %v1491, %v1506
        %v1528 = vmul.f32 %v1492, %v1506
        %v1529 = vmul.f32 %v1493, %v1506
        %v1530 = vmul.f32 %v1494, %v1506
        %v1531 = vmul.f32 %v1495, %v1506
        %v1532 = vmul.f32 %v1496, %v1506
        %v1533 = vmul.f32 %v1497, %v1506
        %v1534 = vmul.f32 %v1498, %v1506
        %v1535 = vmul.f32 %v1499, %v1506
        %v1536 = vmul.f32 %v1500, %v1506
        %v1537 = vmul.f32 %v1501, %v1506
        %v1538 = vmul.f32 %v1502, %v1506
        %v1539 = vadd.f32 %v1303, %v1507
        %v1540 = vadd.f32 %v1304, %v1508
        %v1541 = vadd.f32 %v1305, %v1509
        %v1542 = vadd.f32 %v1306, %v1510
        %v1543 = vadd.f32 %v1307, %v1511
        %v1544 = vadd.f32 %v1308, %v1512
        %v1545 = vadd.f32 %v1309, %v1513
        %v1546 = vadd.f32 %v1310, %v1514
        %v1547 = vadd.f32 %v1311, %v1515
        %v1548 = vadd.f32 %v1312, %v1516
        %v1549 = vadd.f32 %v1313, %v1517
        %v1550 = vadd.f32 %v1314, %v1518
        %v1551 = vadd.f32 %v1315, %v1519
        %v1552 = vadd.f32 %v1316, %v1520
        %v1553 = vadd.f32 %v1317, %v1521
        %v1554 = vadd.f32 %v1318, %v1522
        %v1555 = vadd.f32 %v1319, %v1523
        %v1556 = vadd.f32 %v1320, %v1524
        %v1557 = vadd.f32 %v1321, %v1525
        %v1558 = vadd.f32 %v1322, %v1526
        %v1559 = vadd.f32 %v1323, %v1527
        %v1560 = vadd.f32 %v1324, %v1528
        %v1561 = vadd.f32 %v1325, %v1529
        %v1562 = vadd.f32 %v1326, %v1530
        %v1563 = vadd.f32 %v1327, %v1531
        %v1564 = vadd.f32 %v1328, %v1532
        %v1565 = vadd.f32 %v1329, %v1533
        %v1566 = vadd.f32 %v1330, %v1534
        %v1567 = vadd.f32 %v1331, %v1535
        %v1568 = vadd.f32 %v1332, %v1536
        %v1569 = vadd.f32 %v1333, %v1537
        %v1570 = vadd.f32 %v1334, %v1538
        %v1571 = vlaneseq
        %v1572 = vshrl.u32 %v1571, 7
        %v1573 = vsub.s32 2, %v1572
        %v1574 = vrot.slane %v854, %v1573
        %v1575 = vmul.f32 %v1471, %v1574
        %v1576 = vmul.f32 %v1472, %v1574
        %v1577 = vmul.f32 %v1473, %v1574
        %v1578 = vmul.f32 %v1474, %v1574
        %v1579 = vmul.f32 %v1475, %v1574
        %v1580 = vmul.f32 %v1476, %v1574
        %v1581 = vmul.f32 %v1477, %v1574
        %v1582 = vmul.f32 %v1478, %v1574
        %v1583 = vmul.f32 %v1479, %v1574
        %v1584 = vmul.f32 %v1480, %v1574
        %v1585 = vmul.f32 %v1481, %v1574
        %v1586 = vmul.f32 %v1482, %v1574
        %v1587 = vmul.f32 %v1483, %v1574
        %v1588 = vmul.f32 %v1484, %v1574
        %v1589 = vmul.f32 %v1485, %v1574
        %v1590 = vmul.f32 %v1486, %v1574
        %v1591 = vmul.f32 %v1487, %v1574
        %v1592 = vmul.f32 %v1488, %v1574
        %v1593 = vmul.f32 %v1489, %v1574
        %v1594 = vmul.f32 %v1490, %v1574
        %v1595 = vmul.f32 %v1491, %v1574
        %v1596 = vmul.f32 %v1492, %v1574
        %v1597 = vmul.f32 %v1493, %v1574
        %v1598 = vmul.f32 %v1494, %v1574
        %v1599 = vmul.f32 %v1495, %v1574
        %v1600 = vmul.f32 %v1496, %v1574
        %v1601 = vmul.f32 %v1497, %v1574
        %v1602 = vmul.f32 %v1498, %v1574
        %v1603 = vmul.f32 %v1499, %v1574
        %v1604 = vmul.f32 %v1500, %v1574
        %v1605 = vmul.f32 %v1501, %v1574
        %v1606 = vmul.f32 %v1502, %v1574
        %v1607 = vadd.f32 %v1371, %v1575
        %v1608 = vadd.f32 %v1372, %v1576
        %v1609 = vadd.f32 %v1373, %v1577
        %v1610 = vadd.f32 %v1374, %v1578
        %v1611 = vadd.f32 %v1375, %v1579
        %v1612 = vadd.f32 %v1376, %v1580
        %v1613 = vadd.f32 %v1377, %v1581
        %v1614 = vadd.f32 %v1378, %v1582
        %v1615 = vadd.f32 %v1379, %v1583
        %v1616 = vadd.f32 %v1380, %v1584
        %v1617 = vadd.f32 %v1381, %v1585
        %v1618 = vadd.f32 %v1382, %v1586
        %v1619 = vadd.f32 %v1383, %v1587
        %v1620 = vadd.f32 %v1384, %v1588
        %v1621 = vadd.f32 %v1385, %v1589
        %v1622 = vadd.f32 %v1386, %v1590
        %v1623 = vadd.f32 %v1387, %v1591
        %v1624 = vadd.f32 %v1388, %v1592
        %v1625 = vadd.f32 %v1389, %v1593
        %v1626 = vadd.f32 %v1390, %v1594
        %v1627 = vadd.f32 %v1391, %v1595
        %v1628 = vadd.f32 %v1392, %v1596
        %v1629 = vadd.f32 %v1393, %v1597
        %v1630 = vadd.f32 %v1394, %v1598
        %v1631 = vadd.f32 %v1395, %v1599
        %v1632 = vadd.f32 %v1396, %v1600
        %v1633 = vadd.f32 %v1397, %v1601
        %v1634 = vadd.f32 %v1398, %v1602
        %v1635 = vadd.f32 %v1399, %v1603
        %v1636 = vadd.f32 %v1400, %v1604
        %v1637 = vadd.f32 %v1401, %v1605
        %v1638 = vadd.f32 %v1402, %v1606
        %v1639 = vlaneseq
        %v1640 = vshrl.u32 %v1639, 7
        %v1641 = vsub.s32 3, %v1640
        %v1642 = vrot.slane %v854, %v1641
        %v1643 = vmul.f32 %v1471, %v1642
        %v1644 = vmul.f32 %v1472, %v1642
        %v1645 = vmul.f32 %v1473, %v1642
        %v1646 = vmul.f32 %v1474, %v1642
        %v1647 = vmul.f32 %v1475, %v1642
        %v1648 = vmul.f32 %v1476, %v1642
        %v1649 = vmul.f32 %v1477, %v1642
        %v1650 = vmul.f32 %v1478, %v1642
        %v1651 = vmul.f32 %v1479, %v1642
        %v1652 = vmul.f32 %v1480, %v1642
        %v1653 = vmul.f32 %v1481, %v1642
        %v1654 = vmul.f32 %v1482, %v1642
        %v1655 = vmul.f32 %v1483, %v1642
        %v1656 = vmul.f32 %v1484, %v1642
        %v1657 = vmul.f32 %v1485, %v1642
        %v1658 = vmul.f32 %v1486, %v1642
        %v1659 = vmul.f32 %v1487, %v1642
        %v1660 = vmul.f32 %v1488, %v1642
        %v1661 = vmul.f32 %v1489, %v1642
        %v1662 = vmul.f32 %v1490, %v1642
        %v1663 = vmul.f32 %v1491, %v1642
        %v1664 = vmul.f32 %v1492, %v1642
        %v1665 = vmul.f32 %v1493, %v1642
        %v1666 = vmul.f32 %v1494, %v1642
        %v1667 = vmul.f32 %v1495, %v1642
        %v1668 = vmul.f32 %v1496, %v1642
        %v1669 = vmul.f32 %v1497, %v1642
        %v1670 = vmul.f32 %v1498, %v1642
        %v1671 = vmul.f32 %v1499, %v1642
        %v1672 = vmul.f32 %v1500, %v1642
        %v1673 = vmul.f32 %v1501, %v1642
        %v1674 = vmul.f32 %v1502, %v1642
        %v1675 = vadd.f32 %v1439, %v1643
        %v1676 = vadd.f32 %v1440, %v1644
        %v1677 = vadd.f32 %v1441, %v1645
        %v1678 = vadd.f32 %v1442, %v1646
        %v1679 = vadd.f32 %v1443, %v1647
        %v1680 = vadd.f32 %v1444, %v1648
        %v1681 = vadd.f32 %v1445, %v1649
        %v1682 = vadd.f32 %v1446, %v1650
        %v1683 = vadd.f32 %v1447, %v1651
        %v1684 = vadd.f32 %v1448, %v1652
        %v1685 = vadd.f32 %v1449, %v1653
        %v1686 = vadd.f32 %v1450, %v1654
        %v1687 = vadd.f32 %v1451, %v1655
        %v1688 = vadd.f32 %v1452, %v1656
        %v1689 = vadd.f32 %v1453, %v1657
        %v1690 = vadd.f32 %v1454, %v1658
        %v1691 = vadd.f32 %v1455, %v1659
        %v1692 = vadd.f32 %v1456, %v1660
        %v1693 = vadd.f32 %v1457, %v1661
        %v1694 = vadd.f32 %v1458, %v1662
        %v1695 = vadd.f32 %v1459, %v1663
        %v1696 = vadd.f32 %v1460, %v1664
        %v1697 = vadd.f32 %v1461, %v1665
        %v1698 = vadd.f32 %v1462, %v1666
        %v1699 = vadd.f32 %v1463, %v1667
        %v1700 = vadd.f32 %v1464, %v1668
        %v1701 = vadd.f32 %v1465, %v1669
        %v1702 = vadd.f32 %v1466, %v1670
        %v1703 = vadd.f32 %v1467, %v1671
        %v1704 = vadd.f32 %v1468, %v1672
        %v1705 = vadd.f32 %v1469, %v1673
        %v1706 = vadd.f32 %v1470, %v1674
        %v1707 = vld [vmem:[%s820] sm:$0xff]
        %v1708 = vld [vmem:[%s820 + $0x8] sm:$0xff]
        %v1709 = vld [vmem:[%s820 + $0x10] sm:$0xff]
        %v1710 = vld [vmem:[%s820 + $0x18] sm:$0xff]
        %v1711 = vld [vmem:[%s820 + $0x20] sm:$0xff]
        %v1712 = vld [vmem:[%s820 + $0x28] sm:$0xff]
        %v1713 = vld [vmem:[%s820 + $0x30] sm:$0xff]
        %v1714 = vld [vmem:[%s820 + $0x38] sm:$0xff]
        %v1715 = vld [vmem:[%s820 + $0x50] sm:$0xff]
        %v1716 = vld [vmem:[%s820 + $0x58] sm:$0xff]
        %v1717 = vld [vmem:[%s820 + $0x60] sm:$0xff]
        %v1718 = vld [vmem:[%s820 + $0x68] sm:$0xff]
        %v1719 = vld [vmem:[%s820 + $0x70] sm:$0xff]
        %v1720 = vld [vmem:[%s820 + $0x78] sm:$0xff]
        %v1721 = vld [vmem:[%s820 + $0x80] sm:$0xff]
        %v1722 = vld [vmem:[%s820 + $0x88] sm:$0xff]
        %v1723 = vld [vmem:[%s820 + $0xa0] sm:$0xff]
        %v1724 = vld [vmem:[%s820 + $0xa8] sm:$0xff]
        %v1725 = vld [vmem:[%s820 + $0xb0] sm:$0xff]
        %v1726 = vld [vmem:[%s820 + $0xb8] sm:$0xff]
        %v1727 = vld [vmem:[%s820 + $0xc0] sm:$0xff]
        %v1728 = vld [vmem:[%s820 + $0xc8] sm:$0xff]
        %v1729 = vld [vmem:[%s820 + $0xd0] sm:$0xff]
        %v1730 = vld [vmem:[%s820 + $0xd8] sm:$0xff]
        %v1731 = vld [vmem:[%s820 + $0xf0] sm:$0xff]
        %v1732 = vld [vmem:[%s820 + $0xf8] sm:$0xff]
        %v1733 = vld [vmem:[%s820 + $0x100] sm:$0xff]
        %v1734 = vld [vmem:[%s820 + $0x108] sm:$0xff]
        %v1735 = vld [vmem:[%s820 + $0x110] sm:$0xff]
        %v1736 = vld [vmem:[%s820 + $0x118] sm:$0xff]
        %v1737 = vld [vmem:[%s820 + $0x120] sm:$0xff]
        %v1738 = vld [vmem:[%s820 + $0x128] sm:$0xff]
        %v1739 = vlaneseq
        %v1740 = vshrl.u32 %v1739, 7
        %v1741 = vsub.s32 4, %v1740
        %v1742 = vrot.slane %v854, %v1741
        %v1743 = vmul.f32 %v1707, %v1742
        %v1744 = vmul.f32 %v1708, %v1742
        %v1745 = vmul.f32 %v1709, %v1742
        %v1746 = vmul.f32 %v1710, %v1742
        %v1747 = vmul.f32 %v1711, %v1742
        %v1748 = vmul.f32 %v1712, %v1742
        %v1749 = vmul.f32 %v1713, %v1742
        %v1750 = vmul.f32 %v1714, %v1742
        %v1751 = vmul.f32 %v1715, %v1742
        %v1752 = vmul.f32 %v1716, %v1742
        %v1753 = vmul.f32 %v1717, %v1742
        %v1754 = vmul.f32 %v1718, %v1742
        %v1755 = vmul.f32 %v1719, %v1742
        %v1756 = vmul.f32 %v1720, %v1742
        %v1757 = vmul.f32 %v1721, %v1742
        %v1758 = vmul.f32 %v1722, %v1742
        %v1759 = vmul.f32 %v1723, %v1742
        %v1760 = vmul.f32 %v1724, %v1742
        %v1761 = vmul.f32 %v1725, %v1742
        %v1762 = vmul.f32 %v1726, %v1742
        %v1763 = vmul.f32 %v1727, %v1742
        %v1764 = vmul.f32 %v1728, %v1742
        %v1765 = vmul.f32 %v1729, %v1742
        %v1766 = vmul.f32 %v1730, %v1742
        %v1767 = vmul.f32 %v1731, %v1742
        %v1768 = vmul.f32 %v1732, %v1742
        %v1769 = vmul.f32 %v1733, %v1742
        %v1770 = vmul.f32 %v1734, %v1742
        %v1771 = vmul.f32 %v1735, %v1742
        %v1772 = vmul.f32 %v1736, %v1742
        %v1773 = vmul.f32 %v1737, %v1742
        %v1774 = vmul.f32 %v1738, %v1742
        %v1775 = vadd.f32 %v1539, %v1743
        %v1776 = vadd.f32 %v1540, %v1744
        %v1777 = vadd.f32 %v1541, %v1745
        %v1778 = vadd.f32 %v1542, %v1746
        %v1779 = vadd.f32 %v1543, %v1747
        %v1780 = vadd.f32 %v1544, %v1748
        %v1781 = vadd.f32 %v1545, %v1749
        %v1782 = vadd.f32 %v1546, %v1750
        %v1783 = vadd.f32 %v1547, %v1751
        %v1784 = vadd.f32 %v1548, %v1752
        %v1785 = vadd.f32 %v1549, %v1753
        %v1786 = vadd.f32 %v1550, %v1754
        %v1787 = vadd.f32 %v1551, %v1755
        %v1788 = vadd.f32 %v1552, %v1756
        %v1789 = vadd.f32 %v1553, %v1757
        %v1790 = vadd.f32 %v1554, %v1758
        %v1791 = vadd.f32 %v1555, %v1759
        %v1792 = vadd.f32 %v1556, %v1760
        %v1793 = vadd.f32 %v1557, %v1761
        %v1794 = vadd.f32 %v1558, %v1762
        %v1795 = vadd.f32 %v1559, %v1763
        %v1796 = vadd.f32 %v1560, %v1764
        %v1797 = vadd.f32 %v1561, %v1765
        %v1798 = vadd.f32 %v1562, %v1766
        %v1799 = vadd.f32 %v1563, %v1767
        %v1800 = vadd.f32 %v1564, %v1768
        %v1801 = vadd.f32 %v1565, %v1769
        %v1802 = vadd.f32 %v1566, %v1770
        %v1803 = vadd.f32 %v1567, %v1771
        %v1804 = vadd.f32 %v1568, %v1772
        %v1805 = vadd.f32 %v1569, %v1773
        %v1806 = vadd.f32 %v1570, %v1774
        %v1807 = vlaneseq
        %v1808 = vshrl.u32 %v1807, 7
        %v1809 = vsub.s32 5, %v1808
        %v1810 = vrot.slane %v854, %v1809
        %v1811 = vmul.f32 %v1707, %v1810
        %v1812 = vmul.f32 %v1708, %v1810
        %v1813 = vmul.f32 %v1709, %v1810
        %v1814 = vmul.f32 %v1710, %v1810
        %v1815 = vmul.f32 %v1711, %v1810
        %v1816 = vmul.f32 %v1712, %v1810
        %v1817 = vmul.f32 %v1713, %v1810
        %v1818 = vmul.f32 %v1714, %v1810
        %v1819 = vmul.f32 %v1715, %v1810
        %v1820 = vmul.f32 %v1716, %v1810
        %v1821 = vmul.f32 %v1717, %v1810
        %v1822 = vmul.f32 %v1718, %v1810
        %v1823 = vmul.f32 %v1719, %v1810
        %v1824 = vmul.f32 %v1720, %v1810
        %v1825 = vmul.f32 %v1721, %v1810
        %v1826 = vmul.f32 %v1722, %v1810
        %v1827 = vmul.f32 %v1723, %v1810
        %v1828 = vmul.f32 %v1724, %v1810
        %v1829 = vmul.f32 %v1725, %v1810
        %v1830 = vmul.f32 %v1726, %v1810
        %v1831 = vmul.f32 %v1727, %v1810
        %v1832 = vmul.f32 %v1728, %v1810
        %v1833 = vmul.f32 %v1729, %v1810
        %v1834 = vmul.f32 %v1730, %v1810
        %v1835 = vmul.f32 %v1731, %v1810
        %v1836 = vmul.f32 %v1732, %v1810
        %v1837 = vmul.f32 %v1733, %v1810
        %v1838 = vmul.f32 %v1734, %v1810
        %v1839 = vmul.f32 %v1735, %v1810
        %v1840 = vmul.f32 %v1736, %v1810
        %v1841 = vmul.f32 %v1737, %v1810
        %v1842 = vmul.f32 %v1738, %v1810
        %v1843 = vadd.f32 %v1607, %v1811
        %v1844 = vadd.f32 %v1608, %v1812
        %v1845 = vadd.f32 %v1609, %v1813
        %v1846 = vadd.f32 %v1610, %v1814
        %v1847 = vadd.f32 %v1611, %v1815
        %v1848 = vadd.f32 %v1612, %v1816
        %v1849 = vadd.f32 %v1613, %v1817
        %v1850 = vadd.f32 %v1614, %v1818
        %v1851 = vadd.f32 %v1615, %v1819
        %v1852 = vadd.f32 %v1616, %v1820
        %v1853 = vadd.f32 %v1617, %v1821
        %v1854 = vadd.f32 %v1618, %v1822
        %v1855 = vadd.f32 %v1619, %v1823
        %v1856 = vadd.f32 %v1620, %v1824
        %v1857 = vadd.f32 %v1621, %v1825
        %v1858 = vadd.f32 %v1622, %v1826
        %v1859 = vadd.f32 %v1623, %v1827
        %v1860 = vadd.f32 %v1624, %v1828
        %v1861 = vadd.f32 %v1625, %v1829
        %v1862 = vadd.f32 %v1626, %v1830
        %v1863 = vadd.f32 %v1627, %v1831
        %v1864 = vadd.f32 %v1628, %v1832
        %v1865 = vadd.f32 %v1629, %v1833
        %v1866 = vadd.f32 %v1630, %v1834
        %v1867 = vadd.f32 %v1631, %v1835
        %v1868 = vadd.f32 %v1632, %v1836
        %v1869 = vadd.f32 %v1633, %v1837
        %v1870 = vadd.f32 %v1634, %v1838
        %v1871 = vadd.f32 %v1635, %v1839
        %v1872 = vadd.f32 %v1636, %v1840
        %v1873 = vadd.f32 %v1637, %v1841
        %v1874 = vadd.f32 %v1638, %v1842
        %v1875 = vlaneseq
        %v1876 = vshrl.u32 %v1875, 7
        %v1877 = vsub.s32 6, %v1876
        %v1878 = vrot.slane %v854, %v1877
        %v1879 = vmul.f32 %v1707, %v1878
        %v1880 = vmul.f32 %v1708, %v1878
        %v1881 = vmul.f32 %v1709, %v1878
        %v1882 = vmul.f32 %v1710, %v1878
        %v1883 = vmul.f32 %v1711, %v1878
        %v1884 = vmul.f32 %v1712, %v1878
        %v1885 = vmul.f32 %v1713, %v1878
        %v1886 = vmul.f32 %v1714, %v1878
        %v1887 = vmul.f32 %v1715, %v1878
        %v1888 = vmul.f32 %v1716, %v1878
        %v1889 = vmul.f32 %v1717, %v1878
        %v1890 = vmul.f32 %v1718, %v1878
        %v1891 = vmul.f32 %v1719, %v1878
        %v1892 = vmul.f32 %v1720, %v1878
        %v1893 = vmul.f32 %v1721, %v1878
        %v1894 = vmul.f32 %v1722, %v1878
        %v1895 = vmul.f32 %v1723, %v1878
        %v1896 = vmul.f32 %v1724, %v1878
        %v1897 = vmul.f32 %v1725, %v1878
        %v1898 = vmul.f32 %v1726, %v1878
        %v1899 = vmul.f32 %v1727, %v1878
        %v1900 = vmul.f32 %v1728, %v1878
        %v1901 = vmul.f32 %v1729, %v1878
        %v1902 = vmul.f32 %v1730, %v1878
        %v1903 = vmul.f32 %v1731, %v1878
        %v1904 = vmul.f32 %v1732, %v1878
        %v1905 = vmul.f32 %v1733, %v1878
        %v1906 = vmul.f32 %v1734, %v1878
        %v1907 = vmul.f32 %v1735, %v1878
        %v1908 = vmul.f32 %v1736, %v1878
        %v1909 = vmul.f32 %v1737, %v1878
        %v1910 = vmul.f32 %v1738, %v1878
        %v1911 = vadd.f32 %v1675, %v1879
        %v1912 = vadd.f32 %v1676, %v1880
        %v1913 = vadd.f32 %v1677, %v1881
        %v1914 = vadd.f32 %v1678, %v1882
        %v1915 = vadd.f32 %v1679, %v1883
        %v1916 = vadd.f32 %v1680, %v1884
        %v1917 = vadd.f32 %v1681, %v1885
        %v1918 = vadd.f32 %v1682, %v1886
        %v1919 = vadd.f32 %v1683, %v1887
        %v1920 = vadd.f32 %v1684, %v1888
        %v1921 = vadd.f32 %v1685, %v1889
        %v1922 = vadd.f32 %v1686, %v1890
        %v1923 = vadd.f32 %v1687, %v1891
        %v1924 = vadd.f32 %v1688, %v1892
        %v1925 = vadd.f32 %v1689, %v1893
        %v1926 = vadd.f32 %v1690, %v1894
        %v1927 = vadd.f32 %v1691, %v1895
        %v1928 = vadd.f32 %v1692, %v1896
        %v1929 = vadd.f32 %v1693, %v1897
        %v1930 = vadd.f32 %v1694, %v1898
        %v1931 = vadd.f32 %v1695, %v1899
        %v1932 = vadd.f32 %v1696, %v1900
        %v1933 = vadd.f32 %v1697, %v1901
        %v1934 = vadd.f32 %v1698, %v1902
        %v1935 = vadd.f32 %v1699, %v1903
        %v1936 = vadd.f32 %v1700, %v1904
        %v1937 = vadd.f32 %v1701, %v1905
        %v1938 = vadd.f32 %v1702, %v1906
        %v1939 = vadd.f32 %v1703, %v1907
        %v1940 = vadd.f32 %v1704, %v1908
        %v1941 = vadd.f32 %v1705, %v1909
        %v1942 = vadd.f32 %v1706, %v1910
        %s1943 = scalar_lea.vmem [#allocation2], 96
        %v1944 = vld [vmem:[%s1943] sm:$0xff]
        %v1945 = vld [vmem:[%s1943 + $0x8] sm:$0xff]
        %v1946 = vld [vmem:[%s1943 + $0x10] sm:$0xff]
        %v1947 = vld [vmem:[%s1943 + $0x18] sm:$0xff]
        %v1948 = vld [vmem:[%s1943 + $0x20] sm:$0xff]
        %v1949 = vld [vmem:[%s1943 + $0x28] sm:$0xff]
        %v1950 = vld [vmem:[%s1943 + $0x30] sm:$0xff]
        %v1951 = vld [vmem:[%s1943 + $0x38] sm:$0xff]
        %v1952 = vld [vmem:[%s1943 + $0x50] sm:$0xff]
        %v1953 = vld [vmem:[%s1943 + $0x58] sm:$0xff]
        %v1954 = vld [vmem:[%s1943 + $0x60] sm:$0xff]
        %v1955 = vld [vmem:[%s1943 + $0x68] sm:$0xff]
        %v1956 = vld [vmem:[%s1943 + $0x70] sm:$0xff]
        %v1957 = vld [vmem:[%s1943 + $0x78] sm:$0xff]
        %v1958 = vld [vmem:[%s1943 + $0x80] sm:$0xff]
        %v1959 = vld [vmem:[%s1943 + $0x88] sm:$0xff]
        %v1960 = vld [vmem:[%s1943 + $0xa0] sm:$0xff]
        %v1961 = vld [vmem:[%s1943 + $0xa8] sm:$0xff]
        %v1962 = vld [vmem:[%s1943 + $0xb0] sm:$0xff]
        %v1963 = vld [vmem:[%s1943 + $0xb8] sm:$0xff]
        %v1964 = vld [vmem:[%s1943 + $0xc0] sm:$0xff]
        %v1965 = vld [vmem:[%s1943 + $0xc8] sm:$0xff]
        %v1966 = vld [vmem:[%s1943 + $0xd0] sm:$0xff]
        %v1967 = vld [vmem:[%s1943 + $0xd8] sm:$0xff]
        %v1968 = vld [vmem:[%s1943 + $0xf0] sm:$0xff]
        %v1969 = vld [vmem:[%s1943 + $0xf8] sm:$0xff]
        %v1970 = vld [vmem:[%s1943 + $0x100] sm:$0xff]
        %v1971 = vld [vmem:[%s1943 + $0x108] sm:$0xff]
        %v1972 = vld [vmem:[%s1943 + $0x110] sm:$0xff]
        %v1973 = vld [vmem:[%s1943 + $0x118] sm:$0xff]
        %v1974 = vld [vmem:[%s1943 + $0x120] sm:$0xff]
        %v1975 = vld [vmem:[%s1943 + $0x128] sm:$0xff]
        %v1976 = vlaneseq
        %v1977 = vshrl.u32 %v1976, 7
        %v1978 = vsub.s32 7, %v1977
        %v1979 = vrot.slane %v854, %v1978
        %v1980 = vmul.f32 %v1944, %v1979
        %v1981 = vmul.f32 %v1945, %v1979
        %v1982 = vmul.f32 %v1946, %v1979
        %v1983 = vmul.f32 %v1947, %v1979
        %v1984 = vmul.f32 %v1948, %v1979
        %v1985 = vmul.f32 %v1949, %v1979
        %v1986 = vmul.f32 %v1950, %v1979
        %v1987 = vmul.f32 %v1951, %v1979
        %v1988 = vmul.f32 %v1952, %v1979
        %v1989 = vmul.f32 %v1953, %v1979
        %v1990 = vmul.f32 %v1954, %v1979
        %v1991 = vmul.f32 %v1955, %v1979
        %v1992 = vmul.f32 %v1956, %v1979
        %v1993 = vmul.f32 %v1957, %v1979
        %v1994 = vmul.f32 %v1958, %v1979
        %v1995 = vmul.f32 %v1959, %v1979
        %v1996 = vmul.f32 %v1960, %v1979
        %v1997 = vmul.f32 %v1961, %v1979
        %v1998 = vmul.f32 %v1962, %v1979
        %v1999 = vmul.f32 %v1963, %v1979
        %v2000 = vmul.f32 %v1964, %v1979
        %v2001 = vmul.f32 %v1965, %v1979
        %v2002 = vmul.f32 %v1966, %v1979
        %v2003 = vmul.f32 %v1967, %v1979
        %v2004 = vmul.f32 %v1968, %v1979
        %v2005 = vmul.f32 %v1969, %v1979
        %v2006 = vmul.f32 %v1970, %v1979
        %v2007 = vmul.f32 %v1971, %v1979
        %v2008 = vmul.f32 %v1972, %v1979
        %v2009 = vmul.f32 %v1973, %v1979
        %v2010 = vmul.f32 %v1974, %v1979
        %v2011 = vmul.f32 %v1975, %v1979
        %v2012 = vadd.f32 %v1775, %v1980
        %v2013 = vadd.f32 %v1776, %v1981
        %v2014 = vadd.f32 %v1777, %v1982
        %v2015 = vadd.f32 %v1778, %v1983
        %v2016 = vadd.f32 %v1779, %v1984
        %v2017 = vadd.f32 %v1780, %v1985
        %v2018 = vadd.f32 %v1781, %v1986
        %v2019 = vadd.f32 %v1782, %v1987
        %v2020 = vadd.f32 %v1783, %v1988
        %v2021 = vadd.f32 %v1784, %v1989
        %v2022 = vadd.f32 %v1785, %v1990
        %v2023 = vadd.f32 %v1786, %v1991
        %v2024 = vadd.f32 %v1787, %v1992
        %v2025 = vadd.f32 %v1788, %v1993
        %v2026 = vadd.f32 %v1789, %v1994
        %v2027 = vadd.f32 %v1790, %v1995
        %v2028 = vadd.f32 %v1791, %v1996
        %v2029 = vadd.f32 %v1792, %v1997
        %v2030 = vadd.f32 %v1793, %v1998
        %v2031 = vadd.f32 %v1794, %v1999
        %v2032 = vadd.f32 %v1795, %v2000
        %v2033 = vadd.f32 %v1796, %v2001
        %v2034 = vadd.f32 %v1797, %v2002
        %v2035 = vadd.f32 %v1798, %v2003
        %v2036 = vadd.f32 %v1799, %v2004
        %v2037 = vadd.f32 %v1800, %v2005
        %v2038 = vadd.f32 %v1801, %v2006
        %v2039 = vadd.f32 %v1802, %v2007
        %v2040 = vadd.f32 %v1803, %v2008
        %v2041 = vadd.f32 %v1804, %v2009
        %v2042 = vadd.f32 %v1805, %v2010
        %v2043 = vadd.f32 %v1806, %v2011
        %v2044 = vlaneseq
        %v2045 = vshrl.u32 %v2044, 7
        %v2046 = vsub.s32 0, %v2045
        %v2047 = vrot.slane %v855, %v2046
        %v2048 = vmul.f32 %v1944, %v2047
        %v2049 = vmul.f32 %v1945, %v2047
        %v2050 = vmul.f32 %v1946, %v2047
        %v2051 = vmul.f32 %v1947, %v2047
        %v2052 = vmul.f32 %v1948, %v2047
        %v2053 = vmul.f32 %v1949, %v2047
        %v2054 = vmul.f32 %v1950, %v2047
        %v2055 = vmul.f32 %v1951, %v2047
        %v2056 = vmul.f32 %v1952, %v2047
        %v2057 = vmul.f32 %v1953, %v2047
        %v2058 = vmul.f32 %v1954, %v2047
        %v2059 = vmul.f32 %v1955, %v2047
        %v2060 = vmul.f32 %v1956, %v2047
        %v2061 = vmul.f32 %v1957, %v2047
        %v2062 = vmul.f32 %v1958, %v2047
        %v2063 = vmul.f32 %v1959, %v2047
        %v2064 = vmul.f32 %v1960, %v2047
        %v2065 = vmul.f32 %v1961, %v2047
        %v2066 = vmul.f32 %v1962, %v2047
        %v2067 = vmul.f32 %v1963, %v2047
        %v2068 = vmul.f32 %v1964, %v2047
        %v2069 = vmul.f32 %v1965, %v2047
        %v2070 = vmul.f32 %v1966, %v2047
        %v2071 = vmul.f32 %v1967, %v2047
        %v2072 = vmul.f32 %v1968, %v2047
        %v2073 = vmul.f32 %v1969, %v2047
        %v2074 = vmul.f32 %v1970, %v2047
        %v2075 = vmul.f32 %v1971, %v2047
        %v2076 = vmul.f32 %v1972, %v2047
        %v2077 = vmul.f32 %v1973, %v2047
        %v2078 = vmul.f32 %v1974, %v2047
        %v2079 = vmul.f32 %v1975, %v2047
        %v2080 = vadd.f32 %v1843, %v2048
        %v2081 = vadd.f32 %v1844, %v2049
        %v2082 = vadd.f32 %v1845, %v2050
        %v2083 = vadd.f32 %v1846, %v2051
        %v2084 = vadd.f32 %v1847, %v2052
        %v2085 = vadd.f32 %v1848, %v2053
        %v2086 = vadd.f32 %v1849, %v2054
        %v2087 = vadd.f32 %v1850, %v2055
        %v2088 = vadd.f32 %v1851, %v2056
        %v2089 = vadd.f32 %v1852, %v2057
        %v2090 = vadd.f32 %v1853, %v2058
        %v2091 = vadd.f32 %v1854, %v2059
        %v2092 = vadd.f32 %v1855, %v2060
        %v2093 = vadd.f32 %v1856, %v2061
        %v2094 = vadd.f32 %v1857, %v2062
        %v2095 = vadd.f32 %v1858, %v2063
        %v2096 = vadd.f32 %v1859, %v2064
        %v2097 = vadd.f32 %v1860, %v2065
        %v2098 = vadd.f32 %v1861, %v2066
        %v2099 = vadd.f32 %v1862, %v2067
        %v2100 = vadd.f32 %v1863, %v2068
        %v2101 = vadd.f32 %v1864, %v2069
        %v2102 = vadd.f32 %v1865, %v2070
        %v2103 = vadd.f32 %v1866, %v2071
        %v2104 = vadd.f32 %v1867, %v2072
        %v2105 = vadd.f32 %v1868, %v2073
        %v2106 = vadd.f32 %v1869, %v2074
        %v2107 = vadd.f32 %v1870, %v2075
        %v2108 = vadd.f32 %v1871, %v2076
        %v2109 = vadd.f32 %v1872, %v2077
        %v2110 = vadd.f32 %v1873, %v2078
        %v2111 = vadd.f32 %v1874, %v2079
        %v2112 = vlaneseq
        %v2113 = vshrl.u32 %v2112, 7
        %v2114 = vsub.s32 1, %v2113
        %v2115 = vrot.slane %v855, %v2114
        %v2116 = vmul.f32 %v1944, %v2115
        %v2117 = vmul.f32 %v1945, %v2115
        %v2118 = vmul.f32 %v1946, %v2115
        %v2119 = vmul.f32 %v1947, %v2115
        %v2120 = vmul.f32 %v1948, %v2115
        %v2121 = vmul.f32 %v1949, %v2115
        %v2122 = vmul.f32 %v1950, %v2115
        %v2123 = vmul.f32 %v1951, %v2115
        %v2124 = vmul.f32 %v1952, %v2115
        %v2125 = vmul.f32 %v1953, %v2115
        %v2126 = vmul.f32 %v1954, %v2115
        %v2127 = vmul.f32 %v1955, %v2115
        %v2128 = vmul.f32 %v1956, %v2115
        %v2129 = vmul.f32 %v1957, %v2115
        %v2130 = vmul.f32 %v1958, %v2115
        %v2131 = vmul.f32 %v1959, %v2115
        %v2132 = vmul.f32 %v1960, %v2115
        %v2133 = vmul.f32 %v1961, %v2115
        %v2134 = vmul.f32 %v1962, %v2115
        %v2135 = vmul.f32 %v1963, %v2115
        %v2136 = vmul.f32 %v1964, %v2115
        %v2137 = vmul.f32 %v1965, %v2115
        %v2138 = vmul.f32 %v1966, %v2115
        %v2139 = vmul.f32 %v1967, %v2115
        %v2140 = vmul.f32 %v1968, %v2115
        %v2141 = vmul.f32 %v1969, %v2115
        %v2142 = vmul.f32 %v1970, %v2115
        %v2143 = vmul.f32 %v1971, %v2115
        %v2144 = vmul.f32 %v1972, %v2115
        %v2145 = vmul.f32 %v1973, %v2115
        %v2146 = vmul.f32 %v1974, %v2115
        %v2147 = vmul.f32 %v1975, %v2115
        %v2148 = vadd.f32 %v1911, %v2116
        %v2149 = vadd.f32 %v1912, %v2117
        %v2150 = vadd.f32 %v1913, %v2118
        %v2151 = vadd.f32 %v1914, %v2119
        %v2152 = vadd.f32 %v1915, %v2120
        %v2153 = vadd.f32 %v1916, %v2121
        %v2154 = vadd.f32 %v1917, %v2122
        %v2155 = vadd.f32 %v1918, %v2123
        %v2156 = vadd.f32 %v1919, %v2124
        %v2157 = vadd.f32 %v1920, %v2125
        %v2158 = vadd.f32 %v1921, %v2126
        %v2159 = vadd.f32 %v1922, %v2127
        %v2160 = vadd.f32 %v1923, %v2128
        %v2161 = vadd.f32 %v1924, %v2129
        %v2162 = vadd.f32 %v1925, %v2130
        %v2163 = vadd.f32 %v1926, %v2131
        %v2164 = vadd.f32 %v1927, %v2132
        %v2165 = vadd.f32 %v1928, %v2133
        %v2166 = vadd.f32 %v1929, %v2134
        %v2167 = vadd.f32 %v1930, %v2135
        %v2168 = vadd.f32 %v1931, %v2136
        %v2169 = vadd.f32 %v1932, %v2137
        %v2170 = vadd.f32 %v1933, %v2138
        %v2171 = vadd.f32 %v1934, %v2139
        %v2172 = vadd.f32 %v1935, %v2140
        %v2173 = vadd.f32 %v1936, %v2141
        %v2174 = vadd.f32 %v1937, %v2142
        %v2175 = vadd.f32 %v1938, %v2143
        %v2176 = vadd.f32 %v1939, %v2144
        %v2177 = vadd.f32 %v1940, %v2145
        %v2178 = vadd.f32 %v1941, %v2146
        %v2179 = vadd.f32 %v1942, %v2147
        %s2180 = scalar_lea.vmem [#allocation2], 160
        %v2181 = vld [vmem:[%s2180] sm:$0xff]
        %v2182 = vld [vmem:[%s2180 + $0x8] sm:$0xff]
        %v2183 = vld [vmem:[%s2180 + $0x10] sm:$0xff]
        %v2184 = vld [vmem:[%s2180 + $0x18] sm:$0xff]
        %v2185 = vld [vmem:[%s2180 + $0x20] sm:$0xff]
        %v2186 = vld [vmem:[%s2180 + $0x28] sm:$0xff]
        %v2187 = vld [vmem:[%s2180 + $0x30] sm:$0xff]
        %v2188 = vld [vmem:[%s2180 + $0x38] sm:$0xff]
        %v2189 = vld [vmem:[%s2180 + $0x50] sm:$0xff]
        %v2190 = vld [vmem:[%s2180 + $0x58] sm:$0xff]
        %v2191 = vld [vmem:[%s2180 + $0x60] sm:$0xff]
        %v2192 = vld [vmem:[%s2180 + $0x68] sm:$0xff]
        %v2193 = vld [vmem:[%s2180 + $0x70] sm:$0xff]
        %v2194 = vld [vmem:[%s2180 + $0x78] sm:$0xff]
        %v2195 = vld [vmem:[%s2180 + $0x80] sm:$0xff]
        %v2196 = vld [vmem:[%s2180 + $0x88] sm:$0xff]
        %v2197 = vld [vmem:[%s2180 + $0xa0] sm:$0xff]
        %v2198 = vld [vmem:[%s2180 + $0xa8] sm:$0xff]
        %v2199 = vld [vmem:[%s2180 + $0xb0] sm:$0xff]
        %v2200 = vld [vmem:[%s2180 + $0xb8] sm:$0xff]
        %v2201 = vld [vmem:[%s2180 + $0xc0] sm:$0xff]
        %v2202 = vld [vmem:[%s2180 + $0xc8] sm:$0xff]
        %v2203 = vld [vmem:[%s2180 + $0xd0] sm:$0xff]
        %v2204 = vld [vmem:[%s2180 + $0xd8] sm:$0xff]
        %v2205 = vld [vmem:[%s2180 + $0xf0] sm:$0xff]
        %v2206 = vld [vmem:[%s2180 + $0xf8] sm:$0xff]
        %v2207 = vld [vmem:[%s2180 + $0x100] sm:$0xff]
        %v2208 = vld [vmem:[%s2180 + $0x108] sm:$0xff]
        %v2209 = vld [vmem:[%s2180 + $0x110] sm:$0xff]
        %v2210 = vld [vmem:[%s2180 + $0x118] sm:$0xff]
        %v2211 = vld [vmem:[%s2180 + $0x120] sm:$0xff]
        %v2212 = vld [vmem:[%s2180 + $0x128] sm:$0xff]
        %v2213 = vlaneseq
        %v2214 = vshrl.u32 %v2213, 7
        %v2215 = vsub.s32 2, %v2214
        %v2216 = vrot.slane %v855, %v2215
        %v2217 = vmul.f32 %v2181, %v2216
        %v2218 = vmul.f32 %v2182, %v2216
        %v2219 = vmul.f32 %v2183, %v2216
        %v2220 = vmul.f32 %v2184, %v2216
        %v2221 = vmul.f32 %v2185, %v2216
        %v2222 = vmul.f32 %v2186, %v2216
        %v2223 = vmul.f32 %v2187, %v2216
        %v2224 = vmul.f32 %v2188, %v2216
        %v2225 = vmul.f32 %v2189, %v2216
        %v2226 = vmul.f32 %v2190, %v2216
        %v2227 = vmul.f32 %v2191, %v2216
        %v2228 = vmul.f32 %v2192, %v2216
        %v2229 = vmul.f32 %v2193, %v2216
        %v2230 = vmul.f32 %v2194, %v2216
        %v2231 = vmul.f32 %v2195, %v2216
        %v2232 = vmul.f32 %v2196, %v2216
        %v2233 = vmul.f32 %v2197, %v2216
        %v2234 = vmul.f32 %v2198, %v2216
        %v2235 = vmul.f32 %v2199, %v2216
        %v2236 = vmul.f32 %v2200, %v2216
        %v2237 = vmul.f32 %v2201, %v2216
        %v2238 = vmul.f32 %v2202, %v2216
        %v2239 = vmul.f32 %v2203, %v2216
        %v2240 = vmul.f32 %v2204, %v2216
        %v2241 = vmul.f32 %v2205, %v2216
        %v2242 = vmul.f32 %v2206, %v2216
        %v2243 = vmul.f32 %v2207, %v2216
        %v2244 = vmul.f32 %v2208, %v2216
        %v2245 = vmul.f32 %v2209, %v2216
        %v2246 = vmul.f32 %v2210, %v2216
        %v2247 = vmul.f32 %v2211, %v2216
        %v2248 = vmul.f32 %v2212, %v2216
        %v2249 = vadd.f32 %v2012, %v2217
        %v2250 = vadd.f32 %v2013, %v2218
        %v2251 = vadd.f32 %v2014, %v2219
        %v2252 = vadd.f32 %v2015, %v2220
        %v2253 = vadd.f32 %v2016, %v2221
        %v2254 = vadd.f32 %v2017, %v2222
        %v2255 = vadd.f32 %v2018, %v2223
        %v2256 = vadd.f32 %v2019, %v2224
        %v2257 = vadd.f32 %v2020, %v2225
        %v2258 = vadd.f32 %v2021, %v2226
        %v2259 = vadd.f32 %v2022, %v2227
        %v2260 = vadd.f32 %v2023, %v2228
        %v2261 = vadd.f32 %v2024, %v2229
        %v2262 = vadd.f32 %v2025, %v2230
        %v2263 = vadd.f32 %v2026, %v2231
        %v2264 = vadd.f32 %v2027, %v2232
        %v2265 = vadd.f32 %v2028, %v2233
        %v2266 = vadd.f32 %v2029, %v2234
        %v2267 = vadd.f32 %v2030, %v2235
        %v2268 = vadd.f32 %v2031, %v2236
        %v2269 = vadd.f32 %v2032, %v2237
        %v2270 = vadd.f32 %v2033, %v2238
        %v2271 = vadd.f32 %v2034, %v2239
        %v2272 = vadd.f32 %v2035, %v2240
        %v2273 = vadd.f32 %v2036, %v2241
        %v2274 = vadd.f32 %v2037, %v2242
        %v2275 = vadd.f32 %v2038, %v2243
        %v2276 = vadd.f32 %v2039, %v2244
        %v2277 = vadd.f32 %v2040, %v2245
        %v2278 = vadd.f32 %v2041, %v2246
        %v2279 = vadd.f32 %v2042, %v2247
        %v2280 = vadd.f32 %v2043, %v2248
        %v2281 = vlaneseq
        %v2282 = vshrl.u32 %v2281, 7
        %v2283 = vsub.s32 3, %v2282
        %v2284 = vrot.slane %v855, %v2283
        %v2285 = vmul.f32 %v2181, %v2284
        %v2286 = vmul.f32 %v2182, %v2284
        %v2287 = vmul.f32 %v2183, %v2284
        %v2288 = vmul.f32 %v2184, %v2284
        %v2289 = vmul.f32 %v2185, %v2284
        %v2290 = vmul.f32 %v2186, %v2284
        %v2291 = vmul.f32 %v2187, %v2284
        %v2292 = vmul.f32 %v2188, %v2284
        %v2293 = vmul.f32 %v2189, %v2284
        %v2294 = vmul.f32 %v2190, %v2284
        %v2295 = vmul.f32 %v2191, %v2284
        %v2296 = vmul.f32 %v2192, %v2284
        %v2297 = vmul.f32 %v2193, %v2284
        %v2298 = vmul.f32 %v2194, %v2284
        %v2299 = vmul.f32 %v2195, %v2284
        %v2300 = vmul.f32 %v2196, %v2284
        %v2301 = vmul.f32 %v2197, %v2284
        %v2302 = vmul.f32 %v2198, %v2284
        %v2303 = vmul.f32 %v2199, %v2284
        %v2304 = vmul.f32 %v2200, %v2284
        %v2305 = vmul.f32 %v2201, %v2284
        %v2306 = vmul.f32 %v2202, %v2284
        %v2307 = vmul.f32 %v2203, %v2284
        %v2308 = vmul.f32 %v2204, %v2284
        %v2309 = vmul.f32 %v2205, %v2284
        %v2310 = vmul.f32 %v2206, %v2284
        %v2311 = vmul.f32 %v2207, %v2284
        %v2312 = vmul.f32 %v2208, %v2284
        %v2313 = vmul.f32 %v2209, %v2284
        %v2314 = vmul.f32 %v2210, %v2284
        %v2315 = vmul.f32 %v2211, %v2284
        %v2316 = vmul.f32 %v2212, %v2284
        %v2317 = vadd.f32 %v2080, %v2285
        %v2318 = vadd.f32 %v2081, %v2286
        %v2319 = vadd.f32 %v2082, %v2287
        %v2320 = vadd.f32 %v2083, %v2288
        %v2321 = vadd.f32 %v2084, %v2289
        %v2322 = vadd.f32 %v2085, %v2290
        %v2323 = vadd.f32 %v2086, %v2291
        %v2324 = vadd.f32 %v2087, %v2292
        %v2325 = vadd.f32 %v2088, %v2293
        %v2326 = vadd.f32 %v2089, %v2294
        %v2327 = vadd.f32 %v2090, %v2295
        %v2328 = vadd.f32 %v2091, %v2296
        %v2329 = vadd.f32 %v2092, %v2297
        %v2330 = vadd.f32 %v2093, %v2298
        %v2331 = vadd.f32 %v2094, %v2299
        %v2332 = vadd.f32 %v2095, %v2300
        %v2333 = vadd.f32 %v2096, %v2301
        %v2334 = vadd.f32 %v2097, %v2302
        %v2335 = vadd.f32 %v2098, %v2303
        %v2336 = vadd.f32 %v2099, %v2304
        %v2337 = vadd.f32 %v2100, %v2305
        %v2338 = vadd.f32 %v2101, %v2306
        %v2339 = vadd.f32 %v2102, %v2307
        %v2340 = vadd.f32 %v2103, %v2308
        %v2341 = vadd.f32 %v2104, %v2309
        %v2342 = vadd.f32 %v2105, %v2310
        %v2343 = vadd.f32 %v2106, %v2311
        %v2344 = vadd.f32 %v2107, %v2312
        %v2345 = vadd.f32 %v2108, %v2313
        %v2346 = vadd.f32 %v2109, %v2314
        %v2347 = vadd.f32 %v2110, %v2315
        %v2348 = vadd.f32 %v2111, %v2316
        %v2349 = vlaneseq
        %v2350 = vshrl.u32 %v2349, 7
        %v2351 = vsub.s32 4, %v2350
        %v2352 = vrot.slane %v855, %v2351
        %v2353 = vmul.f32 %v2181, %v2352
        %v2354 = vmul.f32 %v2182, %v2352
        %v2355 = vmul.f32 %v2183, %v2352
        %v2356 = vmul.f32 %v2184, %v2352
        %v2357 = vmul.f32 %v2185, %v2352
        %v2358 = vmul.f32 %v2186, %v2352
        %v2359 = vmul.f32 %v2187, %v2352
        %v2360 = vmul.f32 %v2188, %v2352
        %v2361 = vmul.f32 %v2189, %v2352
        %v2362 = vmul.f32 %v2190, %v2352
        %v2363 = vmul.f32 %v2191, %v2352
        %v2364 = vmul.f32 %v2192, %v2352
        %v2365 = vmul.f32 %v2193, %v2352
        %v2366 = vmul.f32 %v2194, %v2352
        %v2367 = vmul.f32 %v2195, %v2352
        %v2368 = vmul.f32 %v2196, %v2352
        %v2369 = vmul.f32 %v2197, %v2352
        %v2370 = vmul.f32 %v2198, %v2352
        %v2371 = vmul.f32 %v2199, %v2352
        %v2372 = vmul.f32 %v2200, %v2352
        %v2373 = vmul.f32 %v2201, %v2352
        %v2374 = vmul.f32 %v2202, %v2352
        %v2375 = vmul.f32 %v2203, %v2352
        %v2376 = vmul.f32 %v2204, %v2352
        %v2377 = vmul.f32 %v2205, %v2352
        %v2378 = vmul.f32 %v2206, %v2352
        %v2379 = vmul.f32 %v2207, %v2352
        %v2380 = vmul.f32 %v2208, %v2352
        %v2381 = vmul.f32 %v2209, %v2352
        %v2382 = vmul.f32 %v2210, %v2352
        %v2383 = vmul.f32 %v2211, %v2352
        %v2384 = vmul.f32 %v2212, %v2352
        %v2385 = vadd.f32 %v2148, %v2353
        %v2386 = vadd.f32 %v2149, %v2354
        %v2387 = vadd.f32 %v2150, %v2355
        %v2388 = vadd.f32 %v2151, %v2356
        %v2389 = vadd.f32 %v2152, %v2357
        %v2390 = vadd.f32 %v2153, %v2358
        %v2391 = vadd.f32 %v2154, %v2359
        %v2392 = vadd.f32 %v2155, %v2360
        %v2393 = vadd.f32 %v2156, %v2361
        %v2394 = vadd.f32 %v2157, %v2362
        %v2395 = vadd.f32 %v2158, %v2363
        %v2396 = vadd.f32 %v2159, %v2364
        %v2397 = vadd.f32 %v2160, %v2365
        %v2398 = vadd.f32 %v2161, %v2366
        %v2399 = vadd.f32 %v2162, %v2367
        %v2400 = vadd.f32 %v2163, %v2368
        %v2401 = vadd.f32 %v2164, %v2369
        %v2402 = vadd.f32 %v2165, %v2370
        %v2403 = vadd.f32 %v2166, %v2371
        %v2404 = vadd.f32 %v2167, %v2372
        %v2405 = vadd.f32 %v2168, %v2373
        %v2406 = vadd.f32 %v2169, %v2374
        %v2407 = vadd.f32 %v2170, %v2375
        %v2408 = vadd.f32 %v2171, %v2376
        %v2409 = vadd.f32 %v2172, %v2377
        %v2410 = vadd.f32 %v2173, %v2378
        %v2411 = vadd.f32 %v2174, %v2379
        %v2412 = vadd.f32 %v2175, %v2380
        %v2413 = vadd.f32 %v2176, %v2381
        %v2414 = vadd.f32 %v2177, %v2382
        %v2415 = vadd.f32 %v2178, %v2383
        %v2416 = vadd.f32 %v2179, %v2384
        %s2417 = scalar_lea.vmem [#allocation2], 168
        %v2418 = vld [vmem:[%s2417] sm:$0xff]
        %v2419 = vld [vmem:[%s2417 + $0x8] sm:$0xff]
        %v2420 = vld [vmem:[%s2417 + $0x10] sm:$0xff]
        %v2421 = vld [vmem:[%s2417 + $0x18] sm:$0xff]
        %v2422 = vld [vmem:[%s2417 + $0x20] sm:$0xff]
        %v2423 = vld [vmem:[%s2417 + $0x28] sm:$0xff]
        %v2424 = vld [vmem:[%s2417 + $0x30] sm:$0xff]
        %v2425 = vld [vmem:[%s2417 + $0x38] sm:$0xff]
        %v2426 = vld [vmem:[%s2417 + $0x50] sm:$0xff]
        %v2427 = vld [vmem:[%s2417 + $0x58] sm:$0xff]
        %v2428 = vld [vmem:[%s2417 + $0x60] sm:$0xff]
        %v2429 = vld [vmem:[%s2417 + $0x68] sm:$0xff]
        %v2430 = vld [vmem:[%s2417 + $0x70] sm:$0xff]
        %v2431 = vld [vmem:[%s2417 + $0x78] sm:$0xff]
        %v2432 = vld [vmem:[%s2417 + $0x80] sm:$0xff]
        %v2433 = vld [vmem:[%s2417 + $0x88] sm:$0xff]
        %v2434 = vld [vmem:[%s2417 + $0xa0] sm:$0xff]
        %v2435 = vld [vmem:[%s2417 + $0xa8] sm:$0xff]
        %v2436 = vld [vmem:[%s2417 + $0xb0] sm:$0xff]
        %v2437 = vld [vmem:[%s2417 + $0xb8] sm:$0xff]
        %v2438 = vld [vmem:[%s2417 + $0xc0] sm:$0xff]
        %v2439 = vld [vmem:[%s2417 + $0xc8] sm:$0xff]
        %v2440 = vld [vmem:[%s2417 + $0xd0] sm:$0xff]
        %v2441 = vld [vmem:[%s2417 + $0xd8] sm:$0xff]
        %v2442 = vld [vmem:[%s2417 + $0xf0] sm:$0xff]
        %v2443 = vld [vmem:[%s2417 + $0xf8] sm:$0xff]
        %v2444 = vld [vmem:[%s2417 + $0x100] sm:$0xff]
        %v2445 = vld [vmem:[%s2417 + $0x108] sm:$0xff]
        %v2446 = vld [vmem:[%s2417 + $0x110] sm:$0xff]
        %v2447 = vld [vmem:[%s2417 + $0x118] sm:$0xff]
        %v2448 = vld [vmem:[%s2417 + $0x120] sm:$0xff]
        %v2449 = vld [vmem:[%s2417 + $0x128] sm:$0xff]
        %v2450 = vlaneseq
        %v2451 = vshrl.u32 %v2450, 7
        %v2452 = vsub.s32 5, %v2451
        %v2453 = vrot.slane %v855, %v2452
        %v2454 = vmul.f32 %v2418, %v2453
        %v2455 = vmul.f32 %v2419, %v2453
        %v2456 = vmul.f32 %v2420, %v2453
        %v2457 = vmul.f32 %v2421, %v2453
        %v2458 = vmul.f32 %v2422, %v2453
        %v2459 = vmul.f32 %v2423, %v2453
        %v2460 = vmul.f32 %v2424, %v2453
        %v2461 = vmul.f32 %v2425, %v2453
        %v2462 = vmul.f32 %v2426, %v2453
        %v2463 = vmul.f32 %v2427, %v2453
        %v2464 = vmul.f32 %v2428, %v2453
        %v2465 = vmul.f32 %v2429, %v2453
        %v2466 = vmul.f32 %v2430, %v2453
        %v2467 = vmul.f32 %v2431, %v2453
        %v2468 = vmul.f32 %v2432, %v2453
        %v2469 = vmul.f32 %v2433, %v2453
        %v2470 = vmul.f32 %v2434, %v2453
        %v2471 = vmul.f32 %v2435, %v2453
        %v2472 = vmul.f32 %v2436, %v2453
        %v2473 = vmul.f32 %v2437, %v2453
        %v2474 = vmul.f32 %v2438, %v2453
        %v2475 = vmul.f32 %v2439, %v2453
        %v2476 = vmul.f32 %v2440, %v2453
        %v2477 = vmul.f32 %v2441, %v2453
        %v2478 = vmul.f32 %v2442, %v2453
        %v2479 = vmul.f32 %v2443, %v2453
        %v2480 = vmul.f32 %v2444, %v2453
        %v2481 = vmul.f32 %v2445, %v2453
        %v2482 = vmul.f32 %v2446, %v2453
        %v2483 = vmul.f32 %v2447, %v2453
        %v2484 = vmul.f32 %v2448, %v2453
        %v2485 = vmul.f32 %v2449, %v2453
        %v2486 = vadd.f32 %v2249, %v2454
        %v2487 = vadd.f32 %v2250, %v2455
        %v2488 = vadd.f32 %v2251, %v2456
        %v2489 = vadd.f32 %v2252, %v2457
        %v2490 = vadd.f32 %v2253, %v2458
        %v2491 = vadd.f32 %v2254, %v2459
        %v2492 = vadd.f32 %v2255, %v2460
        %v2493 = vadd.f32 %v2256, %v2461
        %v2494 = vadd.f32 %v2257, %v2462
        %v2495 = vadd.f32 %v2258, %v2463
        %v2496 = vadd.f32 %v2259, %v2464
        %v2497 = vadd.f32 %v2260, %v2465
        %v2498 = vadd.f32 %v2261, %v2466
        %v2499 = vadd.f32 %v2262, %v2467
        %v2500 = vadd.f32 %v2263, %v2468
        %v2501 = vadd.f32 %v2264, %v2469
        %v2502 = vadd.f32 %v2265, %v2470
        %v2503 = vadd.f32 %v2266, %v2471
        %v2504 = vadd.f32 %v2267, %v2472
        %v2505 = vadd.f32 %v2268, %v2473
        %v2506 = vadd.f32 %v2269, %v2474
        %v2507 = vadd.f32 %v2270, %v2475
        %v2508 = vadd.f32 %v2271, %v2476
        %v2509 = vadd.f32 %v2272, %v2477
        %v2510 = vadd.f32 %v2273, %v2478
        %v2511 = vadd.f32 %v2274, %v2479
        %v2512 = vadd.f32 %v2275, %v2480
        %v2513 = vadd.f32 %v2276, %v2481
        %v2514 = vadd.f32 %v2277, %v2482
        %v2515 = vadd.f32 %v2278, %v2483
        %v2516 = vadd.f32 %v2279, %v2484
        %v2517 = vadd.f32 %v2280, %v2485
        %v2518 = vlaneseq
        %v2519 = vshrl.u32 %v2518, 7
        %v2520 = vsub.s32 6, %v2519
        %v2521 = vrot.slane %v855, %v2520
        %v2522 = vmul.f32 %v2418, %v2521
        %v2523 = vmul.f32 %v2419, %v2521
        %v2524 = vmul.f32 %v2420, %v2521
        %v2525 = vmul.f32 %v2421, %v2521
        %v2526 = vmul.f32 %v2422, %v2521
        %v2527 = vmul.f32 %v2423, %v2521
        %v2528 = vmul.f32 %v2424, %v2521
        %v2529 = vmul.f32 %v2425, %v2521
        %v2530 = vmul.f32 %v2426, %v2521
        %v2531 = vmul.f32 %v2427, %v2521
        %v2532 = vmul.f32 %v2428, %v2521
        %v2533 = vmul.f32 %v2429, %v2521
        %v2534 = vmul.f32 %v2430, %v2521
        %v2535 = vmul.f32 %v2431, %v2521
        %v2536 = vmul.f32 %v2432, %v2521
        %v2537 = vmul.f32 %v2433, %v2521
        %v2538 = vmul.f32 %v2434, %v2521
        %v2539 = vmul.f32 %v2435, %v2521
        %v2540 = vmul.f32 %v2436, %v2521
        %v2541 = vmul.f32 %v2437, %v2521
        %v2542 = vmul.f32 %v2438, %v2521
        %v2543 = vmul.f32 %v2439, %v2521
        %v2544 = vmul.f32 %v2440, %v2521
        %v2545 = vmul.f32 %v2441, %v2521
        %v2546 = vmul.f32 %v2442, %v2521
        %v2547 = vmul.f32 %v2443, %v2521
        %v2548 = vmul.f32 %v2444, %v2521
        %v2549 = vmul.f32 %v2445, %v2521
        %v2550 = vmul.f32 %v2446, %v2521
        %v2551 = vmul.f32 %v2447, %v2521
        %v2552 = vmul.f32 %v2448, %v2521
        %v2553 = vmul.f32 %v2449, %v2521
        %v2554 = vadd.f32 %v2317, %v2522
        %v2555 = vadd.f32 %v2318, %v2523
        %v2556 = vadd.f32 %v2319, %v2524
        %v2557 = vadd.f32 %v2320, %v2525
        %v2558 = vadd.f32 %v2321, %v2526
        %v2559 = vadd.f32 %v2322, %v2527
        %v2560 = vadd.f32 %v2323, %v2528
        %v2561 = vadd.f32 %v2324, %v2529
        %v2562 = vadd.f32 %v2325, %v2530
        %v2563 = vadd.f32 %v2326, %v2531
        %v2564 = vadd.f32 %v2327, %v2532
        %v2565 = vadd.f32 %v2328, %v2533
        %v2566 = vadd.f32 %v2329, %v2534
        %v2567 = vadd.f32 %v2330, %v2535
        %v2568 = vadd.f32 %v2331, %v2536
        %v2569 = vadd.f32 %v2332, %v2537
        %v2570 = vadd.f32 %v2333, %v2538
        %v2571 = vadd.f32 %v2334, %v2539
        %v2572 = vadd.f32 %v2335, %v2540
        %v2573 = vadd.f32 %v2336, %v2541
        %v2574 = vadd.f32 %v2337, %v2542
        %v2575 = vadd.f32 %v2338, %v2543
        %v2576 = vadd.f32 %v2339, %v2544
        %v2577 = vadd.f32 %v2340, %v2545
        %v2578 = vadd.f32 %v2341, %v2546
        %v2579 = vadd.f32 %v2342, %v2547
        %v2580 = vadd.f32 %v2343, %v2548
        %v2581 = vadd.f32 %v2344, %v2549
        %v2582 = vadd.f32 %v2345, %v2550
        %v2583 = vadd.f32 %v2346, %v2551
        %v2584 = vadd.f32 %v2347, %v2552
        %v2585 = vadd.f32 %v2348, %v2553
        %v2586 = vlaneseq
        %v2587 = vshrl.u32 %v2586, 7
        %v2588 = vsub.s32 7, %v2587
        %v2589 = vrot.slane %v855, %v2588
        %v2590 = vmul.f32 %v2418, %v2589
        %v2591 = vmul.f32 %v2419, %v2589
        %v2592 = vmul.f32 %v2420, %v2589
        %v2593 = vmul.f32 %v2421, %v2589
        %v2594 = vmul.f32 %v2422, %v2589
        %v2595 = vmul.f32 %v2423, %v2589
        %v2596 = vmul.f32 %v2424, %v2589
        %v2597 = vmul.f32 %v2425, %v2589
        %v2598 = vmul.f32 %v2426, %v2589
        %v2599 = vmul.f32 %v2427, %v2589
        %v2600 = vmul.f32 %v2428, %v2589
        %v2601 = vmul.f32 %v2429, %v2589
        %v2602 = vmul.f32 %v2430, %v2589
        %v2603 = vmul.f32 %v2431, %v2589
        %v2604 = vmul.f32 %v2432, %v2589
        %v2605 = vmul.f32 %v2433, %v2589
        %v2606 = vmul.f32 %v2434, %v2589
        %v2607 = vmul.f32 %v2435, %v2589
        %v2608 = vmul.f32 %v2436, %v2589
        %v2609 = vmul.f32 %v2437, %v2589
        %v2610 = vmul.f32 %v2438, %v2589
        %v2611 = vmul.f32 %v2439, %v2589
        %v2612 = vmul.f32 %v2440, %v2589
        %v2613 = vmul.f32 %v2441, %v2589
        %v2614 = vmul.f32 %v2442, %v2589
        %v2615 = vmul.f32 %v2443, %v2589
        %v2616 = vmul.f32 %v2444, %v2589
        %v2617 = vmul.f32 %v2445, %v2589
        %v2618 = vmul.f32 %v2446, %v2589
        %v2619 = vmul.f32 %v2447, %v2589
        %v2620 = vmul.f32 %v2448, %v2589
        %v2621 = vmul.f32 %v2449, %v2589
        %v2622 = vadd.f32 %v2385, %v2590
        %v2623 = vadd.f32 %v2386, %v2591
        %v2624 = vadd.f32 %v2387, %v2592
        %v2625 = vadd.f32 %v2388, %v2593
        %v2626 = vadd.f32 %v2389, %v2594
        %v2627 = vadd.f32 %v2390, %v2595
        %v2628 = vadd.f32 %v2391, %v2596
        %v2629 = vadd.f32 %v2392, %v2597
        %v2630 = vadd.f32 %v2393, %v2598
        %v2631 = vadd.f32 %v2394, %v2599
        %v2632 = vadd.f32 %v2395, %v2600
        %v2633 = vadd.f32 %v2396, %v2601
        %v2634 = vadd.f32 %v2397, %v2602
        %v2635 = vadd.f32 %v2398, %v2603
        %v2636 = vadd.f32 %v2399, %v2604
        %v2637 = vadd.f32 %v2400, %v2605
        %v2638 = vadd.f32 %v2401, %v2606
        %v2639 = vadd.f32 %v2402, %v2607
        %v2640 = vadd.f32 %v2403, %v2608
        %v2641 = vadd.f32 %v2404, %v2609
        %v2642 = vadd.f32 %v2405, %v2610
        %v2643 = vadd.f32 %v2406, %v2611
        %v2644 = vadd.f32 %v2407, %v2612
        %v2645 = vadd.f32 %v2408, %v2613
        %v2646 = vadd.f32 %v2409, %v2614
        %v2647 = vadd.f32 %v2410, %v2615
        %v2648 = vadd.f32 %v2411, %v2616
        %v2649 = vadd.f32 %v2412, %v2617
        %v2650 = vadd.f32 %v2413, %v2618
        %v2651 = vadd.f32 %v2414, %v2619
        %v2652 = vadd.f32 %v2415, %v2620
        %v2653 = vadd.f32 %v2416, %v2621
        %s2654 = scalar_lea.vmem [#allocation2], 176
        %v2655 = vld [vmem:[%s2654] sm:$0xff]
        %v2656 = vld [vmem:[%s2654 + $0x8] sm:$0xff]
        %v2657 = vld [vmem:[%s2654 + $0x10] sm:$0xff]
        %v2658 = vld [vmem:[%s2654 + $0x18] sm:$0xff]
        %v2659 = vld [vmem:[%s2654 + $0x20] sm:$0xff]
        %v2660 = vld [vmem:[%s2654 + $0x28] sm:$0xff]
        %v2661 = vld [vmem:[%s2654 + $0x30] sm:$0xff]
        %v2662 = vld [vmem:[%s2654 + $0x38] sm:$0xff]
        %v2663 = vld [vmem:[%s2654 + $0x50] sm:$0xff]
        %v2664 = vld [vmem:[%s2654 + $0x58] sm:$0xff]
        %v2665 = vld [vmem:[%s2654 + $0x60] sm:$0xff]
        %v2666 = vld [vmem:[%s2654 + $0x68] sm:$0xff]
        %v2667 = vld [vmem:[%s2654 + $0x70] sm:$0xff]
        %v2668 = vld [vmem:[%s2654 + $0x78] sm:$0xff]
        %v2669 = vld [vmem:[%s2654 + $0x80] sm:$0xff]
        %v2670 = vld [vmem:[%s2654 + $0x88] sm:$0xff]
        %v2671 = vld [vmem:[%s2654 + $0xa0] sm:$0xff]
        %v2672 = vld [vmem:[%s2654 + $0xa8] sm:$0xff]
        %v2673 = vld [vmem:[%s2654 + $0xb0] sm:$0xff]
        %v2674 = vld [vmem:[%s2654 + $0xb8] sm:$0xff]
        %v2675 = vld [vmem:[%s2654 + $0xc0] sm:$0xff]
        %v2676 = vld [vmem:[%s2654 + $0xc8] sm:$0xff]
        %v2677 = vld [vmem:[%s2654 + $0xd0] sm:$0xff]
        %v2678 = vld [vmem:[%s2654 + $0xd8] sm:$0xff]
        %v2679 = vld [vmem:[%s2654 + $0xf0] sm:$0xff]
        %v2680 = vld [vmem:[%s2654 + $0xf8] sm:$0xff]
        %v2681 = vld [vmem:[%s2654 + $0x100] sm:$0xff]
        %v2682 = vld [vmem:[%s2654 + $0x108] sm:$0xff]
        %v2683 = vld [vmem:[%s2654 + $0x110] sm:$0xff]
        %v2684 = vld [vmem:[%s2654 + $0x118] sm:$0xff]
        %v2685 = vld [vmem:[%s2654 + $0x120] sm:$0xff]
        %v2686 = vld [vmem:[%s2654 + $0x128] sm:$0xff]
        %v2687 = vlaneseq
        %v2688 = vshrl.u32 %v2687, 7
        %v2689 = vsub.s32 0, %v2688
        %v2690 = vrot.slane %v856, %v2689
        %v2691 = vmul.f32 %v2655, %v2690
        %v2692 = vmul.f32 %v2656, %v2690
        %v2693 = vmul.f32 %v2657, %v2690
        %v2694 = vmul.f32 %v2658, %v2690
        %v2695 = vmul.f32 %v2659, %v2690
        %v2696 = vmul.f32 %v2660, %v2690
        %v2697 = vmul.f32 %v2661, %v2690
        %v2698 = vmul.f32 %v2662, %v2690
        %v2699 = vmul.f32 %v2663, %v2690
        %v2700 = vmul.f32 %v2664, %v2690
        %v2701 = vmul.f32 %v2665, %v2690
        %v2702 = vmul.f32 %v2666, %v2690
        %v2703 = vmul.f32 %v2667, %v2690
        %v2704 = vmul.f32 %v2668, %v2690
        %v2705 = vmul.f32 %v2669, %v2690
        %v2706 = vmul.f32 %v2670, %v2690
        %v2707 = vmul.f32 %v2671, %v2690
        %v2708 = vmul.f32 %v2672, %v2690
        %v2709 = vmul.f32 %v2673, %v2690
        %v2710 = vmul.f32 %v2674, %v2690
        %v2711 = vmul.f32 %v2675, %v2690
        %v2712 = vmul.f32 %v2676, %v2690
        %v2713 = vmul.f32 %v2677, %v2690
        %v2714 = vmul.f32 %v2678, %v2690
        %v2715 = vmul.f32 %v2679, %v2690
        %v2716 = vmul.f32 %v2680, %v2690
        %v2717 = vmul.f32 %v2681, %v2690
        %v2718 = vmul.f32 %v2682, %v2690
        %v2719 = vmul.f32 %v2683, %v2690
        %v2720 = vmul.f32 %v2684, %v2690
        %v2721 = vmul.f32 %v2685, %v2690
        %v2722 = vmul.f32 %v2686, %v2690
        %v2723 = vadd.f32 %v2486, %v2691
        %v2724 = vadd.f32 %v2487, %v2692
        %v2725 = vadd.f32 %v2488, %v2693
        %v2726 = vadd.f32 %v2489, %v2694
        %v2727 = vadd.f32 %v2490, %v2695
        %v2728 = vadd.f32 %v2491, %v2696
        %v2729 = vadd.f32 %v2492, %v2697
        %v2730 = vadd.f32 %v2493, %v2698
        %v2731 = vadd.f32 %v2494, %v2699
        %v2732 = vadd.f32 %v2495, %v2700
        %v2733 = vadd.f32 %v2496, %v2701
        %v2734 = vadd.f32 %v2497, %v2702
        %v2735 = vadd.f32 %v2498, %v2703
        %v2736 = vadd.f32 %v2499, %v2704
        %v2737 = vadd.f32 %v2500, %v2705
        %v2738 = vadd.f32 %v2501, %v2706
        %v2739 = vadd.f32 %v2502, %v2707
        %v2740 = vadd.f32 %v2503, %v2708
        %v2741 = vadd.f32 %v2504, %v2709
        %v2742 = vadd.f32 %v2505, %v2710
        %v2743 = vadd.f32 %v2506, %v2711
        %v2744 = vadd.f32 %v2507, %v2712
        %v2745 = vadd.f32 %v2508, %v2713
        %v2746 = vadd.f32 %v2509, %v2714
        %v2747 = vadd.f32 %v2510, %v2715
        %v2748 = vadd.f32 %v2511, %v2716
        %v2749 = vadd.f32 %v2512, %v2717
        %v2750 = vadd.f32 %v2513, %v2718
        %v2751 = vadd.f32 %v2514, %v2719
        %v2752 = vadd.f32 %v2515, %v2720
        %v2753 = vadd.f32 %v2516, %v2721
        %v2754 = vadd.f32 %v2517, %v2722
        %v2755 = vlaneseq
        %v2756 = vshrl.u32 %v2755, 7
        %v2757 = vsub.s32 1, %v2756
        %v2758 = vrot.slane %v856, %v2757
        %v2759 = vmul.f32 %v2655, %v2758
        %v2760 = vmul.f32 %v2656, %v2758
        %v2761 = vmul.f32 %v2657, %v2758
        %v2762 = vmul.f32 %v2658, %v2758
        %v2763 = vmul.f32 %v2659, %v2758
        %v2764 = vmul.f32 %v2660, %v2758
        %v2765 = vmul.f32 %v2661, %v2758
        %v2766 = vmul.f32 %v2662, %v2758
        %v2767 = vmul.f32 %v2663, %v2758
        %v2768 = vmul.f32 %v2664, %v2758
        %v2769 = vmul.f32 %v2665, %v2758
        %v2770 = vmul.f32 %v2666, %v2758
        %v2771 = vmul.f32 %v2667, %v2758
        %v2772 = vmul.f32 %v2668, %v2758
        %v2773 = vmul.f32 %v2669, %v2758
        %v2774 = vmul.f32 %v2670, %v2758
        %v2775 = vmul.f32 %v2671, %v2758
        %v2776 = vmul.f32 %v2672, %v2758
        %v2777 = vmul.f32 %v2673, %v2758
        %v2778 = vmul.f32 %v2674, %v2758
        %v2779 = vmul.f32 %v2675, %v2758
        %v2780 = vmul.f32 %v2676, %v2758
        %v2781 = vmul.f32 %v2677, %v2758
        %v2782 = vmul.f32 %v2678, %v2758
        %v2783 = vmul.f32 %v2679, %v2758
        %v2784 = vmul.f32 %v2680, %v2758
        %v2785 = vmul.f32 %v2681, %v2758
        %v2786 = vmul.f32 %v2682, %v2758
        %v2787 = vmul.f32 %v2683, %v2758
        %v2788 = vmul.f32 %v2684, %v2758
        %v2789 = vmul.f32 %v2685, %v2758
        %v2790 = vmul.f32 %v2686, %v2758
        %v2791 = vadd.f32 %v2554, %v2759
        %v2792 = vadd.f32 %v2555, %v2760
        %v2793 = vadd.f32 %v2556, %v2761
        %v2794 = vadd.f32 %v2557, %v2762
        %v2795 = vadd.f32 %v2558, %v2763
        %v2796 = vadd.f32 %v2559, %v2764
        %v2797 = vadd.f32 %v2560, %v2765
        %v2798 = vadd.f32 %v2561, %v2766
        %v2799 = vadd.f32 %v2562, %v2767
        %v2800 = vadd.f32 %v2563, %v2768
        %v2801 = vadd.f32 %v2564, %v2769
        %v2802 = vadd.f32 %v2565, %v2770
        %v2803 = vadd.f32 %v2566, %v2771
        %v2804 = vadd.f32 %v2567, %v2772
        %v2805 = vadd.f32 %v2568, %v2773
        %v2806 = vadd.f32 %v2569, %v2774
        %v2807 = vadd.f32 %v2570, %v2775
        %v2808 = vadd.f32 %v2571, %v2776
        %v2809 = vadd.f32 %v2572, %v2777
        %v2810 = vadd.f32 %v2573, %v2778
        %v2811 = vadd.f32 %v2574, %v2779
        %v2812 = vadd.f32 %v2575, %v2780
        %v2813 = vadd.f32 %v2576, %v2781
        %v2814 = vadd.f32 %v2577, %v2782
        %v2815 = vadd.f32 %v2578, %v2783
        %v2816 = vadd.f32 %v2579, %v2784
        %v2817 = vadd.f32 %v2580, %v2785
        %v2818 = vadd.f32 %v2581, %v2786
        %v2819 = vadd.f32 %v2582, %v2787
        %v2820 = vadd.f32 %v2583, %v2788
        %v2821 = vadd.f32 %v2584, %v2789
        %v2822 = vadd.f32 %v2585, %v2790
        %v2823 = vlaneseq
        %v2824 = vshrl.u32 %v2823, 7
        %v2825 = vsub.s32 2, %v2824
        %v2826 = vrot.slane %v856, %v2825
        %v2827 = vmul.f32 %v2655, %v2826
        %v2828 = vmul.f32 %v2656, %v2826
        %v2829 = vmul.f32 %v2657, %v2826
        %v2830 = vmul.f32 %v2658, %v2826
        %v2831 = vmul.f32 %v2659, %v2826
        %v2832 = vmul.f32 %v2660, %v2826
        %v2833 = vmul.f32 %v2661, %v2826
        %v2834 = vmul.f32 %v2662, %v2826
        %v2835 = vmul.f32 %v2663, %v2826
        %v2836 = vmul.f32 %v2664, %v2826
        %v2837 = vmul.f32 %v2665, %v2826
        %v2838 = vmul.f32 %v2666, %v2826
        %v2839 = vmul.f32 %v2667, %v2826
        %v2840 = vmul.f32 %v2668, %v2826
        %v2841 = vmul.f32 %v2669, %v2826
        %v2842 = vmul.f32 %v2670, %v2826
        %v2843 = vmul.f32 %v2671, %v2826
        %v2844 = vmul.f32 %v2672, %v2826
        %v2845 = vmul.f32 %v2673, %v2826
        %v2846 = vmul.f32 %v2674, %v2826
        %v2847 = vmul.f32 %v2675, %v2826
        %v2848 = vmul.f32 %v2676, %v2826
        %v2849 = vmul.f32 %v2677, %v2826
        %v2850 = vmul.f32 %v2678, %v2826
        %v2851 = vmul.f32 %v2679, %v2826
        %v2852 = vmul.f32 %v2680, %v2826
        %v2853 = vmul.f32 %v2681, %v2826
        %v2854 = vmul.f32 %v2682, %v2826
        %v2855 = vmul.f32 %v2683, %v2826
        %v2856 = vmul.f32 %v2684, %v2826
        %v2857 = vmul.f32 %v2685, %v2826
        %v2858 = vmul.f32 %v2686, %v2826
        %v2859 = vadd.f32 %v2622, %v2827
        %v2860 = vadd.f32 %v2623, %v2828
        %v2861 = vadd.f32 %v2624, %v2829
        %v2862 = vadd.f32 %v2625, %v2830
        %v2863 = vadd.f32 %v2626, %v2831
        %v2864 = vadd.f32 %v2627, %v2832
        %v2865 = vadd.f32 %v2628, %v2833
        %v2866 = vadd.f32 %v2629, %v2834
        %v2867 = vadd.f32 %v2630, %v2835
        %v2868 = vadd.f32 %v2631, %v2836
        %v2869 = vadd.f32 %v2632, %v2837
        %v2870 = vadd.f32 %v2633, %v2838
        %v2871 = vadd.f32 %v2634, %v2839
        %v2872 = vadd.f32 %v2635, %v2840
        %v2873 = vadd.f32 %v2636, %v2841
        %v2874 = vadd.f32 %v2637, %v2842
        %v2875 = vadd.f32 %v2638, %v2843
        %v2876 = vadd.f32 %v2639, %v2844
        %v2877 = vadd.f32 %v2640, %v2845
        %v2878 = vadd.f32 %v2641, %v2846
        %v2879 = vadd.f32 %v2642, %v2847
        %v2880 = vadd.f32 %v2643, %v2848
        %v2881 = vadd.f32 %v2644, %v2849
        %v2882 = vadd.f32 %v2645, %v2850
        %v2883 = vadd.f32 %v2646, %v2851
        %v2884 = vadd.f32 %v2647, %v2852
        %v2885 = vadd.f32 %v2648, %v2853
        %v2886 = vadd.f32 %v2649, %v2854
        %v2887 = vadd.f32 %v2650, %v2855
        %v2888 = vadd.f32 %v2651, %v2856
        %v2889 = vadd.f32 %v2652, %v2857
        %v2890 = vadd.f32 %v2653, %v2858
        %v2923 = vrot.slane %v2723, 7
        %v2924 = vrot.slane %v2724, 7
        %v2925 = vrot.slane %v2725, 7
        %v2926 = vrot.slane %v2726, 7
        %v2927 = vrot.slane %v2727, 7
        %v2928 = vrot.slane %v2728, 7
        %v2929 = vrot.slane %v2729, 7
        %v2930 = vrot.slane %v2730, 7
        %v2931 = vrot.slane %v2731, 7
        %v2932 = vrot.slane %v2732, 7
        %v2933 = vrot.slane %v2733, 7
        %v2934 = vrot.slane %v2734, 7
        %v2935 = vrot.slane %v2735, 7
        %v2936 = vrot.slane %v2736, 7
        %v2937 = vrot.slane %v2737, 7
        %v2938 = vrot.slane %v2738, 7
        %v2939 = vrot.slane %v2739, 7
        %v2940 = vrot.slane %v2740, 7
        %v2941 = vrot.slane %v2741, 7
        %v2942 = vrot.slane %v2742, 7
        %v2943 = vrot.slane %v2743, 7
        %v2944 = vrot.slane %v2744, 7
        %v2945 = vrot.slane %v2745, 7
        %v2946 = vrot.slane %v2746, 7
        %v2947 = vrot.slane %v2747, 7
        %v2948 = vrot.slane %v2748, 7
        %v2949 = vrot.slane %v2749, 7
        %v2950 = vrot.slane %v2750, 7
        %v2951 = vrot.slane %v2751, 7
        %v2952 = vrot.slane %v2752, 7
        %v2953 = vrot.slane %v2753, 7
        %v2954 = vrot.slane %v2754, 7
        %vm2987 = vcmask 1040384
        %v2988 = vsel %vm2987, 0.0, %v2923
        %v2989 = vsel %vm2987, 0.0, %v2924
        %v2990 = vsel %vm2987, 0.0, %v2925
        %v2991 = vsel %vm2987, 0.0, %v2926
        %v2992 = vsel %vm2987, 0.0, %v2927
        %v2993 = vsel %vm2987, 0.0, %v2928
        %v2994 = vsel %vm2987, 0.0, %v2929
        %v2995 = vsel %vm2987, 0.0, %v2930
        %v2996 = vsel %vm2987, 0.0, %v2931
        %v2997 = vsel %vm2987, 0.0, %v2932
        %v2998 = vsel %vm2987, 0.0, %v2933
        %v2999 = vsel %vm2987, 0.0, %v2934
        %v3000 = vsel %vm2987, 0.0, %v2935
        %v3001 = vsel %vm2987, 0.0, %v2936
        %v3002 = vsel %vm2987, 0.0, %v2937
        %v3003 = vsel %vm2987, 0.0, %v2938
        %v3004 = vsel %vm2987, 0.0, %v2939
        %v3005 = vsel %vm2987, 0.0, %v2940
        %v3006 = vsel %vm2987, 0.0, %v2941
        %v3007 = vsel %vm2987, 0.0, %v2942
        %v3008 = vsel %vm2987, 0.0, %v2943
        %v3009 = vsel %vm2987, 0.0, %v2944
        %v3010 = vsel %vm2987, 0.0, %v2945
        %v3011 = vsel %vm2987, 0.0, %v2946
        %v3012 = vsel %vm2987, 0.0, %v2947
        %v3013 = vsel %vm2987, 0.0, %v2948
        %v3014 = vsel %vm2987, 0.0, %v2949
        %v3015 = vsel %vm2987, 0.0, %v2950
        %v3016 = vsel %vm2987, 0.0, %v2951
        %v3017 = vsel %vm2987, 0.0, %v2952
        %v3018 = vsel %vm2987, 0.0, %v2953
        %v3019 = vsel %vm2987, 0.0, %v2954
        %v3052 = vrot.slane %v2859, 1
        %v3053 = vrot.slane %v2860, 1
        %v3054 = vrot.slane %v2861, 1
        %v3055 = vrot.slane %v2862, 1
        %v3056 = vrot.slane %v2863, 1
        %v3057 = vrot.slane %v2864, 1
        %v3058 = vrot.slane %v2865, 1
        %v3059 = vrot.slane %v2866, 1
        %v3060 = vrot.slane %v2867, 1
        %v3061 = vrot.slane %v2868, 1
        %v3062 = vrot.slane %v2869, 1
        %v3063 = vrot.slane %v2870, 1
        %v3064 = vrot.slane %v2871, 1
        %v3065 = vrot.slane %v2872, 1
        %v3066 = vrot.slane %v2873, 1
        %v3067 = vrot.slane %v2874, 1
        %v3068 = vrot.slane %v2875, 1
        %v3069 = vrot.slane %v2876, 1
        %v3070 = vrot.slane %v2877, 1
        %v3071 = vrot.slane %v2878, 1
        %v3072 = vrot.slane %v2879, 1
        %v3073 = vrot.slane %v2880, 1
        %v3074 = vrot.slane %v2881, 1
        %v3075 = vrot.slane %v2882, 1
        %v3076 = vrot.slane %v2883, 1
        %v3077 = vrot.slane %v2884, 1
        %v3078 = vrot.slane %v2885, 1
        %v3079 = vrot.slane %v2886, 1
        %v3080 = vrot.slane %v2887, 1
        %v3081 = vrot.slane %v2888, 1
        %v3082 = vrot.slane %v2889, 1
        %v3083 = vrot.slane %v2890, 1
        %vm3116 = vcmask 1046528
        %v3117 = vsel %vm3116, %v3052, 0.0
        %v3118 = vsel %vm3116, %v3053, 0.0
        %v3119 = vsel %vm3116, %v3054, 0.0
        %v3120 = vsel %vm3116, %v3055, 0.0
        %v3121 = vsel %vm3116, %v3056, 0.0
        %v3122 = vsel %vm3116, %v3057, 0.0
        %v3123 = vsel %vm3116, %v3058, 0.0
        %v3124 = vsel %vm3116, %v3059, 0.0
        %v3125 = vsel %vm3116, %v3060, 0.0
        %v3126 = vsel %vm3116, %v3061, 0.0
        %v3127 = vsel %vm3116, %v3062, 0.0
        %v3128 = vsel %vm3116, %v3063, 0.0
        %v3129 = vsel %vm3116, %v3064, 0.0
        %v3130 = vsel %vm3116, %v3065, 0.0
        %v3131 = vsel %vm3116, %v3066, 0.0
        %v3132 = vsel %vm3116, %v3067, 0.0
        %v3133 = vsel %vm3116, %v3068, 0.0
        %v3134 = vsel %vm3116, %v3069, 0.0
        %v3135 = vsel %vm3116, %v3070, 0.0
        %v3136 = vsel %vm3116, %v3071, 0.0
        %v3137 = vsel %vm3116, %v3072, 0.0
        %v3138 = vsel %vm3116, %v3073, 0.0
        %v3139 = vsel %vm3116, %v3074, 0.0
        %v3140 = vsel %vm3116, %v3075, 0.0
        %v3141 = vsel %vm3116, %v3076, 0.0
        %v3142 = vsel %vm3116, %v3077, 0.0
        %v3143 = vsel %vm3116, %v3078, 0.0
        %v3144 = vsel %vm3116, %v3079, 0.0
        %v3145 = vsel %vm3116, %v3080, 0.0
        %v3146 = vsel %vm3116, %v3081, 0.0
        %v3147 = vsel %vm3116, %v3082, 0.0
        %v3148 = vsel %vm3116, %v3083, 0.0
        %v3149 = vadd.f32 %v2791, %v2988
        %v3150 = vadd.f32 %v2792, %v2989
        %v3151 = vadd.f32 %v2793, %v2990
        %v3152 = vadd.f32 %v2794, %v2991
        %v3153 = vadd.f32 %v2795, %v2992
        %v3154 = vadd.f32 %v2796, %v2993
        %v3155 = vadd.f32 %v2797, %v2994
        %v3156 = vadd.f32 %v2798, %v2995
        %v3157 = vadd.f32 %v2799, %v2996
        %v3158 = vadd.f32 %v2800, %v2997
        %v3159 = vadd.f32 %v2801, %v2998
        %v3160 = vadd.f32 %v2802, %v2999
        %v3161 = vadd.f32 %v2803, %v3000
        %v3162 = vadd.f32 %v2804, %v3001
        %v3163 = vadd.f32 %v2805, %v3002
        %v3164 = vadd.f32 %v2806, %v3003
        %v3165 = vadd.f32 %v2807, %v3004
        %v3166 = vadd.f32 %v2808, %v3005
        %v3167 = vadd.f32 %v2809, %v3006
        %v3168 = vadd.f32 %v2810, %v3007
        %v3169 = vadd.f32 %v2811, %v3008
        %v3170 = vadd.f32 %v2812, %v3009
        %v3171 = vadd.f32 %v2813, %v3010
        %v3172 = vadd.f32 %v2814, %v3011
        %v3173 = vadd.f32 %v2815, %v3012
        %v3174 = vadd.f32 %v2816, %v3013
        %v3175 = vadd.f32 %v2817, %v3014
        %v3176 = vadd.f32 %v2818, %v3015
        %v3177 = vadd.f32 %v2819, %v3016
        %v3178 = vadd.f32 %v2820, %v3017
        %v3179 = vadd.f32 %v2821, %v3018
        %v3180 = vadd.f32 %v2822, %v3019
        %v3181 = vadd.f32 %v3149, %v3117
        %v3182 = vadd.f32 %v3150, %v3118
        %v3183 = vadd.f32 %v3151, %v3119
        %v3184 = vadd.f32 %v3152, %v3120
        %v3185 = vadd.f32 %v3153, %v3121
        %v3186 = vadd.f32 %v3154, %v3122
        %v3187 = vadd.f32 %v3155, %v3123
        %v3188 = vadd.f32 %v3156, %v3124
        %v3189 = vadd.f32 %v3157, %v3125
        %v3190 = vadd.f32 %v3158, %v3126
        %v3191 = vadd.f32 %v3159, %v3127
        %v3192 = vadd.f32 %v3160, %v3128
        %v3193 = vadd.f32 %v3161, %v3129
        %v3194 = vadd.f32 %v3162, %v3130
        %v3195 = vadd.f32 %v3163, %v3131
        %v3196 = vadd.f32 %v3164, %v3132
        %v3197 = vadd.f32 %v3165, %v3133
        %v3198 = vadd.f32 %v3166, %v3134
        %v3199 = vadd.f32 %v3167, %v3135
        %v3200 = vadd.f32 %v3168, %v3136
        %v3201 = vadd.f32 %v3169, %v3137
        %v3202 = vadd.f32 %v3170, %v3138
        %v3203 = vadd.f32 %v3171, %v3139
        %v3204 = vadd.f32 %v3172, %v3140
        %v3205 = vadd.f32 %v3173, %v3141
        %v3206 = vadd.f32 %v3174, %v3142
        %v3207 = vadd.f32 %v3175, %v3143
        %v3208 = vadd.f32 %v3176, %v3144
        %v3209 = vadd.f32 %v3177, %v3145
        %v3210 = vadd.f32 %v3178, %v3146
        %v3211 = vadd.f32 %v3179, %v3147
        %v3212 = vadd.f32 %v3180, %v3148
        %v3213 = vpack.c.bf16 %v3182, %v3181
        %v3214 = vpack.c.bf16 %v3184, %v3183
        %v3215 = vpack.c.bf16 %v3186, %v3185
        %v3216 = vpack.c.bf16 %v3188, %v3187
        %v3217 = vpack.c.bf16 %v3190, %v3189
        %v3218 = vpack.c.bf16 %v3192, %v3191
        %v3219 = vpack.c.bf16 %v3194, %v3193
        %v3220 = vpack.c.bf16 %v3196, %v3195
        %v3221 = vpack.c.bf16 %v3198, %v3197
        %v3222 = vpack.c.bf16 %v3200, %v3199
        %v3223 = vpack.c.bf16 %v3202, %v3201
        %v3224 = vpack.c.bf16 %v3204, %v3203
        %v3225 = vpack.c.bf16 %v3206, %v3205
        %v3226 = vpack.c.bf16 %v3208, %v3207
        %v3227 = vpack.c.bf16 %v3210, %v3209
        %v3228 = vpack.c.bf16 %v3212, %v3211
        %v3229 = vld [vmem:[%s7] sm:$0xf]
        %v3230 = vld [vmem:[%s7 + $0x4] sm:$0xf]
        %v3233 = vunpack.c.l.b16 %v3229
        %v3234 = vunpack.c.l.b16 %v3230
        %v3235 = vpack.c.b16 %v3234, %v3233
        %v3238 = vsel %vm788, %v3213, 0
        %v3241 = vsel %vm788, %v3214, 0
        %v3244 = vsel %vm788, %v3215, 0
        %v3247 = vsel %vm788, %v3216, 0
        %v3250 = vsel %vm788, %v3217, 0
        %v3253 = vsel %vm788, %v3218, 0
        %v3256 = vsel %vm788, %v3219, 0
        %v3259 = vsel %vm788, %v3220, 0
        %v3262 = vsel %vm788, %v3221, 0
        %v3265 = vsel %vm788, %v3222, 0
        %v3268 = vsel %vm788, %v3223, 0
        %v3271 = vsel %vm788, %v3224, 0
        %v3274 = vsel %vm788, %v3225, 0
        %v3277 = vsel %vm788, %v3226, 0
        %v3280 = vsel %vm788, %v3227, 0
        %v3283 = vsel %vm788, %v3228, 0
        %3285 = vmatprep.subr.bf16.mxu0 0
        %3286 = vmatpush1.bf16.msra.mxu0 %v3235
        %3287 = vmatprep.subr.bf16.mxu0 0
        %3288 = vmatpush1.bf16.msra.mxu0 0
        %3289 = vmatprep.subr.bf16.mxu0 0
        %3290 = vmatpush1.bf16.msra.mxu0 0
        %3291 = vmatprep.subr.bf16.mxu0 0
        %3292 = vmatpush1.bf16.msra.mxu0 0
        %3293 = vmatprep.subr.bf16.mxu0 0
        %3294 = vmatpush1.bf16.msra.mxu0 0
        %3295 = vmatprep.subr.bf16.mxu0 0
        %3296 = vmatpush1.bf16.msra.mxu0 0
        %3297 = vmatprep.subr.bf16.mxu0 0
        %3298 = vmatpush1.bf16.msra.mxu0 0
        %3299 = vmatprep.subr.bf16.mxu0 0
        %3300 = vmatpush1.bf16.msra.mxu0 0
        %3301 = vmatprep.subr.bf16.mxu0 0
        %3302 = vmatpush1.bf16.msra.mxu0 0
        %3303 = vmatprep.subr.bf16.mxu0 0
        %3304 = vmatpush1.bf16.msra.mxu0 0
        %3305 = vmatprep.subr.bf16.mxu0 0
        %3306 = vmatpush1.bf16.msra.mxu0 0
        %3307 = vmatprep.subr.bf16.mxu0 0
        %3308 = vmatpush1.bf16.msra.mxu0 0
        %3309 = vmatprep.subr.bf16.mxu0 0
        %3310 = vmatpush1.bf16.msra.mxu0 0
        %3311 = vmatprep.subr.bf16.mxu0 0
        %3312 = vmatpush1.bf16.msra.mxu0 0
        %3313 = vmatprep.subr.bf16.mxu0 0
        %3314 = vmatpush1.bf16.msra.mxu0 0
        %3315 = vmatprep.subr.bf16.mxu0 0
        %3316 = vmatpush1.bf16.msra.mxu0 0
        %3317 = vmatprep.mubr.bf16.mxu0 0
        %3318 = vmatmul.mubr.bf16.gmra.mrb[0].mxu0 %v3238
        %v3319 = vpop.f32.mrb[0].mxu0
        %v3320 = vadd.f32 0.0, %v3319
        %v3321 = vpop.f32.mrb[0].mxu0
        %v3322 = vpop.f32.mrb[0].mxu0
        %v3323 = vadd.f32 0.0, %v3322
        %v3324 = vpop.f32.mrb[0].mxu0
        %3325 = vmatprep.mubr.bf16.mxu0 0
        %3326 = vmatmul.mubr.bf16.gmra.mrb[0].mxu0 %v3241
        %v3327 = vpop.f32.mrb[0].mxu0
        %v3328 = vadd.f32 0.0, %v3327
        %v3329 = vpop.f32.mrb[0].mxu0
        %v3330 = vpop.f32.mrb[0].mxu0
        %v3331 = vadd.f32 0.0, %v3330
        %v3332 = vpop.f32.mrb[0].mxu0
        %3333 = vmatprep.mubr.bf16.mxu0 0
        %3334 = vmatmul.mubr.bf16.gmra.mrb[0].mxu0 %v3244
        %v3335 = vpop.f32.mrb[0].mxu0
        %v3336 = vadd.f32 0.0, %v3335
        %v3337 = vpop.f32.mrb[0].mxu0
        %v3338 = vpop.f32.mrb[0].mxu0
        %v3339 = vadd.f32 0.0, %v3338
        %v3340 = vpop.f32.mrb[0].mxu0
        %3341 = vmatprep.mubr.bf16.mxu0 0
        %3342 = vmatmul.mubr.bf16.gmra.mrb[0].mxu0 %v3247
        %v3343 = vpop.f32.mrb[0].mxu0
        %v3344 = vadd.f32 0.0, %v3343
        %v3345 = vpop.f32.mrb[0].mxu0
        %v3346 = vpop.f32.mrb[0].mxu0
        %v3347 = vadd.f32 0.0, %v3346
        %v3348 = vpop.f32.mrb[0].mxu0
        %3349 = vmatprep.mubr.bf16.mxu0 0
        %3350 = vmatmul.mubr.bf16.gmra.mrb[0].mxu0 %v3250
        %v3351 = vpop.f32.mrb[0].mxu0
        %v3352 = vadd.f32 0.0, %v3351
        %v3353 = vpop.f32.mrb[0].mxu0
        %v3354 = vpop.f32.mrb[0].mxu0
        %v3355 = vadd.f32 0.0, %v3354
        %v3356 = vpop.f32.mrb[0].mxu0
        %3357 = vmatprep.mubr.bf16.mxu0 0
        %3358 = vmatmul.mubr.bf16.gmra.mrb[0].mxu0 %v3253
        %v3359 = vpop.f32.mrb[0].mxu0
        %v3360 = vadd.f32 0.0, %v3359
        %v3361 = vpop.f32.mrb[0].mxu0
        %v3362 = vpop.f32.mrb[0].mxu0
        %v3363 = vadd.f32 0.0, %v3362
        %v3364 = vpop.f32.mrb[0].mxu0
        %3365 = vmatprep.mubr.bf16.mxu0 0
        %3366 = vmatmul.mubr.bf16.gmra.mrb[0].mxu0 %v3256
        %v3367 = vpop.f32.mrb[0].mxu0
        %v3368 = vadd.f32 0.0, %v3367
        %v3369 = vpop.f32.mrb[0].mxu0
        %v3370 = vpop.f32.mrb[0].mxu0
        %v3371 = vadd.f32 0.0, %v3370
        %v3372 = vpop.f32.mrb[0].mxu0
        %3373 = vmatprep.mubr.bf16.mxu0 0
        %3374 = vmatmul.mubr.bf16.gmra.mrb[0].mxu0 %v3259
        %v3375 = vpop.f32.mrb[0].mxu0
        %v3376 = vadd.f32 0.0, %v3375
        %v3377 = vpop.f32.mrb[0].mxu0
        %v3378 = vpop.f32.mrb[0].mxu0
        %v3379 = vadd.f32 0.0, %v3378
        %v3380 = vpop.f32.mrb[0].mxu0
        %3381 = vmatprep.mubr.bf16.mxu0 0
        %3382 = vmatmul.mubr.bf16.gmra.mrb[0].mxu0 %v3262
        %v3383 = vpop.f32.mrb[0].mxu0
        %v3384 = vadd.f32 0.0, %v3383
        %v3385 = vpop.f32.mrb[0].mxu0
        %v3386 = vpop.f32.mrb[0].mxu0
        %v3387 = vadd.f32 0.0, %v3386
        %v3388 = vpop.f32.mrb[0].mxu0
        %3389 = vmatprep.mubr.bf16.mxu0 0
        %3390 = vmatmul.mubr.bf16.gmra.mrb[0].mxu0 %v3265
        %v3391 = vpop.f32.mrb[0].mxu0
        %v3392 = vadd.f32 0.0, %v3391
        %v3393 = vpop.f32.mrb[0].mxu0
        %v3394 = vpop.f32.mrb[0].mxu0
        %v3395 = vadd.f32 0.0, %v3394
        %v3396 = vpop.f32.mrb[0].mxu0
        %3397 = vmatprep.mubr.bf16.mxu0 0
        %3398 = vmatmul.mubr.bf16.gmra.mrb[0].mxu0 %v3268
        %v3399 = vpop.f32.mrb[0].mxu0
        %v3400 = vadd.f32 0.0, %v3399
        %v3401 = vpop.f32.mrb[0].mxu0
        %v3402 = vpop.f32.mrb[0].mxu0
        %v3403 = vadd.f32 0.0, %v3402
        %v3404 = vpop.f32.mrb[0].mxu0
        %3405 = vmatprep.mubr.bf16.mxu0 0
        %3406 = vmatmul.mubr.bf16.gmra.mrb[0].mxu0 %v3271
        %v3407 = vpop.f32.mrb[0].mxu0
        %v3408 = vadd.f32 0.0, %v3407
        %v3409 = vpop.f32.mrb[0].mxu0
        %v3410 = vpop.f32.mrb[0].mxu0
        %v3411 = vadd.f32 0.0, %v3410
        %v3412 = vpop.f32.mrb[0].mxu0
        %3413 = vmatprep.mubr.bf16.mxu0 0
        %3414 = vmatmul.mubr.bf16.gmra.mrb[0].mxu0 %v3274
        %v3415 = vpop.f32.mrb[0].mxu0
        %v3416 = vadd.f32 0.0, %v3415
        %v3417 = vpop.f32.mrb[0].mxu0
        %v3418 = vpop.f32.mrb[0].mxu0
        %v3419 = vadd.f32 0.0, %v3418
        %v3420 = vpop.f32.mrb[0].mxu0
        %3421 = vmatprep.mubr.bf16.mxu0 0
        %3422 = vmatmul.mubr.bf16.gmra.mrb[0].mxu0 %v3277
        %v3423 = vpop.f32.mrb[0].mxu0
        %v3424 = vadd.f32 0.0, %v3423
        %v3425 = vpop.f32.mrb[0].mxu0
        %v3426 = vpop.f32.mrb[0].mxu0
        %v3427 = vadd.f32 0.0, %v3426
        %v3428 = vpop.f32.mrb[0].mxu0
        %3429 = vmatprep.mubr.bf16.mxu0 0
        %3430 = vmatmul.mubr.bf16.gmra.mrb[0].mxu0 %v3280
        %v3431 = vpop.f32.mrb[0].mxu0
        %v3432 = vadd.f32 0.0, %v3431
        %v3433 = vpop.f32.mrb[0].mxu0
        %v3434 = vpop.f32.mrb[0].mxu0
        %v3435 = vadd.f32 0.0, %v3434
        %v3436 = vpop.f32.mrb[0].mxu0
        %3437 = vmatprep.mubr.bf16.mxu0 0
        %3438 = vmatmul.mubr.bf16.gmra.mrb[0].mxu0 %v3283
        %v3439 = vpop.f32.mrb[0].mxu0
        %v3440 = vadd.f32 0.0, %v3439
        %v3441 = vpop.f32.mrb[0].mxu0
        %v3442 = vpop.f32.mrb[0].mxu0
        %v3443 = vadd.f32 0.0, %v3442
        %v3444 = vpop.f32.mrb[0].mxu0
        %3445 = vdwg.mxu0
        %3446 = vst.msk [vmem:[%s298] sm:$0xff] %vm464, %v305
        %3447 = vst.msk [vmem:[%s298 + $0x8] sm:$0xff] %vm464, %v306
        %3448 = vst.msk [vmem:[%s298 + $0x10] sm:$0xff] %vm464, %v307
        %3449 = vst.msk [vmem:[%s298 + $0x18] sm:$0xff] %vm464, %v308
        %3450 = vst.msk [vmem:[%s298 + $0x20] sm:$0xff] %vm464, %v309
        %3451 = vst.msk [vmem:[%s298 + $0x28] sm:$0xff] %vm464, %v310
        %3452 = vst.msk [vmem:[%s298 + $0x30] sm:$0xff] %vm464, %v311
        %3453 = vst.msk [vmem:[%s298 + $0x38] sm:$0xff] %vm464, %v312
        %3454 = vst.msk [vmem:[%s298 + $0x40] sm:$0xff] %vm464, %v313
        %3455 = vst.msk [vmem:[%s298 + $0x48] sm:$0xff] %vm464, %v314
        %3456 = vst.msk [vmem:[%s298 + $0x50] sm:$0xff] %vm464, %v315
        %3457 = vst.msk [vmem:[%s298 + $0x58] sm:$0xff] %vm464, %v316
        %3458 = vst.msk [vmem:[%s298 + $0x60] sm:$0xff] %vm464, %v317
        %3459 = vst.msk [vmem:[%s298 + $0x68] sm:$0xff] %vm464, %v318
        %3460 = vst.msk [vmem:[%s298 + $0x70] sm:$0xff] %vm464, %v319
        %3461 = vst.msk [vmem:[%s298 + $0x78] sm:$0xff] %vm464, %v320
        %3462 = vst.msk [vmem:[%s298 + $0x80] sm:$0xff] %vm464, %v321
        %3463 = vst.msk [vmem:[%s298 + $0x88] sm:$0xff] %vm464, %v322
        %3464 = vst.msk [vmem:[%s298 + $0x90] sm:$0xff] %vm464, %v323
        %3465 = vst.msk [vmem:[%s298 + $0x98] sm:$0xff] %vm464, %v324
        %3466 = vst.msk [vmem:[%s298 + $0xa0] sm:$0xff] %vm464, %v325
        %3467 = vst.msk [vmem:[%s298 + $0xa8] sm:$0xff] %vm464, %v326
        %3468 = vst.msk [vmem:[%s298 + $0xb0] sm:$0xff] %vm464, %v327
        %3469 = vst.msk [vmem:[%s298 + $0xb8] sm:$0xff] %vm464, %v328
        %3470 = vst.msk [vmem:[%s298 + $0xc0] sm:$0xff] %vm464, %v329
        %3471 = vst.msk [vmem:[%s298 + $0xc8] sm:$0xff] %vm464, %v330
        %3472 = vst.msk [vmem:[%s298 + $0xd0] sm:$0xff] %vm464, %v331
        %3473 = vst.msk [vmem:[%s298 + $0xd8] sm:$0xff] %vm464, %v332
        %3474 = vst.msk [vmem:[%s298 + $0xe0] sm:$0xff] %vm464, %v333
        %3475 = vst.msk [vmem:[%s298 + $0xe8] sm:$0xff] %vm464, %v334
        %3476 = vst.msk [vmem:[%s298 + $0xf0] sm:$0xff] %vm464, %v335
        %3477 = vst.msk [vmem:[%s298 + $0xf8] sm:$0xff] %vm464, %v336
        %3510 = vrot.lane.b32.xlu0 %v3320, 8
        %v3511 = vpop.permute.xlu0 %3510
        %3512 = vrot.lane.b32.xlu0 %v3323, 8
        %v3513 = vpop.permute.xlu0 %3512
        %3514 = vrot.lane.b32.xlu0 %v3328, 8
        %v3515 = vpop.permute.xlu0 %3514
        %3516 = vrot.lane.b32.xlu0 %v3331, 8
        %v3517 = vpop.permute.xlu0 %3516
        %3518 = vrot.lane.b32.xlu0 %v3336, 8
        %v3519 = vpop.permute.xlu0 %3518
        %3520 = vrot.lane.b32.xlu0 %v3339, 8
        %v3521 = vpop.permute.xlu0 %3520
        %3522 = vrot.lane.b32.xlu0 %v3344, 8
        %v3523 = vpop.permute.xlu0 %3522
        %3524 = vrot.lane.b32.xlu0 %v3347, 8
        %v3525 = vpop.permute.xlu0 %3524
        %3526 = vrot.lane.b32.xlu0 %v3352, 8
        %v3527 = vpop.permute.xlu0 %3526
        %3528 = vrot.lane.b32.xlu0 %v3355, 8
        %v3529 = vpop.permute.xlu0 %3528
        %3530 = vrot.lane.b32.xlu0 %v3360, 8
        %v3531 = vpop.permute.xlu0 %3530
        %3532 = vrot.lane.b32.xlu0 %v3363, 8
        %v3533 = vpop.permute.xlu0 %3532
        %3534 = vrot.lane.b32.xlu0 %v3368, 8
        %v3535 = vpop.permute.xlu0 %3534
        %3536 = vrot.lane.b32.xlu0 %v3371, 8
        %v3537 = vpop.permute.xlu0 %3536
        %3538 = vrot.lane.b32.xlu0 %v3376, 8
        %v3539 = vpop.permute.xlu0 %3538
        %3540 = vrot.lane.b32.xlu0 %v3379, 8
        %v3541 = vpop.permute.xlu0 %3540
        %3542 = vrot.lane.b32.xlu0 %v3384, 8
        %v3543 = vpop.permute.xlu0 %3542
        %3544 = vrot.lane.b32.xlu0 %v3387, 8
        %v3545 = vpop.permute.xlu0 %3544
        %3546 = vrot.lane.b32.xlu0 %v3392, 8
        %v3547 = vpop.permute.xlu0 %3546
        %3548 = vrot.lane.b32.xlu0 %v3395, 8
        %v3549 = vpop.permute.xlu0 %3548
        %3550 = vrot.lane.b32.xlu0 %v3400, 8
        %v3551 = vpop.permute.xlu0 %3550
        %3552 = vrot.lane.b32.xlu0 %v3403, 8
        %v3553 = vpop.permute.xlu0 %3552
        %3554 = vrot.lane.b32.xlu0 %v3408, 8
        %v3555 = vpop.permute.xlu0 %3554
        %3556 = vrot.lane.b32.xlu0 %v3411, 8
        %v3557 = vpop.permute.xlu0 %3556
        %3558 = vrot.lane.b32.xlu0 %v3416, 8
        %v3559 = vpop.permute.xlu0 %3558
        %3560 = vrot.lane.b32.xlu0 %v3419, 8
        %v3561 = vpop.permute.xlu0 %3560
        %3562 = vrot.lane.b32.xlu0 %v3424, 8
        %v3563 = vpop.permute.xlu0 %3562
        %3564 = vrot.lane.b32.xlu0 %v3427, 8
        %v3565 = vpop.permute.xlu0 %3564
        %3566 = vrot.lane.b32.xlu0 %v3432, 8
        %v3567 = vpop.permute.xlu0 %3566
        %3568 = vrot.lane.b32.xlu0 %v3435, 8
        %v3569 = vpop.permute.xlu0 %3568
        %3570 = vrot.lane.b32.xlu0 %v3440, 8
        %v3571 = vpop.permute.xlu0 %3570
        %3572 = vrot.lane.b32.xlu0 %v3443, 8
        %v3573 = vpop.permute.xlu0 %3572
        %vm3606 = vcmask 130112
        %3607 = vst.msk [vmem:[%s298] sm:$0xff] %vm3606, %v3511
        %3608 = vst.msk [vmem:[%s298 + $0x8] sm:$0xff] %vm3606, %v3513
        %3609 = vst.msk [vmem:[%s298 + $0x10] sm:$0xff] %vm3606, %v3515
        %3610 = vst.msk [vmem:[%s298 + $0x18] sm:$0xff] %vm3606, %v3517
        %3611 = vst.msk [vmem:[%s298 + $0x20] sm:$0xff] %vm3606, %v3519
        %3612 = vst.msk [vmem:[%s298 + $0x28] sm:$0xff] %vm3606, %v3521
        %3613 = vst.msk [vmem:[%s298 + $0x30] sm:$0xff] %vm3606, %v3523
        %3614 = vst.msk [vmem:[%s298 + $0x38] sm:$0xff] %vm3606, %v3525
        %3615 = vst.msk [vmem:[%s298 + $0x40] sm:$0xff] %vm3606, %v3527
        %3616 = vst.msk [vmem:[%s298 + $0x48] sm:$0xff] %vm3606, %v3529
        %3617 = vst.msk [vmem:[%s298 + $0x50] sm:$0xff] %vm3606, %v3531
        %3618 = vst.msk [vmem:[%s298 + $0x58] sm:$0xff] %vm3606, %v3533
        %3619 = vst.msk [vmem:[%s298 + $0x60] sm:$0xff] %vm3606, %v3535
        %3620 = vst.msk [vmem:[%s298 + $0x68] sm:$0xff] %vm3606, %v3537
        %3621 = vst.msk [vmem:[%s298 + $0x70] sm:$0xff] %vm3606, %v3539
        %3622 = vst.msk [vmem:[%s298 + $0x78] sm:$0xff] %vm3606, %v3541
        %3623 = vst.msk [vmem:[%s298 + $0x80] sm:$0xff] %vm3606, %v3543
        %3624 = vst.msk [vmem:[%s298 + $0x88] sm:$0xff] %vm3606, %v3545
        %3625 = vst.msk [vmem:[%s298 + $0x90] sm:$0xff] %vm3606, %v3547
        %3626 = vst.msk [vmem:[%s298 + $0x98] sm:$0xff] %vm3606, %v3549
        %3627 = vst.msk [vmem:[%s298 + $0xa0] sm:$0xff] %vm3606, %v3551
        %3628 = vst.msk [vmem:[%s298 + $0xa8] sm:$0xff] %vm3606, %v3553
        %3629 = vst.msk [vmem:[%s298 + $0xb0] sm:$0xff] %vm3606, %v3555
        %3630 = vst.msk [vmem:[%s298 + $0xb8] sm:$0xff] %vm3606, %v3557
        %3631 = vst.msk [vmem:[%s298 + $0xc0] sm:$0xff] %vm3606, %v3559
        %3632 = vst.msk [vmem:[%s298 + $0xc8] sm:$0xff] %vm3606, %v3561
        %3633 = vst.msk [vmem:[%s298 + $0xd0] sm:$0xff] %vm3606, %v3563
        %3634 = vst.msk [vmem:[%s298 + $0xd8] sm:$0xff] %vm3606, %v3565
        %3635 = vst.msk [vmem:[%s298 + $0xe0] sm:$0xff] %vm3606, %v3567
        %3636 = vst.msk [vmem:[%s298 + $0xe8] sm:$0xff] %vm3606, %v3569
        %3637 = vst.msk [vmem:[%s298 + $0xf0] sm:$0xff] %vm3606, %v3571
        %3638 = vst.msk [vmem:[%s298 + $0xf8] sm:$0xff] %vm3606, %v3573
        %s3639 = sand.u32 %s203, 1
        %s3640 = scalar_lea.sflag [#allocation4], %s3639
        %s3641 = sand.u32 %s203, 1
        %s3642 = smul.addr %s3641, 256
        %s3643 = scalar_lea.vmem [#allocation3], %s3642
        // Predicated region
        $region53: #{_lambda_.3} parent=51 // pred_check
          %p3644 = pneg %p213
        $region54: #{_lambda_.3} parent=51 // pred_check_branch
          %3646 = sbr.rel (%p3644) target = $region56
        $region55: #{_lambda_.3} parent=51 // pred_region
          %s3648 = ssub.s32 4096, 4096
          %3649 = vsyncadd %s3640, %s3648
          %s3650 = smul.addr %s22, 32
          %s3651 = smul.addr %s3650, 128
          %s3652 = scalar_lea.hbm %s8, %s3651
          %s3653 = sshll.u32 %s3643, 4
          %s3654 = int_to_ptr.vmem [resolvable:$true] %s3653
          %3659 = dma.vmem_to_hbm [thread:$0]  %s3654, 4096, %s3652, %s3640, 128, 128, 8
        $region56: #{_lambda_.3} parent=51 // pred_fallthru
          _
      $region52: #{_lambda_.3} parent=5 // pred_fallthru
        _
      %p3660 = scmp.le.s32.totalorder 2, %s17
      // Predicated region
      $region57: #{_lambda_.3} parent=5 // pred_check
        %p3661 = pneg %p3660
      $region58: #{_lambda_.3} parent=5 // pred_check_branch
        %3663 = sbr.rel (%p3661) target = $region60
      $region59: #{_lambda_.3} parent=5 // pred_region
        %s3664 = ssub.s32 %s17, 2
        // Predicated region
        $region61: #{_lambda_.3} parent=59 // pred_check
          %p3665 = pneg %p219
        $region62: #{_lambda_.3} parent=59 // pred_check_branch
          %3667 = sbr.rel (%p3665) target = $region64
        $region63: #{_lambda_.3} parent=59 // pred_region
          %s3668 = sand.u32 %s204, 1
          %s3669 = scalar_lea.sflag [#allocation4], %s3668
          %s3670 = sand.u32 %s204, 1
          %s3671 = smul.addr %s3670, 256
          %s3672 = scalar_lea.vmem [#allocation3], %s3671
          %3673 = dma.done %s3669, 4096
        $region64: #{_lambda_.3} parent=59 // pred_fallthru
          _
      $region60: #{_lambda_.3} parent=5 // pred_fallthru
        _
    $region6: #{_lambda_.3} parent=1 // loop_footer
      %s21 = sadd.s32 1, %s17
    $region7: #{_lambda_.3} parent=1 // loop_footer_branch
      %16 = sbr.rel target = $region3
    $region8: #{_lambda_.3} parent=1 // loop_exit
      _
    %3674 = vsyncpa [#allocation4], 1
    %s3675 = scalar_lea.sflag [#allocation4], 1
    %3676 = vsyncpa %s3675, 1

// kernel: _lambda_.2
$region0: #{_lambda_.2}
  #allocation0 [shape = 'u32[]', space=smem, size = 0x4, offset = 0x4, fixed_abs, tag = 'smem constant byte address 0x4 - core index']
  #allocation1 [shape = 'u32[144,128]{1,0:T(1,128)}', space=vmem, size = 0x12000, scoped, tag = 'internal scratch']
  #allocation2 [shape = 'f32[1,6,10,8,8]{4,3,2,1,0:T(8,128)}', space=vmem, size = 0x3c000, scoped, tag = 'scratch operand']
  %s0 = inlined_call_operand.vmem [shape: f32[2,4,8,8,4], index: 0, kind: input, shape index: {}]
  %s1 = inlined_call_operand.vmem [shape: f32[1,4], index: 1, kind: input, shape index: {}]
  %s2 = inlined_call_operand.vmem [shape: f32[1,4], index: 2, kind: input, shape index: {}]
  %s3 = inlined_call_operand.vmem [shape: bf16[4,8], index: 3, kind: input, shape index: {}]
  %s4 = inlined_call_operand.vmem [shape: f32[1,8], index: 4, kind: input, shape index: {}]
  %s5 = inlined_call_operand.vmem [shape: f32[1,8], index: 5, kind: input, shape index: {}]
  %s6 = inlined_call_operand.vmem [shape: f32[27,8], index: 6, kind: input, shape index: {}]
  %s7 = inlined_call_operand.vmem [shape: bf16[8,4], index: 7, kind: input, shape index: {}]
  %s8 = inlined_call_operand.vmem [shape: f32[2,4,8,8,8], index: 8, kind: output, shape index: {}]
  %s9 = sld [smem:[#allocation0]]
  $region65: #{_lambda_.2} parent=0
    _
  %s11 = ssub.s32 1, %s9
  %s12 = scalar_select 0, %s11, %s9
  loop: start=0, step=1, limit=4
  $region2: #{_lambda_.2} parent=0 // loop_pre_header
    _
  $region3: #{_lambda_.2} parent=0 // loop_header
    %s14 = sphi 0, %s18
    %p15 = scmp.ge.s32.totalorder %s14, 4
    %s24 = sphi 0, %s26
    %s27 = sphi 0, %s24
    %s28 = sphi 0, %s27
    %s44 = sphi 0, %s28
    %s48 = sphi 0, %s48
    %s50 = sphi 0, %s48
    %s51 = sphi 0, %s50
    %s65 = sphi 0, %s51
    %s69 = sphi 0, %s69
    %s71 = sphi 0, %s69
    %s72 = sphi 0, %s71
    %s86 = sphi 0, %s72
    %s90 = sphi 0, %s90
    %s92 = sphi 0, %s90
    %s93 = sphi 0, %s92
    %s107 = sphi 0, %s93
    %s111 = sphi 0, %s111
    %s113 = sphi 0, %s111
    %s114 = sphi 0, %s113
    %s128 = sphi 0, %s114
    %s132 = sphi 0, %s132
    %s134 = sphi 0, %s132
    %s135 = sphi 0, %s134
    %s149 = sphi 0, %s135
    %s153 = sphi 0, %s153
    %s155 = sphi 0, %s153
    %s156 = sphi 0, %s155
    %s170 = sphi 0, %s156
    %s174 = sphi 0, %s174
    %s176 = sphi 0, %s174
    %s177 = sphi 0, %s176
    %s191 = sphi 0, %s177
    %s197 = sphi 0, %s199
    %s200 = sphi 0, %s197
    %s201 = sphi 0, %s200
    %s217 = sphi 0, %s201
  $region4: #{_lambda_.2} parent=0 // loop_header_branch
    %17 = sbr.rel (%p15) target = $region8
  $region5: #{_lambda_.2} parent=0 // loop_body
    %s19 = ssub.s32 %s14, 1
    %s20 = ssub.s32 %s14, 2
    %s21 = sadd.s32 %s14, 1
    %s22 = ssub.s32 %s14, %s21
    %p23 = scmp.eq.s32.totalorder %s22, 0
    %s25 = sadd.s32 %s24, 1
    %s26 = scalar_select %p23, %s24, %s25
    %p29 = pneg %p23
    %p30 = scmp.eq.s32.totalorder %s14, 1
    %p31 = por %p29, %p30
    %p32 = scmp.ne.s32.totalorder %s24, %s27
    %p33 = scmp.eq.s32.totalorder %s14, 0
    %p34 = por %p32, %p33
    %p35 = scmp.ne.s32.totalorder %s24, %s27
    %p36 = scmp.eq.s32.totalorder %s19, 1
    %p37 = por %p35, %p36
    %p38 = scmp.ne.s32.totalorder %s27, %s28
    %p39 = scmp.eq.s32.totalorder %s19, 0
    %p40 = por %p38, %p39
    %p41 = scmp.ne.s32.totalorder %s27, %s28
    %p42 = scmp.eq.s32.totalorder %s20, 1
    %p43 = por %p41, %p42
    %p45 = scmp.ne.s32.totalorder %s28, %s44
    %p46 = scmp.eq.s32.totalorder %s20, 0
    %p47 = por %p45, %p46
    %s49 = sadd.s32 %s48, 1
    %p52 = scmp.eq.s32.totalorder %s14, 1
    %p53 = scmp.ne.s32.totalorder %s48, %s50
    %p54 = scmp.eq.s32.totalorder %s14, 0
    %p55 = por %p53, %p54
    %p56 = scmp.ne.s32.totalorder %s48, %s50
    %p57 = scmp.eq.s32.totalorder %s19, 1
    %p58 = por %p56, %p57
    %p59 = scmp.ne.s32.totalorder %s50, %s51
    %p60 = scmp.eq.s32.totalorder %s19, 0
    %p61 = por %p59, %p60
    %p62 = scmp.ne.s32.totalorder %s50, %s51
    %p63 = scmp.eq.s32.totalorder %s20, 1
    %p64 = por %p62, %p63
    %p66 = scmp.ne.s32.totalorder %s51, %s65
    %p67 = scmp.eq.s32.totalorder %s20, 0
    %p68 = por %p66, %p67
    %s70 = sadd.s32 %s69, 1
    %p73 = scmp.eq.s32.totalorder %s14, 1
    %p74 = scmp.ne.s32.totalorder %s69, %s71
    %p75 = scmp.eq.s32.totalorder %s14, 0
    %p76 = por %p74, %p75
    %p77 = scmp.ne.s32.totalorder %s69, %s71
    %p78 = scmp.eq.s32.totalorder %s19, 1
    %p79 = por %p77, %p78
    %p80 = scmp.ne.s32.totalorder %s71, %s72
    %p81 = scmp.eq.s32.totalorder %s19, 0
    %p82 = por %p80, %p81
    %p83 = scmp.ne.s32.totalorder %s71, %s72
    %p84 = scmp.eq.s32.totalorder %s20, 1
    %p85 = por %p83, %p84
    %p87 = scmp.ne.s32.totalorder %s72, %s86
    %p88 = scmp.eq.s32.totalorder %s20, 0
    %p89 = por %p87, %p88
    %s91 = sadd.s32 %s90, 1
    %p94 = scmp.eq.s32.totalorder %s14, 1
    %p95 = scmp.ne.s32.totalorder %s90, %s92
    %p96 = scmp.eq.s32.totalorder %s14, 0
    %p97 = por %p95, %p96
    %p98 = scmp.ne.s32.totalorder %s90, %s92
    %p99 = scmp.eq.s32.totalorder %s19, 1
    %p100 = por %p98, %p99
    %p101 = scmp.ne.s32.totalorder %s92, %s93
    %p102 = scmp.eq.s32.totalorder %s19, 0
    %p103 = por %p101, %p102
    %p104 = scmp.ne.s32.totalorder %s92, %s93
    %p105 = scmp.eq.s32.totalorder %s20, 1
    %p106 = por %p104, %p105
    %p108 = scmp.ne.s32.totalorder %s93, %s107
    %p109 = scmp.eq.s32.totalorder %s20, 0
    %p110 = por %p108, %p109
    %s112 = sadd.s32 %s111, 1
    %p115 = scmp.eq.s32.totalorder %s14, 1
    %p116 = scmp.ne.s32.totalorder %s111, %s113
    %p117 = scmp.eq.s32.totalorder %s14, 0
    %p118 = por %p116, %p117
    %p119 = scmp.ne.s32.totalorder %s111, %s113
    %p120 = scmp.eq.s32.totalorder %s19, 1
    %p121 = por %p119, %p120
    %p122 = scmp.ne.s32.totalorder %s113, %s114
    %p123 = scmp.eq.s32.totalorder %s19, 0
    %p124 = por %p122, %p123
    %p125 = scmp.ne.s32.totalorder %s113, %s114
    %p126 = scmp.eq.s32.totalorder %s20, 1
    %p127 = por %p125, %p126
    %p129 = scmp.ne.s32.totalorder %s114, %s128
    %p130 = scmp.eq.s32.totalorder %s20, 0
    %p131 = por %p129, %p130
    %s133 = sadd.s32 %s132, 1
    %p136 = scmp.eq.s32.totalorder %s14, 1
    %p137 = scmp.ne.s32.totalorder %s132, %s134
    %p138 = scmp.eq.s32.totalorder %s14, 0
    %p139 = por %p137, %p138
    %p140 = scmp.ne.s32.totalorder %s132, %s134
    %p141 = scmp.eq.s32.totalorder %s19, 1
    %p142 = por %p140, %p141
    %p143 = scmp.ne.s32.totalorder %s134, %s135
    %p144 = scmp.eq.s32.totalorder %s19, 0
    %p145 = por %p143, %p144
    %p146 = scmp.ne.s32.totalorder %s134, %s135
    %p147 = scmp.eq.s32.totalorder %s20, 1
    %p148 = por %p146, %p147
    %p150 = scmp.ne.s32.totalorder %s135, %s149
    %p151 = scmp.eq.s32.totalorder %s20, 0
    %p152 = por %p150, %p151
    %s154 = sadd.s32 %s153, 1
    %p157 = scmp.eq.s32.totalorder %s14, 1
    %p158 = scmp.ne.s32.totalorder %s153, %s155
    %p159 = scmp.eq.s32.totalorder %s14, 0
    %p160 = por %p158, %p159
    %p161 = scmp.ne.s32.totalorder %s153, %s155
    %p162 = scmp.eq.s32.totalorder %s19, 1
    %p163 = por %p161, %p162
    %p164 = scmp.ne.s32.totalorder %s155, %s156
    %p165 = scmp.eq.s32.totalorder %s19, 0
    %p166 = por %p164, %p165
    %p167 = scmp.ne.s32.totalorder %s155, %s156
    %p168 = scmp.eq.s32.totalorder %s20, 1
    %p169 = por %p167, %p168
    %p171 = scmp.ne.s32.totalorder %s156, %s170
    %p172 = scmp.eq.s32.totalorder %s20, 0
    %p173 = por %p171, %p172
    %s175 = sadd.s32 %s174, 1
    %p178 = scmp.eq.s32.totalorder %s14, 1
    %p179 = scmp.ne.s32.totalorder %s174, %s176
    %p180 = scmp.eq.s32.totalorder %s14, 0
    %p181 = por %p179, %p180
    %p182 = scmp.ne.s32.totalorder %s174, %s176
    %p183 = scmp.eq.s32.totalorder %s19, 1
    %p184 = por %p182, %p183
    %p185 = scmp.ne.s32.totalorder %s176, %s177
    %p186 = scmp.eq.s32.totalorder %s19, 0
    %p187 = por %p185, %p186
    %p188 = scmp.ne.s32.totalorder %s176, %s177
    %p189 = scmp.eq.s32.totalorder %s20, 1
    %p190 = por %p188, %p189
    %p192 = scmp.ne.s32.totalorder %s177, %s191
    %p193 = scmp.eq.s32.totalorder %s20, 0
    %p194 = por %p192, %p193
    %s195 = ssub.s32 %s14, %s21
    %p196 = scmp.eq.s32.totalorder %s195, 0
    %s198 = sadd.s32 %s197, 1
    %s199 = scalar_select %p196, %s197, %s198
    %p202 = pneg %p196
    %p203 = scmp.eq.s32.totalorder %s14, 1
    %p204 = por %p202, %p203
    %p205 = scmp.ne.s32.totalorder %s197, %s200
    %p206 = scmp.eq.s32.totalorder %s14, 0
    %p207 = por %p205, %p206
    %p208 = scmp.ne.s32.totalorder %s197, %s200
    %p209 = scmp.eq.s32.totalorder %s19, 1
    %p210 = por %p208, %p209
    %p211 = scmp.ne.s32.totalorder %s200, %s201
    %p212 = scmp.eq.s32.totalorder %s19, 0
    %p213 = por %p211, %p212
    %p214 = scmp.ne.s32.totalorder %s200, %s201
    %p215 = scmp.eq.s32.totalorder %s20, 1
    %p216 = por %p214, %p215
    %p218 = scmp.ne.s32.totalorder %s201, %s217
    %p219 = scmp.eq.s32.totalorder %s20, 0
    %p220 = por %p218, %p219
    %p221 = scmp.le.s32.totalorder 1, %s14
    %p222 = scmp.lt.s32.totalorder %s14, 3
    %p223 = pnand %p221, %p222
    %p224 = pneg %p223
    // Predicated region
    $region9: #{_lambda_.2} parent=5 // pred_check
      _
    $region10: #{_lambda_.2} parent=5 // pred_check_branch
      %226 = sbr.rel (%p223) target = $region12
    $region11: #{_lambda_.2} parent=5 // pred_region
      %s227 = ssub.s32 %s14, 1
      // Predicated region
      $region13: #{_lambda_.2} parent=11 // pred_check
        %p228 = pneg %p61
      $region14: #{_lambda_.2} parent=11 // pred_check_branch
        %230 = sbr.rel (%p228) target = $region16
      $region15: #{_lambda_.2} parent=11 // pred_region
        _
      $region16: #{_lambda_.2} parent=11 // pred_fallthru
        _
      // Predicated region
      $region17: #{_lambda_.2} parent=11 // pred_check
        %p231 = pneg %p82
      $region18: #{_lambda_.2} parent=11 // pred_check_branch
        %233 = sbr.rel (%p231) target = $region20
      $region19: #{_lambda_.2} parent=11 // pred_region
        _
      $region20: #{_lambda_.2} parent=11 // pred_fallthru
        _
      // Predicated region
      $region21: #{_lambda_.2} parent=11 // pred_check
        %p234 = pneg %p103
      $region22: #{_lambda_.2} parent=11 // pred_check_branch
        %236 = sbr.rel (%p234) target = $region24
      $region23: #{_lambda_.2} parent=11 // pred_region
        _
      $region24: #{_lambda_.2} parent=11 // pred_fallthru
        _
      // Predicated region
      $region25: #{_lambda_.2} parent=11 // pred_check
        %p237 = pneg %p124
      $region26: #{_lambda_.2} parent=11 // pred_check_branch
        %239 = sbr.rel (%p237) target = $region28
      $region27: #{_lambda_.2} parent=11 // pred_region
        _
      $region28: #{_lambda_.2} parent=11 // pred_fallthru
        _
      // Predicated region
      $region29: #{_lambda_.2} parent=11 // pred_check
        %p240 = pneg %p145
      $region30: #{_lambda_.2} parent=11 // pred_check_branch
        %242 = sbr.rel (%p240) target = $region32
      $region31: #{_lambda_.2} parent=11 // pred_region
        _
      $region32: #{_lambda_.2} parent=11 // pred_fallthru
        _
      // Predicated region
      $region33: #{_lambda_.2} parent=11 // pred_check
        %p243 = pneg %p166
      $region34: #{_lambda_.2} parent=11 // pred_check_branch
        %245 = sbr.rel (%p243) target = $region36
      $region35: #{_lambda_.2} parent=11 // pred_region
        _
      $region36: #{_lambda_.2} parent=11 // pred_fallthru
        _
      // Predicated region
      $region37: #{_lambda_.2} parent=11 // pred_check
        %p246 = pneg %p187
      $region38: #{_lambda_.2} parent=11 // pred_check_branch
        %248 = sbr.rel (%p246) target = $region40
      $region39: #{_lambda_.2} parent=11 // pred_region
        _
      $region40: #{_lambda_.2} parent=11 // pred_fallthru
        _
    $region12: #{_lambda_.2} parent=5 // pred_fallthru
      _
    %p249 = scmp.lt.s32.totalorder %s14, 2
    // Predicated region
    $region41: #{_lambda_.2} parent=5 // pred_check
      %p250 = pneg %p249
    $region42: #{_lambda_.2} parent=5 // pred_check_branch
      %252 = sbr.rel (%p250) target = $region44
    $region43: #{_lambda_.2} parent=5 // pred_region
      // Predicated region
      $region45: #{_lambda_.2} parent=43 // pred_check
        %p253 = pneg %p34
      $region46: #{_lambda_.2} parent=43 // pred_check_branch
        %255 = sbr.rel (%p253) target = $region48
      $region47: #{_lambda_.2} parent=43 // pred_region
        %p256 = scmp.lt.s32.totalorder %s14, 1
        %s257 = scalar_select %p256, %s14, 1
        %s258 = smul.addr %s257, 32
        %s259 = smul.addr %s258, 8
        %s260 = scalar_lea.vmem %s0, %s259
      $region48: #{_lambda_.2} parent=43 // pred_fallthru
        _
    $region44: #{_lambda_.2} parent=5 // pred_fallthru
      _
    %p261 = scmp.le.s32.totalorder 1, %s14
    %p262 = scmp.lt.s32.totalorder %s14, 3
    %p263 = pnand %p261, %p262
    %p264 = pneg %p263
    // Predicated region
    $region49: #{_lambda_.2} parent=5 // pred_check
      _
    $region50: #{_lambda_.2} parent=5 // pred_check_branch
      %266 = sbr.rel (%p263) target = $region52
    $region51: #{_lambda_.2} parent=5 // pred_region
      %s267 = ssub.s32 %s14, 1
      %p268 = scmp.lt.s32.totalorder %s19, 1
      %s269 = scalar_select %p268, %s19, 1
      %s270 = smul.addr %s269, 32
      %s271 = smul.addr %s270, 8
      %s272 = scalar_lea.vmem %s0, %s271
      %p273 = pneg %p40
      %p274 = pneg %p37
      %p275 = pneg %p61
      %p276 = pneg %p58
      %p277 = pneg %p82
      %p278 = pneg %p79
      %p279 = pneg %p103
      %p280 = pneg %p100
      %p281 = pneg %p124
      %p282 = pneg %p121
      %p283 = pneg %p145
      %p284 = pneg %p142
      %p285 = pneg %p166
      %p286 = pneg %p163
      %p287 = pneg %p187
      %p288 = pneg %p184
      %p289 = pneg %p213
      %p290 = pneg %p210
      %p291 = scmp.lt.s32.totalorder %s19, 1
      %s292 = scalar_select %p291, %s19, 1
      %s293 = smul.addr %s292, 32
      %s294 = smul.addr %s293, 8
      %s295 = scalar_lea.vmem %s8, %s294
      %p296 = scmp.lt.s32.totalorder %s19, 1
      %s297 = scalar_select %p296, %s19, 1
      %s298 = smul.addr %s297, 32
      %s299 = smul.addr %s298, 8
      %s300 = scalar_lea.vmem %s0, %s299
      %p301 = scmp.lt.s32.totalorder %s19, 1
      %s302 = scalar_select %p301, %s19, 1
      %s303 = smul.addr %s302, 32
      %s304 = smul.addr %s303, 8
      %s305 = scalar_lea.vmem %s8, %s304
      %v307 = vld [vmem:[%s300] sm:$0xff]
      %v308 = vld [vmem:[%s300 + $0x8] sm:$0xff]
      %v309 = vld [vmem:[%s300 + $0x10] sm:$0xff]
      %v310 = vld [vmem:[%s300 + $0x18] sm:$0xff]
      %v311 = vld [vmem:[%s300 + $0x20] sm:$0xff]
      %v312 = vld [vmem:[%s300 + $0x28] sm:$0xff]
      %v313 = vld [vmem:[%s300 + $0x30] sm:$0xff]
      %v314 = vld [vmem:[%s300 + $0x38] sm:$0xff]
      %v315 = vld [vmem:[%s300 + $0x40] sm:$0xff]
      %v316 = vld [vmem:[%s300 + $0x48] sm:$0xff]
      %v317 = vld [vmem:[%s300 + $0x50] sm:$0xff]
      %v318 = vld [vmem:[%s300 + $0x58] sm:$0xff]
      %v319 = vld [vmem:[%s300 + $0x60] sm:$0xff]
      %v320 = vld [vmem:[%s300 + $0x68] sm:$0xff]
      %v321 = vld [vmem:[%s300 + $0x70] sm:$0xff]
      %v322 = vld [vmem:[%s300 + $0x78] sm:$0xff]
      %v323 = vld [vmem:[%s300 + $0x80] sm:$0xff]
      %v324 = vld [vmem:[%s300 + $0x88] sm:$0xff]
      %v325 = vld [vmem:[%s300 + $0x90] sm:$0xff]
      %v326 = vld [vmem:[%s300 + $0x98] sm:$0xff]
      %v327 = vld [vmem:[%s300 + $0xa0] sm:$0xff]
      %v328 = vld [vmem:[%s300 + $0xa8] sm:$0xff]
      %v329 = vld [vmem:[%s300 + $0xb0] sm:$0xff]
      %v330 = vld [vmem:[%s300 + $0xb8] sm:$0xff]
      %v331 = vld [vmem:[%s300 + $0xc0] sm:$0xff]
      %v332 = vld [vmem:[%s300 + $0xc8] sm:$0xff]
      %v333 = vld [vmem:[%s300 + $0xd0] sm:$0xff]
      %v334 = vld [vmem:[%s300 + $0xd8] sm:$0xff]
      %v335 = vld [vmem:[%s300 + $0xe0] sm:$0xff]
      %v336 = vld [vmem:[%s300 + $0xe8] sm:$0xff]
      %v337 = vld [vmem:[%s300 + $0xf0] sm:$0xff]
      %v338 = vld [vmem:[%s300 + $0xf8] sm:$0xff]
      %v339 = vld [vmem:[%s1] sm:$0x1]
      %v341 = vlaneseq
      %v342 = vshrl.u32 %v341, 7
      %v343 = vsub.s32 0, %v342
      %v344 = vrot.slane %v339, %v343
      %v346 = vmul.f32 %v307, %v344
      %v347 = vmul.f32 %v308, %v344
      %v348 = vmul.f32 %v309, %v344
      %v349 = vmul.f32 %v310, %v344
      %v350 = vmul.f32 %v311, %v344
      %v351 = vmul.f32 %v312, %v344
      %v352 = vmul.f32 %v313, %v344
      %v353 = vmul.f32 %v314, %v344
      %v354 = vmul.f32 %v315, %v344
      %v355 = vmul.f32 %v316, %v344
      %v356 = vmul.f32 %v317, %v344
      %v357 = vmul.f32 %v318, %v344
      %v358 = vmul.f32 %v319, %v344
      %v359 = vmul.f32 %v320, %v344
      %v360 = vmul.f32 %v321, %v344
      %v361 = vmul.f32 %v322, %v344
      %v362 = vmul.f32 %v323, %v344
      %v363 = vmul.f32 %v324, %v344
      %v364 = vmul.f32 %v325, %v344
      %v365 = vmul.f32 %v326, %v344
      %v366 = vmul.f32 %v327, %v344
      %v367 = vmul.f32 %v328, %v344
      %v368 = vmul.f32 %v329, %v344
      %v369 = vmul.f32 %v330, %v344
      %v370 = vmul.f32 %v331, %v344
      %v371 = vmul.f32 %v332, %v344
      %v372 = vmul.f32 %v333, %v344
      %v373 = vmul.f32 %v334, %v344
      %v374 = vmul.f32 %v335, %v344
      %v375 = vmul.f32 %v336, %v344
      %v376 = vmul.f32 %v337, %v344
      %v377 = vmul.f32 %v338, %v344
      %v378 = vld [vmem:[%s2] sm:$0x1]
      %v380 = vlaneseq
      %v381 = vshrl.u32 %v380, 7
      %v382 = vsub.s32 0, %v381
      %v383 = vrot.slane %v378, %v382
      %v385 = vadd.f32 %v346, %v383
      %v386 = vadd.f32 %v347, %v383
      %v387 = vadd.f32 %v348, %v383
      %v388 = vadd.f32 %v349, %v383
      %v389 = vadd.f32 %v350, %v383
      %v390 = vadd.f32 %v351, %v383
      %v391 = vadd.f32 %v352, %v383
      %v392 = vadd.f32 %v353, %v383
      %v393 = vadd.f32 %v354, %v383
      %v394 = vadd.f32 %v355, %v383
      %v395 = vadd.f32 %v356, %v383
      %v396 = vadd.f32 %v357, %v383
      %v397 = vadd.f32 %v358, %v383
      %v398 = vadd.f32 %v359, %v383
      %v399 = vadd.f32 %v360, %v383
      %v400 = vadd.f32 %v361, %v383
      %v401 = vadd.f32 %v362, %v383
      %v402 = vadd.f32 %v363, %v383
      %v403 = vadd.f32 %v364, %v383
      %v404 = vadd.f32 %v365, %v383
      %v405 = vadd.f32 %v366, %v383
      %v406 = vadd.f32 %v367, %v383
      %v407 = vadd.f32 %v368, %v383
      %v408 = vadd.f32 %v369, %v383
      %v409 = vadd.f32 %v370, %v383
      %v410 = vadd.f32 %v371, %v383
      %v411 = vadd.f32 %v372, %v383
      %v412 = vadd.f32 %v373, %v383
      %v413 = vadd.f32 %v374, %v383
      %v414 = vadd.f32 %v375, %v383
      %v415 = vadd.f32 %v376, %v383
      %v416 = vadd.f32 %v377, %v383
      %v417 = vmax.f32 %v385, 0.0
      %v418 = vmax.f32 %v386, 0.0
      %v419 = vmax.f32 %v387, 0.0
      %v420 = vmax.f32 %v388, 0.0
      %v421 = vmax.f32 %v389, 0.0
      %v422 = vmax.f32 %v390, 0.0
      %v423 = vmax.f32 %v391, 0.0
      %v424 = vmax.f32 %v392, 0.0
      %v425 = vmax.f32 %v393, 0.0
      %v426 = vmax.f32 %v394, 0.0
      %v427 = vmax.f32 %v395, 0.0
      %v428 = vmax.f32 %v396, 0.0
      %v429 = vmax.f32 %v397, 0.0
      %v430 = vmax.f32 %v398, 0.0
      %v431 = vmax.f32 %v399, 0.0
      %v432 = vmax.f32 %v400, 0.0
      %v433 = vmax.f32 %v401, 0.0
      %v434 = vmax.f32 %v402, 0.0
      %v435 = vmax.f32 %v403, 0.0
      %v436 = vmax.f32 %v404, 0.0
      %v437 = vmax.f32 %v405, 0.0
      %v438 = vmax.f32 %v406, 0.0
      %v439 = vmax.f32 %v407, 0.0
      %v440 = vmax.f32 %v408, 0.0
      %v441 = vmax.f32 %v409, 0.0
      %v442 = vmax.f32 %v410, 0.0
      %v443 = vmax.f32 %v411, 0.0
      %v444 = vmax.f32 %v412, 0.0
      %v445 = vmax.f32 %v413, 0.0
      %v446 = vmax.f32 %v414, 0.0
      %v447 = vmax.f32 %v415, 0.0
      %v448 = vmax.f32 %v416, 0.0
      %v449 = vpack.c.bf16 %v418, %v417
      %v450 = vpack.c.bf16 %v420, %v419
      %v451 = vpack.c.bf16 %v422, %v421
      %v452 = vpack.c.bf16 %v424, %v423
      %v453 = vpack.c.bf16 %v426, %v425
      %v454 = vpack.c.bf16 %v428, %v427
      %v455 = vpack.c.bf16 %v430, %v429
      %v456 = vpack.c.bf16 %v432, %v431
      %v457 = vpack.c.bf16 %v434, %v433
      %v458 = vpack.c.bf16 %v436, %v435
      %v459 = vpack.c.bf16 %v438, %v437
      %v460 = vpack.c.bf16 %v440, %v439
      %v461 = vpack.c.bf16 %v442, %v441
      %v462 = vpack.c.bf16 %v444, %v443
      %v463 = vpack.c.bf16 %v446, %v445
      %v464 = vpack.c.bf16 %v448, %v447
      %v465 = vld [vmem:[%s3] sm:$0x3]
      %vm466 = vcmask 31744
      %v468 = vsel %vm466, %v449, 0
      %v471 = vsel %vm466, %v450, 0
      %v474 = vsel %vm466, %v451, 0
      %v477 = vsel %vm466, %v452, 0
      %v480 = vsel %vm466, %v453, 0
      %v483 = vsel %vm466, %v454, 0
      %v486 = vsel %vm466, %v455, 0
      %v489 = vsel %vm466, %v456, 0
      %v492 = vsel %vm466, %v457, 0
      %v495 = vsel %vm466, %v458, 0
      %v498 = vsel %vm466, %v459, 0
      %v501 = vsel %vm466, %v460, 0
      %v504 = vsel %vm466, %v461, 0
      %v507 = vsel %vm466, %v462, 0
      %v510 = vsel %vm466, %v463, 0
      %v513 = vsel %vm466, %v464, 0
      %vm515 = vcmask 1041408
      %v517 = vsel %vm515, %v465, 0
      %519 = vmatprep.subr.bf16.mxu0 0
      %520 = vmatpush1.bf16.msra.mxu0 %v517
      %521 = vmatprep.subr.bf16.mxu0 0
      %522 = vmatpush1.bf16.msra.mxu0 0
      %523 = vmatprep.subr.bf16.mxu0 0
      %524 = vmatpush1.bf16.msra.mxu0 0
      %525 = vmatprep.subr.bf16.mxu0 0
      %526 = vmatpush1.bf16.msra.mxu0 0
      %527 = vmatprep.subr.bf16.mxu0 0
      %528 = vmatpush1.bf16.msra.mxu0 0
      %529 = vmatprep.subr.bf16.mxu0 0
      %530 = vmatpush1.bf16.msra.mxu0 0
      %531 = vmatprep.subr.bf16.mxu0 0
      %532 = vmatpush1.bf16.msra.mxu0 0
      %533 = vmatprep.subr.bf16.mxu0 0
      %534 = vmatpush1.bf16.msra.mxu0 0
      %535 = vmatprep.subr.bf16.mxu0 0
      %536 = vmatpush1.bf16.msra.mxu0 0
      %537 = vmatprep.subr.bf16.mxu0 0
      %538 = vmatpush1.bf16.msra.mxu0 0
      %539 = vmatprep.subr.bf16.mxu0 0
      %540 = vmatpush1.bf16.msra.mxu0 0
      %541 = vmatprep.subr.bf16.mxu0 0
      %542 = vmatpush1.bf16.msra.mxu0 0
      %543 = vmatprep.subr.bf16.mxu0 0
      %544 = vmatpush1.bf16.msra.mxu0 0
      %545 = vmatprep.subr.bf16.mxu0 0
      %546 = vmatpush1.bf16.msra.mxu0 0
      %547 = vmatprep.subr.bf16.mxu0 0
      %548 = vmatpush1.bf16.msra.mxu0 0
      %549 = vmatprep.subr.bf16.mxu0 0
      %550 = vmatpush1.bf16.msra.mxu0 0
      %551 = vmatprep.mubr.bf16.mxu0 0
      %552 = vmatmul.mubr.bf16.gmra.mrb[0].mxu0 %v468
      %v553 = vpop.f32.mrb[0].mxu0
      %v554 = vadd.f32 0.0, %v553
      %v555 = vpop.f32.mrb[0].mxu0
      %v556 = vpop.f32.mrb[0].mxu0
      %v557 = vadd.f32 0.0, %v556
      %v558 = vpop.f32.mrb[0].mxu0
      %559 = vmatprep.mubr.bf16.mxu0 0
      %560 = vmatmul.mubr.bf16.gmra.mrb[0].mxu0 %v471
      %v561 = vpop.f32.mrb[0].mxu0
      %v562 = vadd.f32 0.0, %v561
      %v563 = vpop.f32.mrb[0].mxu0
      %v564 = vpop.f32.mrb[0].mxu0
      %v565 = vadd.f32 0.0, %v564
      %v566 = vpop.f32.mrb[0].mxu0
      %567 = vmatprep.mubr.bf16.mxu0 0
      %568 = vmatmul.mubr.bf16.gmra.mrb[0].mxu0 %v474
      %v569 = vpop.f32.mrb[0].mxu0
      %v570 = vadd.f32 0.0, %v569
      %v571 = vpop.f32.mrb[0].mxu0
      %v572 = vpop.f32.mrb[0].mxu0
      %v573 = vadd.f32 0.0, %v572
      %v574 = vpop.f32.mrb[0].mxu0
      %575 = vmatprep.mubr.bf16.mxu0 0
      %576 = vmatmul.mubr.bf16.gmra.mrb[0].mxu0 %v477
      %v577 = vpop.f32.mrb[0].mxu0
      %v578 = vadd.f32 0.0, %v577
      %v579 = vpop.f32.mrb[0].mxu0
      %v580 = vpop.f32.mrb[0].mxu0
      %v581 = vadd.f32 0.0, %v580
      %v582 = vpop.f32.mrb[0].mxu0
      %583 = vmatprep.mubr.bf16.mxu0 0
      %584 = vmatmul.mubr.bf16.gmra.mrb[0].mxu0 %v480
      %v585 = vpop.f32.mrb[0].mxu0
      %v586 = vadd.f32 0.0, %v585
      %v587 = vpop.f32.mrb[0].mxu0
      %v588 = vpop.f32.mrb[0].mxu0
      %v589 = vadd.f32 0.0, %v588
      %v590 = vpop.f32.mrb[0].mxu0
      %591 = vmatprep.mubr.bf16.mxu0 0
      %592 = vmatmul.mubr.bf16.gmra.mrb[0].mxu0 %v483
      %v593 = vpop.f32.mrb[0].mxu0
      %v594 = vadd.f32 0.0, %v593
      %v595 = vpop.f32.mrb[0].mxu0
      %v596 = vpop.f32.mrb[0].mxu0
      %v597 = vadd.f32 0.0, %v596
      %v598 = vpop.f32.mrb[0].mxu0
      %599 = vmatprep.mubr.bf16.mxu0 0
      %600 = vmatmul.mubr.bf16.gmra.mrb[0].mxu0 %v486
      %v601 = vpop.f32.mrb[0].mxu0
      %v602 = vadd.f32 0.0, %v601
      %v603 = vpop.f32.mrb[0].mxu0
      %v604 = vpop.f32.mrb[0].mxu0
      %v605 = vadd.f32 0.0, %v604
      %v606 = vpop.f32.mrb[0].mxu0
      %607 = vmatprep.mubr.bf16.mxu0 0
      %608 = vmatmul.mubr.bf16.gmra.mrb[0].mxu0 %v489
      %v609 = vpop.f32.mrb[0].mxu0
      %v610 = vadd.f32 0.0, %v609
      %v611 = vpop.f32.mrb[0].mxu0
      %v612 = vpop.f32.mrb[0].mxu0
      %v613 = vadd.f32 0.0, %v612
      %v614 = vpop.f32.mrb[0].mxu0
      %615 = vmatprep.mubr.bf16.mxu0 0
      %616 = vmatmul.mubr.bf16.gmra.mrb[0].mxu0 %v492
      %v617 = vpop.f32.mrb[0].mxu0
      %v618 = vadd.f32 0.0, %v617
      %v619 = vpop.f32.mrb[0].mxu0
      %v620 = vpop.f32.mrb[0].mxu0
      %v621 = vadd.f32 0.0, %v620
      %v622 = vpop.f32.mrb[0].mxu0
      %623 = vmatprep.mubr.bf16.mxu0 0
      %624 = vmatmul.mubr.bf16.gmra.mrb[0].mxu0 %v495
      %v625 = vpop.f32.mrb[0].mxu0
      %v626 = vadd.f32 0.0, %v625
      %v627 = vpop.f32.mrb[0].mxu0
      %v628 = vpop.f32.mrb[0].mxu0
      %v629 = vadd.f32 0.0, %v628
      %v630 = vpop.f32.mrb[0].mxu0
      %631 = vmatprep.mubr.bf16.mxu0 0
      %632 = vmatmul.mubr.bf16.gmra.mrb[0].mxu0 %v498
      %v633 = vpop.f32.mrb[0].mxu0
      %v634 = vadd.f32 0.0, %v633
      %v635 = vpop.f32.mrb[0].mxu0
      %v636 = vpop.f32.mrb[0].mxu0
      %v637 = vadd.f32 0.0, %v636
      %v638 = vpop.f32.mrb[0].mxu0
      %639 = vmatprep.mubr.bf16.mxu0 0
      %640 = vmatmul.mubr.bf16.gmra.mrb[0].mxu0 %v501
      %v641 = vpop.f32.mrb[0].mxu0
      %v642 = vadd.f32 0.0, %v641
      %v643 = vpop.f32.mrb[0].mxu0
      %v644 = vpop.f32.mrb[0].mxu0
      %v645 = vadd.f32 0.0, %v644
      %v646 = vpop.f32.mrb[0].mxu0
      %647 = vmatprep.mubr.bf16.mxu0 0
      %648 = vmatmul.mubr.bf16.gmra.mrb[0].mxu0 %v504
      %v649 = vpop.f32.mrb[0].mxu0
      %v650 = vadd.f32 0.0, %v649
      %v651 = vpop.f32.mrb[0].mxu0
      %v652 = vpop.f32.mrb[0].mxu0
      %v653 = vadd.f32 0.0, %v652
      %v654 = vpop.f32.mrb[0].mxu0
      %655 = vmatprep.mubr.bf16.mxu0 0
      %656 = vmatmul.mubr.bf16.gmra.mrb[0].mxu0 %v507
      %v657 = vpop.f32.mrb[0].mxu0
      %v658 = vadd.f32 0.0, %v657
      %v659 = vpop.f32.mrb[0].mxu0
      %v660 = vpop.f32.mrb[0].mxu0
      %v661 = vadd.f32 0.0, %v660
      %v662 = vpop.f32.mrb[0].mxu0
      %663 = vmatprep.mubr.bf16.mxu0 0
      %664 = vmatmul.mubr.bf16.gmra.mrb[0].mxu0 %v510
      %v665 = vpop.f32.mrb[0].mxu0
      %v666 = vadd.f32 0.0, %v665
      %v667 = vpop.f32.mrb[0].mxu0
      %v668 = vpop.f32.mrb[0].mxu0
      %v669 = vadd.f32 0.0, %v668
      %v670 = vpop.f32.mrb[0].mxu0
      %671 = vmatprep.mubr.bf16.mxu0 0
      %672 = vmatmul.mubr.bf16.gmra.mrb[0].mxu0 %v513
      %v673 = vpop.f32.mrb[0].mxu0
      %v674 = vadd.f32 0.0, %v673
      %v675 = vpop.f32.mrb[0].mxu0
      %v676 = vpop.f32.mrb[0].mxu0
      %v677 = vadd.f32 0.0, %v676
      %v678 = vpop.f32.mrb[0].mxu0
      %679 = vdwg.mxu0
      %v680 = vld [vmem:[%s4] sm:$0x1]
      %v682 = vlaneseq
      %v683 = vshrl.u32 %v682, 7
      %v684 = vsub.s32 0, %v683
      %v685 = vrot.slane %v680, %v684
      %v687 = vmul.f32 %v554, %v685
      %v688 = vmul.f32 %v557, %v685
      %v689 = vmul.f32 %v562, %v685
      %v690 = vmul.f32 %v565, %v685
      %v691 = vmul.f32 %v570, %v685
      %v692 = vmul.f32 %v573, %v685
      %v693 = vmul.f32 %v578, %v685
      %v694 = vmul.f32 %v581, %v685
      %v695 = vmul.f32 %v586, %v685
      %v696 = vmul.f32 %v589, %v685
      %v697 = vmul.f32 %v594, %v685
      %v698 = vmul.f32 %v597, %v685
      %v699 = vmul.f32 %v602, %v685
      %v700 = vmul.f32 %v605, %v685
      %v701 = vmul.f32 %v610, %v685
      %v702 = vmul.f32 %v613, %v685
      %v703 = vmul.f32 %v618, %v685
      %v704 = vmul.f32 %v621, %v685
      %v705 = vmul.f32 %v626, %v685
      %v706 = vmul.f32 %v629, %v685
      %v707 = vmul.f32 %v634, %v685
      %v708 = vmul.f32 %v637, %v685
      %v709 = vmul.f32 %v642, %v685
      %v710 = vmul.f32 %v645, %v685
      %v711 = vmul.f32 %v650, %v685
      %v712 = vmul.f32 %v653, %v685
      %v713 = vmul.f32 %v658, %v685
      %v714 = vmul.f32 %v661, %v685
      %v715 = vmul.f32 %v666, %v685
      %v716 = vmul.f32 %v669, %v685
      %v717 = vmul.f32 %v674, %v685
      %v718 = vmul.f32 %v677, %v685
      %v719 = vld [vmem:[%s5] sm:$0x1]
      %v721 = vlaneseq
      %v722 = vshrl.u32 %v721, 7
      %v723 = vsub.s32 0, %v722
      %v724 = vrot.slane %v719, %v723
      %v726 = vadd.f32 %v687, %v724
      %v727 = vadd.f32 %v688, %v724
      %v728 = vadd.f32 %v689, %v724
      %v729 = vadd.f32 %v690, %v724
      %v730 = vadd.f32 %v691, %v724
      %v731 = vadd.f32 %v692, %v724
      %v732 = vadd.f32 %v693, %v724
      %v733 = vadd.f32 %v694, %v724
      %v734 = vadd.f32 %v695, %v724
      %v735 = vadd.f32 %v696, %v724
      %v736 = vadd.f32 %v697, %v724
      %v737 = vadd.f32 %v698, %v724
      %v738 = vadd.f32 %v699, %v724
      %v739 = vadd.f32 %v700, %v724
      %v740 = vadd.f32 %v701, %v724
      %v741 = vadd.f32 %v702, %v724
      %v742 = vadd.f32 %v703, %v724
      %v743 = vadd.f32 %v704, %v724
      %v744 = vadd.f32 %v705, %v724
      %v745 = vadd.f32 %v706, %v724
      %v746 = vadd.f32 %v707, %v724
      %v747 = vadd.f32 %v708, %v724
      %v748 = vadd.f32 %v709, %v724
      %v749 = vadd.f32 %v710, %v724
      %v750 = vadd.f32 %v711, %v724
      %v751 = vadd.f32 %v712, %v724
      %v752 = vadd.f32 %v713, %v724
      %v753 = vadd.f32 %v714, %v724
      %v754 = vadd.f32 %v715, %v724
      %v755 = vadd.f32 %v716, %v724
      %v756 = vadd.f32 %v717, %v724
      %v757 = vadd.f32 %v718, %v724
      %v758 = vmax.f32 %v726, 0.0
      %v759 = vmax.f32 %v727, 0.0
      %v760 = vmax.f32 %v728, 0.0
      %v761 = vmax.f32 %v729, 0.0
      %v762 = vmax.f32 %v730, 0.0
      %v763 = vmax.f32 %v731, 0.0
      %v764 = vmax.f32 %v732, 0.0
      %v765 = vmax.f32 %v733, 0.0
      %v766 = vmax.f32 %v734, 0.0
      %v767 = vmax.f32 %v735, 0.0
      %v768 = vmax.f32 %v736, 0.0
      %v769 = vmax.f32 %v737, 0.0
      %v770 = vmax.f32 %v738, 0.0
      %v771 = vmax.f32 %v739, 0.0
      %v772 = vmax.f32 %v740, 0.0
      %v773 = vmax.f32 %v741, 0.0
      %v774 = vmax.f32 %v742, 0.0
      %v775 = vmax.f32 %v743, 0.0
      %v776 = vmax.f32 %v744, 0.0
      %v777 = vmax.f32 %v745, 0.0
      %v778 = vmax.f32 %v746, 0.0
      %v779 = vmax.f32 %v747, 0.0
      %v780 = vmax.f32 %v748, 0.0
      %v781 = vmax.f32 %v749, 0.0
      %v782 = vmax.f32 %v750, 0.0
      %v783 = vmax.f32 %v751, 0.0
      %v784 = vmax.f32 %v752, 0.0
      %v785 = vmax.f32 %v753, 0.0
      %v786 = vmax.f32 %v754, 0.0
      %v787 = vmax.f32 %v755, 0.0
      %v788 = vmax.f32 %v756, 0.0
      %v789 = vmax.f32 %v757, 0.0
      %vm790 = vcmask 64512
      %791 = vst.msk [vmem:[#allocation2] sm:$0xff] %vm790, 0.0
      %792 = vst.msk [vmem:[#allocation2 + $0x8] sm:$0xff] %vm790, 0.0
      %793 = vst.msk [vmem:[#allocation2 + $0x10] sm:$0xff] %vm790, 0.0
      %794 = vst.msk [vmem:[#allocation2 + $0x18] sm:$0xff] %vm790, 0.0
      %795 = vst.msk [vmem:[#allocation2 + $0x20] sm:$0xff] %vm790, 0.0
      %796 = vst.msk [vmem:[#allocation2 + $0x28] sm:$0xff] %vm790, 0.0
      %797 = vst.msk [vmem:[#allocation2 + $0x30] sm:$0xff] %vm790, 0.0
      %798 = vst.msk [vmem:[#allocation2 + $0x38] sm:$0xff] %vm790, 0.0
      %799 = vst.msk [vmem:[#allocation2 + $0x40] sm:$0xff] %vm790, 0.0
      %800 = vst.msk [vmem:[#allocation2 + $0x48] sm:$0xff] %vm790, 0.0
      %s801 = scalar_lea.vmem [#allocation2], 400
      %802 = vst.msk [vmem:[%s801] sm:$0xff] %vm790, 0.0
      %803 = vst.msk [vmem:[%s801 + $0x8] sm:$0xff] %vm790, 0.0
      %804 = vst.msk [vmem:[%s801 + $0x10] sm:$0xff] %vm790, 0.0
      %805 = vst.msk [vmem:[%s801 + $0x18] sm:$0xff] %vm790, 0.0
      %806 = vst.msk [vmem:[%s801 + $0x20] sm:$0xff] %vm790, 0.0
      %807 = vst.msk [vmem:[%s801 + $0x28] sm:$0xff] %vm790, 0.0
      %808 = vst.msk [vmem:[%s801 + $0x30] sm:$0xff] %vm790, 0.0
      %809 = vst.msk [vmem:[%s801 + $0x38] sm:$0xff] %vm790, 0.0
      %810 = vst.msk [vmem:[%s801 + $0x40] sm:$0xff] %vm790, 0.0
      %811 = vst.msk [vmem:[%s801 + $0x48] sm:$0xff] %vm790, 0.0
      %s812 = scalar_lea.vmem [#allocation2], 80
      %813 = vst.msk [vmem:[%s812] sm:$0xff] %vm790, 0.0
      %814 = vst.msk [vmem:[%s812 + $0x50] sm:$0xff] %vm790, 0.0
      %815 = vst.msk [vmem:[%s812 + $0xa0] sm:$0xff] %vm790, 0.0
      %816 = vst.msk [vmem:[%s812 + $0xf0] sm:$0xff] %vm790, 0.0
      %s817 = scalar_lea.vmem [#allocation2], 152
      %818 = vst.msk [vmem:[%s817] sm:$0xff] %vm790, 0.0
      %819 = vst.msk [vmem:[%s817 + $0x50] sm:$0xff] %vm790, 0.0
      %820 = vst.msk [vmem:[%s817 + $0xa0] sm:$0xff] %vm790, 0.0
      %821 = vst.msk [vmem:[%s817 + $0xf0] sm:$0xff] %vm790, 0.0
      %s822 = scalar_lea.vmem [#allocation2], 88
      %823 = vst.msk [vmem:[%s822] sm:$0xff] %vm790, %v758
      %824 = vst.msk [vmem:[%s822 + $0x8] sm:$0xff] %vm790, %v759
      %825 = vst.msk [vmem:[%s822 + $0x10] sm:$0xff] %vm790, %v760
      %826 = vst.msk [vmem:[%s822 + $0x18] sm:$0xff] %vm790, %v761
      %827 = vst.msk [vmem:[%s822 + $0x20] sm:$0xff] %vm790, %v762
      %828 = vst.msk [vmem:[%s822 + $0x28] sm:$0xff] %vm790, %v763
      %829 = vst.msk [vmem:[%s822 + $0x30] sm:$0xff] %vm790, %v764
      %830 = vst.msk [vmem:[%s822 + $0x38] sm:$0xff] %vm790, %v765
      %831 = vst.msk [vmem:[%s822 + $0x50] sm:$0xff] %vm790, %v766
      %832 = vst.msk [vmem:[%s822 + $0x58] sm:$0xff] %vm790, %v767
      %833 = vst.msk [vmem:[%s822 + $0x60] sm:$0xff] %vm790, %v768
      %834 = vst.msk [vmem:[%s822 + $0x68] sm:$0xff] %vm790, %v769
      %835 = vst.msk [vmem:[%s822 + $0x70] sm:$0xff] %vm790, %v770
      %836 = vst.msk [vmem:[%s822 + $0x78] sm:$0xff] %vm790, %v771
      %837 = vst.msk [vmem:[%s822 + $0x80] sm:$0xff] %vm790, %v772
      %838 = vst.msk [vmem:[%s822 + $0x88] sm:$0xff] %vm790, %v773
      %839 = vst.msk [vmem:[%s822 + $0xa0] sm:$0xff] %vm790, %v774
      %840 = vst.msk [vmem:[%s822 + $0xa8] sm:$0xff] %vm790, %v775
      %841 = vst.msk [vmem:[%s822 + $0xb0] sm:$0xff] %vm790, %v776
      %842 = vst.msk [vmem:[%s822 + $0xb8] sm:$0xff] %vm790, %v777
      %843 = vst.msk [vmem:[%s822 + $0xc0] sm:$0xff] %vm790, %v778
      %844 = vst.msk [vmem:[%s822 + $0xc8] sm:$0xff] %vm790, %v779
      %845 = vst.msk [vmem:[%s822 + $0xd0] sm:$0xff] %vm790, %v780
      %846 = vst.msk [vmem:[%s822 + $0xd8] sm:$0xff] %vm790, %v781
      %847 = vst.msk [vmem:[%s822 + $0xf0] sm:$0xff] %vm790, %v782
      %848 = vst.msk [vmem:[%s822 + $0xf8] sm:$0xff] %vm790, %v783
      %849 = vst.msk [vmem:[%s822 + $0x100] sm:$0xff] %vm790, %v784
      %850 = vst.msk [vmem:[%s822 + $0x108] sm:$0xff] %vm790, %v785
      %851 = vst.msk [vmem:[%s822 + $0x110] sm:$0xff] %vm790, %v786
      %852 = vst.msk [vmem:[%s822 + $0x118] sm:$0xff] %vm790, %v787
      %853 = vst.msk [vmem:[%s822 + $0x120] sm:$0xff] %vm790, %v788
      %854 = vst.msk [vmem:[%s822 + $0x128] sm:$0xff] %vm790, %v789
      %v855 = vld [vmem:[%s6] sm:$0xff]
      %v856 = vld [vmem:[%s6 + $0x8] sm:$0xff]
      %v857 = vld [vmem:[%s6 + $0x10] sm:$0xff]
      %v858 = vld [vmem:[%s6 + $0x18] sm:$0x7]
      %v859 = vld [vmem:[#allocation2] sm:$0xff]
      %v860 = vld [vmem:[#allocation2 + $0x8] sm:$0xff]
      %v861 = vld [vmem:[#allocation2 + $0x10] sm:$0xff]
      %v862 = vld [vmem:[#allocation2 + $0x18] sm:$0xff]
      %v863 = vld [vmem:[#allocation2 + $0x20] sm:$0xff]
      %v864 = vld [vmem:[#allocation2 + $0x28] sm:$0xff]
      %v865 = vld [vmem:[#allocation2 + $0x30] sm:$0xff]
      %v866 = vld [vmem:[#allocation2 + $0x38] sm:$0xff]
      %v867 = vld [vmem:[#allocation2 + $0x50] sm:$0xff]
      %v868 = vld [vmem:[#allocation2 + $0x58] sm:$0xff]
      %v869 = vld [vmem:[#allocation2 + $0x60] sm:$0xff]
      %v870 = vld [vmem:[#allocation2 + $0x68] sm:$0xff]
      %v871 = vld [vmem:[#allocation2 + $0x70] sm:$0xff]
      %v872 = vld [vmem:[#allocation2 + $0x78] sm:$0xff]
      %v873 = vld [vmem:[#allocation2 + $0x80] sm:$0xff]
      %v874 = vld [vmem:[#allocation2 + $0x88] sm:$0xff]
      %v875 = vld [vmem:[#allocation2 + $0xa0] sm:$0xff]
      %v876 = vld [vmem:[#allocation2 + $0xa8] sm:$0xff]
      %v877 = vld [vmem:[#allocation2 + $0xb0] sm:$0xff]
      %v878 = vld [vmem:[#allocation2 + $0xb8] sm:$0xff]
      %v879 = vld [vmem:[#allocation2 + $0xc0] sm:$0xff]
      %v880 = vld [vmem:[#allocation2 + $0xc8] sm:$0xff]
      %v881 = vld [vmem:[#allocation2 + $0xd0] sm:$0xff]
      %v882 = vld [vmem:[#allocation2 + $0xd8] sm:$0xff]
      %v883 = vld [vmem:[#allocation2 + $0xf0] sm:$0xff]
      %v884 = vld [vmem:[#allocation2 + $0xf8] sm:$0xff]
      %v885 = vld [vmem:[#allocation2 + $0x100] sm:$0xff]
      %v886 = vld [vmem:[#allocation2 + $0x108] sm:$0xff]
      %v887 = vld [vmem:[#allocation2 + $0x110] sm:$0xff]
      %v888 = vld [vmem:[#allocation2 + $0x118] sm:$0xff]
      %v889 = vld [vmem:[#allocation2 + $0x120] sm:$0xff]
      %v890 = vld [vmem:[#allocation2 + $0x128] sm:$0xff]
      %v891 = vlaneseq
      %v892 = vshrl.u32 %v891, 7
      %v893 = vsub.s32 0, %v892
      %v894 = vrot.slane %v855, %v893
      %v895 = vmul.f32 %v859, %v894
      %v896 = vmul.f32 %v860, %v894
      %v897 = vmul.f32 %v861, %v894
      %v898 = vmul.f32 %v862, %v894
      %v899 = vmul.f32 %v863, %v894
      %v900 = vmul.f32 %v864, %v894
      %v901 = vmul.f32 %v865, %v894
      %v902 = vmul.f32 %v866, %v894
      %v903 = vmul.f32 %v867, %v894
      %v904 = vmul.f32 %v868, %v894
      %v905 = vmul.f32 %v869, %v894
      %v906 = vmul.f32 %v870, %v894
      %v907 = vmul.f32 %v871, %v894
      %v908 = vmul.f32 %v872, %v894
      %v909 = vmul.f32 %v873, %v894
      %v910 = vmul.f32 %v874, %v894
      %v911 = vmul.f32 %v875, %v894
      %v912 = vmul.f32 %v876, %v894
      %v913 = vmul.f32 %v877, %v894
      %v914 = vmul.f32 %v878, %v894
      %v915 = vmul.f32 %v879, %v894
      %v916 = vmul.f32 %v880, %v894
      %v917 = vmul.f32 %v881, %v894
      %v918 = vmul.f32 %v882, %v894
      %v919 = vmul.f32 %v883, %v894
      %v920 = vmul.f32 %v884, %v894
      %v921 = vmul.f32 %v885, %v894
      %v922 = vmul.f32 %v886, %v894
      %v923 = vmul.f32 %v887, %v894
      %v924 = vmul.f32 %v888, %v894
      %v925 = vmul.f32 %v889, %v894
      %v926 = vmul.f32 %v890, %v894
      %v927 = vlaneseq
      %v928 = vshrl.u32 %v927, 7
      %v929 = vsub.s32 1, %v928
      %v930 = vrot.slane %v855, %v929
      %v931 = vmul.f32 %v859, %v930
      %v932 = vmul.f32 %v860, %v930
      %v933 = vmul.f32 %v861, %v930
      %v934 = vmul.f32 %v862, %v930
      %v935 = vmul.f32 %v863, %v930
      %v936 = vmul.f32 %v864, %v930
      %v937 = vmul.f32 %v865, %v930
      %v938 = vmul.f32 %v866, %v930
      %v939 = vmul.f32 %v867, %v930
      %v940 = vmul.f32 %v868, %v930
      %v941 = vmul.f32 %v869, %v930
      %v942 = vmul.f32 %v870, %v930
      %v943 = vmul.f32 %v871, %v930
      %v944 = vmul.f32 %v872, %v930
      %v945 = vmul.f32 %v873, %v930
      %v946 = vmul.f32 %v874, %v930
      %v947 = vmul.f32 %v875, %v930
      %v948 = vmul.f32 %v876, %v930
      %v949 = vmul.f32 %v877, %v930
      %v950 = vmul.f32 %v878, %v930
      %v951 = vmul.f32 %v879, %v930
      %v952 = vmul.f32 %v880, %v930
      %v953 = vmul.f32 %v881, %v930
      %v954 = vmul.f32 %v882, %v930
      %v955 = vmul.f32 %v883, %v930
      %v956 = vmul.f32 %v884, %v930
      %v957 = vmul.f32 %v885, %v930
      %v958 = vmul.f32 %v886, %v930
      %v959 = vmul.f32 %v887, %v930
      %v960 = vmul.f32 %v888, %v930
      %v961 = vmul.f32 %v889, %v930
      %v962 = vmul.f32 %v890, %v930
      %v963 = vlaneseq
      %v964 = vshrl.u32 %v963, 7
      %v965 = vsub.s32 2, %v964
      %v966 = vrot.slane %v855, %v965
      %v967 = vmul.f32 %v859, %v966
      %v968 = vmul.f32 %v860, %v966
      %v969 = vmul.f32 %v861, %v966
      %v970 = vmul.f32 %v862, %v966
      %v971 = vmul.f32 %v863, %v966
      %v972 = vmul.f32 %v864, %v966
      %v973 = vmul.f32 %v865, %v966
      %v974 = vmul.f32 %v866, %v966
      %v975 = vmul.f32 %v867, %v966
      %v976 = vmul.f32 %v868, %v966
      %v977 = vmul.f32 %v869, %v966
      %v978 = vmul.f32 %v870, %v966
      %v979 = vmul.f32 %v871, %v966
      %v980 = vmul.f32 %v872, %v966
      %v981 = vmul.f32 %v873, %v966
      %v982 = vmul.f32 %v874, %v966
      %v983 = vmul.f32 %v875, %v966
      %v984 = vmul.f32 %v876, %v966
      %v985 = vmul.f32 %v877, %v966
      %v986 = vmul.f32 %v878, %v966
      %v987 = vmul.f32 %v879, %v966
      %v988 = vmul.f32 %v880, %v966
      %v989 = vmul.f32 %v881, %v966
      %v990 = vmul.f32 %v882, %v966
      %v991 = vmul.f32 %v883, %v966
      %v992 = vmul.f32 %v884, %v966
      %v993 = vmul.f32 %v885, %v966
      %v994 = vmul.f32 %v886, %v966
      %v995 = vmul.f32 %v887, %v966
      %v996 = vmul.f32 %v888, %v966
      %v997 = vmul.f32 %v889, %v966
      %v998 = vmul.f32 %v890, %v966
      %s999 = scalar_lea.vmem [#allocation2], 8
      %v1000 = vld [vmem:[%s999] sm:$0xff]
      %v1001 = vld [vmem:[%s999 + $0x8] sm:$0xff]
      %v1002 = vld [vmem:[%s999 + $0x10] sm:$0xff]
      %v1003 = vld [vmem:[%s999 + $0x18] sm:$0xff]
      %v1004 = vld [vmem:[%s999 + $0x20] sm:$0xff]
      %v1005 = vld [vmem:[%s999 + $0x28] sm:$0xff]
      %v1006 = vld [vmem:[%s999 + $0x30] sm:$0xff]
      %v1007 = vld [vmem:[%s999 + $0x38] sm:$0xff]
      %v1008 = vld [vmem:[%s999 + $0x50] sm:$0xff]
      %v1009 = vld [vmem:[%s999 + $0x58] sm:$0xff]
      %v1010 = vld [vmem:[%s999 + $0x60] sm:$0xff]
      %v1011 = vld [vmem:[%s999 + $0x68] sm:$0xff]
      %v1012 = vld [vmem:[%s999 + $0x70] sm:$0xff]
      %v1013 = vld [vmem:[%s999 + $0x78] sm:$0xff]
      %v1014 = vld [vmem:[%s999 + $0x80] sm:$0xff]
      %v1015 = vld [vmem:[%s999 + $0x88] sm:$0xff]
      %v1016 = vld [vmem:[%s999 + $0xa0] sm:$0xff]
      %v1017 = vld [vmem:[%s999 + $0xa8] sm:$0xff]
      %v1018 = vld [vmem:[%s999 + $0xb0] sm:$0xff]
      %v1019 = vld [vmem:[%s999 + $0xb8] sm:$0xff]
      %v1020 = vld [vmem:[%s999 + $0xc0] sm:$0xff]
      %v1021 = vld [vmem:[%s999 + $0xc8] sm:$0xff]
      %v1022 = vld [vmem:[%s999 + $0xd0] sm:$0xff]
      %v1023 = vld [vmem:[%s999 + $0xd8] sm:$0xff]
      %v1024 = vld [vmem:[%s999 + $0xf0] sm:$0xff]
      %v1025 = vld [vmem:[%s999 + $0xf8] sm:$0xff]
      %v1026 = vld [vmem:[%s999 + $0x100] sm:$0xff]
      %v1027 = vld [vmem:[%s999 + $0x108] sm:$0xff]
      %v1028 = vld [vmem:[%s999 + $0x110] sm:$0xff]
      %v1029 = vld [vmem:[%s999 + $0x118] sm:$0xff]
      %v1030 = vld [vmem:[%s999 + $0x120] sm:$0xff]
      %v1031 = vld [vmem:[%s999 + $0x128] sm:$0xff]
      %v1032 = vlaneseq
      %v1033 = vshrl.u32 %v1032, 7
      %v1034 = vsub.s32 3, %v1033
      %v1035 = vrot.slane %v855, %v1034
      %v1036 = vmul.f32 %v1000, %v1035
      %v1037 = vmul.f32 %v1001, %v1035
      %v1038 = vmul.f32 %v1002, %v1035
      %v1039 = vmul.f32 %v1003, %v1035
      %v1040 = vmul.f32 %v1004, %v1035
      %v1041 = vmul.f32 %v1005, %v1035
      %v1042 = vmul.f32 %v1006, %v1035
      %v1043 = vmul.f32 %v1007, %v1035
      %v1044 = vmul.f32 %v1008, %v1035
      %v1045 = vmul.f32 %v1009, %v1035
      %v1046 = vmul.f32 %v1010, %v1035
      %v1047 = vmul.f32 %v1011, %v1035
      %v1048 = vmul.f32 %v1012, %v1035
      %v1049 = vmul.f32 %v1013, %v1035
      %v1050 = vmul.f32 %v1014, %v1035
      %v1051 = vmul.f32 %v1015, %v1035
      %v1052 = vmul.f32 %v1016, %v1035
      %v1053 = vmul.f32 %v1017, %v1035
      %v1054 = vmul.f32 %v1018, %v1035
      %v1055 = vmul.f32 %v1019, %v1035
      %v1056 = vmul.f32 %v1020, %v1035
      %v1057 = vmul.f32 %v1021, %v1035
      %v1058 = vmul.f32 %v1022, %v1035
      %v1059 = vmul.f32 %v1023, %v1035
      %v1060 = vmul.f32 %v1024, %v1035
      %v1061 = vmul.f32 %v1025, %v1035
      %v1062 = vmul.f32 %v1026, %v1035
      %v1063 = vmul.f32 %v1027, %v1035
      %v1064 = vmul.f32 %v1028, %v1035
      %v1065 = vmul.f32 %v1029, %v1035
      %v1066 = vmul.f32 %v1030, %v1035
      %v1067 = vmul.f32 %v1031, %v1035
      %v1068 = vadd.f32 %v895, %v1036
      %v1069 = vadd.f32 %v896, %v1037
      %v1070 = vadd.f32 %v897, %v1038
      %v1071 = vadd.f32 %v898, %v1039
      %v1072 = vadd.f32 %v899, %v1040
      %v1073 = vadd.f32 %v900, %v1041
      %v1074 = vadd.f32 %v901, %v1042
      %v1075 = vadd.f32 %v902, %v1043
      %v1076 = vadd.f32 %v903, %v1044
      %v1077 = vadd.f32 %v904, %v1045
      %v1078 = vadd.f32 %v905, %v1046
      %v1079 = vadd.f32 %v906, %v1047
      %v1080 = vadd.f32 %v907, %v1048
      %v1081 = vadd.f32 %v908, %v1049
      %v1082 = vadd.f32 %v909, %v1050
      %v1083 = vadd.f32 %v910, %v1051
      %v1084 = vadd.f32 %v911, %v1052
      %v1085 = vadd.f32 %v912, %v1053
      %v1086 = vadd.f32 %v913, %v1054
      %v1087 = vadd.f32 %v914, %v1055
      %v1088 = vadd.f32 %v915, %v1056
      %v1089 = vadd.f32 %v916, %v1057
      %v1090 = vadd.f32 %v917, %v1058
      %v1091 = vadd.f32 %v918, %v1059
      %v1092 = vadd.f32 %v919, %v1060
      %v1093 = vadd.f32 %v920, %v1061
      %v1094 = vadd.f32 %v921, %v1062
      %v1095 = vadd.f32 %v922, %v1063
      %v1096 = vadd.f32 %v923, %v1064
      %v1097 = vadd.f32 %v924, %v1065
      %v1098 = vadd.f32 %v925, %v1066
      %v1099 = vadd.f32 %v926, %v1067
      %v1100 = vlaneseq
      %v1101 = vshrl.u32 %v1100, 7
      %v1102 = vsub.s32 4, %v1101
      %v1103 = vrot.slane %v855, %v1102
      %v1104 = vmul.f32 %v1000, %v1103
      %v1105 = vmul.f32 %v1001, %v1103
      %v1106 = vmul.f32 %v1002, %v1103
      %v1107 = vmul.f32 %v1003, %v1103
      %v1108 = vmul.f32 %v1004, %v1103
      %v1109 = vmul.f32 %v1005, %v1103
      %v1110 = vmul.f32 %v1006, %v1103
      %v1111 = vmul.f32 %v1007, %v1103
      %v1112 = vmul.f32 %v1008, %v1103
      %v1113 = vmul.f32 %v1009, %v1103
      %v1114 = vmul.f32 %v1010, %v1103
      %v1115 = vmul.f32 %v1011, %v1103
      %v1116 = vmul.f32 %v1012, %v1103
      %v1117 = vmul.f32 %v1013, %v1103
      %v1118 = vmul.f32 %v1014, %v1103
      %v1119 = vmul.f32 %v1015, %v1103
      %v1120 = vmul.f32 %v1016, %v1103
      %v1121 = vmul.f32 %v1017, %v1103
      %v1122 = vmul.f32 %v1018, %v1103
      %v1123 = vmul.f32 %v1019, %v1103
      %v1124 = vmul.f32 %v1020, %v1103
      %v1125 = vmul.f32 %v1021, %v1103
      %v1126 = vmul.f32 %v1022, %v1103
      %v1127 = vmul.f32 %v1023, %v1103
      %v1128 = vmul.f32 %v1024, %v1103
      %v1129 = vmul.f32 %v1025, %v1103
      %v1130 = vmul.f32 %v1026, %v1103
      %v1131 = vmul.f32 %v1027, %v1103
      %v1132 = vmul.f32 %v1028, %v1103
      %v1133 = vmul.f32 %v1029, %v1103
      %v1134 = vmul.f32 %v1030, %v1103
      %v1135 = vmul.f32 %v1031, %v1103
      %v1136 = vadd.f32 %v931, %v1104
      %v1137 = vadd.f32 %v932, %v1105
      %v1138 = vadd.f32 %v933, %v1106
      %v1139 = vadd.f32 %v934, %v1107
      %v1140 = vadd.f32 %v935, %v1108
      %v1141 = vadd.f32 %v936, %v1109
      %v1142 = vadd.f32 %v937, %v1110
      %v1143 = vadd.f32 %v938, %v1111
      %v1144 = vadd.f32 %v939, %v1112
      %v1145 = vadd.f32 %v940, %v1113
      %v1146 = vadd.f32 %v941, %v1114
      %v1147 = vadd.f32 %v942, %v1115
      %v1148 = vadd.f32 %v943, %v1116
      %v1149 = vadd.f32 %v944, %v1117
      %v1150 = vadd.f32 %v945, %v1118
      %v1151 = vadd.f32 %v946, %v1119
      %v1152 = vadd.f32 %v947, %v1120
      %v1153 = vadd.f32 %v948, %v1121
      %v1154 = vadd.f32 %v949, %v1122
      %v1155 = vadd.f32 %v950, %v1123
      %v1156 = vadd.f32 %v951, %v1124
      %v1157 = vadd.f32 %v952, %v1125
      %v1158 = vadd.f32 %v953, %v1126
      %v1159 = vadd.f32 %v954, %v1127
      %v1160 = vadd.f32 %v955, %v1128
      %v1161 = vadd.f32 %v956, %v1129
      %v1162 = vadd.f32 %v957, %v1130
      %v1163 = vadd.f32 %v958, %v1131
      %v1164 = vadd.f32 %v959, %v1132
      %v1165 = vadd.f32 %v960, %v1133
      %v1166 = vadd.f32 %v961, %v1134
      %v1167 = vadd.f32 %v962, %v1135
      %v1168 = vlaneseq
      %v1169 = vshrl.u32 %v1168, 7
      %v1170 = vsub.s32 5, %v1169
      %v1171 = vrot.slane %v855, %v1170
      %v1172 = vmul.f32 %v1000, %v1171
      %v1173 = vmul.f32 %v1001, %v1171
      %v1174 = vmul.f32 %v1002, %v1171
      %v1175 = vmul.f32 %v1003, %v1171
      %v1176 = vmul.f32 %v1004, %v1171
      %v1177 = vmul.f32 %v1005, %v1171
      %v1178 = vmul.f32 %v1006, %v1171
      %v1179 = vmul.f32 %v1007, %v1171
      %v1180 = vmul.f32 %v1008, %v1171
      %v1181 = vmul.f32 %v1009, %v1171
      %v1182 = vmul.f32 %v1010, %v1171
      %v1183 = vmul.f32 %v1011, %v1171
      %v1184 = vmul.f32 %v1012, %v1171
      %v1185 = vmul.f32 %v1013, %v1171
      %v1186 = vmul.f32 %v1014, %v1171
      %v1187 = vmul.f32 %v1015, %v1171
      %v1188 = vmul.f32 %v1016, %v1171
      %v1189 = vmul.f32 %v1017, %v1171
      %v1190 = vmul.f32 %v1018, %v1171
      %v1191 = vmul.f32 %v1019, %v1171
      %v1192 = vmul.f32 %v1020, %v1171
      %v1193 = vmul.f32 %v1021, %v1171
      %v1194 = vmul.f32 %v1022, %v1171
      %v1195 = vmul.f32 %v1023, %v1171
      %v1196 = vmul.f32 %v1024, %v1171
      %v1197 = vmul.f32 %v1025, %v1171
      %v1198 = vmul.f32 %v1026, %v1171
      %v1199 = vmul.f32 %v1027, %v1171
      %v1200 = vmul.f32 %v1028, %v1171
      %v1201 = vmul.f32 %v1029, %v1171
      %v1202 = vmul.f32 %v1030, %v1171
      %v1203 = vmul.f32 %v1031, %v1171
      %v1204 = vadd.f32 %v967, %v1172
      %v1205 = vadd.f32 %v968, %v1173
      %v1206 = vadd.f32 %v969, %v1174
      %v1207 = vadd.f32 %v970, %v1175
      %v1208 = vadd.f32 %v971, %v1176
      %v1209 = vadd.f32 %v972, %v1177
      %v1210 = vadd.f32 %v973, %v1178
      %v1211 = vadd.f32 %v974, %v1179
      %v1212 = vadd.f32 %v975, %v1180
      %v1213 = vadd.f32 %v976, %v1181
      %v1214 = vadd.f32 %v977, %v1182
      %v1215 = vadd.f32 %v978, %v1183
      %v1216 = vadd.f32 %v979, %v1184
      %v1217 = vadd.f32 %v980, %v1185
      %v1218 = vadd.f32 %v981, %v1186
      %v1219 = vadd.f32 %v982, %v1187
      %v1220 = vadd.f32 %v983, %v1188
      %v1221 = vadd.f32 %v984, %v1189
      %v1222 = vadd.f32 %v985, %v1190
      %v1223 = vadd.f32 %v986, %v1191
      %v1224 = vadd.f32 %v987, %v1192
      %v1225 = vadd.f32 %v988, %v1193
      %v1226 = vadd.f32 %v989, %v1194
      %v1227 = vadd.f32 %v990, %v1195
      %v1228 = vadd.f32 %v991, %v1196
      %v1229 = vadd.f32 %v992, %v1197
      %v1230 = vadd.f32 %v993, %v1198
      %v1231 = vadd.f32 %v994, %v1199
      %v1232 = vadd.f32 %v995, %v1200
      %v1233 = vadd.f32 %v996, %v1201
      %v1234 = vadd.f32 %v997, %v1202
      %v1235 = vadd.f32 %v998, %v1203
      %s1236 = scalar_lea.vmem [#allocation2], 16
      %v1237 = vld [vmem:[%s1236] sm:$0xff]
      %v1238 = vld [vmem:[%s1236 + $0x8] sm:$0xff]
      %v1239 = vld [vmem:[%s1236 + $0x10] sm:$0xff]
      %v1240 = vld [vmem:[%s1236 + $0x18] sm:$0xff]
      %v1241 = vld [vmem:[%s1236 + $0x20] sm:$0xff]
      %v1242 = vld [vmem:[%s1236 + $0x28] sm:$0xff]
      %v1243 = vld [vmem:[%s1236 + $0x30] sm:$0xff]
      %v1244 = vld [vmem:[%s1236 + $0x38] sm:$0xff]
      %v1245 = vld [vmem:[%s1236 + $0x50] sm:$0xff]
      %v1246 = vld [vmem:[%s1236 + $0x58] sm:$0xff]
      %v1247 = vld [vmem:[%s1236 + $0x60] sm:$0xff]
      %v1248 = vld [vmem:[%s1236 + $0x68] sm:$0xff]
      %v1249 = vld [vmem:[%s1236 + $0x70] sm:$0xff]
      %v1250 = vld [vmem:[%s1236 + $0x78] sm:$0xff]
      %v1251 = vld [vmem:[%s1236 + $0x80] sm:$0xff]
      %v1252 = vld [vmem:[%s1236 + $0x88] sm:$0xff]
      %v1253 = vld [vmem:[%s1236 + $0xa0] sm:$0xff]
      %v1254 = vld [vmem:[%s1236 + $0xa8] sm:$0xff]
      %v1255 = vld [vmem:[%s1236 + $0xb0] sm:$0xff]
      %v1256 = vld [vmem:[%s1236 + $0xb8] sm:$0xff]
      %v1257 = vld [vmem:[%s1236 + $0xc0] sm:$0xff]
      %v1258 = vld [vmem:[%s1236 + $0xc8] sm:$0xff]
      %v1259 = vld [vmem:[%s1236 + $0xd0] sm:$0xff]
      %v1260 = vld [vmem:[%s1236 + $0xd8] sm:$0xff]
      %v1261 = vld [vmem:[%s1236 + $0xf0] sm:$0xff]
      %v1262 = vld [vmem:[%s1236 + $0xf8] sm:$0xff]
      %v1263 = vld [vmem:[%s1236 + $0x100] sm:$0xff]
      %v1264 = vld [vmem:[%s1236 + $0x108] sm:$0xff]
      %v1265 = vld [vmem:[%s1236 + $0x110] sm:$0xff]
      %v1266 = vld [vmem:[%s1236 + $0x118] sm:$0xff]
      %v1267 = vld [vmem:[%s1236 + $0x120] sm:$0xff]
      %v1268 = vld [vmem:[%s1236 + $0x128] sm:$0xff]
      %v1269 = vlaneseq
      %v1270 = vshrl.u32 %v1269, 7
      %v1271 = vsub.s32 6, %v1270
      %v1272 = vrot.slane %v855, %v1271
      %v1273 = vmul.f32 %v1237, %v1272
      %v1274 = vmul.f32 %v1238, %v1272
      %v1275 = vmul.f32 %v1239, %v1272
      %v1276 = vmul.f32 %v1240, %v1272
      %v1277 = vmul.f32 %v1241, %v1272
      %v1278 = vmul.f32 %v1242, %v1272
      %v1279 = vmul.f32 %v1243, %v1272
      %v1280 = vmul.f32 %v1244, %v1272
      %v1281 = vmul.f32 %v1245, %v1272
      %v1282 = vmul.f32 %v1246, %v1272
      %v1283 = vmul.f32 %v1247, %v1272
      %v1284 = vmul.f32 %v1248, %v1272
      %v1285 = vmul.f32 %v1249, %v1272
      %v1286 = vmul.f32 %v1250, %v1272
      %v1287 = vmul.f32 %v1251, %v1272
      %v1288 = vmul.f32 %v1252, %v1272
      %v1289 = vmul.f32 %v1253, %v1272
      %v1290 = vmul.f32 %v1254, %v1272
      %v1291 = vmul.f32 %v1255, %v1272
      %v1292 = vmul.f32 %v1256, %v1272
      %v1293 = vmul.f32 %v1257, %v1272
      %v1294 = vmul.f32 %v1258, %v1272
      %v1295 = vmul.f32 %v1259, %v1272
      %v1296 = vmul.f32 %v1260, %v1272
      %v1297 = vmul.f32 %v1261, %v1272
      %v1298 = vmul.f32 %v1262, %v1272
      %v1299 = vmul.f32 %v1263, %v1272
      %v1300 = vmul.f32 %v1264, %v1272
      %v1301 = vmul.f32 %v1265, %v1272
      %v1302 = vmul.f32 %v1266, %v1272
      %v1303 = vmul.f32 %v1267, %v1272
      %v1304 = vmul.f32 %v1268, %v1272
      %v1305 = vadd.f32 %v1068, %v1273
      %v1306 = vadd.f32 %v1069, %v1274
      %v1307 = vadd.f32 %v1070, %v1275
      %v1308 = vadd.f32 %v1071, %v1276
      %v1309 = vadd.f32 %v1072, %v1277
      %v1310 = vadd.f32 %v1073, %v1278
      %v1311 = vadd.f32 %v1074, %v1279
      %v1312 = vadd.f32 %v1075, %v1280
      %v1313 = vadd.f32 %v1076, %v1281
      %v1314 = vadd.f32 %v1077, %v1282
      %v1315 = vadd.f32 %v1078, %v1283
      %v1316 = vadd.f32 %v1079, %v1284
      %v1317 = vadd.f32 %v1080, %v1285
      %v1318 = vadd.f32 %v1081, %v1286
      %v1319 = vadd.f32 %v1082, %v1287
      %v1320 = vadd.f32 %v1083, %v1288
      %v1321 = vadd.f32 %v1084, %v1289
      %v1322 = vadd.f32 %v1085, %v1290
      %v1323 = vadd.f32 %v1086, %v1291
      %v1324 = vadd.f32 %v1087, %v1292
      %v1325 = vadd.f32 %v1088, %v1293
      %v1326 = vadd.f32 %v1089, %v1294
      %v1327 = vadd.f32 %v1090, %v1295
      %v1328 = vadd.f32 %v1091, %v1296
      %v1329 = vadd.f32 %v1092, %v1297
      %v1330 = vadd.f32 %v1093, %v1298
      %v1331 = vadd.f32 %v1094, %v1299
      %v1332 = vadd.f32 %v1095, %v1300
      %v1333 = vadd.f32 %v1096, %v1301
      %v1334 = vadd.f32 %v1097, %v1302
      %v1335 = vadd.f32 %v1098, %v1303
      %v1336 = vadd.f32 %v1099, %v1304
      %v1337 = vlaneseq
      %v1338 = vshrl.u32 %v1337, 7
      %v1339 = vsub.s32 7, %v1338
      %v1340 = vrot.slane %v855, %v1339
      %v1341 = vmul.f32 %v1237, %v1340
      %v1342 = vmul.f32 %v1238, %v1340
      %v1343 = vmul.f32 %v1239, %v1340
      %v1344 = vmul.f32 %v1240, %v1340
      %v1345 = vmul.f32 %v1241, %v1340
      %v1346 = vmul.f32 %v1242, %v1340
      %v1347 = vmul.f32 %v1243, %v1340
      %v1348 = vmul.f32 %v1244, %v1340
      %v1349 = vmul.f32 %v1245, %v1340
      %v1350 = vmul.f32 %v1246, %v1340
      %v1351 = vmul.f32 %v1247, %v1340
      %v1352 = vmul.f32 %v1248, %v1340
      %v1353 = vmul.f32 %v1249, %v1340
      %v1354 = vmul.f32 %v1250, %v1340
      %v1355 = vmul.f32 %v1251, %v1340
      %v1356 = vmul.f32 %v1252, %v1340
      %v1357 = vmul.f32 %v1253, %v1340
      %v1358 = vmul.f32 %v1254, %v1340
      %v1359 = vmul.f32 %v1255, %v1340
      %v1360 = vmul.f32 %v1256, %v1340
      %v1361 = vmul.f32 %v1257, %v1340
      %v1362 = vmul.f32 %v1258, %v1340
      %v1363 = vmul.f32 %v1259, %v1340
      %v1364 = vmul.f32 %v1260, %v1340
      %v1365 = vmul.f32 %v1261, %v1340
      %v1366 = vmul.f32 %v1262, %v1340
      %v1367 = vmul.f32 %v1263, %v1340
      %v1368 = vmul.f32 %v1264, %v1340
      %v1369 = vmul.f32 %v1265, %v1340
      %v1370 = vmul.f32 %v1266, %v1340
      %v1371 = vmul.f32 %v1267, %v1340
      %v1372 = vmul.f32 %v1268, %v1340
      %v1373 = vadd.f32 %v1136, %v1341
      %v1374 = vadd.f32 %v1137, %v1342
      %v1375 = vadd.f32 %v1138, %v1343
      %v1376 = vadd.f32 %v1139, %v1344
      %v1377 = vadd.f32 %v1140, %v1345
      %v1378 = vadd.f32 %v1141, %v1346
      %v1379 = vadd.f32 %v1142, %v1347
      %v1380 = vadd.f32 %v1143, %v1348
      %v1381 = vadd.f32 %v1144, %v1349
      %v1382 = vadd.f32 %v1145, %v1350
      %v1383 = vadd.f32 %v1146, %v1351
      %v1384 = vadd.f32 %v1147, %v1352
      %v1385 = vadd.f32 %v1148, %v1353
      %v1386 = vadd.f32 %v1149, %v1354
      %v1387 = vadd.f32 %v1150, %v1355
      %v1388 = vadd.f32 %v1151, %v1356
      %v1389 = vadd.f32 %v1152, %v1357
      %v1390 = vadd.f32 %v1153, %v1358
      %v1391 = vadd.f32 %v1154, %v1359
      %v1392 = vadd.f32 %v1155, %v1360
      %v1393 = vadd.f32 %v1156, %v1361
      %v1394 = vadd.f32 %v1157, %v1362
      %v1395 = vadd.f32 %v1158, %v1363
      %v1396 = vadd.f32 %v1159, %v1364
      %v1397 = vadd.f32 %v1160, %v1365
      %v1398 = vadd.f32 %v1161, %v1366
      %v1399 = vadd.f32 %v1162, %v1367
      %v1400 = vadd.f32 %v1163, %v1368
      %v1401 = vadd.f32 %v1164, %v1369
      %v1402 = vadd.f32 %v1165, %v1370
      %v1403 = vadd.f32 %v1166, %v1371
      %v1404 = vadd.f32 %v1167, %v1372
      %v1405 = vlaneseq
      %v1406 = vshrl.u32 %v1405, 7
      %v1407 = vsub.s32 0, %v1406
      %v1408 = vrot.slane %v856, %v1407
      %v1409 = vmul.f32 %v1237, %v1408
      %v1410 = vmul.f32 %v1238, %v1408
      %v1411 = vmul.f32 %v1239, %v1408
      %v1412 = vmul.f32 %v1240, %v1408
      %v1413 = vmul.f32 %v1241, %v1408
      %v1414 = vmul.f32 %v1242, %v1408
      %v1415 = vmul.f32 %v1243, %v1408
      %v1416 = vmul.f32 %v1244, %v1408
      %v1417 = vmul.f32 %v1245, %v1408
      %v1418 = vmul.f32 %v1246, %v1408
      %v1419 = vmul.f32 %v1247, %v1408
      %v1420 = vmul.f32 %v1248, %v1408
      %v1421 = vmul.f32 %v1249, %v1408
      %v1422 = vmul.f32 %v1250, %v1408
      %v1423 = vmul.f32 %v1251, %v1408
      %v1424 = vmul.f32 %v1252, %v1408
      %v1425 = vmul.f32 %v1253, %v1408
      %v1426 = vmul.f32 %v1254, %v1408
      %v1427 = vmul.f32 %v1255, %v1408
      %v1428 = vmul.f32 %v1256, %v1408
      %v1429 = vmul.f32 %v1257, %v1408
      %v1430 = vmul.f32 %v1258, %v1408
      %v1431 = vmul.f32 %v1259, %v1408
      %v1432 = vmul.f32 %v1260, %v1408
      %v1433 = vmul.f32 %v1261, %v1408
      %v1434 = vmul.f32 %v1262, %v1408
      %v1435 = vmul.f32 %v1263, %v1408
      %v1436 = vmul.f32 %v1264, %v1408
      %v1437 = vmul.f32 %v1265, %v1408
      %v1438 = vmul.f32 %v1266, %v1408
      %v1439 = vmul.f32 %v1267, %v1408
      %v1440 = vmul.f32 %v1268, %v1408
      %v1441 = vadd.f32 %v1204, %v1409
      %v1442 = vadd.f32 %v1205, %v1410
      %v1443 = vadd.f32 %v1206, %v1411
      %v1444 = vadd.f32 %v1207, %v1412
      %v1445 = vadd.f32 %v1208, %v1413
      %v1446 = vadd.f32 %v1209, %v1414
      %v1447 = vadd.f32 %v1210, %v1415
      %v1448 = vadd.f32 %v1211, %v1416
      %v1449 = vadd.f32 %v1212, %v1417
      %v1450 = vadd.f32 %v1213, %v1418
      %v1451 = vadd.f32 %v1214, %v1419
      %v1452 = vadd.f32 %v1215, %v1420
      %v1453 = vadd.f32 %v1216, %v1421
      %v1454 = vadd.f32 %v1217, %v1422
      %v1455 = vadd.f32 %v1218, %v1423
      %v1456 = vadd.f32 %v1219, %v1424
      %v1457 = vadd.f32 %v1220, %v1425
      %v1458 = vadd.f32 %v1221, %v1426
      %v1459 = vadd.f32 %v1222, %v1427
      %v1460 = vadd.f32 %v1223, %v1428
      %v1461 = vadd.f32 %v1224, %v1429
      %v1462 = vadd.f32 %v1225, %v1430
      %v1463 = vadd.f32 %v1226, %v1431
      %v1464 = vadd.f32 %v1227, %v1432
      %v1465 = vadd.f32 %v1228, %v1433
      %v1466 = vadd.f32 %v1229, %v1434
      %v1467 = vadd.f32 %v1230, %v1435
      %v1468 = vadd.f32 %v1231, %v1436
      %v1469 = vadd.f32 %v1232, %v1437
      %v1470 = vadd.f32 %v1233, %v1438
      %v1471 = vadd.f32 %v1234, %v1439
      %v1472 = vadd.f32 %v1235, %v1440
      %v1473 = vld [vmem:[%s812] sm:$0xff]
      %v1474 = vld [vmem:[%s812 + $0x8] sm:$0xff]
      %v1475 = vld [vmem:[%s812 + $0x10] sm:$0xff]
      %v1476 = vld [vmem:[%s812 + $0x18] sm:$0xff]
      %v1477 = vld [vmem:[%s812 + $0x20] sm:$0xff]
      %v1478 = vld [vmem:[%s812 + $0x28] sm:$0xff]
      %v1479 = vld [vmem:[%s812 + $0x30] sm:$0xff]
      %v1480 = vld [vmem:[%s812 + $0x38] sm:$0xff]
      %v1481 = vld [vmem:[%s812 + $0x50] sm:$0xff]
      %v1482 = vld [vmem:[%s812 + $0x58] sm:$0xff]
      %v1483 = vld [vmem:[%s812 + $0x60] sm:$0xff]
      %v1484 = vld [vmem:[%s812 + $0x68] sm:$0xff]
      %v1485 = vld [vmem:[%s812 + $0x70] sm:$0xff]
      %v1486 = vld [vmem:[%s812 + $0x78] sm:$0xff]
      %v1487 = vld [vmem:[%s812 + $0x80] sm:$0xff]
      %v1488 = vld [vmem:[%s812 + $0x88] sm:$0xff]
      %v1489 = vld [vmem:[%s812 + $0xa0] sm:$0xff]
      %v1490 = vld [vmem:[%s812 + $0xa8] sm:$0xff]
      %v1491 = vld [vmem:[%s812 + $0xb0] sm:$0xff]
      %v1492 = vld [vmem:[%s812 + $0xb8] sm:$0xff]
      %v1493 = vld [vmem:[%s812 + $0xc0] sm:$0xff]
      %v1494 = vld [vmem:[%s812 + $0xc8] sm:$0xff]
      %v1495 = vld [vmem:[%s812 + $0xd0] sm:$0xff]
      %v1496 = vld [vmem:[%s812 + $0xd8] sm:$0xff]
      %v1497 = vld [vmem:[%s812 + $0xf0] sm:$0xff]
      %v1498 = vld [vmem:[%s812 + $0xf8] sm:$0xff]
      %v1499 = vld [vmem:[%s812 + $0x100] sm:$0xff]
      %v1500 = vld [vmem:[%s812 + $0x108] sm:$0xff]
      %v1501 = vld [vmem:[%s812 + $0x110] sm:$0xff]
      %v1502 = vld [vmem:[%s812 + $0x118] sm:$0xff]
      %v1503 = vld [vmem:[%s812 + $0x120] sm:$0xff]
      %v1504 = vld [vmem:[%s812 + $0x128] sm:$0xff]
      %v1505 = vlaneseq
      %v1506 = vshrl.u32 %v1505, 7
      %v1507 = vsub.s32 1, %v1506
      %v1508 = vrot.slane %v856, %v1507
      %v1509 = vmul.f32 %v1473, %v1508
      %v1510 = vmul.f32 %v1474, %v1508
      %v1511 = vmul.f32 %v1475, %v1508
      %v1512 = vmul.f32 %v1476, %v1508
      %v1513 = vmul.f32 %v1477, %v1508
      %v1514 = vmul.f32 %v1478, %v1508
      %v1515 = vmul.f32 %v1479, %v1508
      %v1516 = vmul.f32 %v1480, %v1508
      %v1517 = vmul.f32 %v1481, %v1508
      %v1518 = vmul.f32 %v1482, %v1508
      %v1519 = vmul.f32 %v1483, %v1508
      %v1520 = vmul.f32 %v1484, %v1508
      %v1521 = vmul.f32 %v1485, %v1508
      %v1522 = vmul.f32 %v1486, %v1508
      %v1523 = vmul.f32 %v1487, %v1508
      %v1524 = vmul.f32 %v1488, %v1508
      %v1525 = vmul.f32 %v1489, %v1508
      %v1526 = vmul.f32 %v1490, %v1508
      %v1527 = vmul.f32 %v1491, %v1508
      %v1528 = vmul.f32 %v1492, %v1508
      %v1529 = vmul.f32 %v1493, %v1508
      %v1530 = vmul.f32 %v1494, %v1508
      %v1531 = vmul.f32 %v1495, %v1508
      %v1532 = vmul.f32 %v1496, %v1508
      %v1533 = vmul.f32 %v1497, %v1508
      %v1534 = vmul.f32 %v1498, %v1508
      %v1535 = vmul.f32 %v1499, %v1508
      %v1536 = vmul.f32 %v1500, %v1508
      %v1537 = vmul.f32 %v1501, %v1508
      %v1538 = vmul.f32 %v1502, %v1508
      %v1539 = vmul.f32 %v1503, %v1508
      %v1540 = vmul.f32 %v1504, %v1508
      %v1541 = vadd.f32 %v1305, %v1509
      %v1542 = vadd.f32 %v1306, %v1510
      %v1543 = vadd.f32 %v1307, %v1511
      %v1544 = vadd.f32 %v1308, %v1512
      %v1545 = vadd.f32 %v1309, %v1513
      %v1546 = vadd.f32 %v1310, %v1514
      %v1547 = vadd.f32 %v1311, %v1515
      %v1548 = vadd.f32 %v1312, %v1516
      %v1549 = vadd.f32 %v1313, %v1517
      %v1550 = vadd.f32 %v1314, %v1518
      %v1551 = vadd.f32 %v1315, %v1519
      %v1552 = vadd.f32 %v1316, %v1520
      %v1553 = vadd.f32 %v1317, %v1521
      %v1554 = vadd.f32 %v1318, %v1522
      %v1555 = vadd.f32 %v1319, %v1523
      %v1556 = vadd.f32 %v1320, %v1524
      %v1557 = vadd.f32 %v1321, %v1525
      %v1558 = vadd.f32 %v1322, %v1526
      %v1559 = vadd.f32 %v1323, %v1527
      %v1560 = vadd.f32 %v1324, %v1528
      %v1561 = vadd.f32 %v1325, %v1529
      %v1562 = vadd.f32 %v1326, %v1530
      %v1563 = vadd.f32 %v1327, %v1531
      %v1564 = vadd.f32 %v1328, %v1532
      %v1565 = vadd.f32 %v1329, %v1533
      %v1566 = vadd.f32 %v1330, %v1534
      %v1567 = vadd.f32 %v1331, %v1535
      %v1568 = vadd.f32 %v1332, %v1536
      %v1569 = vadd.f32 %v1333, %v1537
      %v1570 = vadd.f32 %v1334, %v1538
      %v1571 = vadd.f32 %v1335, %v1539
      %v1572 = vadd.f32 %v1336, %v1540
      %v1573 = vlaneseq
      %v1574 = vshrl.u32 %v1573, 7
      %v1575 = vsub.s32 2, %v1574
      %v1576 = vrot.slane %v856, %v1575
      %v1577 = vmul.f32 %v1473, %v1576
      %v1578 = vmul.f32 %v1474, %v1576
      %v1579 = vmul.f32 %v1475, %v1576
      %v1580 = vmul.f32 %v1476, %v1576
      %v1581 = vmul.f32 %v1477, %v1576
      %v1582 = vmul.f32 %v1478, %v1576
      %v1583 = vmul.f32 %v1479, %v1576
      %v1584 = vmul.f32 %v1480, %v1576
      %v1585 = vmul.f32 %v1481, %v1576
      %v1586 = vmul.f32 %v1482, %v1576
      %v1587 = vmul.f32 %v1483, %v1576
      %v1588 = vmul.f32 %v1484, %v1576
      %v1589 = vmul.f32 %v1485, %v1576
      %v1590 = vmul.f32 %v1486, %v1576
      %v1591 = vmul.f32 %v1487, %v1576
      %v1592 = vmul.f32 %v1488, %v1576
      %v1593 = vmul.f32 %v1489, %v1576
      %v1594 = vmul.f32 %v1490, %v1576
      %v1595 = vmul.f32 %v1491, %v1576
      %v1596 = vmul.f32 %v1492, %v1576
      %v1597 = vmul.f32 %v1493, %v1576
      %v1598 = vmul.f32 %v1494, %v1576
      %v1599 = vmul.f32 %v1495, %v1576
      %v1600 = vmul.f32 %v1496, %v1576
      %v1601 = vmul.f32 %v1497, %v1576
      %v1602 = vmul.f32 %v1498, %v1576
      %v1603 = vmul.f32 %v1499, %v1576
      %v1604 = vmul.f32 %v1500, %v1576
      %v1605 = vmul.f32 %v1501, %v1576
      %v1606 = vmul.f32 %v1502, %v1576
      %v1607 = vmul.f32 %v1503, %v1576
      %v1608 = vmul.f32 %v1504, %v1576
      %v1609 = vadd.f32 %v1373, %v1577
      %v1610 = vadd.f32 %v1374, %v1578
      %v1611 = vadd.f32 %v1375, %v1579
      %v1612 = vadd.f32 %v1376, %v1580
      %v1613 = vadd.f32 %v1377, %v1581
      %v1614 = vadd.f32 %v1378, %v1582
      %v1615 = vadd.f32 %v1379, %v1583
      %v1616 = vadd.f32 %v1380, %v1584
      %v1617 = vadd.f32 %v1381, %v1585
      %v1618 = vadd.f32 %v1382, %v1586
      %v1619 = vadd.f32 %v1383, %v1587
      %v1620 = vadd.f32 %v1384, %v1588
      %v1621 = vadd.f32 %v1385, %v1589
      %v1622 = vadd.f32 %v1386, %v1590
      %v1623 = vadd.f32 %v1387, %v1591
      %v1624 = vadd.f32 %v1388, %v1592
      %v1625 = vadd.f32 %v1389, %v1593
      %v1626 = vadd.f32 %v1390, %v1594
      %v1627 = vadd.f32 %v1391, %v1595
      %v1628 = vadd.f32 %v1392, %v1596
      %v1629 = vadd.f32 %v1393, %v1597
      %v1630 = vadd.f32 %v1394, %v1598
      %v1631 = vadd.f32 %v1395, %v1599
      %v1632 = vadd.f32 %v1396, %v1600
      %v1633 = vadd.f32 %v1397, %v1601
      %v1634 = vadd.f32 %v1398, %v1602
      %v1635 = vadd.f32 %v1399, %v1603
      %v1636 = vadd.f32 %v1400, %v1604
      %v1637 = vadd.f32 %v1401, %v1605
      %v1638 = vadd.f32 %v1402, %v1606
      %v1639 = vadd.f32 %v1403, %v1607
      %v1640 = vadd.f32 %v1404, %v1608
      %v1641 = vlaneseq
      %v1642 = vshrl.u32 %v1641, 7
      %v1643 = vsub.s32 3, %v1642
      %v1644 = vrot.slane %v856, %v1643
      %v1645 = vmul.f32 %v1473, %v1644
      %v1646 = vmul.f32 %v1474, %v1644
      %v1647 = vmul.f32 %v1475, %v1644
      %v1648 = vmul.f32 %v1476, %v1644
      %v1649 = vmul.f32 %v1477, %v1644
      %v1650 = vmul.f32 %v1478, %v1644
      %v1651 = vmul.f32 %v1479, %v1644
      %v1652 = vmul.f32 %v1480, %v1644
      %v1653 = vmul.f32 %v1481, %v1644
      %v1654 = vmul.f32 %v1482, %v1644
      %v1655 = vmul.f32 %v1483, %v1644
      %v1656 = vmul.f32 %v1484, %v1644
      %v1657 = vmul.f32 %v1485, %v1644
      %v1658 = vmul.f32 %v1486, %v1644
      %v1659 = vmul.f32 %v1487, %v1644
      %v1660 = vmul.f32 %v1488, %v1644
      %v1661 = vmul.f32 %v1489, %v1644
      %v1662 = vmul.f32 %v1490, %v1644
      %v1663 = vmul.f32 %v1491, %v1644
      %v1664 = vmul.f32 %v1492, %v1644
      %v1665 = vmul.f32 %v1493, %v1644
      %v1666 = vmul.f32 %v1494, %v1644
      %v1667 = vmul.f32 %v1495, %v1644
      %v1668 = vmul.f32 %v1496, %v1644
      %v1669 = vmul.f32 %v1497, %v1644
      %v1670 = vmul.f32 %v1498, %v1644
      %v1671 = vmul.f32 %v1499, %v1644
      %v1672 = vmul.f32 %v1500, %v1644
      %v1673 = vmul.f32 %v1501, %v1644
      %v1674 = vmul.f32 %v1502, %v1644
      %v1675 = vmul.f32 %v1503, %v1644
      %v1676 = vmul.f32 %v1504, %v1644
      %v1677 = vadd.f32 %v1441, %v1645
      %v1678 = vadd.f32 %v1442, %v1646
      %v1679 = vadd.f32 %v1443, %v1647
      %v1680 = vadd.f32 %v1444, %v1648
      %v1681 = vadd.f32 %v1445, %v1649
      %v1682 = vadd.f32 %v1446, %v1650
      %v1683 = vadd.f32 %v1447, %v1651
      %v1684 = vadd.f32 %v1448, %v1652
      %v1685 = vadd.f32 %v1449, %v1653
      %v1686 = vadd.f32 %v1450, %v1654
      %v1687 = vadd.f32 %v1451, %v1655
      %v1688 = vadd.f32 %v1452, %v1656
      %v1689 = vadd.f32 %v1453, %v1657
      %v1690 = vadd.f32 %v1454, %v1658
      %v1691 = vadd.f32 %v1455, %v1659
      %v1692 = vadd.f32 %v1456, %v1660
      %v1693 = vadd.f32 %v1457, %v1661
      %v1694 = vadd.f32 %v1458, %v1662
      %v1695 = vadd.f32 %v1459, %v1663
      %v1696 = vadd.f32 %v1460, %v1664
      %v1697 = vadd.f32 %v1461, %v1665
      %v1698 = vadd.f32 %v1462, %v1666
      %v1699 = vadd.f32 %v1463, %v1667
      %v1700 = vadd.f32 %v1464, %v1668
      %v1701 = vadd.f32 %v1465, %v1669
      %v1702 = vadd.f32 %v1466, %v1670
      %v1703 = vadd.f32 %v1467, %v1671
      %v1704 = vadd.f32 %v1468, %v1672
      %v1705 = vadd.f32 %v1469, %v1673
      %v1706 = vadd.f32 %v1470, %v1674
      %v1707 = vadd.f32 %v1471, %v1675
      %v1708 = vadd.f32 %v1472, %v1676
      %v1709 = vld [vmem:[%s822] sm:$0xff]
      %v1710 = vld [vmem:[%s822 + $0x8] sm:$0xff]
      %v1711 = vld [vmem:[%s822 + $0x10] sm:$0xff]
      %v1712 = vld [vmem:[%s822 + $0x18] sm:$0xff]
      %v1713 = vld [vmem:[%s822 + $0x20] sm:$0xff]
      %v1714 = vld [vmem:[%s822 + $0x28] sm:$0xff]
      %v1715 = vld [vmem:[%s822 + $0x30] sm:$0xff]
      %v1716 = vld [vmem:[%s822 + $0x38] sm:$0xff]
      %v1717 = vld [vmem:[%s822 + $0x50] sm:$0xff]
      %v1718 = vld [vmem:[%s822 + $0x58] sm:$0xff]
      %v1719 = vld [vmem:[%s822 + $0x60] sm:$0xff]
      %v1720 = vld [vmem:[%s822 + $0x68] sm:$0xff]
      %v1721 = vld [vmem:[%s822 + $0x70] sm:$0xff]
      %v1722 = vld [vmem:[%s822 + $0x78] sm:$0xff]
      %v1723 = vld [vmem:[%s822 + $0x80] sm:$0xff]
      %v1724 = vld [vmem:[%s822 + $0x88] sm:$0xff]
      %v1725 = vld [vmem:[%s822 + $0xa0] sm:$0xff]
      %v1726 = vld [vmem:[%s822 + $0xa8] sm:$0xff]
      %v1727 = vld [vmem:[%s822 + $0xb0] sm:$0xff]
      %v1728 = vld [vmem:[%s822 + $0xb8] sm:$0xff]
      %v1729 = vld [vmem:[%s822 + $0xc0] sm:$0xff]
      %v1730 = vld [vmem:[%s822 + $0xc8] sm:$0xff]
      %v1731 = vld [vmem:[%s822 + $0xd0] sm:$0xff]
      %v1732 = vld [vmem:[%s822 + $0xd8] sm:$0xff]
      %v1733 = vld [vmem:[%s822 + $0xf0] sm:$0xff]
      %v1734 = vld [vmem:[%s822 + $0xf8] sm:$0xff]
      %v1735 = vld [vmem:[%s822 + $0x100] sm:$0xff]
      %v1736 = vld [vmem:[%s822 + $0x108] sm:$0xff]
      %v1737 = vld [vmem:[%s822 + $0x110] sm:$0xff]
      %v1738 = vld [vmem:[%s822 + $0x118] sm:$0xff]
      %v1739 = vld [vmem:[%s822 + $0x120] sm:$0xff]
      %v1740 = vld [vmem:[%s822 + $0x128] sm:$0xff]
      %v1741 = vlaneseq
      %v1742 = vshrl.u32 %v1741, 7
      %v1743 = vsub.s32 4, %v1742
      %v1744 = vrot.slane %v856, %v1743
      %v1745 = vmul.f32 %v1709, %v1744
      %v1746 = vmul.f32 %v1710, %v1744
      %v1747 = vmul.f32 %v1711, %v1744
      %v1748 = vmul.f32 %v1712, %v1744
      %v1749 = vmul.f32 %v1713, %v1744
      %v1750 = vmul.f32 %v1714, %v1744
      %v1751 = vmul.f32 %v1715, %v1744
      %v1752 = vmul.f32 %v1716, %v1744
      %v1753 = vmul.f32 %v1717, %v1744
      %v1754 = vmul.f32 %v1718, %v1744
      %v1755 = vmul.f32 %v1719, %v1744
      %v1756 = vmul.f32 %v1720, %v1744
      %v1757 = vmul.f32 %v1721, %v1744
      %v1758 = vmul.f32 %v1722, %v1744
      %v1759 = vmul.f32 %v1723, %v1744
      %v1760 = vmul.f32 %v1724, %v1744
      %v1761 = vmul.f32 %v1725, %v1744
      %v1762 = vmul.f32 %v1726, %v1744
      %v1763 = vmul.f32 %v1727, %v1744
      %v1764 = vmul.f32 %v1728, %v1744
      %v1765 = vmul.f32 %v1729, %v1744
      %v1766 = vmul.f32 %v1730, %v1744
      %v1767 = vmul.f32 %v1731, %v1744
      %v1768 = vmul.f32 %v1732, %v1744
      %v1769 = vmul.f32 %v1733, %v1744
      %v1770 = vmul.f32 %v1734, %v1744
      %v1771 = vmul.f32 %v1735, %v1744
      %v1772 = vmul.f32 %v1736, %v1744
      %v1773 = vmul.f32 %v1737, %v1744
      %v1774 = vmul.f32 %v1738, %v1744
      %v1775 = vmul.f32 %v1739, %v1744
      %v1776 = vmul.f32 %v1740, %v1744
      %v1777 = vadd.f32 %v1541, %v1745
      %v1778 = vadd.f32 %v1542, %v1746
      %v1779 = vadd.f32 %v1543, %v1747
      %v1780 = vadd.f32 %v1544, %v1748
      %v1781 = vadd.f32 %v1545, %v1749
      %v1782 = vadd.f32 %v1546, %v1750
      %v1783 = vadd.f32 %v1547, %v1751
      %v1784 = vadd.f32 %v1548, %v1752
      %v1785 = vadd.f32 %v1549, %v1753
      %v1786 = vadd.f32 %v1550, %v1754
      %v1787 = vadd.f32 %v1551, %v1755
      %v1788 = vadd.f32 %v1552, %v1756
      %v1789 = vadd.f32 %v1553, %v1757
      %v1790 = vadd.f32 %v1554, %v1758
      %v1791 = vadd.f32 %v1555, %v1759
      %v1792 = vadd.f32 %v1556, %v1760
      %v1793 = vadd.f32 %v1557, %v1761
      %v1794 = vadd.f32 %v1558, %v1762
      %v1795 = vadd.f32 %v1559, %v1763
      %v1796 = vadd.f32 %v1560, %v1764
      %v1797 = vadd.f32 %v1561, %v1765
      %v1798 = vadd.f32 %v1562, %v1766
      %v1799 = vadd.f32 %v1563, %v1767
      %v1800 = vadd.f32 %v1564, %v1768
      %v1801 = vadd.f32 %v1565, %v1769
      %v1802 = vadd.f32 %v1566, %v1770
      %v1803 = vadd.f32 %v1567, %v1771
      %v1804 = vadd.f32 %v1568, %v1772
      %v1805 = vadd.f32 %v1569, %v1773
      %v1806 = vadd.f32 %v1570, %v1774
      %v1807 = vadd.f32 %v1571, %v1775
      %v1808 = vadd.f32 %v1572, %v1776
      %v1809 = vlaneseq
      %v1810 = vshrl.u32 %v1809, 7
      %v1811 = vsub.s32 5, %v1810
      %v1812 = vrot.slane %v856, %v1811
      %v1813 = vmul.f32 %v1709, %v1812
      %v1814 = vmul.f32 %v1710, %v1812
      %v1815 = vmul.f32 %v1711, %v1812
      %v1816 = vmul.f32 %v1712, %v1812
      %v1817 = vmul.f32 %v1713, %v1812
      %v1818 = vmul.f32 %v1714, %v1812
      %v1819 = vmul.f32 %v1715, %v1812
      %v1820 = vmul.f32 %v1716, %v1812
      %v1821 = vmul.f32 %v1717, %v1812
      %v1822 = vmul.f32 %v1718, %v1812
      %v1823 = vmul.f32 %v1719, %v1812
      %v1824 = vmul.f32 %v1720, %v1812
      %v1825 = vmul.f32 %v1721, %v1812
      %v1826 = vmul.f32 %v1722, %v1812
      %v1827 = vmul.f32 %v1723, %v1812
      %v1828 = vmul.f32 %v1724, %v1812
      %v1829 = vmul.f32 %v1725, %v1812
      %v1830 = vmul.f32 %v1726, %v1812
      %v1831 = vmul.f32 %v1727, %v1812
      %v1832 = vmul.f32 %v1728, %v1812
      %v1833 = vmul.f32 %v1729, %v1812
      %v1834 = vmul.f32 %v1730, %v1812
      %v1835 = vmul.f32 %v1731, %v1812
      %v1836 = vmul.f32 %v1732, %v1812
      %v1837 = vmul.f32 %v1733, %v1812
      %v1838 = vmul.f32 %v1734, %v1812
      %v1839 = vmul.f32 %v1735, %v1812
      %v1840 = vmul.f32 %v1736, %v1812
      %v1841 = vmul.f32 %v1737, %v1812
      %v1842 = vmul.f32 %v1738, %v1812
      %v1843 = vmul.f32 %v1739, %v1812
      %v1844 = vmul.f32 %v1740, %v1812
      %v1845 = vadd.f32 %v1609, %v1813
      %v1846 = vadd.f32 %v1610, %v1814
      %v1847 = vadd.f32 %v1611, %v1815
      %v1848 = vadd.f32 %v1612, %v1816
      %v1849 = vadd.f32 %v1613, %v1817
      %v1850 = vadd.f32 %v1614, %v1818
      %v1851 = vadd.f32 %v1615, %v1819
      %v1852 = vadd.f32 %v1616, %v1820
      %v1853 = vadd.f32 %v1617, %v1821
      %v1854 = vadd.f32 %v1618, %v1822
      %v1855 = vadd.f32 %v1619, %v1823
      %v1856 = vadd.f32 %v1620, %v1824
      %v1857 = vadd.f32 %v1621, %v1825
      %v1858 = vadd.f32 %v1622, %v1826
      %v1859 = vadd.f32 %v1623, %v1827
      %v1860 = vadd.f32 %v1624, %v1828
      %v1861 = vadd.f32 %v1625, %v1829
      %v1862 = vadd.f32 %v1626, %v1830
      %v1863 = vadd.f32 %v1627, %v1831
      %v1864 = vadd.f32 %v1628, %v1832
      %v1865 = vadd.f32 %v1629, %v1833
      %v1866 = vadd.f32 %v1630, %v1834
      %v1867 = vadd.f32 %v1631, %v1835
      %v1868 = vadd.f32 %v1632, %v1836
      %v1869 = vadd.f32 %v1633, %v1837
      %v1870 = vadd.f32 %v1634, %v1838
      %v1871 = vadd.f32 %v1635, %v1839
      %v1872 = vadd.f32 %v1636, %v1840
      %v1873 = vadd.f32 %v1637, %v1841
      %v1874 = vadd.f32 %v1638, %v1842
      %v1875 = vadd.f32 %v1639, %v1843
      %v1876 = vadd.f32 %v1640, %v1844
      %v1877 = vlaneseq
      %v1878 = vshrl.u32 %v1877, 7
      %v1879 = vsub.s32 6, %v1878
      %v1880 = vrot.slane %v856, %v1879
      %v1881 = vmul.f32 %v1709, %v1880
      %v1882 = vmul.f32 %v1710, %v1880
      %v1883 = vmul.f32 %v1711, %v1880
      %v1884 = vmul.f32 %v1712, %v1880
      %v1885 = vmul.f32 %v1713, %v1880
      %v1886 = vmul.f32 %v1714, %v1880
      %v1887 = vmul.f32 %v1715, %v1880
      %v1888 = vmul.f32 %v1716, %v1880
      %v1889 = vmul.f32 %v1717, %v1880
      %v1890 = vmul.f32 %v1718, %v1880
      %v1891 = vmul.f32 %v1719, %v1880
      %v1892 = vmul.f32 %v1720, %v1880
      %v1893 = vmul.f32 %v1721, %v1880
      %v1894 = vmul.f32 %v1722, %v1880
      %v1895 = vmul.f32 %v1723, %v1880
      %v1896 = vmul.f32 %v1724, %v1880
      %v1897 = vmul.f32 %v1725, %v1880
      %v1898 = vmul.f32 %v1726, %v1880
      %v1899 = vmul.f32 %v1727, %v1880
      %v1900 = vmul.f32 %v1728, %v1880
      %v1901 = vmul.f32 %v1729, %v1880
      %v1902 = vmul.f32 %v1730, %v1880
      %v1903 = vmul.f32 %v1731, %v1880
      %v1904 = vmul.f32 %v1732, %v1880
      %v1905 = vmul.f32 %v1733, %v1880
      %v1906 = vmul.f32 %v1734, %v1880
      %v1907 = vmul.f32 %v1735, %v1880
      %v1908 = vmul.f32 %v1736, %v1880
      %v1909 = vmul.f32 %v1737, %v1880
      %v1910 = vmul.f32 %v1738, %v1880
      %v1911 = vmul.f32 %v1739, %v1880
      %v1912 = vmul.f32 %v1740, %v1880
      %v1913 = vadd.f32 %v1677, %v1881
      %v1914 = vadd.f32 %v1678, %v1882
      %v1915 = vadd.f32 %v1679, %v1883
      %v1916 = vadd.f32 %v1680, %v1884
      %v1917 = vadd.f32 %v1681, %v1885
      %v1918 = vadd.f32 %v1682, %v1886
      %v1919 = vadd.f32 %v1683, %v1887
      %v1920 = vadd.f32 %v1684, %v1888
      %v1921 = vadd.f32 %v1685, %v1889
      %v1922 = vadd.f32 %v1686, %v1890
      %v1923 = vadd.f32 %v1687, %v1891
      %v1924 = vadd.f32 %v1688, %v1892
      %v1925 = vadd.f32 %v1689, %v1893
      %v1926 = vadd.f32 %v1690, %v1894
      %v1927 = vadd.f32 %v1691, %v1895
      %v1928 = vadd.f32 %v1692, %v1896
      %v1929 = vadd.f32 %v1693, %v1897
      %v1930 = vadd.f32 %v1694, %v1898
      %v1931 = vadd.f32 %v1695, %v1899
      %v1932 = vadd.f32 %v1696, %v1900
      %v1933 = vadd.f32 %v1697, %v1901
      %v1934 = vadd.f32 %v1698, %v1902
      %v1935 = vadd.f32 %v1699, %v1903
      %v1936 = vadd.f32 %v1700, %v1904
      %v1937 = vadd.f32 %v1701, %v1905
      %v1938 = vadd.f32 %v1702, %v1906
      %v1939 = vadd.f32 %v1703, %v1907
      %v1940 = vadd.f32 %v1704, %v1908
      %v1941 = vadd.f32 %v1705, %v1909
      %v1942 = vadd.f32 %v1706, %v1910
      %v1943 = vadd.f32 %v1707, %v1911
      %v1944 = vadd.f32 %v1708, %v1912
      %s1945 = scalar_lea.vmem [#allocation2], 96
      %v1946 = vld [vmem:[%s1945] sm:$0xff]
      %v1947 = vld [vmem:[%s1945 + $0x8] sm:$0xff]
      %v1948 = vld [vmem:[%s1945 + $0x10] sm:$0xff]
      %v1949 = vld [vmem:[%s1945 + $0x18] sm:$0xff]
      %v1950 = vld [vmem:[%s1945 + $0x20] sm:$0xff]
      %v1951 = vld [vmem:[%s1945 + $0x28] sm:$0xff]
      %v1952 = vld [vmem:[%s1945 + $0x30] sm:$0xff]
      %v1953 = vld [vmem:[%s1945 + $0x38] sm:$0xff]
      %v1954 = vld [vmem:[%s1945 + $0x50] sm:$0xff]
      %v1955 = vld [vmem:[%s1945 + $0x58] sm:$0xff]
      %v1956 = vld [vmem:[%s1945 + $0x60] sm:$0xff]
      %v1957 = vld [vmem:[%s1945 + $0x68] sm:$0xff]
      %v1958 = vld [vmem:[%s1945 + $0x70] sm:$0xff]
      %v1959 = vld [vmem:[%s1945 + $0x78] sm:$0xff]
      %v1960 = vld [vmem:[%s1945 + $0x80] sm:$0xff]
      %v1961 = vld [vmem:[%s1945 + $0x88] sm:$0xff]
      %v1962 = vld [vmem:[%s1945 + $0xa0] sm:$0xff]
      %v1963 = vld [vmem:[%s1945 + $0xa8] sm:$0xff]
      %v1964 = vld [vmem:[%s1945 + $0xb0] sm:$0xff]
      %v1965 = vld [vmem:[%s1945 + $0xb8] sm:$0xff]
      %v1966 = vld [vmem:[%s1945 + $0xc0] sm:$0xff]
      %v1967 = vld [vmem:[%s1945 + $0xc8] sm:$0xff]
      %v1968 = vld [vmem:[%s1945 + $0xd0] sm:$0xff]
      %v1969 = vld [vmem:[%s1945 + $0xd8] sm:$0xff]
      %v1970 = vld [vmem:[%s1945 + $0xf0] sm:$0xff]
      %v1971 = vld [vmem:[%s1945 + $0xf8] sm:$0xff]
      %v1972 = vld [vmem:[%s1945 + $0x100] sm:$0xff]
      %v1973 = vld [vmem:[%s1945 + $0x108] sm:$0xff]
      %v1974 = vld [vmem:[%s1945 + $0x110] sm:$0xff]
      %v1975 = vld [vmem:[%s1945 + $0x118] sm:$0xff]
      %v1976 = vld [vmem:[%s1945 + $0x120] sm:$0xff]
      %v1977 = vld [vmem:[%s1945 + $0x128] sm:$0xff]
      %v1978 = vlaneseq
      %v1979 = vshrl.u32 %v1978, 7
      %v1980 = vsub.s32 7, %v1979
      %v1981 = vrot.slane %v856, %v1980
      %v1982 = vmul.f32 %v1946, %v1981
      %v1983 = vmul.f32 %v1947, %v1981
      %v1984 = vmul.f32 %v1948, %v1981
      %v1985 = vmul.f32 %v1949, %v1981
      %v1986 = vmul.f32 %v1950, %v1981
      %v1987 = vmul.f32 %v1951, %v1981
      %v1988 = vmul.f32 %v1952, %v1981
      %v1989 = vmul.f32 %v1953, %v1981
      %v1990 = vmul.f32 %v1954, %v1981
      %v1991 = vmul.f32 %v1955, %v1981
      %v1992 = vmul.f32 %v1956, %v1981
      %v1993 = vmul.f32 %v1957, %v1981
      %v1994 = vmul.f32 %v1958, %v1981
      %v1995 = vmul.f32 %v1959, %v1981
      %v1996 = vmul.f32 %v1960, %v1981
      %v1997 = vmul.f32 %v1961, %v1981
      %v1998 = vmul.f32 %v1962, %v1981
      %v1999 = vmul.f32 %v1963, %v1981
      %v2000 = vmul.f32 %v1964, %v1981
      %v2001 = vmul.f32 %v1965, %v1981
      %v2002 = vmul.f32 %v1966, %v1981
      %v2003 = vmul.f32 %v1967, %v1981
      %v2004 = vmul.f32 %v1968, %v1981
      %v2005 = vmul.f32 %v1969, %v1981
      %v2006 = vmul.f32 %v1970, %v1981
      %v2007 = vmul.f32 %v1971, %v1981
      %v2008 = vmul.f32 %v1972, %v1981
      %v2009 = vmul.f32 %v1973, %v1981
      %v2010 = vmul.f32 %v1974, %v1981
      %v2011 = vmul.f32 %v1975, %v1981
      %v2012 = vmul.f32 %v1976, %v1981
      %v2013 = vmul.f32 %v1977, %v1981
      %v2014 = vadd.f32 %v1777, %v1982
      %v2015 = vadd.f32 %v1778, %v1983
      %v2016 = vadd.f32 %v1779, %v1984
      %v2017 = vadd.f32 %v1780, %v1985
      %v2018 = vadd.f32 %v1781, %v1986
      %v2019 = vadd.f32 %v1782, %v1987
      %v2020 = vadd.f32 %v1783, %v1988
      %v2021 = vadd.f32 %v1784, %v1989
      %v2022 = vadd.f32 %v1785, %v1990
      %v2023 = vadd.f32 %v1786, %v1991
      %v2024 = vadd.f32 %v1787, %v1992
      %v2025 = vadd.f32 %v1788, %v1993
      %v2026 = vadd.f32 %v1789, %v1994
      %v2027 = vadd.f32 %v1790, %v1995
      %v2028 = vadd.f32 %v1791, %v1996
      %v2029 = vadd.f32 %v1792, %v1997
      %v2030 = vadd.f32 %v1793, %v1998
      %v2031 = vadd.f32 %v1794, %v1999
      %v2032 = vadd.f32 %v1795, %v2000
      %v2033 = vadd.f32 %v1796, %v2001
      %v2034 = vadd.f32 %v1797, %v2002
      %v2035 = vadd.f32 %v1798, %v2003
      %v2036 = vadd.f32 %v1799, %v2004
      %v2037 = vadd.f32 %v1800, %v2005
      %v2038 = vadd.f32 %v1801, %v2006
      %v2039 = vadd.f32 %v1802, %v2007
      %v2040 = vadd.f32 %v1803, %v2008
      %v2041 = vadd.f32 %v1804, %v2009
      %v2042 = vadd.f32 %v1805, %v2010
      %v2043 = vadd.f32 %v1806, %v2011
      %v2044 = vadd.f32 %v1807, %v2012
      %v2045 = vadd.f32 %v1808, %v2013
      %v2046 = vlaneseq
      %v2047 = vshrl.u32 %v2046, 7
      %v2048 = vsub.s32 0, %v2047
      %v2049 = vrot.slane %v857, %v2048
      %v2050 = vmul.f32 %v1946, %v2049
      %v2051 = vmul.f32 %v1947, %v2049
      %v2052 = vmul.f32 %v1948, %v2049
      %v2053 = vmul.f32 %v1949, %v2049
      %v2054 = vmul.f32 %v1950, %v2049
      %v2055 = vmul.f32 %v1951, %v2049
      %v2056 = vmul.f32 %v1952, %v2049
      %v2057 = vmul.f32 %v1953, %v2049
      %v2058 = vmul.f32 %v1954, %v2049
      %v2059 = vmul.f32 %v1955, %v2049
      %v2060 = vmul.f32 %v1956, %v2049
      %v2061 = vmul.f32 %v1957, %v2049
      %v2062 = vmul.f32 %v1958, %v2049
      %v2063 = vmul.f32 %v1959, %v2049
      %v2064 = vmul.f32 %v1960, %v2049
      %v2065 = vmul.f32 %v1961, %v2049
      %v2066 = vmul.f32 %v1962, %v2049
      %v2067 = vmul.f32 %v1963, %v2049
      %v2068 = vmul.f32 %v1964, %v2049
      %v2069 = vmul.f32 %v1965, %v2049
      %v2070 = vmul.f32 %v1966, %v2049
      %v2071 = vmul.f32 %v1967, %v2049
      %v2072 = vmul.f32 %v1968, %v2049
      %v2073 = vmul.f32 %v1969, %v2049
      %v2074 = vmul.f32 %v1970, %v2049
      %v2075 = vmul.f32 %v1971, %v2049
      %v2076 = vmul.f32 %v1972, %v2049
      %v2077 = vmul.f32 %v1973, %v2049
      %v2078 = vmul.f32 %v1974, %v2049
      %v2079 = vmul.f32 %v1975, %v2049
      %v2080 = vmul.f32 %v1976, %v2049
      %v2081 = vmul.f32 %v1977, %v2049
      %v2082 = vadd.f32 %v1845, %v2050
      %v2083 = vadd.f32 %v1846, %v2051
      %v2084 = vadd.f32 %v1847, %v2052
      %v2085 = vadd.f32 %v1848, %v2053
      %v2086 = vadd.f32 %v1849, %v2054
      %v2087 = vadd.f32 %v1850, %v2055
      %v2088 = vadd.f32 %v1851, %v2056
      %v2089 = vadd.f32 %v1852, %v2057
      %v2090 = vadd.f32 %v1853, %v2058
      %v2091 = vadd.f32 %v1854, %v2059
      %v2092 = vadd.f32 %v1855, %v2060
      %v2093 = vadd.f32 %v1856, %v2061
      %v2094 = vadd.f32 %v1857, %v2062
      %v2095 = vadd.f32 %v1858, %v2063
      %v2096 = vadd.f32 %v1859, %v2064
      %v2097 = vadd.f32 %v1860, %v2065
      %v2098 = vadd.f32 %v1861, %v2066
      %v2099 = vadd.f32 %v1862, %v2067
      %v2100 = vadd.f32 %v1863, %v2068
      %v2101 = vadd.f32 %v1864, %v2069
      %v2102 = vadd.f32 %v1865, %v2070
      %v2103 = vadd.f32 %v1866, %v2071
      %v2104 = vadd.f32 %v1867, %v2072
      %v2105 = vadd.f32 %v1868, %v2073
      %v2106 = vadd.f32 %v1869, %v2074
      %v2107 = vadd.f32 %v1870, %v2075
      %v2108 = vadd.f32 %v1871, %v2076
      %v2109 = vadd.f32 %v1872, %v2077
      %v2110 = vadd.f32 %v1873, %v2078
      %v2111 = vadd.f32 %v1874, %v2079
      %v2112 = vadd.f32 %v1875, %v2080
      %v2113 = vadd.f32 %v1876, %v2081
      %v2114 = vlaneseq
      %v2115 = vshrl.u32 %v2114, 7
      %v2116 = vsub.s32 1, %v2115
      %v2117 = vrot.slane %v857, %v2116
      %v2118 = vmul.f32 %v1946, %v2117
      %v2119 = vmul.f32 %v1947, %v2117
      %v2120 = vmul.f32 %v1948, %v2117
      %v2121 = vmul.f32 %v1949, %v2117
      %v2122 = vmul.f32 %v1950, %v2117
      %v2123 = vmul.f32 %v1951, %v2117
      %v2124 = vmul.f32 %v1952, %v2117
      %v2125 = vmul.f32 %v1953, %v2117
      %v2126 = vmul.f32 %v1954, %v2117
      %v2127 = vmul.f32 %v1955, %v2117
      %v2128 = vmul.f32 %v1956, %v2117
      %v2129 = vmul.f32 %v1957, %v2117
      %v2130 = vmul.f32 %v1958, %v2117
      %v2131 = vmul.f32 %v1959, %v2117
      %v2132 = vmul.f32 %v1960, %v2117
      %v2133 = vmul.f32 %v1961, %v2117
      %v2134 = vmul.f32 %v1962, %v2117
      %v2135 = vmul.f32 %v1963, %v2117
      %v2136 = vmul.f32 %v1964, %v2117
      %v2137 = vmul.f32 %v1965, %v2117
      %v2138 = vmul.f32 %v1966, %v2117
      %v2139 = vmul.f32 %v1967, %v2117
      %v2140 = vmul.f32 %v1968, %v2117
      %v2141 = vmul.f32 %v1969, %v2117
      %v2142 = vmul.f32 %v1970, %v2117
      %v2143 = vmul.f32 %v1971, %v2117
      %v2144 = vmul.f32 %v1972, %v2117
      %v2145 = vmul.f32 %v1973, %v2117
      %v2146 = vmul.f32 %v1974, %v2117
      %v2147 = vmul.f32 %v1975, %v2117
      %v2148 = vmul.f32 %v1976, %v2117
      %v2149 = vmul.f32 %v1977, %v2117
      %v2150 = vadd.f32 %v1913, %v2118
      %v2151 = vadd.f32 %v1914, %v2119
      %v2152 = vadd.f32 %v1915, %v2120
      %v2153 = vadd.f32 %v1916, %v2121
      %v2154 = vadd.f32 %v1917, %v2122
      %v2155 = vadd.f32 %v1918, %v2123
      %v2156 = vadd.f32 %v1919, %v2124
      %v2157 = vadd.f32 %v1920, %v2125
      %v2158 = vadd.f32 %v1921, %v2126
      %v2159 = vadd.f32 %v1922, %v2127
      %v2160 = vadd.f32 %v1923, %v2128
      %v2161 = vadd.f32 %v1924, %v2129
      %v2162 = vadd.f32 %v1925, %v2130
      %v2163 = vadd.f32 %v1926, %v2131
      %v2164 = vadd.f32 %v1927, %v2132
      %v2165 = vadd.f32 %v1928, %v2133
      %v2166 = vadd.f32 %v1929, %v2134
      %v2167 = vadd.f32 %v1930, %v2135
      %v2168 = vadd.f32 %v1931, %v2136
      %v2169 = vadd.f32 %v1932, %v2137
      %v2170 = vadd.f32 %v1933, %v2138
      %v2171 = vadd.f32 %v1934, %v2139
      %v2172 = vadd.f32 %v1935, %v2140
      %v2173 = vadd.f32 %v1936, %v2141
      %v2174 = vadd.f32 %v1937, %v2142
      %v2175 = vadd.f32 %v1938, %v2143
      %v2176 = vadd.f32 %v1939, %v2144
      %v2177 = vadd.f32 %v1940, %v2145
      %v2178 = vadd.f32 %v1941, %v2146
      %v2179 = vadd.f32 %v1942, %v2147
      %v2180 = vadd.f32 %v1943, %v2148
      %v2181 = vadd.f32 %v1944, %v2149
      %s2182 = scalar_lea.vmem [#allocation2], 160
      %v2183 = vld [vmem:[%s2182] sm:$0xff]
      %v2184 = vld [vmem:[%s2182 + $0x8] sm:$0xff]
      %v2185 = vld [vmem:[%s2182 + $0x10] sm:$0xff]
      %v2186 = vld [vmem:[%s2182 + $0x18] sm:$0xff]
      %v2187 = vld [vmem:[%s2182 + $0x20] sm:$0xff]
      %v2188 = vld [vmem:[%s2182 + $0x28] sm:$0xff]
      %v2189 = vld [vmem:[%s2182 + $0x30] sm:$0xff]
      %v2190 = vld [vmem:[%s2182 + $0x38] sm:$0xff]
      %v2191 = vld [vmem:[%s2182 + $0x50] sm:$0xff]
      %v2192 = vld [vmem:[%s2182 + $0x58] sm:$0xff]
      %v2193 = vld [vmem:[%s2182 + $0x60] sm:$0xff]
      %v2194 = vld [vmem:[%s2182 + $0x68] sm:$0xff]
      %v2195 = vld [vmem:[%s2182 + $0x70] sm:$0xff]
      %v2196 = vld [vmem:[%s2182 + $0x78] sm:$0xff]
      %v2197 = vld [vmem:[%s2182 + $0x80] sm:$0xff]
      %v2198 = vld [vmem:[%s2182 + $0x88] sm:$0xff]
      %v2199 = vld [vmem:[%s2182 + $0xa0] sm:$0xff]
      %v2200 = vld [vmem:[%s2182 + $0xa8] sm:$0xff]
      %v2201 = vld [vmem:[%s2182 + $0xb0] sm:$0xff]
      %v2202 = vld [vmem:[%s2182 + $0xb8] sm:$0xff]
      %v2203 = vld [vmem:[%s2182 + $0xc0] sm:$0xff]
      %v2204 = vld [vmem:[%s2182 + $0xc8] sm:$0xff]
      %v2205 = vld [vmem:[%s2182 + $0xd0] sm:$0xff]
      %v2206 = vld [vmem:[%s2182 + $0xd8] sm:$0xff]
      %v2207 = vld [vmem:[%s2182 + $0xf0] sm:$0xff]
      %v2208 = vld [vmem:[%s2182 + $0xf8] sm:$0xff]
      %v2209 = vld [vmem:[%s2182 + $0x100] sm:$0xff]
      %v2210 = vld [vmem:[%s2182 + $0x108] sm:$0xff]
      %v2211 = vld [vmem:[%s2182 + $0x110] sm:$0xff]
      %v2212 = vld [vmem:[%s2182 + $0x118] sm:$0xff]
      %v2213 = vld [vmem:[%s2182 + $0x120] sm:$0xff]
      %v2214 = vld [vmem:[%s2182 + $0x128] sm:$0xff]
      %v2215 = vlaneseq
      %v2216 = vshrl.u32 %v2215, 7
      %v2217 = vsub.s32 2, %v2216
      %v2218 = vrot.slane %v857, %v2217
      %v2219 = vmul.f32 %v2183, %v2218
      %v2220 = vmul.f32 %v2184, %v2218
      %v2221 = vmul.f32 %v2185, %v2218
      %v2222 = vmul.f32 %v2186, %v2218
      %v2223 = vmul.f32 %v2187, %v2218
      %v2224 = vmul.f32 %v2188, %v2218
      %v2225 = vmul.f32 %v2189, %v2218
      %v2226 = vmul.f32 %v2190, %v2218
      %v2227 = vmul.f32 %v2191, %v2218
      %v2228 = vmul.f32 %v2192, %v2218
      %v2229 = vmul.f32 %v2193, %v2218
      %v2230 = vmul.f32 %v2194, %v2218
      %v2231 = vmul.f32 %v2195, %v2218
      %v2232 = vmul.f32 %v2196, %v2218
      %v2233 = vmul.f32 %v2197, %v2218
      %v2234 = vmul.f32 %v2198, %v2218
      %v2235 = vmul.f32 %v2199, %v2218
      %v2236 = vmul.f32 %v2200, %v2218
      %v2237 = vmul.f32 %v2201, %v2218
      %v2238 = vmul.f32 %v2202, %v2218
      %v2239 = vmul.f32 %v2203, %v2218
      %v2240 = vmul.f32 %v2204, %v2218
      %v2241 = vmul.f32 %v2205, %v2218
      %v2242 = vmul.f32 %v2206, %v2218
      %v2243 = vmul.f32 %v2207, %v2218
      %v2244 = vmul.f32 %v2208, %v2218
      %v2245 = vmul.f32 %v2209, %v2218
      %v2246 = vmul.f32 %v2210, %v2218
      %v2247 = vmul.f32 %v2211, %v2218
      %v2248 = vmul.f32 %v2212, %v2218
      %v2249 = vmul.f32 %v2213, %v2218
      %v2250 = vmul.f32 %v2214, %v2218
      %v2251 = vadd.f32 %v2014, %v2219
      %v2252 = vadd.f32 %v2015, %v2220
      %v2253 = vadd.f32 %v2016, %v2221
      %v2254 = vadd.f32 %v2017, %v2222
      %v2255 = vadd.f32 %v2018, %v2223
      %v2256 = vadd.f32 %v2019, %v2224
      %v2257 = vadd.f32 %v2020, %v2225
      %v2258 = vadd.f32 %v2021, %v2226
      %v2259 = vadd.f32 %v2022, %v2227
      %v2260 = vadd.f32 %v2023, %v2228
      %v2261 = vadd.f32 %v2024, %v2229
      %v2262 = vadd.f32 %v2025, %v2230
      %v2263 = vadd.f32 %v2026, %v2231
      %v2264 = vadd.f32 %v2027, %v2232
      %v2265 = vadd.f32 %v2028, %v2233
      %v2266 = vadd.f32 %v2029, %v2234
      %v2267 = vadd.f32 %v2030, %v2235
      %v2268 = vadd.f32 %v2031, %v2236
      %v2269 = vadd.f32 %v2032, %v2237
      %v2270 = vadd.f32 %v2033, %v2238
      %v2271 = vadd.f32 %v2034, %v2239
      %v2272 = vadd.f32 %v2035, %v2240
      %v2273 = vadd.f32 %v2036, %v2241
      %v2274 = vadd.f32 %v2037, %v2242
      %v2275 = vadd.f32 %v2038, %v2243
      %v2276 = vadd.f32 %v2039, %v2244
      %v2277 = vadd.f32 %v2040, %v2245
      %v2278 = vadd.f32 %v2041, %v2246
      %v2279 = vadd.f32 %v2042, %v2247
      %v2280 = vadd.f32 %v2043, %v2248
      %v2281 = vadd.f32 %v2044, %v2249
      %v2282 = vadd.f32 %v2045, %v2250
      %v2283 = vlaneseq
      %v2284 = vshrl.u32 %v2283, 7
      %v2285 = vsub.s32 3, %v2284
      %v2286 = vrot.slane %v857, %v2285
      %v2287 = vmul.f32 %v2183, %v2286
      %v2288 = vmul.f32 %v2184, %v2286
      %v2289 = vmul.f32 %v2185, %v2286
      %v2290 = vmul.f32 %v2186, %v2286
      %v2291 = vmul.f32 %v2187, %v2286
      %v2292 = vmul.f32 %v2188, %v2286
      %v2293 = vmul.f32 %v2189, %v2286
      %v2294 = vmul.f32 %v2190, %v2286
      %v2295 = vmul.f32 %v2191, %v2286
      %v2296 = vmul.f32 %v2192, %v2286
      %v2297 = vmul.f32 %v2193, %v2286
      %v2298 = vmul.f32 %v2194, %v2286
      %v2299 = vmul.f32 %v2195, %v2286
      %v2300 = vmul.f32 %v2196, %v2286
      %v2301 = vmul.f32 %v2197, %v2286
      %v2302 = vmul.f32 %v2198, %v2286
      %v2303 = vmul.f32 %v2199, %v2286
      %v2304 = vmul.f32 %v2200, %v2286
      %v2305 = vmul.f32 %v2201, %v2286
      %v2306 = vmul.f32 %v2202, %v2286
      %v2307 = vmul.f32 %v2203, %v2286
      %v2308 = vmul.f32 %v2204, %v2286
      %v2309 = vmul.f32 %v2205, %v2286
      %v2310 = vmul.f32 %v2206, %v2286
      %v2311 = vmul.f32 %v2207, %v2286
      %v2312 = vmul.f32 %v2208, %v2286
      %v2313 = vmul.f32 %v2209, %v2286
      %v2314 = vmul.f32 %v2210, %v2286
      %v2315 = vmul.f32 %v2211, %v2286
      %v2316 = vmul.f32 %v2212, %v2286
      %v2317 = vmul.f32 %v2213, %v2286
      %v2318 = vmul.f32 %v2214, %v2286
      %v2319 = vadd.f32 %v2082, %v2287
      %v2320 = vadd.f32 %v2083, %v2288
      %v2321 = vadd.f32 %v2084, %v2289
      %v2322 = vadd.f32 %v2085, %v2290
      %v2323 = vadd.f32 %v2086, %v2291
      %v2324 = vadd.f32 %v2087, %v2292
      %v2325 = vadd.f32 %v2088, %v2293
      %v2326 = vadd.f32 %v2089, %v2294
      %v2327 = vadd.f32 %v2090, %v2295
      %v2328 = vadd.f32 %v2091, %v2296
      %v2329 = vadd.f32 %v2092, %v2297
      %v2330 = vadd.f32 %v2093, %v2298
      %v2331 = vadd.f32 %v2094, %v2299
      %v2332 = vadd.f32 %v2095, %v2300
      %v2333 = vadd.f32 %v2096, %v2301
      %v2334 = vadd.f32 %v2097, %v2302
      %v2335 = vadd.f32 %v2098, %v2303
      %v2336 = vadd.f32 %v2099, %v2304
      %v2337 = vadd.f32 %v2100, %v2305
      %v2338 = vadd.f32 %v2101, %v2306
      %v2339 = vadd.f32 %v2102, %v2307
      %v2340 = vadd.f32 %v2103, %v2308
      %v2341 = vadd.f32 %v2104, %v2309
      %v2342 = vadd.f32 %v2105, %v2310
      %v2343 = vadd.f32 %v2106, %v2311
      %v2344 = vadd.f32 %v2107, %v2312
      %v2345 = vadd.f32 %v2108, %v2313
      %v2346 = vadd.f32 %v2109, %v2314
      %v2347 = vadd.f32 %v2110, %v2315
      %v2348 = vadd.f32 %v2111, %v2316
      %v2349 = vadd.f32 %v2112, %v2317
      %v2350 = vadd.f32 %v2113, %v2318
      %v2351 = vlaneseq
      %v2352 = vshrl.u32 %v2351, 7
      %v2353 = vsub.s32 4, %v2352
      %v2354 = vrot.slane %v857, %v2353
      %v2355 = vmul.f32 %v2183, %v2354
      %v2356 = vmul.f32 %v2184, %v2354
      %v2357 = vmul.f32 %v2185, %v2354
      %v2358 = vmul.f32 %v2186, %v2354
      %v2359 = vmul.f32 %v2187, %v2354
      %v2360 = vmul.f32 %v2188, %v2354
      %v2361 = vmul.f32 %v2189, %v2354
      %v2362 = vmul.f32 %v2190, %v2354
      %v2363 = vmul.f32 %v2191, %v2354
      %v2364 = vmul.f32 %v2192, %v2354
      %v2365 = vmul.f32 %v2193, %v2354
      %v2366 = vmul.f32 %v2194, %v2354
      %v2367 = vmul.f32 %v2195, %v2354
      %v2368 = vmul.f32 %v2196, %v2354
      %v2369 = vmul.f32 %v2197, %v2354
      %v2370 = vmul.f32 %v2198, %v2354
      %v2371 = vmul.f32 %v2199, %v2354
      %v2372 = vmul.f32 %v2200, %v2354
      %v2373 = vmul.f32 %v2201, %v2354
      %v2374 = vmul.f32 %v2202, %v2354
      %v2375 = vmul.f32 %v2203, %v2354
      %v2376 = vmul.f32 %v2204, %v2354
      %v2377 = vmul.f32 %v2205, %v2354
      %v2378 = vmul.f32 %v2206, %v2354
      %v2379 = vmul.f32 %v2207, %v2354
      %v2380 = vmul.f32 %v2208, %v2354
      %v2381 = vmul.f32 %v2209, %v2354
      %v2382 = vmul.f32 %v2210, %v2354
      %v2383 = vmul.f32 %v2211, %v2354
      %v2384 = vmul.f32 %v2212, %v2354
      %v2385 = vmul.f32 %v2213, %v2354
      %v2386 = vmul.f32 %v2214, %v2354
      %v2387 = vadd.f32 %v2150, %v2355
      %v2388 = vadd.f32 %v2151, %v2356
      %v2389 = vadd.f32 %v2152, %v2357
      %v2390 = vadd.f32 %v2153, %v2358
      %v2391 = vadd.f32 %v2154, %v2359
      %v2392 = vadd.f32 %v2155, %v2360
      %v2393 = vadd.f32 %v2156, %v2361
      %v2394 = vadd.f32 %v2157, %v2362
      %v2395 = vadd.f32 %v2158, %v2363
      %v2396 = vadd.f32 %v2159, %v2364
      %v2397 = vadd.f32 %v2160, %v2365
      %v2398 = vadd.f32 %v2161, %v2366
      %v2399 = vadd.f32 %v2162, %v2367
      %v2400 = vadd.f32 %v2163, %v2368
      %v2401 = vadd.f32 %v2164, %v2369
      %v2402 = vadd.f32 %v2165, %v2370
      %v2403 = vadd.f32 %v2166, %v2371
      %v2404 = vadd.f32 %v2167, %v2372
      %v2405 = vadd.f32 %v2168, %v2373
      %v2406 = vadd.f32 %v2169, %v2374
      %v2407 = vadd.f32 %v2170, %v2375
      %v2408 = vadd.f32 %v2171, %v2376
      %v2409 = vadd.f32 %v2172, %v2377
      %v2410 = vadd.f32 %v2173, %v2378
      %v2411 = vadd.f32 %v2174, %v2379
      %v2412 = vadd.f32 %v2175, %v2380
      %v2413 = vadd.f32 %v2176, %v2381
      %v2414 = vadd.f32 %v2177, %v2382
      %v2415 = vadd.f32 %v2178, %v2383
      %v2416 = vadd.f32 %v2179, %v2384
      %v2417 = vadd.f32 %v2180, %v2385
      %v2418 = vadd.f32 %v2181, %v2386
      %s2419 = scalar_lea.vmem [#allocation2], 168
      %v2420 = vld [vmem:[%s2419] sm:$0xff]
      %v2421 = vld [vmem:[%s2419 + $0x8] sm:$0xff]
      %v2422 = vld [vmem:[%s2419 + $0x10] sm:$0xff]
      %v2423 = vld [vmem:[%s2419 + $0x18] sm:$0xff]
      %v2424 = vld [vmem:[%s2419 + $0x20] sm:$0xff]
      %v2425 = vld [vmem:[%s2419 + $0x28] sm:$0xff]
      %v2426 = vld [vmem:[%s2419 + $0x30] sm:$0xff]
      %v2427 = vld [vmem:[%s2419 + $0x38] sm:$0xff]
      %v2428 = vld [vmem:[%s2419 + $0x50] sm:$0xff]
      %v2429 = vld [vmem:[%s2419 + $0x58] sm:$0xff]
      %v2430 = vld [vmem:[%s2419 + $0x60] sm:$0xff]
      %v2431 = vld [vmem:[%s2419 + $0x68] sm:$0xff]
      %v2432 = vld [vmem:[%s2419 + $0x70] sm:$0xff]
      %v2433 = vld [vmem:[%s2419 + $0x78] sm:$0xff]
      %v2434 = vld [vmem:[%s2419 + $0x80] sm:$0xff]
      %v2435 = vld [vmem:[%s2419 + $0x88] sm:$0xff]
      %v2436 = vld [vmem:[%s2419 + $0xa0] sm:$0xff]
      %v2437 = vld [vmem:[%s2419 + $0xa8] sm:$0xff]
      %v2438 = vld [vmem:[%s2419 + $0xb0] sm:$0xff]
      %v2439 = vld [vmem:[%s2419 + $0xb8] sm:$0xff]
      %v2440 = vld [vmem:[%s2419 + $0xc0] sm:$0xff]
      %v2441 = vld [vmem:[%s2419 + $0xc8] sm:$0xff]
      %v2442 = vld [vmem:[%s2419 + $0xd0] sm:$0xff]
      %v2443 = vld [vmem:[%s2419 + $0xd8] sm:$0xff]
      %v2444 = vld [vmem:[%s2419 + $0xf0] sm:$0xff]
      %v2445 = vld [vmem:[%s2419 + $0xf8] sm:$0xff]
      %v2446 = vld [vmem:[%s2419 + $0x100] sm:$0xff]
      %v2447 = vld [vmem:[%s2419 + $0x108] sm:$0xff]
      %v2448 = vld [vmem:[%s2419 + $0x110] sm:$0xff]
      %v2449 = vld [vmem:[%s2419 + $0x118] sm:$0xff]
      %v2450 = vld [vmem:[%s2419 + $0x120] sm:$0xff]
      %v2451 = vld [vmem:[%s2419 + $0x128] sm:$0xff]
      %v2452 = vlaneseq
      %v2453 = vshrl.u32 %v2452, 7
      %v2454 = vsub.s32 5, %v2453
      %v2455 = vrot.slane %v857, %v2454
      %v2456 = vmul.f32 %v2420, %v2455
      %v2457 = vmul.f32 %v2421, %v2455
      %v2458 = vmul.f32 %v2422, %v2455
      %v2459 = vmul.f32 %v2423, %v2455
      %v2460 = vmul.f32 %v2424, %v2455
      %v2461 = vmul.f32 %v2425, %v2455
      %v2462 = vmul.f32 %v2426, %v2455
      %v2463 = vmul.f32 %v2427, %v2455
      %v2464 = vmul.f32 %v2428, %v2455
      %v2465 = vmul.f32 %v2429, %v2455
      %v2466 = vmul.f32 %v2430, %v2455
      %v2467 = vmul.f32 %v2431, %v2455
      %v2468 = vmul.f32 %v2432, %v2455
      %v2469 = vmul.f32 %v2433, %v2455
      %v2470 = vmul.f32 %v2434, %v2455
      %v2471 = vmul.f32 %v2435, %v2455
      %v2472 = vmul.f32 %v2436, %v2455
      %v2473 = vmul.f32 %v2437, %v2455
      %v2474 = vmul.f32 %v2438, %v2455
      %v2475 = vmul.f32 %v2439, %v2455
      %v2476 = vmul.f32 %v2440, %v2455
      %v2477 = vmul.f32 %v2441, %v2455
      %v2478 = vmul.f32 %v2442, %v2455
      %v2479 = vmul.f32 %v2443, %v2455
      %v2480 = vmul.f32 %v2444, %v2455
      %v2481 = vmul.f32 %v2445, %v2455
      %v2482 = vmul.f32 %v2446, %v2455
      %v2483 = vmul.f32 %v2447, %v2455
      %v2484 = vmul.f32 %v2448, %v2455
      %v2485 = vmul.f32 %v2449, %v2455
      %v2486 = vmul.f32 %v2450, %v2455
      %v2487 = vmul.f32 %v2451, %v2455
      %v2488 = vadd.f32 %v2251, %v2456
      %v2489 = vadd.f32 %v2252, %v2457
      %v2490 = vadd.f32 %v2253, %v2458
      %v2491 = vadd.f32 %v2254, %v2459
      %v2492 = vadd.f32 %v2255, %v2460
      %v2493 = vadd.f32 %v2256, %v2461
      %v2494 = vadd.f32 %v2257, %v2462
      %v2495 = vadd.f32 %v2258, %v2463
      %v2496 = vadd.f32 %v2259, %v2464
      %v2497 = vadd.f32 %v2260, %v2465
      %v2498 = vadd.f32 %v2261, %v2466
      %v2499 = vadd.f32 %v2262, %v2467
      %v2500 = vadd.f32 %v2263, %v2468
      %v2501 = vadd.f32 %v2264, %v2469
      %v2502 = vadd.f32 %v2265, %v2470
      %v2503 = vadd.f32 %v2266, %v2471
      %v2504 = vadd.f32 %v2267, %v2472
      %v2505 = vadd.f32 %v2268, %v2473
      %v2506 = vadd.f32 %v2269, %v2474
      %v2507 = vadd.f32 %v2270, %v2475
      %v2508 = vadd.f32 %v2271, %v2476
      %v2509 = vadd.f32 %v2272, %v2477
      %v2510 = vadd.f32 %v2273, %v2478
      %v2511 = vadd.f32 %v2274, %v2479
      %v2512 = vadd.f32 %v2275, %v2480
      %v2513 = vadd.f32 %v2276, %v2481
      %v2514 = vadd.f32 %v2277, %v2482
      %v2515 = vadd.f32 %v2278, %v2483
      %v2516 = vadd.f32 %v2279, %v2484
      %v2517 = vadd.f32 %v2280, %v2485
      %v2518 = vadd.f32 %v2281, %v2486
      %v2519 = vadd.f32 %v2282, %v2487
      %v2520 = vlaneseq
      %v2521 = vshrl.u32 %v2520, 7
      %v2522 = vsub.s32 6, %v2521
      %v2523 = vrot.slane %v857, %v2522
      %v2524 = vmul.f32 %v2420, %v2523
      %v2525 = vmul.f32 %v2421, %v2523
      %v2526 = vmul.f32 %v2422, %v2523
      %v2527 = vmul.f32 %v2423, %v2523
      %v2528 = vmul.f32 %v2424, %v2523
      %v2529 = vmul.f32 %v2425, %v2523
      %v2530 = vmul.f32 %v2426, %v2523
      %v2531 = vmul.f32 %v2427, %v2523
      %v2532 = vmul.f32 %v2428, %v2523
      %v2533 = vmul.f32 %v2429, %v2523
      %v2534 = vmul.f32 %v2430, %v2523
      %v2535 = vmul.f32 %v2431, %v2523
      %v2536 = vmul.f32 %v2432, %v2523
      %v2537 = vmul.f32 %v2433, %v2523
      %v2538 = vmul.f32 %v2434, %v2523
      %v2539 = vmul.f32 %v2435, %v2523
      %v2540 = vmul.f32 %v2436, %v2523
      %v2541 = vmul.f32 %v2437, %v2523
      %v2542 = vmul.f32 %v2438, %v2523
      %v2543 = vmul.f32 %v2439, %v2523
      %v2544 = vmul.f32 %v2440, %v2523
      %v2545 = vmul.f32 %v2441, %v2523
      %v2546 = vmul.f32 %v2442, %v2523
      %v2547 = vmul.f32 %v2443, %v2523
      %v2548 = vmul.f32 %v2444, %v2523
      %v2549 = vmul.f32 %v2445, %v2523
      %v2550 = vmul.f32 %v2446, %v2523
      %v2551 = vmul.f32 %v2447, %v2523
      %v2552 = vmul.f32 %v2448, %v2523
      %v2553 = vmul.f32 %v2449, %v2523
      %v2554 = vmul.f32 %v2450, %v2523
      %v2555 = vmul.f32 %v2451, %v2523
      %v2556 = vadd.f32 %v2319, %v2524
      %v2557 = vadd.f32 %v2320, %v2525
      %v2558 = vadd.f32 %v2321, %v2526
      %v2559 = vadd.f32 %v2322, %v2527
      %v2560 = vadd.f32 %v2323, %v2528
      %v2561 = vadd.f32 %v2324, %v2529
      %v2562 = vadd.f32 %v2325, %v2530
      %v2563 = vadd.f32 %v2326, %v2531
      %v2564 = vadd.f32 %v2327, %v2532
      %v2565 = vadd.f32 %v2328, %v2533
      %v2566 = vadd.f32 %v2329, %v2534
      %v2567 = vadd.f32 %v2330, %v2535
      %v2568 = vadd.f32 %v2331, %v2536
      %v2569 = vadd.f32 %v2332, %v2537
      %v2570 = vadd.f32 %v2333, %v2538
      %v2571 = vadd.f32 %v2334, %v2539
      %v2572 = vadd.f32 %v2335, %v2540
      %v2573 = vadd.f32 %v2336, %v2541
      %v2574 = vadd.f32 %v2337, %v2542
      %v2575 = vadd.f32 %v2338, %v2543
      %v2576 = vadd.f32 %v2339, %v2544
      %v2577 = vadd.f32 %v2340, %v2545
      %v2578 = vadd.f32 %v2341, %v2546
      %v2579 = vadd.f32 %v2342, %v2547
      %v2580 = vadd.f32 %v2343, %v2548
      %v2581 = vadd.f32 %v2344, %v2549
      %v2582 = vadd.f32 %v2345, %v2550
      %v2583 = vadd.f32 %v2346, %v2551
      %v2584 = vadd.f32 %v2347, %v2552
      %v2585 = vadd.f32 %v2348, %v2553
      %v2586 = vadd.f32 %v2349, %v2554
      %v2587 = vadd.f32 %v2350, %v2555
      %v2588 = vlaneseq
      %v2589 = vshrl.u32 %v2588, 7
      %v2590 = vsub.s32 7, %v2589
      %v2591 = vrot.slane %v857, %v2590
      %v2592 = vmul.f32 %v2420, %v2591
      %v2593 = vmul.f32 %v2421, %v2591
      %v2594 = vmul.f32 %v2422, %v2591
      %v2595 = vmul.f32 %v2423, %v2591
      %v2596 = vmul.f32 %v2424, %v2591
      %v2597 = vmul.f32 %v2425, %v2591
      %v2598 = vmul.f32 %v2426, %v2591
      %v2599 = vmul.f32 %v2427, %v2591
      %v2600 = vmul.f32 %v2428, %v2591
      %v2601 = vmul.f32 %v2429, %v2591
      %v2602 = vmul.f32 %v2430, %v2591
      %v2603 = vmul.f32 %v2431, %v2591
      %v2604 = vmul.f32 %v2432, %v2591
      %v2605 = vmul.f32 %v2433, %v2591
      %v2606 = vmul.f32 %v2434, %v2591
      %v2607 = vmul.f32 %v2435, %v2591
      %v2608 = vmul.f32 %v2436, %v2591
      %v2609 = vmul.f32 %v2437, %v2591
      %v2610 = vmul.f32 %v2438, %v2591
      %v2611 = vmul.f32 %v2439, %v2591
      %v2612 = vmul.f32 %v2440, %v2591
      %v2613 = vmul.f32 %v2441, %v2591
      %v2614 = vmul.f32 %v2442, %v2591
      %v2615 = vmul.f32 %v2443, %v2591
      %v2616 = vmul.f32 %v2444, %v2591
      %v2617 = vmul.f32 %v2445, %v2591
      %v2618 = vmul.f32 %v2446, %v2591
      %v2619 = vmul.f32 %v2447, %v2591
      %v2620 = vmul.f32 %v2448, %v2591
      %v2621 = vmul.f32 %v2449, %v2591
      %v2622 = vmul.f32 %v2450, %v2591
      %v2623 = vmul.f32 %v2451, %v2591
      %v2624 = vadd.f32 %v2387, %v2592
      %v2625 = vadd.f32 %v2388, %v2593
      %v2626 = vadd.f32 %v2389, %v2594
      %v2627 = vadd.f32 %v2390, %v2595
      %v2628 = vadd.f32 %v2391, %v2596
      %v2629 = vadd.f32 %v2392, %v2597
      %v2630 = vadd.f32 %v2393, %v2598
      %v2631 = vadd.f32 %v2394, %v2599
      %v2632 = vadd.f32 %v2395, %v2600
      %v2633 = vadd.f32 %v2396, %v2601
      %v2634 = vadd.f32 %v2397, %v2602
      %v2635 = vadd.f32 %v2398, %v2603
      %v2636 = vadd.f32 %v2399, %v2604
      %v2637 = vadd.f32 %v2400, %v2605
      %v2638 = vadd.f32 %v2401, %v2606
      %v2639 = vadd.f32 %v2402, %v2607
      %v2640 = vadd.f32 %v2403, %v2608
      %v2641 = vadd.f32 %v2404, %v2609
      %v2642 = vadd.f32 %v2405, %v2610
      %v2643 = vadd.f32 %v2406, %v2611
      %v2644 = vadd.f32 %v2407, %v2612
      %v2645 = vadd.f32 %v2408, %v2613
      %v2646 = vadd.f32 %v2409, %v2614
      %v2647 = vadd.f32 %v2410, %v2615
      %v2648 = vadd.f32 %v2411, %v2616
      %v2649 = vadd.f32 %v2412, %v2617
      %v2650 = vadd.f32 %v2413, %v2618
      %v2651 = vadd.f32 %v2414, %v2619
      %v2652 = vadd.f32 %v2415, %v2620
      %v2653 = vadd.f32 %v2416, %v2621
      %v2654 = vadd.f32 %v2417, %v2622
      %v2655 = vadd.f32 %v2418, %v2623
      %s2656 = scalar_lea.vmem [#allocation2], 176
      %v2657 = vld [vmem:[%s2656] sm:$0xff]
      %v2658 = vld [vmem:[%s2656 + $0x8] sm:$0xff]
      %v2659 = vld [vmem:[%s2656 + $0x10] sm:$0xff]
      %v2660 = vld [vmem:[%s2656 + $0x18] sm:$0xff]
      %v2661 = vld [vmem:[%s2656 + $0x20] sm:$0xff]
      %v2662 = vld [vmem:[%s2656 + $0x28] sm:$0xff]
      %v2663 = vld [vmem:[%s2656 + $0x30] sm:$0xff]
      %v2664 = vld [vmem:[%s2656 + $0x38] sm:$0xff]
      %v2665 = vld [vmem:[%s2656 + $0x50] sm:$0xff]
      %v2666 = vld [vmem:[%s2656 + $0x58] sm:$0xff]
      %v2667 = vld [vmem:[%s2656 + $0x60] sm:$0xff]
      %v2668 = vld [vmem:[%s2656 + $0x68] sm:$0xff]
      %v2669 = vld [vmem:[%s2656 + $0x70] sm:$0xff]
      %v2670 = vld [vmem:[%s2656 + $0x78] sm:$0xff]
      %v2671 = vld [vmem:[%s2656 + $0x80] sm:$0xff]
      %v2672 = vld [vmem:[%s2656 + $0x88] sm:$0xff]
      %v2673 = vld [vmem:[%s2656 + $0xa0] sm:$0xff]
      %v2674 = vld [vmem:[%s2656 + $0xa8] sm:$0xff]
      %v2675 = vld [vmem:[%s2656 + $0xb0] sm:$0xff]
      %v2676 = vld [vmem:[%s2656 + $0xb8] sm:$0xff]
      %v2677 = vld [vmem:[%s2656 + $0xc0] sm:$0xff]
      %v2678 = vld [vmem:[%s2656 + $0xc8] sm:$0xff]
      %v2679 = vld [vmem:[%s2656 + $0xd0] sm:$0xff]
      %v2680 = vld [vmem:[%s2656 + $0xd8] sm:$0xff]
      %v2681 = vld [vmem:[%s2656 + $0xf0] sm:$0xff]
      %v2682 = vld [vmem:[%s2656 + $0xf8] sm:$0xff]
      %v2683 = vld [vmem:[%s2656 + $0x100] sm:$0xff]
      %v2684 = vld [vmem:[%s2656 + $0x108] sm:$0xff]
      %v2685 = vld [vmem:[%s2656 + $0x110] sm:$0xff]
      %v2686 = vld [vmem:[%s2656 + $0x118] sm:$0xff]
      %v2687 = vld [vmem:[%s2656 + $0x120] sm:$0xff]
      %v2688 = vld [vmem:[%s2656 + $0x128] sm:$0xff]
      %v2689 = vlaneseq
      %v2690 = vshrl.u32 %v2689, 7
      %v2691 = vsub.s32 0, %v2690
      %v2692 = vrot.slane %v858, %v2691
      %v2693 = vmul.f32 %v2657, %v2692
      %v2694 = vmul.f32 %v2658, %v2692
      %v2695 = vmul.f32 %v2659, %v2692
      %v2696 = vmul.f32 %v2660, %v2692
      %v2697 = vmul.f32 %v2661, %v2692
      %v2698 = vmul.f32 %v2662, %v2692
      %v2699 = vmul.f32 %v2663, %v2692
      %v2700 = vmul.f32 %v2664, %v2692
      %v2701 = vmul.f32 %v2665, %v2692
      %v2702 = vmul.f32 %v2666, %v2692
      %v2703 = vmul.f32 %v2667, %v2692
      %v2704 = vmul.f32 %v2668, %v2692
      %v2705 = vmul.f32 %v2669, %v2692
      %v2706 = vmul.f32 %v2670, %v2692
      %v2707 = vmul.f32 %v2671, %v2692
      %v2708 = vmul.f32 %v2672, %v2692
      %v2709 = vmul.f32 %v2673, %v2692
      %v2710 = vmul.f32 %v2674, %v2692
      %v2711 = vmul.f32 %v2675, %v2692
      %v2712 = vmul.f32 %v2676, %v2692
      %v2713 = vmul.f32 %v2677, %v2692
      %v2714 = vmul.f32 %v2678, %v2692
      %v2715 = vmul.f32 %v2679, %v2692
      %v2716 = vmul.f32 %v2680, %v2692
      %v2717 = vmul.f32 %v2681, %v2692
      %v2718 = vmul.f32 %v2682, %v2692
      %v2719 = vmul.f32 %v2683, %v2692
      %v2720 = vmul.f32 %v2684, %v2692
      %v2721 = vmul.f32 %v2685, %v2692
      %v2722 = vmul.f32 %v2686, %v2692
      %v2723 = vmul.f32 %v2687, %v2692
      %v2724 = vmul.f32 %v2688, %v2692
      %v2725 = vadd.f32 %v2488, %v2693
      %v2726 = vadd.f32 %v2489, %v2694
      %v2727 = vadd.f32 %v2490, %v2695
      %v2728 = vadd.f32 %v2491, %v2696
      %v2729 = vadd.f32 %v2492, %v2697
      %v2730 = vadd.f32 %v2493, %v2698
      %v2731 = vadd.f32 %v2494, %v2699
      %v2732 = vadd.f32 %v2495, %v2700
      %v2733 = vadd.f32 %v2496, %v2701
      %v2734 = vadd.f32 %v2497, %v2702
      %v2735 = vadd.f32 %v2498, %v2703
      %v2736 = vadd.f32 %v2499, %v2704
      %v2737 = vadd.f32 %v2500, %v2705
      %v2738 = vadd.f32 %v2501, %v2706
      %v2739 = vadd.f32 %v2502, %v2707
      %v2740 = vadd.f32 %v2503, %v2708
      %v2741 = vadd.f32 %v2504, %v2709
      %v2742 = vadd.f32 %v2505, %v2710
      %v2743 = vadd.f32 %v2506, %v2711
      %v2744 = vadd.f32 %v2507, %v2712
      %v2745 = vadd.f32 %v2508, %v2713
      %v2746 = vadd.f32 %v2509, %v2714
      %v2747 = vadd.f32 %v2510, %v2715
      %v2748 = vadd.f32 %v2511, %v2716
      %v2749 = vadd.f32 %v2512, %v2717
      %v2750 = vadd.f32 %v2513, %v2718
      %v2751 = vadd.f32 %v2514, %v2719
      %v2752 = vadd.f32 %v2515, %v2720
      %v2753 = vadd.f32 %v2516, %v2721
      %v2754 = vadd.f32 %v2517, %v2722
      %v2755 = vadd.f32 %v2518, %v2723
      %v2756 = vadd.f32 %v2519, %v2724
      %v2757 = vlaneseq
      %v2758 = vshrl.u32 %v2757, 7
      %v2759 = vsub.s32 1, %v2758
      %v2760 = vrot.slane %v858, %v2759
      %v2761 = vmul.f32 %v2657, %v2760
      %v2762 = vmul.f32 %v2658, %v2760
      %v2763 = vmul.f32 %v2659, %v2760
      %v2764 = vmul.f32 %v2660, %v2760
      %v2765 = vmul.f32 %v2661, %v2760
      %v2766 = vmul.f32 %v2662, %v2760
      %v2767 = vmul.f32 %v2663, %v2760
      %v2768 = vmul.f32 %v2664, %v2760
      %v2769 = vmul.f32 %v2665, %v2760
      %v2770 = vmul.f32 %v2666, %v2760
      %v2771 = vmul.f32 %v2667, %v2760
      %v2772 = vmul.f32 %v2668, %v2760
      %v2773 = vmul.f32 %v2669, %v2760
      %v2774 = vmul.f32 %v2670, %v2760
      %v2775 = vmul.f32 %v2671, %v2760
      %v2776 = vmul.f32 %v2672, %v2760
      %v2777 = vmul.f32 %v2673, %v2760
      %v2778 = vmul.f32 %v2674, %v2760
      %v2779 = vmul.f32 %v2675, %v2760
      %v2780 = vmul.f32 %v2676, %v2760
      %v2781 = vmul.f32 %v2677, %v2760
      %v2782 = vmul.f32 %v2678, %v2760
      %v2783 = vmul.f32 %v2679, %v2760
      %v2784 = vmul.f32 %v2680, %v2760
      %v2785 = vmul.f32 %v2681, %v2760
      %v2786 = vmul.f32 %v2682, %v2760
      %v2787 = vmul.f32 %v2683, %v2760
      %v2788 = vmul.f32 %v2684, %v2760
      %v2789 = vmul.f32 %v2685, %v2760
      %v2790 = vmul.f32 %v2686, %v2760
      %v2791 = vmul.f32 %v2687, %v2760
      %v2792 = vmul.f32 %v2688, %v2760
      %v2793 = vadd.f32 %v2556, %v2761
      %v2794 = vadd.f32 %v2557, %v2762
      %v2795 = vadd.f32 %v2558, %v2763
      %v2796 = vadd.f32 %v2559, %v2764
      %v2797 = vadd.f32 %v2560, %v2765
      %v2798 = vadd.f32 %v2561, %v2766
      %v2799 = vadd.f32 %v2562, %v2767
      %v2800 = vadd.f32 %v2563, %v2768
      %v2801 = vadd.f32 %v2564, %v2769
      %v2802 = vadd.f32 %v2565, %v2770
      %v2803 = vadd.f32 %v2566, %v2771
      %v2804 = vadd.f32 %v2567, %v2772
      %v2805 = vadd.f32 %v2568, %v2773
      %v2806 = vadd.f32 %v2569, %v2774
      %v2807 = vadd.f32 %v2570, %v2775
      %v2808 = vadd.f32 %v2571, %v2776
      %v2809 = vadd.f32 %v2572, %v2777
      %v2810 = vadd.f32 %v2573, %v2778
      %v2811 = vadd.f32 %v2574, %v2779
      %v2812 = vadd.f32 %v2575, %v2780
      %v2813 = vadd.f32 %v2576, %v2781
      %v2814 = vadd.f32 %v2577, %v2782
      %v2815 = vadd.f32 %v2578, %v2783
      %v2816 = vadd.f32 %v2579, %v2784
      %v2817 = vadd.f32 %v2580, %v2785
      %v2818 = vadd.f32 %v2581, %v2786
      %v2819 = vadd.f32 %v2582, %v2787
      %v2820 = vadd.f32 %v2583, %v2788
      %v2821 = vadd.f32 %v2584, %v2789
      %v2822 = vadd.f32 %v2585, %v2790
      %v2823 = vadd.f32 %v2586, %v2791
      %v2824 = vadd.f32 %v2587, %v2792
      %v2825 = vlaneseq
      %v2826 = vshrl.u32 %v2825, 7
      %v2827 = vsub.s32 2, %v2826
      %v2828 = vrot.slane %v858, %v2827
      %v2829 = vmul.f32 %v2657, %v2828
      %v2830 = vmul.f32 %v2658, %v2828
      %v2831 = vmul.f32 %v2659, %v2828
      %v2832 = vmul.f32 %v2660, %v2828
      %v2833 = vmul.f32 %v2661, %v2828
      %v2834 = vmul.f32 %v2662, %v2828
      %v2835 = vmul.f32 %v2663, %v2828
      %v2836 = vmul.f32 %v2664, %v2828
      %v2837 = vmul.f32 %v2665, %v2828
      %v2838 = vmul.f32 %v2666, %v2828
      %v2839 = vmul.f32 %v2667, %v2828
      %v2840 = vmul.f32 %v2668, %v2828
      %v2841 = vmul.f32 %v2669, %v2828
      %v2842 = vmul.f32 %v2670, %v2828
      %v2843 = vmul.f32 %v2671, %v2828
      %v2844 = vmul.f32 %v2672, %v2828
      %v2845 = vmul.f32 %v2673, %v2828
      %v2846 = vmul.f32 %v2674, %v2828
      %v2847 = vmul.f32 %v2675, %v2828
      %v2848 = vmul.f32 %v2676, %v2828
      %v2849 = vmul.f32 %v2677, %v2828
      %v2850 = vmul.f32 %v2678, %v2828
      %v2851 = vmul.f32 %v2679, %v2828
      %v2852 = vmul.f32 %v2680, %v2828
      %v2853 = vmul.f32 %v2681, %v2828
      %v2854 = vmul.f32 %v2682, %v2828
      %v2855 = vmul.f32 %v2683, %v2828
      %v2856 = vmul.f32 %v2684, %v2828
      %v2857 = vmul.f32 %v2685, %v2828
      %v2858 = vmul.f32 %v2686, %v2828
      %v2859 = vmul.f32 %v2687, %v2828
      %v2860 = vmul.f32 %v2688, %v2828
      %v2861 = vadd.f32 %v2624, %v2829
      %v2862 = vadd.f32 %v2625, %v2830
      %v2863 = vadd.f32 %v2626, %v2831
      %v2864 = vadd.f32 %v2627, %v2832
      %v2865 = vadd.f32 %v2628, %v2833
      %v2866 = vadd.f32 %v2629, %v2834
      %v2867 = vadd.f32 %v2630, %v2835
      %v2868 = vadd.f32 %v2631, %v2836
      %v2869 = vadd.f32 %v2632, %v2837
      %v2870 = vadd.f32 %v2633, %v2838
      %v2871 = vadd.f32 %v2634, %v2839
      %v2872 = vadd.f32 %v2635, %v2840
      %v2873 = vadd.f32 %v2636, %v2841
      %v2874 = vadd.f32 %v2637, %v2842
      %v2875 = vadd.f32 %v2638, %v2843
      %v2876 = vadd.f32 %v2639, %v2844
      %v2877 = vadd.f32 %v2640, %v2845
      %v2878 = vadd.f32 %v2641, %v2846
      %v2879 = vadd.f32 %v2642, %v2847
      %v2880 = vadd.f32 %v2643, %v2848
      %v2881 = vadd.f32 %v2644, %v2849
      %v2882 = vadd.f32 %v2645, %v2850
      %v2883 = vadd.f32 %v2646, %v2851
      %v2884 = vadd.f32 %v2647, %v2852
      %v2885 = vadd.f32 %v2648, %v2853
      %v2886 = vadd.f32 %v2649, %v2854
      %v2887 = vadd.f32 %v2650, %v2855
      %v2888 = vadd.f32 %v2651, %v2856
      %v2889 = vadd.f32 %v2652, %v2857
      %v2890 = vadd.f32 %v2653, %v2858
      %v2891 = vadd.f32 %v2654, %v2859
      %v2892 = vadd.f32 %v2655, %v2860
      %v2925 = vrot.slane %v2725, 7
      %v2926 = vrot.slane %v2726, 7
      %v2927 = vrot.slane %v2727, 7
      %v2928 = vrot.slane %v2728, 7
      %v2929 = vrot.slane %v2729, 7
      %v2930 = vrot.slane %v2730, 7
      %v2931 = vrot.slane %v2731, 7
      %v2932 = vrot.slane %v2732, 7
      %v2933 = vrot.slane %v2733, 7
      %v2934 = vrot.slane %v2734, 7
      %v2935 = vrot.slane %v2735, 7
      %v2936 = vrot.slane %v2736, 7
      %v2937 = vrot.slane %v2737, 7
      %v2938 = vrot.slane %v2738, 7
      %v2939 = vrot.slane %v2739, 7
      %v2940 = vrot.slane %v2740, 7
      %v2941 = vrot.slane %v2741, 7
      %v2942 = vrot.slane %v2742, 7
      %v2943 = vrot.slane %v2743, 7
      %v2944 = vrot.slane %v2744, 7
      %v2945 = vrot.slane %v2745, 7
      %v2946 = vrot.slane %v2746, 7
      %v2947 = vrot.slane %v2747, 7
      %v2948 = vrot.slane %v2748, 7
      %v2949 = vrot.slane %v2749, 7
      %v2950 = vrot.slane %v2750, 7
      %v2951 = vrot.slane %v2751, 7
      %v2952 = vrot.slane %v2752, 7
      %v2953 = vrot.slane %v2753, 7
      %v2954 = vrot.slane %v2754, 7
      %v2955 = vrot.slane %v2755, 7
      %v2956 = vrot.slane %v2756, 7
      %vm2989 = vcmask 1040384
      %v2990 = vsel %vm2989, 0.0, %v2925
      %v2991 = vsel %vm2989, 0.0, %v2926
      %v2992 = vsel %vm2989, 0.0, %v2927
      %v2993 = vsel %vm2989, 0.0, %v2928
      %v2994 = vsel %vm2989, 0.0, %v2929
      %v2995 = vsel %vm2989, 0.0, %v2930
      %v2996 = vsel %vm2989, 0.0, %v2931
      %v2997 = vsel %vm2989, 0.0, %v2932
      %v2998 = vsel %vm2989, 0.0, %v2933
      %v2999 = vsel %vm2989, 0.0, %v2934
      %v3000 = vsel %vm2989, 0.0, %v2935
      %v3001 = vsel %vm2989, 0.0, %v2936
      %v3002 = vsel %vm2989, 0.0, %v2937
      %v3003 = vsel %vm2989, 0.0, %v2938
      %v3004 = vsel %vm2989, 0.0, %v2939
      %v3005 = vsel %vm2989, 0.0, %v2940
      %v3006 = vsel %vm2989, 0.0, %v2941
      %v3007 = vsel %vm2989, 0.0, %v2942
      %v3008 = vsel %vm2989, 0.0, %v2943
      %v3009 = vsel %vm2989, 0.0, %v2944
      %v3010 = vsel %vm2989, 0.0, %v2945
      %v3011 = vsel %vm2989, 0.0, %v2946
      %v3012 = vsel %vm2989, 0.0, %v2947
      %v3013 = vsel %vm2989, 0.0, %v2948
      %v3014 = vsel %vm2989, 0.0, %v2949
      %v3015 = vsel %vm2989, 0.0, %v2950
      %v3016 = vsel %vm2989, 0.0, %v2951
      %v3017 = vsel %vm2989, 0.0, %v2952
      %v3018 = vsel %vm2989, 0.0, %v2953
      %v3019 = vsel %vm2989, 0.0, %v2954
      %v3020 = vsel %vm2989, 0.0, %v2955
      %v3021 = vsel %vm2989, 0.0, %v2956
      %v3054 = vrot.slane %v2861, 1
      %v3055 = vrot.slane %v2862, 1
      %v3056 = vrot.slane %v2863, 1
      %v3057 = vrot.slane %v2864, 1
      %v3058 = vrot.slane %v2865, 1
      %v3059 = vrot.slane %v2866, 1
      %v3060 = vrot.slane %v2867, 1
      %v3061 = vrot.slane %v2868, 1
      %v3062 = vrot.slane %v2869, 1
      %v3063 = vrot.slane %v2870, 1
      %v3064 = vrot.slane %v2871, 1
      %v3065 = vrot.slane %v2872, 1
      %v3066 = vrot.slane %v2873, 1
      %v3067 = vrot.slane %v2874, 1
      %v3068 = vrot.slane %v2875, 1
      %v3069 = vrot.slane %v2876, 1
      %v3070 = vrot.slane %v2877, 1
      %v3071 = vrot.slane %v2878, 1
      %v3072 = vrot.slane %v2879, 1
      %v3073 = vrot.slane %v2880, 1
      %v3074 = vrot.slane %v2881, 1
      %v3075 = vrot.slane %v2882, 1
      %v3076 = vrot.slane %v2883, 1
      %v3077 = vrot.slane %v2884, 1
      %v3078 = vrot.slane %v2885, 1
      %v3079 = vrot.slane %v2886, 1
      %v3080 = vrot.slane %v2887, 1
      %v3081 = vrot.slane %v2888, 1
      %v3082 = vrot.slane %v2889, 1
      %v3083 = vrot.slane %v2890, 1
      %v3084 = vrot.slane %v2891, 1
      %v3085 = vrot.slane %v2892, 1
      %vm3118 = vcmask 1046528
      %v3119 = vsel %vm3118, %v3054, 0.0
      %v3120 = vsel %vm3118, %v3055, 0.0
      %v3121 = vsel %vm3118, %v3056, 0.0
      %v3122 = vsel %vm3118, %v3057, 0.0
      %v3123 = vsel %vm3118, %v3058, 0.0
      %v3124 = vsel %vm3118, %v3059, 0.0
      %v3125 = vsel %vm3118, %v3060, 0.0
      %v3126 = vsel %vm3118, %v3061, 0.0
      %v3127 = vsel %vm3118, %v3062, 0.0
      %v3128 = vsel %vm3118, %v3063, 0.0
      %v3129 = vsel %vm3118, %v3064, 0.0
      %v3130 = vsel %vm3118, %v3065, 0.0
      %v3131 = vsel %vm3118, %v3066, 0.0
      %v3132 = vsel %vm3118, %v3067, 0.0
      %v3133 = vsel %vm3118, %v3068, 0.0
      %v3134 = vsel %vm3118, %v3069, 0.0
      %v3135 = vsel %vm3118, %v3070, 0.0
      %v3136 = vsel %vm3118, %v3071, 0.0
      %v3137 = vsel %vm3118, %v3072, 0.0
      %v3138 = vsel %vm3118, %v3073, 0.0
      %v3139 = vsel %vm3118, %v3074, 0.0
      %v3140 = vsel %vm3118, %v3075, 0.0
      %v3141 = vsel %vm3118, %v3076, 0.0
      %v3142 = vsel %vm3118, %v3077, 0.0
      %v3143 = vsel %vm3118, %v3078, 0.0
      %v3144 = vsel %vm3118, %v3079, 0.0
      %v3145 = vsel %vm3118, %v3080, 0.0
      %v3146 = vsel %vm3118, %v3081, 0.0
      %v3147 = vsel %vm3118, %v3082, 0.0
      %v3148 = vsel %vm3118, %v3083, 0.0
      %v3149 = vsel %vm3118, %v3084, 0.0
      %v3150 = vsel %vm3118, %v3085, 0.0
      %v3151 = vadd.f32 %v2793, %v2990
      %v3152 = vadd.f32 %v2794, %v2991
      %v3153 = vadd.f32 %v2795, %v2992
      %v3154 = vadd.f32 %v2796, %v2993
      %v3155 = vadd.f32 %v2797, %v2994
      %v3156 = vadd.f32 %v2798, %v2995
      %v3157 = vadd.f32 %v2799, %v2996
      %v3158 = vadd.f32 %v2800, %v2997
      %v3159 = vadd.f32 %v2801, %v2998
      %v3160 = vadd.f32 %v2802, %v2999
      %v3161 = vadd.f32 %v2803, %v3000
      %v3162 = vadd.f32 %v2804, %v3001
      %v3163 = vadd.f32 %v2805, %v3002
      %v3164 = vadd.f32 %v2806, %v3003
      %v3165 = vadd.f32 %v2807, %v3004
      %v3166 = vadd.f32 %v2808, %v3005
      %v3167 = vadd.f32 %v2809, %v3006
      %v3168 = vadd.f32 %v2810, %v3007
      %v3169 = vadd.f32 %v2811, %v3008
      %v3170 = vadd.f32 %v2812, %v3009
      %v3171 = vadd.f32 %v2813, %v3010
      %v3172 = vadd.f32 %v2814, %v3011
      %v3173 = vadd.f32 %v2815, %v3012
      %v3174 = vadd.f32 %v2816, %v3013
      %v3175 = vadd.f32 %v2817, %v3014
      %v3176 = vadd.f32 %v2818, %v3015
      %v3177 = vadd.f32 %v2819, %v3016
      %v3178 = vadd.f32 %v2820, %v3017
      %v3179 = vadd.f32 %v2821, %v3018
      %v3180 = vadd.f32 %v2822, %v3019
      %v3181 = vadd.f32 %v2823, %v3020
      %v3182 = vadd.f32 %v2824, %v3021
      %v3183 = vadd.f32 %v3151, %v3119
      %v3184 = vadd.f32 %v3152, %v3120
      %v3185 = vadd.f32 %v3153, %v3121
      %v3186 = vadd.f32 %v3154, %v3122
      %v3187 = vadd.f32 %v3155, %v3123
      %v3188 = vadd.f32 %v3156, %v3124
      %v3189 = vadd.f32 %v3157, %v3125
      %v3190 = vadd.f32 %v3158, %v3126
      %v3191 = vadd.f32 %v3159, %v3127
      %v3192 = vadd.f32 %v3160, %v3128
      %v3193 = vadd.f32 %v3161, %v3129
      %v3194 = vadd.f32 %v3162, %v3130
      %v3195 = vadd.f32 %v3163, %v3131
      %v3196 = vadd.f32 %v3164, %v3132
      %v3197 = vadd.f32 %v3165, %v3133
      %v3198 = vadd.f32 %v3166, %v3134
      %v3199 = vadd.f32 %v3167, %v3135
      %v3200 = vadd.f32 %v3168, %v3136
      %v3201 = vadd.f32 %v3169, %v3137
      %v3202 = vadd.f32 %v3170, %v3138
      %v3203 = vadd.f32 %v3171, %v3139
      %v3204 = vadd.f32 %v3172, %v3140
      %v3205 = vadd.f32 %v3173, %v3141
      %v3206 = vadd.f32 %v3174, %v3142
      %v3207 = vadd.f32 %v3175, %v3143
      %v3208 = vadd.f32 %v3176, %v3144
      %v3209 = vadd.f32 %v3177, %v3145
      %v3210 = vadd.f32 %v3178, %v3146
      %v3211 = vadd.f32 %v3179, %v3147
      %v3212 = vadd.f32 %v3180, %v3148
      %v3213 = vadd.f32 %v3181, %v3149
      %v3214 = vadd.f32 %v3182, %v3150
      %v3215 = vpack.c.bf16 %v3184, %v3183
      %v3216 = vpack.c.bf16 %v3186, %v3185
      %v3217 = vpack.c.bf16 %v3188, %v3187
      %v3218 = vpack.c.bf16 %v3190, %v3189
      %v3219 = vpack.c.bf16 %v3192, %v3191
      %v3220 = vpack.c.bf16 %v3194, %v3193
      %v3221 = vpack.c.bf16 %v3196, %v3195
      %v3222 = vpack.c.bf16 %v3198, %v3197
      %v3223 = vpack.c.bf16 %v3200, %v3199
      %v3224 = vpack.c.bf16 %v3202, %v3201
      %v3225 = vpack.c.bf16 %v3204, %v3203
      %v3226 = vpack.c.bf16 %v3206, %v3205
      %v3227 = vpack.c.bf16 %v3208, %v3207
      %v3228 = vpack.c.bf16 %v3210, %v3209
      %v3229 = vpack.c.bf16 %v3212, %v3211
      %v3230 = vpack.c.bf16 %v3214, %v3213
      %v3231 = vld [vmem:[%s7] sm:$0xf]
      %v3233 = vsel %vm790, %v3215, 0
      %v3236 = vsel %vm790, %v3216, 0
      %v3239 = vsel %vm790, %v3217, 0
      %v3242 = vsel %vm790, %v3218, 0
      %v3245 = vsel %vm790, %v3219, 0
      %v3248 = vsel %vm790, %v3220, 0
      %v3251 = vsel %vm790, %v3221, 0
      %v3254 = vsel %vm790, %v3222, 0
      %v3257 = vsel %vm790, %v3223, 0
      %v3260 = vsel %vm790, %v3224, 0
      %v3263 = vsel %vm790, %v3225, 0
      %v3266 = vsel %vm790, %v3226, 0
      %v3269 = vsel %vm790, %v3227, 0
      %v3272 = vsel %vm790, %v3228, 0
      %v3275 = vsel %vm790, %v3229, 0
      %v3278 = vsel %vm790, %v3230, 0
      %vm3280 = vcmask 1043456
      %v3282 = vsel %vm3280, %v3231, 0
      %3284 = vmatprep.subr.bf16.mxu0 0
      %3285 = vmatpush1.bf16.msra.mxu0 %v3282
      %3286 = vmatprep.subr.bf16.mxu0 0
      %3287 = vmatpush1.bf16.msra.mxu0 0
      %3288 = vmatprep.subr.bf16.mxu0 0
      %3289 = vmatpush1.bf16.msra.mxu0 0
      %3290 = vmatprep.subr.bf16.mxu0 0
      %3291 = vmatpush1.bf16.msra.mxu0 0
      %3292 = vmatprep.subr.bf16.mxu0 0
      %3293 = vmatpush1.bf16.msra.mxu0 0
      %3294 = vmatprep.subr.bf16.mxu0 0
      %3295 = vmatpush1.bf16.msra.mxu0 0
      %3296 = vmatprep.subr.bf16.mxu0 0
      %3297 = vmatpush1.bf16.msra.mxu0 0
      %3298 = vmatprep.subr.bf16.mxu0 0
      %3299 = vmatpush1.bf16.msra.mxu0 0
      %3300 = vmatprep.subr.bf16.mxu0 0
      %3301 = vmatpush1.bf16.msra.mxu0 0
      %3302 = vmatprep.subr.bf16.mxu0 0
      %3303 = vmatpush1.bf16.msra.mxu0 0
      %3304 = vmatprep.subr.bf16.mxu0 0
      %3305 = vmatpush1.bf16.msra.mxu0 0
      %3306 = vmatprep.subr.bf16.mxu0 0
      %3307 = vmatpush1.bf16.msra.mxu0 0
      %3308 = vmatprep.subr.bf16.mxu0 0
      %3309 = vmatpush1.bf16.msra.mxu0 0
      %3310 = vmatprep.subr.bf16.mxu0 0
      %3311 = vmatpush1.bf16.msra.mxu0 0
      %3312 = vmatprep.subr.bf16.mxu0 0
      %3313 = vmatpush1.bf16.msra.mxu0 0
      %3314 = vmatprep.subr.bf16.mxu0 0
      %3315 = vmatpush1.bf16.msra.mxu0 0
      %3316 = vmatprep.mubr.bf16.mxu0 0
      %3317 = vmatmul.mubr.bf16.gmra.mrb[0].mxu0 %v3233
      %v3318 = vpop.f32.mrb[0].mxu0
      %v3319 = vadd.f32 0.0, %v3318
      %v3320 = vpop.f32.mrb[0].mxu0
      %v3321 = vpop.f32.mrb[0].mxu0
      %v3322 = vadd.f32 0.0, %v3321
      %v3323 = vpop.f32.mrb[0].mxu0
      %3324 = vmatprep.mubr.bf16.mxu0 0
      %3325 = vmatmul.mubr.bf16.gmra.mrb[0].mxu0 %v3236
      %v3326 = vpop.f32.mrb[0].mxu0
      %v3327 = vadd.f32 0.0, %v3326
      %v3328 = vpop.f32.mrb[0].mxu0
      %v3329 = vpop.f32.mrb[0].mxu0
      %v3330 = vadd.f32 0.0, %v3329
      %v3331 = vpop.f32.mrb[0].mxu0
      %3332 = vmatprep.mubr.bf16.mxu0 0
      %3333 = vmatmul.mubr.bf16.gmra.mrb[0].mxu0 %v3239
      %v3334 = vpop.f32.mrb[0].mxu0
      %v3335 = vadd.f32 0.0, %v3334
      %v3336 = vpop.f32.mrb[0].mxu0
      %v3337 = vpop.f32.mrb[0].mxu0
      %v3338 = vadd.f32 0.0, %v3337
      %v3339 = vpop.f32.mrb[0].mxu0
      %3340 = vmatprep.mubr.bf16.mxu0 0
      %3341 = vmatmul.mubr.bf16.gmra.mrb[0].mxu0 %v3242
      %v3342 = vpop.f32.mrb[0].mxu0
      %v3343 = vadd.f32 0.0, %v3342
      %v3344 = vpop.f32.mrb[0].mxu0
      %v3345 = vpop.f32.mrb[0].mxu0
      %v3346 = vadd.f32 0.0, %v3345
      %v3347 = vpop.f32.mrb[0].mxu0
      %3348 = vmatprep.mubr.bf16.mxu0 0
      %3349 = vmatmul.mubr.bf16.gmra.mrb[0].mxu0 %v3245
      %v3350 = vpop.f32.mrb[0].mxu0
      %v3351 = vadd.f32 0.0, %v3350
      %v3352 = vpop.f32.mrb[0].mxu0
      %v3353 = vpop.f32.mrb[0].mxu0
      %v3354 = vadd.f32 0.0, %v3353
      %v3355 = vpop.f32.mrb[0].mxu0
      %3356 = vmatprep.mubr.bf16.mxu0 0
      %3357 = vmatmul.mubr.bf16.gmra.mrb[0].mxu0 %v3248
      %v3358 = vpop.f32.mrb[0].mxu0
      %v3359 = vadd.f32 0.0, %v3358
      %v3360 = vpop.f32.mrb[0].mxu0
      %v3361 = vpop.f32.mrb[0].mxu0
      %v3362 = vadd.f32 0.0, %v3361
      %v3363 = vpop.f32.mrb[0].mxu0
      %3364 = vmatprep.mubr.bf16.mxu0 0
      %3365 = vmatmul.mubr.bf16.gmra.mrb[0].mxu0 %v3251
      %v3366 = vpop.f32.mrb[0].mxu0
      %v3367 = vadd.f32 0.0, %v3366
      %v3368 = vpop.f32.mrb[0].mxu0
      %v3369 = vpop.f32.mrb[0].mxu0
      %v3370 = vadd.f32 0.0, %v3369
      %v3371 = vpop.f32.mrb[0].mxu0
      %3372 = vmatprep.mubr.bf16.mxu0 0
      %3373 = vmatmul.mubr.bf16.gmra.mrb[0].mxu0 %v3254
      %v3374 = vpop.f32.mrb[0].mxu0
      %v3375 = vadd.f32 0.0, %v3374
      %v3376 = vpop.f32.mrb[0].mxu0
      %v3377 = vpop.f32.mrb[0].mxu0
      %v3378 = vadd.f32 0.0, %v3377
      %v3379 = vpop.f32.mrb[0].mxu0
      %3380 = vmatprep.mubr.bf16.mxu0 0
      %3381 = vmatmul.mubr.bf16.gmra.mrb[0].mxu0 %v3257
      %v3382 = vpop.f32.mrb[0].mxu0
      %v3383 = vadd.f32 0.0, %v3382
      %v3384 = vpop.f32.mrb[0].mxu0
      %v3385 = vpop.f32.mrb[0].mxu0
      %v3386 = vadd.f32 0.0, %v3385
      %v3387 = vpop.f32.mrb[0].mxu0
      %3388 = vmatprep.mubr.bf16.mxu0 0
      %3389 = vmatmul.mubr.bf16.gmra.mrb[0].mxu0 %v3260
      %v3390 = vpop.f32.mrb[0].mxu0
      %v3391 = vadd.f32 0.0, %v3390
      %v3392 = vpop.f32.mrb[0].mxu0
      %v3393 = vpop.f32.mrb[0].mxu0
      %v3394 = vadd.f32 0.0, %v3393
      %v3395 = vpop.f32.mrb[0].mxu0
      %3396 = vmatprep.mubr.bf16.mxu0 0
      %3397 = vmatmul.mubr.bf16.gmra.mrb[0].mxu0 %v3263
      %v3398 = vpop.f32.mrb[0].mxu0
      %v3399 = vadd.f32 0.0, %v3398
      %v3400 = vpop.f32.mrb[0].mxu0
      %v3401 = vpop.f32.mrb[0].mxu0
      %v3402 = vadd.f32 0.0, %v3401
      %v3403 = vpop.f32.mrb[0].mxu0
      %3404 = vmatprep.mubr.bf16.mxu0 0
      %3405 = vmatmul.mubr.bf16.gmra.mrb[0].mxu0 %v3266
      %v3406 = vpop.f32.mrb[0].mxu0
      %v3407 = vadd.f32 0.0, %v3406
      %v3408 = vpop.f32.mrb[0].mxu0
      %v3409 = vpop.f32.mrb[0].mxu0
      %v3410 = vadd.f32 0.0, %v3409
      %v3411 = vpop.f32.mrb[0].mxu0
      %3412 = vmatprep.mubr.bf16.mxu0 0
      %3413 = vmatmul.mubr.bf16.gmra.mrb[0].mxu0 %v3269
      %v3414 = vpop.f32.mrb[0].mxu0
      %v3415 = vadd.f32 0.0, %v3414
      %v3416 = vpop.f32.mrb[0].mxu0
      %v3417 = vpop.f32.mrb[0].mxu0
      %v3418 = vadd.f32 0.0, %v3417
      %v3419 = vpop.f32.mrb[0].mxu0
      %3420 = vmatprep.mubr.bf16.mxu0 0
      %3421 = vmatmul.mubr.bf16.gmra.mrb[0].mxu0 %v3272
      %v3422 = vpop.f32.mrb[0].mxu0
      %v3423 = vadd.f32 0.0, %v3422
      %v3424 = vpop.f32.mrb[0].mxu0
      %v3425 = vpop.f32.mrb[0].mxu0
      %v3426 = vadd.f32 0.0, %v3425
      %v3427 = vpop.f32.mrb[0].mxu0
      %3428 = vmatprep.mubr.bf16.mxu0 0
      %3429 = vmatmul.mubr.bf16.gmra.mrb[0].mxu0 %v3275
      %v3430 = vpop.f32.mrb[0].mxu0
      %v3431 = vadd.f32 0.0, %v3430
      %v3432 = vpop.f32.mrb[0].mxu0
      %v3433 = vpop.f32.mrb[0].mxu0
      %v3434 = vadd.f32 0.0, %v3433
      %v3435 = vpop.f32.mrb[0].mxu0
      %3436 = vmatprep.mubr.bf16.mxu0 0
      %3437 = vmatmul.mubr.bf16.gmra.mrb[0].mxu0 %v3278
      %v3438 = vpop.f32.mrb[0].mxu0
      %v3439 = vadd.f32 0.0, %v3438
      %v3440 = vpop.f32.mrb[0].mxu0
      %v3441 = vpop.f32.mrb[0].mxu0
      %v3442 = vadd.f32 0.0, %v3441
      %v3443 = vpop.f32.mrb[0].mxu0
      %3444 = vdwg.mxu0
      %3445 = vst.msk [vmem:[%s305] sm:$0xff] %vm466, %v307
      %3446 = vst.msk [vmem:[%s305 + $0x8] sm:$0xff] %vm466, %v308
      %3447 = vst.msk [vmem:[%s305 + $0x10] sm:$0xff] %vm466, %v309
      %3448 = vst.msk [vmem:[%s305 + $0x18] sm:$0xff] %vm466, %v310
      %3449 = vst.msk [vmem:[%s305 + $0x20] sm:$0xff] %vm466, %v311
      %3450 = vst.msk [vmem:[%s305 + $0x28] sm:$0xff] %vm466, %v312
      %3451 = vst.msk [vmem:[%s305 + $0x30] sm:$0xff] %vm466, %v313
      %3452 = vst.msk [vmem:[%s305 + $0x38] sm:$0xff] %vm466, %v314
      %3453 = vst.msk [vmem:[%s305 + $0x40] sm:$0xff] %vm466, %v315
      %3454 = vst.msk [vmem:[%s305 + $0x48] sm:$0xff] %vm466, %v316
      %3455 = vst.msk [vmem:[%s305 + $0x50] sm:$0xff] %vm466, %v317
      %3456 = vst.msk [vmem:[%s305 + $0x58] sm:$0xff] %vm466, %v318
      %3457 = vst.msk [vmem:[%s305 + $0x60] sm:$0xff] %vm466, %v319
      %3458 = vst.msk [vmem:[%s305 + $0x68] sm:$0xff] %vm466, %v320
      %3459 = vst.msk [vmem:[%s305 + $0x70] sm:$0xff] %vm466, %v321
      %3460 = vst.msk [vmem:[%s305 + $0x78] sm:$0xff] %vm466, %v322
      %3461 = vst.msk [vmem:[%s305 + $0x80] sm:$0xff] %vm466, %v323
      %3462 = vst.msk [vmem:[%s305 + $0x88] sm:$0xff] %vm466, %v324
      %3463 = vst.msk [vmem:[%s305 + $0x90] sm:$0xff] %vm466, %v325
      %3464 = vst.msk [vmem:[%s305 + $0x98] sm:$0xff] %vm466, %v326
      %3465 = vst.msk [vmem:[%s305 + $0xa0] sm:$0xff] %vm466, %v327
      %3466 = vst.msk [vmem:[%s305 + $0xa8] sm:$0xff] %vm466, %v328
      %3467 = vst.msk [vmem:[%s305 + $0xb0] sm:$0xff] %vm466, %v329
      %3468 = vst.msk [vmem:[%s305 + $0xb8] sm:$0xff] %vm466, %v330
      %3469 = vst.msk [vmem:[%s305 + $0xc0] sm:$0xff] %vm466, %v331
      %3470 = vst.msk [vmem:[%s305 + $0xc8] sm:$0xff] %vm466, %v332
      %3471 = vst.msk [vmem:[%s305 + $0xd0] sm:$0xff] %vm466, %v333
      %3472 = vst.msk [vmem:[%s305 + $0xd8] sm:$0xff] %vm466, %v334
      %3473 = vst.msk [vmem:[%s305 + $0xe0] sm:$0xff] %vm466, %v335
      %3474 = vst.msk [vmem:[%s305 + $0xe8] sm:$0xff] %vm466, %v336
      %3475 = vst.msk [vmem:[%s305 + $0xf0] sm:$0xff] %vm466, %v337
      %3476 = vst.msk [vmem:[%s305 + $0xf8] sm:$0xff] %vm466, %v338
      %3509 = vrot.lane.b32.xlu0 %v3319, 4
      %v3510 = vpop.permute.xlu0 %3509
      %3511 = vrot.lane.b32.xlu0 %v3322, 4
      %v3512 = vpop.permute.xlu0 %3511
      %3513 = vrot.lane.b32.xlu0 %v3327, 4
      %v3514 = vpop.permute.xlu0 %3513
      %3515 = vrot.lane.b32.xlu0 %v3330, 4
      %v3516 = vpop.permute.xlu0 %3515
      %3517 = vrot.lane.b32.xlu0 %v3335, 4
      %v3518 = vpop.permute.xlu0 %3517
      %3519 = vrot.lane.b32.xlu0 %v3338, 4
      %v3520 = vpop.permute.xlu0 %3519
      %3521 = vrot.lane.b32.xlu0 %v3343, 4
      %v3522 = vpop.permute.xlu0 %3521
      %3523 = vrot.lane.b32.xlu0 %v3346, 4
      %v3524 = vpop.permute.xlu0 %3523
      %3525 = vrot.lane.b32.xlu0 %v3351, 4
      %v3526 = vpop.permute.xlu0 %3525
      %3527 = vrot.lane.b32.xlu0 %v3354, 4
      %v3528 = vpop.permute.xlu0 %3527
      %3529 = vrot.lane.b32.xlu0 %v3359, 4
      %v3530 = vpop.permute.xlu0 %3529
      %3531 = vrot.lane.b32.xlu0 %v3362, 4
      %v3532 = vpop.permute.xlu0 %3531
      %3533 = vrot.lane.b32.xlu0 %v3367, 4
      %v3534 = vpop.permute.xlu0 %3533
      %3535 = vrot.lane.b32.xlu0 %v3370, 4
      %v3536 = vpop.permute.xlu0 %3535
      %3537 = vrot.lane.b32.xlu0 %v3375, 4
      %v3538 = vpop.permute.xlu0 %3537
      %3539 = vrot.lane.b32.xlu0 %v3378, 4
      %v3540 = vpop.permute.xlu0 %3539
      %3541 = vrot.lane.b32.xlu0 %v3383, 4
      %v3542 = vpop.permute.xlu0 %3541
      %3543 = vrot.lane.b32.xlu0 %v3386, 4
      %v3544 = vpop.permute.xlu0 %3543
      %3545 = vrot.lane.b32.xlu0 %v3391, 4
      %v3546 = vpop.permute.xlu0 %3545
      %3547 = vrot.lane.b32.xlu0 %v3394, 4
      %v3548 = vpop.permute.xlu0 %3547
      %3549 = vrot.lane.b32.xlu0 %v3399, 4
      %v3550 = vpop.permute.xlu0 %3549
      %3551 = vrot.lane.b32.xlu0 %v3402, 4
      %v3552 = vpop.permute.xlu0 %3551
      %3553 = vrot.lane.b32.xlu0 %v3407, 4
      %v3554 = vpop.permute.xlu0 %3553
      %3555 = vrot.lane.b32.xlu0 %v3410, 4
      %v3556 = vpop.permute.xlu0 %3555
      %3557 = vrot.lane.b32.xlu0 %v3415, 4
      %v3558 = vpop.permute.xlu0 %3557
      %3559 = vrot.lane.b32.xlu0 %v3418, 4
      %v3560 = vpop.permute.xlu0 %3559
      %3561 = vrot.lane.b32.xlu0 %v3423, 4
      %v3562 = vpop.permute.xlu0 %3561
      %3563 = vrot.lane.b32.xlu0 %v3426, 4
      %v3564 = vpop.permute.xlu0 %3563
      %3565 = vrot.lane.b32.xlu0 %v3431, 4
      %v3566 = vpop.permute.xlu0 %3565
      %3567 = vrot.lane.b32.xlu0 %v3434, 4
      %v3568 = vpop.permute.xlu0 %3567
      %3569 = vrot.lane.b32.xlu0 %v3439, 4
      %v3570 = vpop.permute.xlu0 %3569
      %3571 = vrot.lane.b32.xlu0 %v3442, 4
      %v3572 = vpop.permute.xlu0 %3571
      %vm3605 = vcmask 64544
      %3606 = vst.msk [vmem:[%s305] sm:$0xff] %vm3605, %v3510
      %3607 = vst.msk [vmem:[%s305 + $0x8] sm:$0xff] %vm3605, %v3512
      %3608 = vst.msk [vmem:[%s305 + $0x10] sm:$0xff] %vm3605, %v3514
      %3609 = vst.msk [vmem:[%s305 + $0x18] sm:$0xff] %vm3605, %v3516
      %3610 = vst.msk [vmem:[%s305 + $0x20] sm:$0xff] %vm3605, %v3518
      %3611 = vst.msk [vmem:[%s305 + $0x28] sm:$0xff] %vm3605, %v3520
      %3612 = vst.msk [vmem:[%s305 + $0x30] sm:$0xff] %vm3605, %v3522
      %3613 = vst.msk [vmem:[%s305 + $0x38] sm:$0xff] %vm3605, %v3524
      %3614 = vst.msk [vmem:[%s305 + $0x40] sm:$0xff] %vm3605, %v3526
      %3615 = vst.msk [vmem:[%s305 + $0x48] sm:$0xff] %vm3605, %v3528
      %3616 = vst.msk [vmem:[%s305 + $0x50] sm:$0xff] %vm3605, %v3530
      %3617 = vst.msk [vmem:[%s305 + $0x58] sm:$0xff] %vm3605, %v3532
      %3618 = vst.msk [vmem:[%s305 + $0x60] sm:$0xff] %vm3605, %v3534
      %3619 = vst.msk [vmem:[%s305 + $0x68] sm:$0xff] %vm3605, %v3536
      %3620 = vst.msk [vmem:[%s305 + $0x70] sm:$0xff] %vm3605, %v3538
      %3621 = vst.msk [vmem:[%s305 + $0x78] sm:$0xff] %vm3605, %v3540
      %3622 = vst.msk [vmem:[%s305 + $0x80] sm:$0xff] %vm3605, %v3542
      %3623 = vst.msk [vmem:[%s305 + $0x88] sm:$0xff] %vm3605, %v3544
      %3624 = vst.msk [vmem:[%s305 + $0x90] sm:$0xff] %vm3605, %v3546
      %3625 = vst.msk [vmem:[%s305 + $0x98] sm:$0xff] %vm3605, %v3548
      %3626 = vst.msk [vmem:[%s305 + $0xa0] sm:$0xff] %vm3605, %v3550
      %3627 = vst.msk [vmem:[%s305 + $0xa8] sm:$0xff] %vm3605, %v3552
      %3628 = vst.msk [vmem:[%s305 + $0xb0] sm:$0xff] %vm3605, %v3554
      %3629 = vst.msk [vmem:[%s305 + $0xb8] sm:$0xff] %vm3605, %v3556
      %3630 = vst.msk [vmem:[%s305 + $0xc0] sm:$0xff] %vm3605, %v3558
      %3631 = vst.msk [vmem:[%s305 + $0xc8] sm:$0xff] %vm3605, %v3560
      %3632 = vst.msk [vmem:[%s305 + $0xd0] sm:$0xff] %vm3605, %v3562
      %3633 = vst.msk [vmem:[%s305 + $0xd8] sm:$0xff] %vm3605, %v3564
      %3634 = vst.msk [vmem:[%s305 + $0xe0] sm:$0xff] %vm3605, %v3566
      %3635 = vst.msk [vmem:[%s305 + $0xe8] sm:$0xff] %vm3605, %v3568
      %3636 = vst.msk [vmem:[%s305 + $0xf0] sm:$0xff] %vm3605, %v3570
      %3637 = vst.msk [vmem:[%s305 + $0xf8] sm:$0xff] %vm3605, %v3572
      %p3638 = scmp.lt.s32.totalorder %s19, 1
      %s3639 = scalar_select %p3638, %s19, 1
      %s3640 = smul.addr %s3639, 32
      %s3641 = smul.addr %s3640, 8
      %s3642 = scalar_lea.vmem %s8, %s3641
      // Predicated region
      $region53: #{_lambda_.2} parent=51 // pred_check
        %p3643 = pneg %p210
      $region54: #{_lambda_.2} parent=51 // pred_check_branch
        %3645 = sbr.rel (%p3643) target = $region56
      $region55: #{_lambda_.2} parent=51 // pred_region
        _
      $region56: #{_lambda_.2} parent=51 // pred_fallthru
        _
    $region52: #{_lambda_.2} parent=5 // pred_fallthru
      _
    %p3646 = scmp.le.s32.totalorder 2, %s14
    // Predicated region
    $region57: #{_lambda_.2} parent=5 // pred_check
      %p3647 = pneg %p3646
    $region58: #{_lambda_.2} parent=5 // pred_check_branch
      %3649 = sbr.rel (%p3647) target = $region60
    $region59: #{_lambda_.2} parent=5 // pred_region
      %s3650 = ssub.s32 %s14, 2
      // Predicated region
      $region61: #{_lambda_.2} parent=59 // pred_check
        %p3651 = pneg %p216
      $region62: #{_lambda_.2} parent=59 // pred_check_branch
        %3653 = sbr.rel (%p3651) target = $region64
      $region63: #{_lambda_.2} parent=59 // pred_region
        %p3654 = scmp.lt.s32.totalorder %s20, 1
        %s3655 = scalar_select %p3654, %s20, 1
        %s3656 = smul.addr %s3655, 32
        %s3657 = smul.addr %s3656, 8
        %s3658 = scalar_lea.vmem %s8, %s3657
      $region64: #{_lambda_.2} parent=59 // pred_fallthru
        _
    $region60: #{_lambda_.2} parent=5 // pred_fallthru
      _
  $region6: #{_lambda_.2} parent=0 // loop_footer
    %s18 = sadd.s32 1, %s14
  $region7: #{_lambda_.2} parent=0 // loop_footer_branch
    %13 = sbr.rel target = $region3
  $region8: #{_lambda_.2} parent=0 // loop_exit
    _

</llo_original>
